<compile_context>
chip_gen: v6e
topology: v6e:2x2x1
jax: 0.10.0
libtpu: 0.0.40
codegen_flags: <defaults>
</compile_context>

<pallas_src>
import jax
import jax.numpy as jnp
from jax.experimental import pallas as pl
from jax.experimental.pallas import tpu as pltpu

T_SIZE = 64 * 64 * 3   # N0 = 12288
N0 = T_SIZE
N1 = 50
N2 = 30
NOUT = 5


def _cdiv(a, b):
    return -(-a // b)


def _round_up(n, m):
    return _cdiv(n, m) * m


def _vmem_cap_bytes():
    # Physical VMEM per TensorCore.  Fallback is v7x's 64 MiB (the smallest of
    # v5e/v6e/v7x) so the budget is always safe even if the query is missing.
    try:
        cap = int(pltpu.get_tpu_info().vmem_capacity_bytes)
        if cap > 0:
            return cap
    except Exception:
        pass
    return 64 << 20


def mlp_kernel(x_ref, w1_ref, b1_ref, w2_ref, b2_ref, w3_ref, b3_ref, o_ref):
    # Whole hot path (3 matmuls + biases + ReLUs) on one batch tile.
    # Hidden dims (50, 30, 5) are tiny and stay full-width.
    x = x_ref[...]                                               # [tm, N0], x.dtype
    h1 = jnp.dot(x, w1_ref[...], preferred_element_type=jnp.float32)
    h1 = jnp.maximum(h1 + b1_ref[...], 0.0)
    h2 = jnp.dot(h1, w2_ref[...], preferred_element_type=jnp.float32)
    h2 = jnp.maximum(h2 + b2_ref[...], 0.0)
    out = jnp.dot(h2, w3_ref[...], preferred_element_type=jnp.float32)
    o_ref[...] = (out + b3_ref[...]).astype(o_ref.dtype)


def net_forward(x, params, *, tm_max=512, min_tiles=4, vmem_limit_bytes=None):
    """Fused 3-layer MLP forward.

    x: [B, N0] float32 or bfloat16.  The first (HBM-bound) matmul streams x
    and W1 in x.dtype and accumulates in f32 -- supply bf16 x from the
    producer for ~2x less HBM traffic (casting here would re-read/write x).
    """
    B = x.shape[0]
    assert x.shape[1] == N0, f"expected x[:, {N0}], got {x.shape}"
    cdt = x.dtype
    w1 = params["w1"].astype(cdt)   # tiny one-time cast; other layers stay f32
    b1, w2, b2, w3, b3 = (params[k] for k in ("b1", "w2", "b2", "w3", "b3"))

    x_item = jnp.dtype(cdt).itemsize
    # VMEM footprint model: double-buffered x tile + output tile (5 lanes pad
    # to 128) scale with tm; resident weights/biases counted (conservatively)
    # as double-buffered.
    per_row = 2 * (N0 * x_item + 128 * 4)
    fixed = 2 * (N0 * N1 * x_item + 4 * (N1 + N1 * N2 + N2 + N2 * NOUT + NOUT))
    cap = _vmem_cap_bytes()

    # Tile selection: fit under VMEM, respect tm_max, size to the batch (no
    # dead rows beyond rounding to 8), and keep >= min_tiles grid steps so the
    # pipeline overlaps DMA/compute and both v7x TCs get work.
    budget = max(cap - (8 << 20) - fixed, 8 * per_row)
    tm_fit = max(8, (budget // per_row) // 8 * 8)
    tm_cap = max(8, min(int(tm_max), int(tm_fit)))
    n_tiles = max(_cdiv(B, tm_cap), min(int(min_tiles), _cdiv(B, 8)), 1)
    tm = int(min(_round_up(_cdiv(B, n_tiles), 8), _round_up(tm_cap, 8)))

    # Ragged last block: no jnp.pad of x.  Rows are independent, so the
    # undefined tail rows of the last input block are harmless, and OOB
    # output writes are masked by Pallas.
    grid = (_cdiv(B, tm),)

    if vmem_limit_bytes is None:
        vmem_limit_bytes = fixed + per_row * tm + (4 << 20)
        vmem_limit_bytes = max(vmem_limit_bytes, 16 << 20)
        vmem_limit_bytes = min(vmem_limit_bytes, cap - (2 << 20))

    out = pl.pallas_call(
        mlp_kernel,
        out_shape=jax.ShapeDtypeStruct((B, NOUT), jnp.float32),
        grid_spec=pltpu.PrefetchScalarGridSpec(
            num_scalar_prefetch=0,
            grid=grid,
            in_specs=[
                pl.BlockSpec((tm, N0), lambda i: (i, 0)),     # x tile: the HBM stream
                pl.BlockSpec((N0, N1), lambda i: (0, 0)),     # W1 (resident)
                pl.BlockSpec((1, N1), lambda i: (0, 0)),      # b1
                pl.BlockSpec((N1, N2), lambda i: (0, 0)),     # W2
                pl.BlockSpec((1, N2), lambda i: (0, 0)),      # b2
                pl.BlockSpec((N2, NOUT), lambda i: (0, 0)),   # W3
                pl.BlockSpec((1, NOUT), lambda i: (0, 0)),    # b3
            ],
            out_specs=pl.BlockSpec((tm, NOUT), lambda i: (i, 0)),
        ),
        compiler_params=pltpu.CompilerParams(
            dimension_semantics=("parallel",),   # batch tiles shard across TCs (v7x)
            vmem_limit_bytes=int(vmem_limit_bytes),
        ),
    )(x, w1, b1, w2, b2, w3, b3)

    return out


def init_params(key):
    """Deterministic init mimicking nn.Linear's U(-1/sqrt(fan_in), 1/sqrt(fan_in)).
    Weights are stored as [in_features, out_features] (transposed vs PyTorch)."""
    ks = jax.random.split(key, 6)

    def lin(kw, kb, fan_in, fan_out):
        bound = 1.0 / jnp.sqrt(fan_in)
        w = jax.random.uniform(kw, (fan_in, fan_out), jnp.float32, -bound, bound)
        b = jax.random.uniform(kb, (1, fan_out), jnp.float32, -bound, bound)
        return w, b

    w1, b1 = lin(ks[0], ks[1], N0, N1)
    w2, b2 = lin(ks[2], ks[3], N1, N2)
    w3, b3 = lin(ks[4], ks[5], N2, NOUT)
    return dict(w1=w1, b1=b1, w2=w2, b2=b2, w3=w3, b3=b3)


def net_forward_ref(x, p, compute_dtype=jnp.float32):
    """Pure-JAX reference; `compute_dtype` controls the first-layer input dtype."""
    w1 = p["w1"].astype(compute_dtype)
    h1 = jnp.dot(x.astype(compute_dtype), w1, preferred_element_type=jnp.float32)
    h1 = jnp.maximum(h1 + p["b1"], 0.0)
    h2 = jnp.maximum(h1 @ p["w2"] + p["b2"], 0.0)
    return h2 @ p["w3"] + p["b3"]


if __name__ == "__main__":
    key = jax.random.PRNGKey(0)
    kx, kp = jax.random.split(key)

    # Small batch, not a multiple of 8: exercises the ragged-tail (no-pad) path.
    B = 44
    x_f32 = jax.random.normal(kx, (B, N0), dtype=jnp.float32)
    params = init_params(kp)

    # Producer-side cast: in a real pipeline x should already arrive as bf16 so
    # the kernel's HBM stream is half-width without an extra cast pass.
    x_bf16 = x_f32.astype(jnp.bfloat16)

    # (1) default config: several tiles + ragged last block.
    out1 = jax.block_until_ready(net_forward(x_bf16, params))
    # (2) single big ragged tile (min_tiles=1).
    out2 = jax.block_until_ready(net_forward(x_bf16, params, tm_max=512, min_tiles=1))

    ref_match = net_forward_ref(x_bf16, params, compute_dtype=jnp.bfloat16)  # matched precision
    ref_f32 = net_forward_ref(x_f32, params, compute_dtype=jnp.float32)      # PyTorch-style f32

    for out in (out1, out2):
        assert out.shape == (B, NOUT)
        assert jnp.allclose(out, ref_match, atol=1e-3, rtol=1e-3), "mismatch vs matched-precision ref"
        assert jnp.allclose(out, ref_f32, atol=5e-2, rtol=5e-2), "mismatch vs f32 reference"

    print("KERNEL_OK")
</pallas_src>

<mosaic_0001>
module attributes {stable_mosaic.version = 11 : i64} {
  func.func @mlp_kernel(%arg0: i32, %arg1: memref<16x12288xbf16, #tpu.memory_space<vmem>>, %arg2: memref<12288x50xbf16, #tpu.memory_space<vmem>>, %arg3: memref<1x50xf32, #tpu.memory_space<vmem>>, %arg4: memref<50x30xf32, #tpu.memory_space<vmem>>, %arg5: memref<1x30xf32, #tpu.memory_space<vmem>>, %arg6: memref<30x5xf32, #tpu.memory_space<vmem>>, %arg7: memref<1x5xf32, #tpu.memory_space<vmem>>, %arg8: memref<16x5xf32, #tpu.memory_space<vmem>>) attributes {dimension_semantics = [#tpu.dimension_semantics<parallel>], iteration_bounds = array<i64: 3>, scalar_prefetch = 0 : i64, scratch_operands = 0 : i64, tpu.core_type = #tpu.core_type<tc>, window_params = [{transform_indices = @transform_0, window_bounds = array<i64: 16, 12288>}, {pipeline_mode = #tpu.pipeline_mode<synchronous>, transform_indices = @transform_1, window_bounds = array<i64: 12288, 50>}, {pipeline_mode = #tpu.pipeline_mode<synchronous>, transform_indices = @transform_2, window_bounds = array<i64: 1, 50>}, {pipeline_mode = #tpu.pipeline_mode<synchronous>, transform_indices = @transform_3, window_bounds = array<i64: 50, 30>}, {pipeline_mode = #tpu.pipeline_mode<synchronous>, transform_indices = @transform_4, window_bounds = array<i64: 1, 30>}, {pipeline_mode = #tpu.pipeline_mode<synchronous>, transform_indices = @transform_5, window_bounds = array<i64: 30, 5>}, {pipeline_mode = #tpu.pipeline_mode<synchronous>, transform_indices = @transform_6, window_bounds = array<i64: 1, 5>}, {transform_indices = @transform_7, window_bounds = array<i64: 16, 5>}]} {
    %c0 = arith.constant 0 : index
    %c0_0 = arith.constant 0 : index
    %0 = vector.load %arg1[%c0, %c0_0] : memref<16x12288xbf16, #tpu.memory_space<vmem>>, vector<16x12288xbf16>
    %c0_1 = arith.constant 0 : index
    %c0_2 = arith.constant 0 : index
    %1 = vector.load %arg2[%c0_1, %c0_2] : memref<12288x50xbf16, #tpu.memory_space<vmem>>, vector<12288x50xbf16>
    %cst = arith.constant dense<0.000000e+00> : vector<16x50xf32>
    %2 = tpu.matmul %0, %1, %cst {dimension_numbers = #tpu.dot_dimension_numbers<[1], [0], [0], [1], [0, 0, 1, 1], [], []>} : vector<16x12288xbf16>, vector<12288x50xbf16>, vector<16x50xf32> -> vector<16x50xf32>
    %c0_3 = arith.constant 0 : index
    %c0_4 = arith.constant 0 : index
    %3 = vector.load %arg3[%c0_3, %c0_4] : memref<1x50xf32, #tpu.memory_space<vmem>>, vector<1x50xf32>
    %4 = vector.broadcast %3 : vector<1x50xf32> to vector<16x50xf32>
    %5 = arith.addf %2, %4 : vector<16x50xf32>
    %cst_5 = arith.constant 0.000000e+00 : f32
    %6 = vector.broadcast %cst_5 : f32 to vector<16x50xf32>
    %7 = arith.maximumf %5, %6 : vector<16x50xf32>
    %c0_6 = arith.constant 0 : index
    %c0_7 = arith.constant 0 : index
    %8 = vector.load %arg4[%c0_6, %c0_7] : memref<50x30xf32, #tpu.memory_space<vmem>>, vector<50x30xf32>
    %cst_8 = arith.constant dense<0.000000e+00> : vector<16x30xf32>
    %9 = tpu.matmul %7, %8, %cst_8 {dimension_numbers = #tpu.dot_dimension_numbers<[1], [0], [0], [1], [0, 0, 1, 1], [], []>} : vector<16x50xf32>, vector<50x30xf32>, vector<16x30xf32> -> vector<16x30xf32>
    %c0_9 = arith.constant 0 : index
    %c0_10 = arith.constant 0 : index
    %10 = vector.load %arg5[%c0_9, %c0_10] : memref<1x30xf32, #tpu.memory_space<vmem>>, vector<1x30xf32>
    %11 = vector.broadcast %10 : vector<1x30xf32> to vector<16x30xf32>
    %12 = arith.addf %9, %11 : vector<16x30xf32>
    %cst_11 = arith.constant 0.000000e+00 : f32
    %13 = vector.broadcast %cst_11 : f32 to vector<16x30xf32>
    %14 = arith.maximumf %12, %13 : vector<16x30xf32>
    %c0_12 = arith.constant 0 : index
    %c0_13 = arith.constant 0 : index
    %15 = vector.load %arg6[%c0_12, %c0_13] : memref<30x5xf32, #tpu.memory_space<vmem>>, vector<30x5xf32>
    %cst_14 = arith.constant dense<0.000000e+00> : vector<16x5xf32>
    %16 = tpu.matmul %14, %15, %cst_14 {dimension_numbers = #tpu.dot_dimension_numbers<[1], [0], [0], [1], [0, 0, 1, 1], [], []>} : vector<16x30xf32>, vector<30x5xf32>, vector<16x5xf32> -> vector<16x5xf32>
    %c0_15 = arith.constant 0 : index
    %c0_16 = arith.constant 0 : index
    %17 = vector.load %arg7[%c0_15, %c0_16] : memref<1x5xf32, #tpu.memory_space<vmem>>, vector<1x5xf32>
    %18 = vector.broadcast %17 : vector<1x5xf32> to vector<16x5xf32>
    %19 = arith.addf %16, %18 : vector<16x5xf32>
    %c0_17 = arith.constant 0 : index
    %c0_18 = arith.constant 0 : index
    %20 = vector.load %arg8[%c0_17, %c0_18] : memref<16x5xf32, #tpu.memory_space<vmem>>, vector<16x5xf32>
    tpu.vector_store %arg8[%c0_17, %c0_18], %19 {strides = array<i32>} : memref<16x5xf32, #tpu.memory_space<vmem>>, vector<16x5xf32>,
    return
  }
  func.func @transform_0(%arg0: i32) -> (i32, i32) {
    %c0_i32 = arith.constant 0 : i32
    %c0_i32_0 = arith.constant 0 : i32
    return %arg0, %c0_i32 : i32, i32
  }
  func.func @transform_1(%arg0: i32) -> (i32, i32) {
    %c0_i32 = arith.constant 0 : i32
    %c0_i32_0 = arith.constant 0 : i32
    %c0_i32_1 = arith.constant 0 : i32
    return %c0_i32, %c0_i32_0 : i32, i32
  }
  func.func @transform_2(%arg0: i32) -> (i32, i32) {
    %c0_i32 = arith.constant 0 : i32
    %c0_i32_0 = arith.constant 0 : i32
    %c0_i32_1 = arith.constant 0 : i32
    return %c0_i32, %c0_i32_0 : i32, i32
  }
  func.func @transform_3(%arg0: i32) -> (i32, i32) {
    %c0_i32 = arith.constant 0 : i32
    %c0_i32_0 = arith.constant 0 : i32
    %c0_i32_1 = arith.constant 0 : i32
    return %c0_i32, %c0_i32_0 : i32, i32
  }
  func.func @transform_4(%arg0: i32) -> (i32, i32) {
    %c0_i32 = arith.constant 0 : i32
    %c0_i32_0 = arith.constant 0 : i32
    %c0_i32_1 = arith.constant 0 : i32
    return %c0_i32, %c0_i32_0 : i32, i32
  }
  func.func @transform_5(%arg0: i32) -> (i32, i32) {
    %c0_i32 = arith.constant 0 : i32
    %c0_i32_0 = arith.constant 0 : i32
    %c0_i32_1 = arith.constant 0 : i32
    return %c0_i32, %c0_i32_0 : i32, i32
  }
  func.func @transform_6(%arg0: i32) -> (i32, i32) {
    %c0_i32 = arith.constant 0 : i32
    %c0_i32_0 = arith.constant 0 : i32
    %c0_i32_1 = arith.constant 0 : i32
    return %c0_i32, %c0_i32_0 : i32, i32
  }
  func.func @transform_7(%arg0: i32) -> (i32, i32) {
    %c0_i32 = arith.constant 0 : i32
    %c0_i32_0 = arith.constant 0 : i32
    return %arg0, %c0_i32 : i32, i32
  }
}

</mosaic_0001>

<llo_original>
// kernel: tpu_custom_call.1
$region0: #{tpu_custom_call.1}
  #allocation0 [shape = 'u32[]', space=smem, size = 0x4, offset = 0x4, fixed_abs, tag = 'smem constant byte address 0x4 - core index']
  #allocation1 [shape = 'u32[144,128]{1,0:T(1,128)}', space=vmem, size = 0x12000, scoped, tag = 'internal scratch']
  %s0 = inlined_call_operand.vmem [shape: bf16[44,12288], index: 0, kind: input, shape index: {}]
  %s1 = inlined_call_operand.vmem [shape: bf16[12288,50], index: 1, kind: input, shape index: {}]
  %s2 = inlined_call_operand.vmem [shape: f32[1,50], index: 2, kind: input, shape index: {}]
  %s3 = inlined_call_operand.vmem [shape: f32[50,30], index: 3, kind: input, shape index: {}]
  %s4 = inlined_call_operand.vmem [shape: f32[1,30], index: 4, kind: input, shape index: {}]
  %s5 = inlined_call_operand.vmem [shape: f32[30,5], index: 5, kind: input, shape index: {}]
  %s6 = inlined_call_operand.vmem [shape: f32[1,5], index: 6, kind: input, shape index: {}]
  %s7 = inlined_call_operand.vmem [shape: f32[44,5], index: 7, kind: output, shape index: {}]
  %s8 = sld [smem:[#allocation0]]
  $region61: #{tpu_custom_call.1} parent=0
    _
  %s10 = ssub.s32 1, %s8
  %s11 = scalar_select 0, %s10, %s8
  loop: start=0, step=1, limit=5
  $region2: #{tpu_custom_call.1} parent=0 // loop_pre_header
    _
  $region3: #{tpu_custom_call.1} parent=0 // loop_header
    %s13 = sphi 0, %s17
    %p14 = scmp.ge.s32.totalorder %s13, 5
    %s23 = sphi 0, %s25
    %s26 = sphi 0, %s23
    %s27 = sphi 0, %s26
    %s43 = sphi 0, %s27
    %s47 = sphi 0, %s47
    %s49 = sphi 0, %s47
    %s50 = sphi 0, %s49
    %s64 = sphi 0, %s50
    %s68 = sphi 0, %s68
    %s70 = sphi 0, %s68
    %s71 = sphi 0, %s70
    %s85 = sphi 0, %s71
    %s89 = sphi 0, %s89
    %s91 = sphi 0, %s89
    %s92 = sphi 0, %s91
    %s106 = sphi 0, %s92
    %s110 = sphi 0, %s110
    %s112 = sphi 0, %s110
    %s113 = sphi 0, %s112
    %s127 = sphi 0, %s113
    %s131 = sphi 0, %s131
    %s133 = sphi 0, %s131
    %s134 = sphi 0, %s133
    %s148 = sphi 0, %s134
    %s152 = sphi 0, %s152
    %s154 = sphi 0, %s152
    %s155 = sphi 0, %s154
    %s169 = sphi 0, %s155
    %s175 = sphi 0, %s177
    %s178 = sphi 0, %s175
    %s179 = sphi 0, %s178
    %s195 = sphi 0, %s179
  $region4: #{tpu_custom_call.1} parent=0 // loop_header_branch
    %16 = sbr.rel (%p14) target = $region8
  $region5: #{tpu_custom_call.1} parent=0 // loop_body
    %s18 = ssub.s32 %s13, 1
    %s19 = ssub.s32 %s13, 2
    %s20 = sadd.s32 %s13, 1
    %s21 = ssub.s32 %s13, %s20
    %p22 = scmp.eq.s32.totalorder %s21, 0
    %s24 = sadd.s32 %s23, 1
    %s25 = scalar_select %p22, %s23, %s24
    %p28 = pneg %p22
    %p29 = scmp.eq.s32.totalorder %s13, 2
    %p30 = por %p28, %p29
    %p31 = scmp.ne.s32.totalorder %s23, %s26
    %p32 = scmp.eq.s32.totalorder %s13, 0
    %p33 = por %p31, %p32
    %p34 = scmp.ne.s32.totalorder %s23, %s26
    %p35 = scmp.eq.s32.totalorder %s18, 2
    %p36 = por %p34, %p35
    %p37 = scmp.ne.s32.totalorder %s26, %s27
    %p38 = scmp.eq.s32.totalorder %s18, 0
    %p39 = por %p37, %p38
    %p40 = scmp.ne.s32.totalorder %s26, %s27
    %p41 = scmp.eq.s32.totalorder %s19, 2
    %p42 = por %p40, %p41
    %p44 = scmp.ne.s32.totalorder %s27, %s43
    %p45 = scmp.eq.s32.totalorder %s19, 0
    %p46 = por %p44, %p45
    %s48 = sadd.s32 %s47, 1
    %p51 = scmp.eq.s32.totalorder %s13, 2
    %p52 = scmp.ne.s32.totalorder %s47, %s49
    %p53 = scmp.eq.s32.totalorder %s13, 0
    %p54 = por %p52, %p53
    %p55 = scmp.ne.s32.totalorder %s47, %s49
    %p56 = scmp.eq.s32.totalorder %s18, 2
    %p57 = por %p55, %p56
    %p58 = scmp.ne.s32.totalorder %s49, %s50
    %p59 = scmp.eq.s32.totalorder %s18, 0
    %p60 = por %p58, %p59
    %p61 = scmp.ne.s32.totalorder %s49, %s50
    %p62 = scmp.eq.s32.totalorder %s19, 2
    %p63 = por %p61, %p62
    %p65 = scmp.ne.s32.totalorder %s50, %s64
    %p66 = scmp.eq.s32.totalorder %s19, 0
    %p67 = por %p65, %p66
    %s69 = sadd.s32 %s68, 1
    %p72 = scmp.eq.s32.totalorder %s13, 2
    %p73 = scmp.ne.s32.totalorder %s68, %s70
    %p74 = scmp.eq.s32.totalorder %s13, 0
    %p75 = por %p73, %p74
    %p76 = scmp.ne.s32.totalorder %s68, %s70
    %p77 = scmp.eq.s32.totalorder %s18, 2
    %p78 = por %p76, %p77
    %p79 = scmp.ne.s32.totalorder %s70, %s71
    %p80 = scmp.eq.s32.totalorder %s18, 0
    %p81 = por %p79, %p80
    %p82 = scmp.ne.s32.totalorder %s70, %s71
    %p83 = scmp.eq.s32.totalorder %s19, 2
    %p84 = por %p82, %p83
    %p86 = scmp.ne.s32.totalorder %s71, %s85
    %p87 = scmp.eq.s32.totalorder %s19, 0
    %p88 = por %p86, %p87
    %s90 = sadd.s32 %s89, 1
    %p93 = scmp.eq.s32.totalorder %s13, 2
    %p94 = scmp.ne.s32.totalorder %s89, %s91
    %p95 = scmp.eq.s32.totalorder %s13, 0
    %p96 = por %p94, %p95
    %p97 = scmp.ne.s32.totalorder %s89, %s91
    %p98 = scmp.eq.s32.totalorder %s18, 2
    %p99 = por %p97, %p98
    %p100 = scmp.ne.s32.totalorder %s91, %s92
    %p101 = scmp.eq.s32.totalorder %s18, 0
    %p102 = por %p100, %p101
    %p103 = scmp.ne.s32.totalorder %s91, %s92
    %p104 = scmp.eq.s32.totalorder %s19, 2
    %p105 = por %p103, %p104
    %p107 = scmp.ne.s32.totalorder %s92, %s106
    %p108 = scmp.eq.s32.totalorder %s19, 0
    %p109 = por %p107, %p108
    %s111 = sadd.s32 %s110, 1
    %p114 = scmp.eq.s32.totalorder %s13, 2
    %p115 = scmp.ne.s32.totalorder %s110, %s112
    %p116 = scmp.eq.s32.totalorder %s13, 0
    %p117 = por %p115, %p116
    %p118 = scmp.ne.s32.totalorder %s110, %s112
    %p119 = scmp.eq.s32.totalorder %s18, 2
    %p120 = por %p118, %p119
    %p121 = scmp.ne.s32.totalorder %s112, %s113
    %p122 = scmp.eq.s32.totalorder %s18, 0
    %p123 = por %p121, %p122
    %p124 = scmp.ne.s32.totalorder %s112, %s113
    %p125 = scmp.eq.s32.totalorder %s19, 2
    %p126 = por %p124, %p125
    %p128 = scmp.ne.s32.totalorder %s113, %s127
    %p129 = scmp.eq.s32.totalorder %s19, 0
    %p130 = por %p128, %p129
    %s132 = sadd.s32 %s131, 1
    %p135 = scmp.eq.s32.totalorder %s13, 2
    %p136 = scmp.ne.s32.totalorder %s131, %s133
    %p137 = scmp.eq.s32.totalorder %s13, 0
    %p138 = por %p136, %p137
    %p139 = scmp.ne.s32.totalorder %s131, %s133
    %p140 = scmp.eq.s32.totalorder %s18, 2
    %p141 = por %p139, %p140
    %p142 = scmp.ne.s32.totalorder %s133, %s134
    %p143 = scmp.eq.s32.totalorder %s18, 0
    %p144 = por %p142, %p143
    %p145 = scmp.ne.s32.totalorder %s133, %s134
    %p146 = scmp.eq.s32.totalorder %s19, 2
    %p147 = por %p145, %p146
    %p149 = scmp.ne.s32.totalorder %s134, %s148
    %p150 = scmp.eq.s32.totalorder %s19, 0
    %p151 = por %p149, %p150
    %s153 = sadd.s32 %s152, 1
    %p156 = scmp.eq.s32.totalorder %s13, 2
    %p157 = scmp.ne.s32.totalorder %s152, %s154
    %p158 = scmp.eq.s32.totalorder %s13, 0
    %p159 = por %p157, %p158
    %p160 = scmp.ne.s32.totalorder %s152, %s154
    %p161 = scmp.eq.s32.totalorder %s18, 2
    %p162 = por %p160, %p161
    %p163 = scmp.ne.s32.totalorder %s154, %s155
    %p164 = scmp.eq.s32.totalorder %s18, 0
    %p165 = por %p163, %p164
    %p166 = scmp.ne.s32.totalorder %s154, %s155
    %p167 = scmp.eq.s32.totalorder %s19, 2
    %p168 = por %p166, %p167
    %p170 = scmp.ne.s32.totalorder %s155, %s169
    %p171 = scmp.eq.s32.totalorder %s19, 0
    %p172 = por %p170, %p171
    %s173 = ssub.s32 %s13, %s20
    %p174 = scmp.eq.s32.totalorder %s173, 0
    %s176 = sadd.s32 %s175, 1
    %s177 = scalar_select %p174, %s175, %s176
    %p180 = pneg %p174
    %p181 = scmp.eq.s32.totalorder %s13, 2
    %p182 = por %p180, %p181
    %p183 = scmp.ne.s32.totalorder %s175, %s178
    %p184 = scmp.eq.s32.totalorder %s13, 0
    %p185 = por %p183, %p184
    %p186 = scmp.ne.s32.totalorder %s175, %s178
    %p187 = scmp.eq.s32.totalorder %s18, 2
    %p188 = por %p186, %p187
    %p189 = scmp.ne.s32.totalorder %s178, %s179
    %p190 = scmp.eq.s32.totalorder %s18, 0
    %p191 = por %p189, %p190
    %p192 = scmp.ne.s32.totalorder %s178, %s179
    %p193 = scmp.eq.s32.totalorder %s19, 2
    %p194 = por %p192, %p193
    %p196 = scmp.ne.s32.totalorder %s179, %s195
    %p197 = scmp.eq.s32.totalorder %s19, 0
    %p198 = por %p196, %p197
    %p199 = scmp.le.s32.totalorder 1, %s13
    %p200 = scmp.lt.s32.totalorder %s13, 4
    %p201 = pnand %p199, %p200
    %p202 = pneg %p201
    // Predicated region
    $region9: #{tpu_custom_call.1} parent=5 // pred_check
      _
    $region10: #{tpu_custom_call.1} parent=5 // pred_check_branch
      %204 = sbr.rel (%p201) target = $region12
    $region11: #{tpu_custom_call.1} parent=5 // pred_region
      %s205 = ssub.s32 %s13, 1
      // Predicated region
      $region13: #{tpu_custom_call.1} parent=11 // pred_check
        %p206 = pneg %p60
      $region14: #{tpu_custom_call.1} parent=11 // pred_check_branch
        %208 = sbr.rel (%p206) target = $region16
      $region15: #{tpu_custom_call.1} parent=11 // pred_region
        _
      $region16: #{tpu_custom_call.1} parent=11 // pred_fallthru
        _
      // Predicated region
      $region17: #{tpu_custom_call.1} parent=11 // pred_check
        %p209 = pneg %p81
      $region18: #{tpu_custom_call.1} parent=11 // pred_check_branch
        %211 = sbr.rel (%p209) target = $region20
      $region19: #{tpu_custom_call.1} parent=11 // pred_region
        _
      $region20: #{tpu_custom_call.1} parent=11 // pred_fallthru
        _
      // Predicated region
      $region21: #{tpu_custom_call.1} parent=11 // pred_check
        %p212 = pneg %p102
      $region22: #{tpu_custom_call.1} parent=11 // pred_check_branch
        %214 = sbr.rel (%p212) target = $region24
      $region23: #{tpu_custom_call.1} parent=11 // pred_region
        _
      $region24: #{tpu_custom_call.1} parent=11 // pred_fallthru
        _
      // Predicated region
      $region25: #{tpu_custom_call.1} parent=11 // pred_check
        %p215 = pneg %p123
      $region26: #{tpu_custom_call.1} parent=11 // pred_check_branch
        %217 = sbr.rel (%p215) target = $region28
      $region27: #{tpu_custom_call.1} parent=11 // pred_region
        _
      $region28: #{tpu_custom_call.1} parent=11 // pred_fallthru
        _
      // Predicated region
      $region29: #{tpu_custom_call.1} parent=11 // pred_check
        %p218 = pneg %p144
      $region30: #{tpu_custom_call.1} parent=11 // pred_check_branch
        %220 = sbr.rel (%p218) target = $region32
      $region31: #{tpu_custom_call.1} parent=11 // pred_region
        _
      $region32: #{tpu_custom_call.1} parent=11 // pred_fallthru
        _
      // Predicated region
      $region33: #{tpu_custom_call.1} parent=11 // pred_check
        %p221 = pneg %p165
      $region34: #{tpu_custom_call.1} parent=11 // pred_check_branch
        %223 = sbr.rel (%p221) target = $region36
      $region35: #{tpu_custom_call.1} parent=11 // pred_region
        _
      $region36: #{tpu_custom_call.1} parent=11 // pred_fallthru
        _
    $region12: #{tpu_custom_call.1} parent=5 // pred_fallthru
      _
    %p224 = scmp.lt.s32.totalorder %s13, 3
    // Predicated region
    $region37: #{tpu_custom_call.1} parent=5 // pred_check
      %p225 = pneg %p224
    $region38: #{tpu_custom_call.1} parent=5 // pred_check_branch
      %227 = sbr.rel (%p225) target = $region40
    $region39: #{tpu_custom_call.1} parent=5 // pred_region
      // Predicated region
      $region41: #{tpu_custom_call.1} parent=39 // pred_check
        %p228 = pneg %p33
      $region42: #{tpu_custom_call.1} parent=39 // pred_check_branch
        %230 = sbr.rel (%p228) target = $region44
      $region43: #{tpu_custom_call.1} parent=39 // pred_region
        %s231 = smul.u32 2, %s13
        %p232 = scmp.lt.s32.totalorder %s231, 5
        %s233 = scalar_select %p232, %s231, 5
        %s234 = smul.addr %s233, 96
        %s235 = smul.addr %s234, 4
        %s236 = scalar_lea.vmem %s0, %s235
        %s237 = smul.u32 2, %s13
      $region44: #{tpu_custom_call.1} parent=39 // pred_fallthru
        _
    $region40: #{tpu_custom_call.1} parent=5 // pred_fallthru
      _
    %p238 = scmp.le.s32.totalorder 1, %s13
    %p239 = scmp.lt.s32.totalorder %s13, 4
    %p240 = pnand %p238, %p239
    %p241 = pneg %p240
    // Predicated region
    $region45: #{tpu_custom_call.1} parent=5 // pred_check
      _
    $region46: #{tpu_custom_call.1} parent=5 // pred_check_branch
      %243 = sbr.rel (%p240) target = $region48
    $region47: #{tpu_custom_call.1} parent=5 // pred_region
      %s244 = ssub.s32 %s13, 1
      %s245 = smul.u32 2, %s18
      %p246 = scmp.lt.s32.totalorder %s245, 5
      %s247 = scalar_select %p246, %s245, 5
      %s248 = smul.addr %s247, 96
      %s249 = smul.addr %s248, 4
      %s250 = scalar_lea.vmem %s0, %s249
      %p251 = pneg %p39
      %p252 = pneg %p36
      %p253 = pneg %p60
      %p254 = pneg %p57
      %p255 = pneg %p81
      %p256 = pneg %p78
      %p257 = pneg %p102
      %p258 = pneg %p99
      %p259 = pneg %p123
      %p260 = pneg %p120
      %p261 = pneg %p144
      %p262 = pneg %p141
      %p263 = pneg %p165
      %p264 = pneg %p162
      %p265 = pneg %p191
      %p266 = pneg %p188
      %s267 = smul.u32 2, %s18
      %p268 = scmp.lt.s32.totalorder %s267, 5
      %s269 = scalar_select %p268, %s267, 5
      %s270 = smul.addr %s269, 8
      %s271 = scalar_lea.vmem %s7, %s270
      %s272 = smul.u32 2, %s18
      %p273 = scmp.lt.s32.totalorder %s272, 5
      %s274 = scalar_select %p273, %s272, 5
      %s275 = smul.addr %s274, 96
      %s276 = smul.addr %s275, 4
      %s277 = scalar_lea.vmem %s0, %s276
      %s278 = smul.u32 2, %s18
      %s279 = smul.u32 2, %s18
      %p280 = scmp.lt.s32.totalorder %s279, 5
      %s281 = scalar_select %p280, %s279, 5
      %s282 = smul.addr %s281, 8
      %s283 = scalar_lea.vmem %s7, %s282
      %s284 = smul.u32 2, %s18
      %v286 = vld [vmem:[%s277] sm:$0xff]
      %v287 = vld [vmem:[%s277 + $0x8] sm:$0xff]
      %v288 = vld [vmem:[%s277 + $0x10] sm:$0xff]
      %v289 = vld [vmem:[%s277 + $0x18] sm:$0xff]
      %v290 = vld [vmem:[%s277 + $0x20] sm:$0xff]
      %v291 = vld [vmem:[%s277 + $0x28] sm:$0xff]
      %v292 = vld [vmem:[%s277 + $0x30] sm:$0xff]
      %v293 = vld [vmem:[%s277 + $0x38] sm:$0xff]
      %v294 = vld [vmem:[%s277 + $0x40] sm:$0xff]
      %v295 = vld [vmem:[%s277 + $0x48] sm:$0xff]
      %v296 = vld [vmem:[%s277 + $0x50] sm:$0xff]
      %v297 = vld [vmem:[%s277 + $0x58] sm:$0xff]
      %v298 = vld [vmem:[%s277 + $0x60] sm:$0xff]
      %v299 = vld [vmem:[%s277 + $0x68] sm:$0xff]
      %v300 = vld [vmem:[%s277 + $0x70] sm:$0xff]
      %v301 = vld [vmem:[%s277 + $0x78] sm:$0xff]
      %v302 = vld [vmem:[%s277 + $0x80] sm:$0xff]
      %v303 = vld [vmem:[%s277 + $0x88] sm:$0xff]
      %v304 = vld [vmem:[%s277 + $0x90] sm:$0xff]
      %v305 = vld [vmem:[%s277 + $0x98] sm:$0xff]
      %v306 = vld [vmem:[%s277 + $0xa0] sm:$0xff]
      %v307 = vld [vmem:[%s277 + $0xa8] sm:$0xff]
      %v308 = vld [vmem:[%s277 + $0xb0] sm:$0xff]
      %v309 = vld [vmem:[%s277 + $0xb8] sm:$0xff]
      %v310 = vld [vmem:[%s277 + $0xc0] sm:$0xff]
      %v311 = vld [vmem:[%s277 + $0xc8] sm:$0xff]
      %v312 = vld [vmem:[%s277 + $0xd0] sm:$0xff]
      %v313 = vld [vmem:[%s277 + $0xd8] sm:$0xff]
      %v314 = vld [vmem:[%s277 + $0xe0] sm:$0xff]
      %v315 = vld [vmem:[%s277 + $0xe8] sm:$0xff]
      %v316 = vld [vmem:[%s277 + $0xf0] sm:$0xff]
      %v317 = vld [vmem:[%s277 + $0xf8] sm:$0xff]
      %v318 = vld [vmem:[%s277 + $0x100] sm:$0xff]
      %v319 = vld [vmem:[%s277 + $0x108] sm:$0xff]
      %v320 = vld [vmem:[%s277 + $0x110] sm:$0xff]
      %v321 = vld [vmem:[%s277 + $0x118] sm:$0xff]
      %v322 = vld [vmem:[%s277 + $0x120] sm:$0xff]
      %v323 = vld [vmem:[%s277 + $0x128] sm:$0xff]
      %v324 = vld [vmem:[%s277 + $0x130] sm:$0xff]
      %v325 = vld [vmem:[%s277 + $0x138] sm:$0xff]
      %v326 = vld [vmem:[%s277 + $0x140] sm:$0xff]
      %v327 = vld [vmem:[%s277 + $0x148] sm:$0xff]
      %v328 = vld [vmem:[%s277 + $0x150] sm:$0xff]
      %v329 = vld [vmem:[%s277 + $0x158] sm:$0xff]
      %v330 = vld [vmem:[%s277 + $0x160] sm:$0xff]
      %v331 = vld [vmem:[%s277 + $0x168] sm:$0xff]
      %v332 = vld [vmem:[%s277 + $0x170] sm:$0xff]
      %v333 = vld [vmem:[%s277 + $0x178] sm:$0xff]
      %v334 = vld [vmem:[%s277 + $0x180] sm:$0xff]
      %v335 = vld [vmem:[%s277 + $0x188] sm:$0xff]
      %v336 = vld [vmem:[%s277 + $0x190] sm:$0xff]
      %v337 = vld [vmem:[%s277 + $0x198] sm:$0xff]
      %v338 = vld [vmem:[%s277 + $0x1a0] sm:$0xff]
      %v339 = vld [vmem:[%s277 + $0x1a8] sm:$0xff]
      %v340 = vld [vmem:[%s277 + $0x1b0] sm:$0xff]
      %v341 = vld [vmem:[%s277 + $0x1b8] sm:$0xff]
      %v342 = vld [vmem:[%s277 + $0x1c0] sm:$0xff]
      %v343 = vld [vmem:[%s277 + $0x1c8] sm:$0xff]
      %v344 = vld [vmem:[%s277 + $0x1d0] sm:$0xff]
      %v345 = vld [vmem:[%s277 + $0x1d8] sm:$0xff]
      %v346 = vld [vmem:[%s277 + $0x1e0] sm:$0xff]
      %v347 = vld [vmem:[%s277 + $0x1e8] sm:$0xff]
      %v348 = vld [vmem:[%s277 + $0x1f0] sm:$0xff]
      %v349 = vld [vmem:[%s277 + $0x1f8] sm:$0xff]
      %v350 = vld [vmem:[%s277 + $0x200] sm:$0xff]
      %v351 = vld [vmem:[%s277 + $0x208] sm:$0xff]
      %v352 = vld [vmem:[%s277 + $0x210] sm:$0xff]
      %v353 = vld [vmem:[%s277 + $0x218] sm:$0xff]
      %v354 = vld [vmem:[%s277 + $0x220] sm:$0xff]
      %v355 = vld [vmem:[%s277 + $0x228] sm:$0xff]
      %v356 = vld [vmem:[%s277 + $0x230] sm:$0xff]
      %v357 = vld [vmem:[%s277 + $0x238] sm:$0xff]
      %v358 = vld [vmem:[%s277 + $0x240] sm:$0xff]
      %v359 = vld [vmem:[%s277 + $0x248] sm:$0xff]
      %v360 = vld [vmem:[%s277 + $0x250] sm:$0xff]
      %v361 = vld [vmem:[%s277 + $0x258] sm:$0xff]
      %v362 = vld [vmem:[%s277 + $0x260] sm:$0xff]
      %v363 = vld [vmem:[%s277 + $0x268] sm:$0xff]
      %v364 = vld [vmem:[%s277 + $0x270] sm:$0xff]
      %v365 = vld [vmem:[%s277 + $0x278] sm:$0xff]
      %v366 = vld [vmem:[%s277 + $0x280] sm:$0xff]
      %v367 = vld [vmem:[%s277 + $0x288] sm:$0xff]
      %v368 = vld [vmem:[%s277 + $0x290] sm:$0xff]
      %v369 = vld [vmem:[%s277 + $0x298] sm:$0xff]
      %v370 = vld [vmem:[%s277 + $0x2a0] sm:$0xff]
      %v371 = vld [vmem:[%s277 + $0x2a8] sm:$0xff]
      %v372 = vld [vmem:[%s277 + $0x2b0] sm:$0xff]
      %v373 = vld [vmem:[%s277 + $0x2b8] sm:$0xff]
      %v374 = vld [vmem:[%s277 + $0x2c0] sm:$0xff]
      %v375 = vld [vmem:[%s277 + $0x2c8] sm:$0xff]
      %v376 = vld [vmem:[%s277 + $0x2d0] sm:$0xff]
      %v377 = vld [vmem:[%s277 + $0x2d8] sm:$0xff]
      %v378 = vld [vmem:[%s277 + $0x2e0] sm:$0xff]
      %v379 = vld [vmem:[%s277 + $0x2e8] sm:$0xff]
      %v380 = vld [vmem:[%s277 + $0x2f0] sm:$0xff]
      %v381 = vld [vmem:[%s277 + $0x2f8] sm:$0xff]
      %v382 = vld [vmem:[%s1] sm:$0xf]
      %v383 = vld [vmem:[%s1 + $0x4] sm:$0xf]
      %v384 = vld [vmem:[%s1 + $0x8] sm:$0xf]
      %v385 = vld [vmem:[%s1 + $0xc] sm:$0xf]
      %v386 = vld [vmem:[%s1 + $0x10] sm:$0xf]
      %v387 = vld [vmem:[%s1 + $0x14] sm:$0xf]
      %v388 = vld [vmem:[%s1 + $0x18] sm:$0xf]
      %v389 = vld [vmem:[%s1 + $0x1c] sm:$0xf]
      %v390 = vld [vmem:[%s1 + $0x20] sm:$0xf]
      %v391 = vld [vmem:[%s1 + $0x24] sm:$0xf]
      %v392 = vld [vmem:[%s1 + $0x28] sm:$0xf]
      %v393 = vld [vmem:[%s1 + $0x2c] sm:$0xf]
      %v394 = vld [vmem:[%s1 + $0x30] sm:$0xf]
      %v395 = vld [vmem:[%s1 + $0x34] sm:$0xf]
      %v396 = vld [vmem:[%s1 + $0x38] sm:$0xf]
      %v397 = vld [vmem:[%s1 + $0x3c] sm:$0xf]
      %v398 = vld [vmem:[%s1 + $0x40] sm:$0xf]
      %v399 = vld [vmem:[%s1 + $0x44] sm:$0xf]
      %v400 = vld [vmem:[%s1 + $0x48] sm:$0xf]
      %v401 = vld [vmem:[%s1 + $0x4c] sm:$0xf]
      %v402 = vld [vmem:[%s1 + $0x50] sm:$0xf]
      %v403 = vld [vmem:[%s1 + $0x54] sm:$0xf]
      %v404 = vld [vmem:[%s1 + $0x58] sm:$0xf]
      %v405 = vld [vmem:[%s1 + $0x5c] sm:$0xf]
      %v406 = vld [vmem:[%s1 + $0x60] sm:$0xf]
      %v407 = vld [vmem:[%s1 + $0x64] sm:$0xf]
      %v408 = vld [vmem:[%s1 + $0x68] sm:$0xf]
      %v409 = vld [vmem:[%s1 + $0x6c] sm:$0xf]
      %v410 = vld [vmem:[%s1 + $0x70] sm:$0xf]
      %v411 = vld [vmem:[%s1 + $0x74] sm:$0xf]
      %v412 = vld [vmem:[%s1 + $0x78] sm:$0xf]
      %v413 = vld [vmem:[%s1 + $0x7c] sm:$0xf]
      %v414 = vld [vmem:[%s1 + $0x80] sm:$0xf]
      %v415 = vld [vmem:[%s1 + $0x84] sm:$0xf]
      %v416 = vld [vmem:[%s1 + $0x88] sm:$0xf]
      %v417 = vld [vmem:[%s1 + $0x8c] sm:$0xf]
      %v418 = vld [vmem:[%s1 + $0x90] sm:$0xf]
      %v419 = vld [vmem:[%s1 + $0x94] sm:$0xf]
      %v420 = vld [vmem:[%s1 + $0x98] sm:$0xf]
      %v421 = vld [vmem:[%s1 + $0x9c] sm:$0xf]
      %v422 = vld [vmem:[%s1 + $0xa0] sm:$0xf]
      %v423 = vld [vmem:[%s1 + $0xa4] sm:$0xf]
      %v424 = vld [vmem:[%s1 + $0xa8] sm:$0xf]
      %v425 = vld [vmem:[%s1 + $0xac] sm:$0xf]
      %v426 = vld [vmem:[%s1 + $0xb0] sm:$0xf]
      %v427 = vld [vmem:[%s1 + $0xb4] sm:$0xf]
      %v428 = vld [vmem:[%s1 + $0xb8] sm:$0xf]
      %v429 = vld [vmem:[%s1 + $0xbc] sm:$0xf]
      %v430 = vld [vmem:[%s1 + $0xc0] sm:$0xf]
      %v431 = vld [vmem:[%s1 + $0xc4] sm:$0xf]
      %v432 = vld [vmem:[%s1 + $0xc8] sm:$0xf]
      %v433 = vld [vmem:[%s1 + $0xcc] sm:$0xf]
      %v434 = vld [vmem:[%s1 + $0xd0] sm:$0xf]
      %v435 = vld [vmem:[%s1 + $0xd4] sm:$0xf]
      %v436 = vld [vmem:[%s1 + $0xd8] sm:$0xf]
      %v437 = vld [vmem:[%s1 + $0xdc] sm:$0xf]
      %v438 = vld [vmem:[%s1 + $0xe0] sm:$0xf]
      %v439 = vld [vmem:[%s1 + $0xe4] sm:$0xf]
      %v440 = vld [vmem:[%s1 + $0xe8] sm:$0xf]
      %v441 = vld [vmem:[%s1 + $0xec] sm:$0xf]
      %v442 = vld [vmem:[%s1 + $0xf0] sm:$0xf]
      %v443 = vld [vmem:[%s1 + $0xf4] sm:$0xf]
      %v444 = vld [vmem:[%s1 + $0xf8] sm:$0xf]
      %v445 = vld [vmem:[%s1 + $0xfc] sm:$0xf]
      %v446 = vld [vmem:[%s1 + $0x100] sm:$0xf]
      %v447 = vld [vmem:[%s1 + $0x104] sm:$0xf]
      %v448 = vld [vmem:[%s1 + $0x108] sm:$0xf]
      %v449 = vld [vmem:[%s1 + $0x10c] sm:$0xf]
      %v450 = vld [vmem:[%s1 + $0x110] sm:$0xf]
      %v451 = vld [vmem:[%s1 + $0x114] sm:$0xf]
      %v452 = vld [vmem:[%s1 + $0x118] sm:$0xf]
      %v453 = vld [vmem:[%s1 + $0x11c] sm:$0xf]
      %v454 = vld [vmem:[%s1 + $0x120] sm:$0xf]
      %v455 = vld [vmem:[%s1 + $0x124] sm:$0xf]
      %v456 = vld [vmem:[%s1 + $0x128] sm:$0xf]
      %v457 = vld [vmem:[%s1 + $0x12c] sm:$0xf]
      %v458 = vld [vmem:[%s1 + $0x130] sm:$0xf]
      %v459 = vld [vmem:[%s1 + $0x134] sm:$0xf]
      %v460 = vld [vmem:[%s1 + $0x138] sm:$0xf]
      %v461 = vld [vmem:[%s1 + $0x13c] sm:$0xf]
      %v462 = vld [vmem:[%s1 + $0x140] sm:$0xf]
      %v463 = vld [vmem:[%s1 + $0x144] sm:$0xf]
      %v464 = vld [vmem:[%s1 + $0x148] sm:$0xf]
      %v465 = vld [vmem:[%s1 + $0x14c] sm:$0xf]
      %v466 = vld [vmem:[%s1 + $0x150] sm:$0xf]
      %v467 = vld [vmem:[%s1 + $0x154] sm:$0xf]
      %v468 = vld [vmem:[%s1 + $0x158] sm:$0xf]
      %v469 = vld [vmem:[%s1 + $0x15c] sm:$0xf]
      %v470 = vld [vmem:[%s1 + $0x160] sm:$0xf]
      %v471 = vld [vmem:[%s1 + $0x164] sm:$0xf]
      %v472 = vld [vmem:[%s1 + $0x168] sm:$0xf]
      %v473 = vld [vmem:[%s1 + $0x16c] sm:$0xf]
      %v474 = vld [vmem:[%s1 + $0x170] sm:$0xf]
      %v475 = vld [vmem:[%s1 + $0x174] sm:$0xf]
      %v476 = vld [vmem:[%s1 + $0x178] sm:$0xf]
      %v477 = vld [vmem:[%s1 + $0x17c] sm:$0xf]
      %v478 = vld [vmem:[%s1 + $0x180] sm:$0xf]
      %v479 = vld [vmem:[%s1 + $0x184] sm:$0xf]
      %v480 = vld [vmem:[%s1 + $0x188] sm:$0xf]
      %v481 = vld [vmem:[%s1 + $0x18c] sm:$0xf]
      %v482 = vld [vmem:[%s1 + $0x190] sm:$0xf]
      %v483 = vld [vmem:[%s1 + $0x194] sm:$0xf]
      %v484 = vld [vmem:[%s1 + $0x198] sm:$0xf]
      %v485 = vld [vmem:[%s1 + $0x19c] sm:$0xf]
      %v486 = vld [vmem:[%s1 + $0x1a0] sm:$0xf]
      %v487 = vld [vmem:[%s1 + $0x1a4] sm:$0xf]
      %v488 = vld [vmem:[%s1 + $0x1a8] sm:$0xf]
      %v489 = vld [vmem:[%s1 + $0x1ac] sm:$0xf]
      %v490 = vld [vmem:[%s1 + $0x1b0] sm:$0xf]
      %v491 = vld [vmem:[%s1 + $0x1b4] sm:$0xf]
      %v492 = vld [vmem:[%s1 + $0x1b8] sm:$0xf]
      %v493 = vld [vmem:[%s1 + $0x1bc] sm:$0xf]
      %v494 = vld [vmem:[%s1 + $0x1c0] sm:$0xf]
      %v495 = vld [vmem:[%s1 + $0x1c4] sm:$0xf]
      %v496 = vld [vmem:[%s1 + $0x1c8] sm:$0xf]
      %v497 = vld [vmem:[%s1 + $0x1cc] sm:$0xf]
      %v498 = vld [vmem:[%s1 + $0x1d0] sm:$0xf]
      %v499 = vld [vmem:[%s1 + $0x1d4] sm:$0xf]
      %v500 = vld [vmem:[%s1 + $0x1d8] sm:$0xf]
      %v501 = vld [vmem:[%s1 + $0x1dc] sm:$0xf]
      %v502 = vld [vmem:[%s1 + $0x1e0] sm:$0xf]
      %v503 = vld [vmem:[%s1 + $0x1e4] sm:$0xf]
      %v504 = vld [vmem:[%s1 + $0x1e8] sm:$0xf]
      %v505 = vld [vmem:[%s1 + $0x1ec] sm:$0xf]
      %v506 = vld [vmem:[%s1 + $0x1f0] sm:$0xf]
      %v507 = vld [vmem:[%s1 + $0x1f4] sm:$0xf]
      %v508 = vld [vmem:[%s1 + $0x1f8] sm:$0xf]
      %v509 = vld [vmem:[%s1 + $0x1fc] sm:$0xf]
      %v510 = vld [vmem:[%s1 + $0x200] sm:$0xf]
      %v511 = vld [vmem:[%s1 + $0x204] sm:$0xf]
      %v512 = vld [vmem:[%s1 + $0x208] sm:$0xf]
      %v513 = vld [vmem:[%s1 + $0x20c] sm:$0xf]
      %v514 = vld [vmem:[%s1 + $0x210] sm:$0xf]
      %v515 = vld [vmem:[%s1 + $0x214] sm:$0xf]
      %v516 = vld [vmem:[%s1 + $0x218] sm:$0xf]
      %v517 = vld [vmem:[%s1 + $0x21c] sm:$0xf]
      %v518 = vld [vmem:[%s1 + $0x220] sm:$0xf]
      %v519 = vld [vmem:[%s1 + $0x224] sm:$0xf]
      %v520 = vld [vmem:[%s1 + $0x228] sm:$0xf]
      %v521 = vld [vmem:[%s1 + $0x22c] sm:$0xf]
      %v522 = vld [vmem:[%s1 + $0x230] sm:$0xf]
      %v523 = vld [vmem:[%s1 + $0x234] sm:$0xf]
      %v524 = vld [vmem:[%s1 + $0x238] sm:$0xf]
      %v525 = vld [vmem:[%s1 + $0x23c] sm:$0xf]
      %v526 = vld [vmem:[%s1 + $0x240] sm:$0xf]
      %v527 = vld [vmem:[%s1 + $0x244] sm:$0xf]
      %v528 = vld [vmem:[%s1 + $0x248] sm:$0xf]
      %v529 = vld [vmem:[%s1 + $0x24c] sm:$0xf]
      %v530 = vld [vmem:[%s1 + $0x250] sm:$0xf]
      %v531 = vld [vmem:[%s1 + $0x254] sm:$0xf]
      %v532 = vld [vmem:[%s1 + $0x258] sm:$0xf]
      %v533 = vld [vmem:[%s1 + $0x25c] sm:$0xf]
      %v534 = vld [vmem:[%s1 + $0x260] sm:$0xf]
      %v535 = vld [vmem:[%s1 + $0x264] sm:$0xf]
      %v536 = vld [vmem:[%s1 + $0x268] sm:$0xf]
      %v537 = vld [vmem:[%s1 + $0x26c] sm:$0xf]
      %v538 = vld [vmem:[%s1 + $0x270] sm:$0xf]
      %v539 = vld [vmem:[%s1 + $0x274] sm:$0xf]
      %v540 = vld [vmem:[%s1 + $0x278] sm:$0xf]
      %v541 = vld [vmem:[%s1 + $0x27c] sm:$0xf]
      %v542 = vld [vmem:[%s1 + $0x280] sm:$0xf]
      %v543 = vld [vmem:[%s1 + $0x284] sm:$0xf]
      %v544 = vld [vmem:[%s1 + $0x288] sm:$0xf]
      %v545 = vld [vmem:[%s1 + $0x28c] sm:$0xf]
      %v546 = vld [vmem:[%s1 + $0x290] sm:$0xf]
      %v547 = vld [vmem:[%s1 + $0x294] sm:$0xf]
      %v548 = vld [vmem:[%s1 + $0x298] sm:$0xf]
      %v549 = vld [vmem:[%s1 + $0x29c] sm:$0xf]
      %v550 = vld [vmem:[%s1 + $0x2a0] sm:$0xf]
      %v551 = vld [vmem:[%s1 + $0x2a4] sm:$0xf]
      %v552 = vld [vmem:[%s1 + $0x2a8] sm:$0xf]
      %v553 = vld [vmem:[%s1 + $0x2ac] sm:$0xf]
      %v554 = vld [vmem:[%s1 + $0x2b0] sm:$0xf]
      %v555 = vld [vmem:[%s1 + $0x2b4] sm:$0xf]
      %v556 = vld [vmem:[%s1 + $0x2b8] sm:$0xf]
      %v557 = vld [vmem:[%s1 + $0x2bc] sm:$0xf]
      %v558 = vld [vmem:[%s1 + $0x2c0] sm:$0xf]
      %v559 = vld [vmem:[%s1 + $0x2c4] sm:$0xf]
      %v560 = vld [vmem:[%s1 + $0x2c8] sm:$0xf]
      %v561 = vld [vmem:[%s1 + $0x2cc] sm:$0xf]
      %v562 = vld [vmem:[%s1 + $0x2d0] sm:$0xf]
      %v563 = vld [vmem:[%s1 + $0x2d4] sm:$0xf]
      %v564 = vld [vmem:[%s1 + $0x2d8] sm:$0xf]
      %v565 = vld [vmem:[%s1 + $0x2dc] sm:$0xf]
      %v566 = vld [vmem:[%s1 + $0x2e0] sm:$0xf]
      %v567 = vld [vmem:[%s1 + $0x2e4] sm:$0xf]
      %v568 = vld [vmem:[%s1 + $0x2e8] sm:$0xf]
      %v569 = vld [vmem:[%s1 + $0x2ec] sm:$0xf]
      %v570 = vld [vmem:[%s1 + $0x2f0] sm:$0xf]
      %v571 = vld [vmem:[%s1 + $0x2f4] sm:$0xf]
      %v572 = vld [vmem:[%s1 + $0x2f8] sm:$0xf]
      %v573 = vld [vmem:[%s1 + $0x2fc] sm:$0xf]
      %v574 = vld [vmem:[%s1 + $0x300] sm:$0xf]
      %v575 = vld [vmem:[%s1 + $0x304] sm:$0xf]
      %v576 = vld [vmem:[%s1 + $0x308] sm:$0xf]
      %v577 = vld [vmem:[%s1 + $0x30c] sm:$0xf]
      %v578 = vld [vmem:[%s1 + $0x310] sm:$0xf]
      %v579 = vld [vmem:[%s1 + $0x314] sm:$0xf]
      %v580 = vld [vmem:[%s1 + $0x318] sm:$0xf]
      %v581 = vld [vmem:[%s1 + $0x31c] sm:$0xf]
      %v582 = vld [vmem:[%s1 + $0x320] sm:$0xf]
      %v583 = vld [vmem:[%s1 + $0x324] sm:$0xf]
      %v584 = vld [vmem:[%s1 + $0x328] sm:$0xf]
      %v585 = vld [vmem:[%s1 + $0x32c] sm:$0xf]
      %v586 = vld [vmem:[%s1 + $0x330] sm:$0xf]
      %v587 = vld [vmem:[%s1 + $0x334] sm:$0xf]
      %v588 = vld [vmem:[%s1 + $0x338] sm:$0xf]
      %v589 = vld [vmem:[%s1 + $0x33c] sm:$0xf]
      %v590 = vld [vmem:[%s1 + $0x340] sm:$0xf]
      %v591 = vld [vmem:[%s1 + $0x344] sm:$0xf]
      %v592 = vld [vmem:[%s1 + $0x348] sm:$0xf]
      %v593 = vld [vmem:[%s1 + $0x34c] sm:$0xf]
      %v594 = vld [vmem:[%s1 + $0x350] sm:$0xf]
      %v595 = vld [vmem:[%s1 + $0x354] sm:$0xf]
      %v596 = vld [vmem:[%s1 + $0x358] sm:$0xf]
      %v597 = vld [vmem:[%s1 + $0x35c] sm:$0xf]
      %v598 = vld [vmem:[%s1 + $0x360] sm:$0xf]
      %v599 = vld [vmem:[%s1 + $0x364] sm:$0xf]
      %v600 = vld [vmem:[%s1 + $0x368] sm:$0xf]
      %v601 = vld [vmem:[%s1 + $0x36c] sm:$0xf]
      %v602 = vld [vmem:[%s1 + $0x370] sm:$0xf]
      %v603 = vld [vmem:[%s1 + $0x374] sm:$0xf]
      %v604 = vld [vmem:[%s1 + $0x378] sm:$0xf]
      %v605 = vld [vmem:[%s1 + $0x37c] sm:$0xf]
      %v606 = vld [vmem:[%s1 + $0x380] sm:$0xf]
      %v607 = vld [vmem:[%s1 + $0x384] sm:$0xf]
      %v608 = vld [vmem:[%s1 + $0x388] sm:$0xf]
      %v609 = vld [vmem:[%s1 + $0x38c] sm:$0xf]
      %v610 = vld [vmem:[%s1 + $0x390] sm:$0xf]
      %v611 = vld [vmem:[%s1 + $0x394] sm:$0xf]
      %v612 = vld [vmem:[%s1 + $0x398] sm:$0xf]
      %v613 = vld [vmem:[%s1 + $0x39c] sm:$0xf]
      %v614 = vld [vmem:[%s1 + $0x3a0] sm:$0xf]
      %v615 = vld [vmem:[%s1 + $0x3a4] sm:$0xf]
      %v616 = vld [vmem:[%s1 + $0x3a8] sm:$0xf]
      %v617 = vld [vmem:[%s1 + $0x3ac] sm:$0xf]
      %v618 = vld [vmem:[%s1 + $0x3b0] sm:$0xf]
      %v619 = vld [vmem:[%s1 + $0x3b4] sm:$0xf]
      %v620 = vld [vmem:[%s1 + $0x3b8] sm:$0xf]
      %v621 = vld [vmem:[%s1 + $0x3bc] sm:$0xf]
      %v622 = vld [vmem:[%s1 + $0x3c0] sm:$0xf]
      %v623 = vld [vmem:[%s1 + $0x3c4] sm:$0xf]
      %v624 = vld [vmem:[%s1 + $0x3c8] sm:$0xf]
      %v625 = vld [vmem:[%s1 + $0x3cc] sm:$0xf]
      %v626 = vld [vmem:[%s1 + $0x3d0] sm:$0xf]
      %v627 = vld [vmem:[%s1 + $0x3d4] sm:$0xf]
      %v628 = vld [vmem:[%s1 + $0x3d8] sm:$0xf]
      %v629 = vld [vmem:[%s1 + $0x3dc] sm:$0xf]
      %v630 = vld [vmem:[%s1 + $0x3e0] sm:$0xf]
      %v631 = vld [vmem:[%s1 + $0x3e4] sm:$0xf]
      %v632 = vld [vmem:[%s1 + $0x3e8] sm:$0xf]
      %v633 = vld [vmem:[%s1 + $0x3ec] sm:$0xf]
      %v634 = vld [vmem:[%s1 + $0x3f0] sm:$0xf]
      %v635 = vld [vmem:[%s1 + $0x3f4] sm:$0xf]
      %v636 = vld [vmem:[%s1 + $0x3f8] sm:$0xf]
      %v637 = vld [vmem:[%s1 + $0x3fc] sm:$0xf]
      %v638 = vld [vmem:[%s1 + $0x400] sm:$0xf]
      %v639 = vld [vmem:[%s1 + $0x404] sm:$0xf]
      %v640 = vld [vmem:[%s1 + $0x408] sm:$0xf]
      %v641 = vld [vmem:[%s1 + $0x40c] sm:$0xf]
      %v642 = vld [vmem:[%s1 + $0x410] sm:$0xf]
      %v643 = vld [vmem:[%s1 + $0x414] sm:$0xf]
      %v644 = vld [vmem:[%s1 + $0x418] sm:$0xf]
      %v645 = vld [vmem:[%s1 + $0x41c] sm:$0xf]
      %v646 = vld [vmem:[%s1 + $0x420] sm:$0xf]
      %v647 = vld [vmem:[%s1 + $0x424] sm:$0xf]
      %v648 = vld [vmem:[%s1 + $0x428] sm:$0xf]
      %v649 = vld [vmem:[%s1 + $0x42c] sm:$0xf]
      %v650 = vld [vmem:[%s1 + $0x430] sm:$0xf]
      %v651 = vld [vmem:[%s1 + $0x434] sm:$0xf]
      %v652 = vld [vmem:[%s1 + $0x438] sm:$0xf]
      %v653 = vld [vmem:[%s1 + $0x43c] sm:$0xf]
      %v654 = vld [vmem:[%s1 + $0x440] sm:$0xf]
      %v655 = vld [vmem:[%s1 + $0x444] sm:$0xf]
      %v656 = vld [vmem:[%s1 + $0x448] sm:$0xf]
      %v657 = vld [vmem:[%s1 + $0x44c] sm:$0xf]
      %v658 = vld [vmem:[%s1 + $0x450] sm:$0xf]
      %v659 = vld [vmem:[%s1 + $0x454] sm:$0xf]
      %v660 = vld [vmem:[%s1 + $0x458] sm:$0xf]
      %v661 = vld [vmem:[%s1 + $0x45c] sm:$0xf]
      %v662 = vld [vmem:[%s1 + $0x460] sm:$0xf]
      %v663 = vld [vmem:[%s1 + $0x464] sm:$0xf]
      %v664 = vld [vmem:[%s1 + $0x468] sm:$0xf]
      %v665 = vld [vmem:[%s1 + $0x46c] sm:$0xf]
      %v666 = vld [vmem:[%s1 + $0x470] sm:$0xf]
      %v667 = vld [vmem:[%s1 + $0x474] sm:$0xf]
      %v668 = vld [vmem:[%s1 + $0x478] sm:$0xf]
      %v669 = vld [vmem:[%s1 + $0x47c] sm:$0xf]
      %v670 = vld [vmem:[%s1 + $0x480] sm:$0xf]
      %v671 = vld [vmem:[%s1 + $0x484] sm:$0xf]
      %v672 = vld [vmem:[%s1 + $0x488] sm:$0xf]
      %v673 = vld [vmem:[%s1 + $0x48c] sm:$0xf]
      %v674 = vld [vmem:[%s1 + $0x490] sm:$0xf]
      %v675 = vld [vmem:[%s1 + $0x494] sm:$0xf]
      %v676 = vld [vmem:[%s1 + $0x498] sm:$0xf]
      %v677 = vld [vmem:[%s1 + $0x49c] sm:$0xf]
      %v678 = vld [vmem:[%s1 + $0x4a0] sm:$0xf]
      %v679 = vld [vmem:[%s1 + $0x4a4] sm:$0xf]
      %v680 = vld [vmem:[%s1 + $0x4a8] sm:$0xf]
      %v681 = vld [vmem:[%s1 + $0x4ac] sm:$0xf]
      %v682 = vld [vmem:[%s1 + $0x4b0] sm:$0xf]
      %v683 = vld [vmem:[%s1 + $0x4b4] sm:$0xf]
      %v684 = vld [vmem:[%s1 + $0x4b8] sm:$0xf]
      %v685 = vld [vmem:[%s1 + $0x4bc] sm:$0xf]
      %v686 = vld [vmem:[%s1 + $0x4c0] sm:$0xf]
      %v687 = vld [vmem:[%s1 + $0x4c4] sm:$0xf]
      %v688 = vld [vmem:[%s1 + $0x4c8] sm:$0xf]
      %v689 = vld [vmem:[%s1 + $0x4cc] sm:$0xf]
      %v690 = vld [vmem:[%s1 + $0x4d0] sm:$0xf]
      %v691 = vld [vmem:[%s1 + $0x4d4] sm:$0xf]
      %v692 = vld [vmem:[%s1 + $0x4d8] sm:$0xf]
      %v693 = vld [vmem:[%s1 + $0x4dc] sm:$0xf]
      %v694 = vld [vmem:[%s1 + $0x4e0] sm:$0xf]
      %v695 = vld [vmem:[%s1 + $0x4e4] sm:$0xf]
      %v696 = vld [vmem:[%s1 + $0x4e8] sm:$0xf]
      %v697 = vld [vmem:[%s1 + $0x4ec] sm:$0xf]
      %v698 = vld [vmem:[%s1 + $0x4f0] sm:$0xf]
      %v699 = vld [vmem:[%s1 + $0x4f4] sm:$0xf]
      %v700 = vld [vmem:[%s1 + $0x4f8] sm:$0xf]
      %v701 = vld [vmem:[%s1 + $0x4fc] sm:$0xf]
      %v702 = vld [vmem:[%s1 + $0x500] sm:$0xf]
      %v703 = vld [vmem:[%s1 + $0x504] sm:$0xf]
      %v704 = vld [vmem:[%s1 + $0x508] sm:$0xf]
      %v705 = vld [vmem:[%s1 + $0x50c] sm:$0xf]
      %v706 = vld [vmem:[%s1 + $0x510] sm:$0xf]
      %v707 = vld [vmem:[%s1 + $0x514] sm:$0xf]
      %v708 = vld [vmem:[%s1 + $0x518] sm:$0xf]
      %v709 = vld [vmem:[%s1 + $0x51c] sm:$0xf]
      %v710 = vld [vmem:[%s1 + $0x520] sm:$0xf]
      %v711 = vld [vmem:[%s1 + $0x524] sm:$0xf]
      %v712 = vld [vmem:[%s1 + $0x528] sm:$0xf]
      %v713 = vld [vmem:[%s1 + $0x52c] sm:$0xf]
      %v714 = vld [vmem:[%s1 + $0x530] sm:$0xf]
      %v715 = vld [vmem:[%s1 + $0x534] sm:$0xf]
      %v716 = vld [vmem:[%s1 + $0x538] sm:$0xf]
      %v717 = vld [vmem:[%s1 + $0x53c] sm:$0xf]
      %v718 = vld [vmem:[%s1 + $0x540] sm:$0xf]
      %v719 = vld [vmem:[%s1 + $0x544] sm:$0xf]
      %v720 = vld [vmem:[%s1 + $0x548] sm:$0xf]
      %v721 = vld [vmem:[%s1 + $0x54c] sm:$0xf]
      %v722 = vld [vmem:[%s1 + $0x550] sm:$0xf]
      %v723 = vld [vmem:[%s1 + $0x554] sm:$0xf]
      %v724 = vld [vmem:[%s1 + $0x558] sm:$0xf]
      %v725 = vld [vmem:[%s1 + $0x55c] sm:$0xf]
      %v726 = vld [vmem:[%s1 + $0x560] sm:$0xf]
      %v727 = vld [vmem:[%s1 + $0x564] sm:$0xf]
      %v728 = vld [vmem:[%s1 + $0x568] sm:$0xf]
      %v729 = vld [vmem:[%s1 + $0x56c] sm:$0xf]
      %v730 = vld [vmem:[%s1 + $0x570] sm:$0xf]
      %v731 = vld [vmem:[%s1 + $0x574] sm:$0xf]
      %v732 = vld [vmem:[%s1 + $0x578] sm:$0xf]
      %v733 = vld [vmem:[%s1 + $0x57c] sm:$0xf]
      %v734 = vld [vmem:[%s1 + $0x580] sm:$0xf]
      %v735 = vld [vmem:[%s1 + $0x584] sm:$0xf]
      %v736 = vld [vmem:[%s1 + $0x588] sm:$0xf]
      %v737 = vld [vmem:[%s1 + $0x58c] sm:$0xf]
      %v738 = vld [vmem:[%s1 + $0x590] sm:$0xf]
      %v739 = vld [vmem:[%s1 + $0x594] sm:$0xf]
      %v740 = vld [vmem:[%s1 + $0x598] sm:$0xf]
      %v741 = vld [vmem:[%s1 + $0x59c] sm:$0xf]
      %v742 = vld [vmem:[%s1 + $0x5a0] sm:$0xf]
      %v743 = vld [vmem:[%s1 + $0x5a4] sm:$0xf]
      %v744 = vld [vmem:[%s1 + $0x5a8] sm:$0xf]
      %v745 = vld [vmem:[%s1 + $0x5ac] sm:$0xf]
      %v746 = vld [vmem:[%s1 + $0x5b0] sm:$0xf]
      %v747 = vld [vmem:[%s1 + $0x5b4] sm:$0xf]
      %v748 = vld [vmem:[%s1 + $0x5b8] sm:$0xf]
      %v749 = vld [vmem:[%s1 + $0x5bc] sm:$0xf]
      %v750 = vld [vmem:[%s1 + $0x5c0] sm:$0xf]
      %v751 = vld [vmem:[%s1 + $0x5c4] sm:$0xf]
      %v752 = vld [vmem:[%s1 + $0x5c8] sm:$0xf]
      %v753 = vld [vmem:[%s1 + $0x5cc] sm:$0xf]
      %v754 = vld [vmem:[%s1 + $0x5d0] sm:$0xf]
      %v755 = vld [vmem:[%s1 + $0x5d4] sm:$0xf]
      %v756 = vld [vmem:[%s1 + $0x5d8] sm:$0xf]
      %v757 = vld [vmem:[%s1 + $0x5dc] sm:$0xf]
      %v758 = vld [vmem:[%s1 + $0x5e0] sm:$0xf]
      %v759 = vld [vmem:[%s1 + $0x5e4] sm:$0xf]
      %v760 = vld [vmem:[%s1 + $0x5e8] sm:$0xf]
      %v761 = vld [vmem:[%s1 + $0x5ec] sm:$0xf]
      %v762 = vld [vmem:[%s1 + $0x5f0] sm:$0xf]
      %v763 = vld [vmem:[%s1 + $0x5f4] sm:$0xf]
      %v764 = vld [vmem:[%s1 + $0x5f8] sm:$0xf]
      %v765 = vld [vmem:[%s1 + $0x5fc] sm:$0xf]
      %v766 = vld [vmem:[%s1 + $0x600] sm:$0xf]
      %v767 = vld [vmem:[%s1 + $0x604] sm:$0xf]
      %v768 = vld [vmem:[%s1 + $0x608] sm:$0xf]
      %v769 = vld [vmem:[%s1 + $0x60c] sm:$0xf]
      %v770 = vld [vmem:[%s1 + $0x610] sm:$0xf]
      %v771 = vld [vmem:[%s1 + $0x614] sm:$0xf]
      %v772 = vld [vmem:[%s1 + $0x618] sm:$0xf]
      %v773 = vld [vmem:[%s1 + $0x61c] sm:$0xf]
      %v774 = vld [vmem:[%s1 + $0x620] sm:$0xf]
      %v775 = vld [vmem:[%s1 + $0x624] sm:$0xf]
      %v776 = vld [vmem:[%s1 + $0x628] sm:$0xf]
      %v777 = vld [vmem:[%s1 + $0x62c] sm:$0xf]
      %v778 = vld [vmem:[%s1 + $0x630] sm:$0xf]
      %v779 = vld [vmem:[%s1 + $0x634] sm:$0xf]
      %v780 = vld [vmem:[%s1 + $0x638] sm:$0xf]
      %v781 = vld [vmem:[%s1 + $0x63c] sm:$0xf]
      %v782 = vld [vmem:[%s1 + $0x640] sm:$0xf]
      %v783 = vld [vmem:[%s1 + $0x644] sm:$0xf]
      %v784 = vld [vmem:[%s1 + $0x648] sm:$0xf]
      %v785 = vld [vmem:[%s1 + $0x64c] sm:$0xf]
      %v786 = vld [vmem:[%s1 + $0x650] sm:$0xf]
      %v787 = vld [vmem:[%s1 + $0x654] sm:$0xf]
      %v788 = vld [vmem:[%s1 + $0x658] sm:$0xf]
      %v789 = vld [vmem:[%s1 + $0x65c] sm:$0xf]
      %v790 = vld [vmem:[%s1 + $0x660] sm:$0xf]
      %v791 = vld [vmem:[%s1 + $0x664] sm:$0xf]
      %v792 = vld [vmem:[%s1 + $0x668] sm:$0xf]
      %v793 = vld [vmem:[%s1 + $0x66c] sm:$0xf]
      %v794 = vld [vmem:[%s1 + $0x670] sm:$0xf]
      %v795 = vld [vmem:[%s1 + $0x674] sm:$0xf]
      %v796 = vld [vmem:[%s1 + $0x678] sm:$0xf]
      %v797 = vld [vmem:[%s1 + $0x67c] sm:$0xf]
      %v798 = vld [vmem:[%s1 + $0x680] sm:$0xf]
      %v799 = vld [vmem:[%s1 + $0x684] sm:$0xf]
      %v800 = vld [vmem:[%s1 + $0x688] sm:$0xf]
      %v801 = vld [vmem:[%s1 + $0x68c] sm:$0xf]
      %v802 = vld [vmem:[%s1 + $0x690] sm:$0xf]
      %v803 = vld [vmem:[%s1 + $0x694] sm:$0xf]
      %v804 = vld [vmem:[%s1 + $0x698] sm:$0xf]
      %v805 = vld [vmem:[%s1 + $0x69c] sm:$0xf]
      %v806 = vld [vmem:[%s1 + $0x6a0] sm:$0xf]
      %v807 = vld [vmem:[%s1 + $0x6a4] sm:$0xf]
      %v808 = vld [vmem:[%s1 + $0x6a8] sm:$0xf]
      %v809 = vld [vmem:[%s1 + $0x6ac] sm:$0xf]
      %v810 = vld [vmem:[%s1 + $0x6b0] sm:$0xf]
      %v811 = vld [vmem:[%s1 + $0x6b4] sm:$0xf]
      %v812 = vld [vmem:[%s1 + $0x6b8] sm:$0xf]
      %v813 = vld [vmem:[%s1 + $0x6bc] sm:$0xf]
      %v814 = vld [vmem:[%s1 + $0x6c0] sm:$0xf]
      %v815 = vld [vmem:[%s1 + $0x6c4] sm:$0xf]
      %v816 = vld [vmem:[%s1 + $0x6c8] sm:$0xf]
      %v817 = vld [vmem:[%s1 + $0x6cc] sm:$0xf]
      %v818 = vld [vmem:[%s1 + $0x6d0] sm:$0xf]
      %v819 = vld [vmem:[%s1 + $0x6d4] sm:$0xf]
      %v820 = vld [vmem:[%s1 + $0x6d8] sm:$0xf]
      %v821 = vld [vmem:[%s1 + $0x6dc] sm:$0xf]
      %v822 = vld [vmem:[%s1 + $0x6e0] sm:$0xf]
      %v823 = vld [vmem:[%s1 + $0x6e4] sm:$0xf]
      %v824 = vld [vmem:[%s1 + $0x6e8] sm:$0xf]
      %v825 = vld [vmem:[%s1 + $0x6ec] sm:$0xf]
      %v826 = vld [vmem:[%s1 + $0x6f0] sm:$0xf]
      %v827 = vld [vmem:[%s1 + $0x6f4] sm:$0xf]
      %v828 = vld [vmem:[%s1 + $0x6f8] sm:$0xf]
      %v829 = vld [vmem:[%s1 + $0x6fc] sm:$0xf]
      %v830 = vld [vmem:[%s1 + $0x700] sm:$0xf]
      %v831 = vld [vmem:[%s1 + $0x704] sm:$0xf]
      %v832 = vld [vmem:[%s1 + $0x708] sm:$0xf]
      %v833 = vld [vmem:[%s1 + $0x70c] sm:$0xf]
      %v834 = vld [vmem:[%s1 + $0x710] sm:$0xf]
      %v835 = vld [vmem:[%s1 + $0x714] sm:$0xf]
      %v836 = vld [vmem:[%s1 + $0x718] sm:$0xf]
      %v837 = vld [vmem:[%s1 + $0x71c] sm:$0xf]
      %v838 = vld [vmem:[%s1 + $0x720] sm:$0xf]
      %v839 = vld [vmem:[%s1 + $0x724] sm:$0xf]
      %v840 = vld [vmem:[%s1 + $0x728] sm:$0xf]
      %v841 = vld [vmem:[%s1 + $0x72c] sm:$0xf]
      %v842 = vld [vmem:[%s1 + $0x730] sm:$0xf]
      %v843 = vld [vmem:[%s1 + $0x734] sm:$0xf]
      %v844 = vld [vmem:[%s1 + $0x738] sm:$0xf]
      %v845 = vld [vmem:[%s1 + $0x73c] sm:$0xf]
      %v846 = vld [vmem:[%s1 + $0x740] sm:$0xf]
      %v847 = vld [vmem:[%s1 + $0x744] sm:$0xf]
      %v848 = vld [vmem:[%s1 + $0x748] sm:$0xf]
      %v849 = vld [vmem:[%s1 + $0x74c] sm:$0xf]
      %v850 = vld [vmem:[%s1 + $0x750] sm:$0xf]
      %v851 = vld [vmem:[%s1 + $0x754] sm:$0xf]
      %v852 = vld [vmem:[%s1 + $0x758] sm:$0xf]
      %v853 = vld [vmem:[%s1 + $0x75c] sm:$0xf]
      %v854 = vld [vmem:[%s1 + $0x760] sm:$0xf]
      %v855 = vld [vmem:[%s1 + $0x764] sm:$0xf]
      %v856 = vld [vmem:[%s1 + $0x768] sm:$0xf]
      %v857 = vld [vmem:[%s1 + $0x76c] sm:$0xf]
      %v858 = vld [vmem:[%s1 + $0x770] sm:$0xf]
      %v859 = vld [vmem:[%s1 + $0x774] sm:$0xf]
      %v860 = vld [vmem:[%s1 + $0x778] sm:$0xf]
      %v861 = vld [vmem:[%s1 + $0x77c] sm:$0xf]
      %v862 = vld [vmem:[%s1 + $0x780] sm:$0xf]
      %v863 = vld [vmem:[%s1 + $0x784] sm:$0xf]
      %v864 = vld [vmem:[%s1 + $0x788] sm:$0xf]
      %v865 = vld [vmem:[%s1 + $0x78c] sm:$0xf]
      %v866 = vld [vmem:[%s1 + $0x790] sm:$0xf]
      %v867 = vld [vmem:[%s1 + $0x794] sm:$0xf]
      %v868 = vld [vmem:[%s1 + $0x798] sm:$0xf]
      %v869 = vld [vmem:[%s1 + $0x79c] sm:$0xf]
      %v870 = vld [vmem:[%s1 + $0x7a0] sm:$0xf]
      %v871 = vld [vmem:[%s1 + $0x7a4] sm:$0xf]
      %v872 = vld [vmem:[%s1 + $0x7a8] sm:$0xf]
      %v873 = vld [vmem:[%s1 + $0x7ac] sm:$0xf]
      %v874 = vld [vmem:[%s1 + $0x7b0] sm:$0xf]
      %v875 = vld [vmem:[%s1 + $0x7b4] sm:$0xf]
      %v876 = vld [vmem:[%s1 + $0x7b8] sm:$0xf]
      %v877 = vld [vmem:[%s1 + $0x7bc] sm:$0xf]
      %v878 = vld [vmem:[%s1 + $0x7c0] sm:$0xf]
      %v879 = vld [vmem:[%s1 + $0x7c4] sm:$0xf]
      %v880 = vld [vmem:[%s1 + $0x7c8] sm:$0xf]
      %v881 = vld [vmem:[%s1 + $0x7cc] sm:$0xf]
      %v882 = vld [vmem:[%s1 + $0x7d0] sm:$0xf]
      %v883 = vld [vmem:[%s1 + $0x7d4] sm:$0xf]
      %v884 = vld [vmem:[%s1 + $0x7d8] sm:$0xf]
      %v885 = vld [vmem:[%s1 + $0x7dc] sm:$0xf]
      %v886 = vld [vmem:[%s1 + $0x7e0] sm:$0xf]
      %v887 = vld [vmem:[%s1 + $0x7e4] sm:$0xf]
      %v888 = vld [vmem:[%s1 + $0x7e8] sm:$0xf]
      %v889 = vld [vmem:[%s1 + $0x7ec] sm:$0xf]
      %v890 = vld [vmem:[%s1 + $0x7f0] sm:$0xf]
      %v891 = vld [vmem:[%s1 + $0x7f4] sm:$0xf]
      %v892 = vld [vmem:[%s1 + $0x7f8] sm:$0xf]
      %v893 = vld [vmem:[%s1 + $0x7fc] sm:$0xf]
      %v894 = vld [vmem:[%s1 + $0x800] sm:$0xf]
      %v895 = vld [vmem:[%s1 + $0x804] sm:$0xf]
      %v896 = vld [vmem:[%s1 + $0x808] sm:$0xf]
      %v897 = vld [vmem:[%s1 + $0x80c] sm:$0xf]
      %v898 = vld [vmem:[%s1 + $0x810] sm:$0xf]
      %v899 = vld [vmem:[%s1 + $0x814] sm:$0xf]
      %v900 = vld [vmem:[%s1 + $0x818] sm:$0xf]
      %v901 = vld [vmem:[%s1 + $0x81c] sm:$0xf]
      %v902 = vld [vmem:[%s1 + $0x820] sm:$0xf]
      %v903 = vld [vmem:[%s1 + $0x824] sm:$0xf]
      %v904 = vld [vmem:[%s1 + $0x828] sm:$0xf]
      %v905 = vld [vmem:[%s1 + $0x82c] sm:$0xf]
      %v906 = vld [vmem:[%s1 + $0x830] sm:$0xf]
      %v907 = vld [vmem:[%s1 + $0x834] sm:$0xf]
      %v908 = vld [vmem:[%s1 + $0x838] sm:$0xf]
      %v909 = vld [vmem:[%s1 + $0x83c] sm:$0xf]
      %v910 = vld [vmem:[%s1 + $0x840] sm:$0xf]
      %v911 = vld [vmem:[%s1 + $0x844] sm:$0xf]
      %v912 = vld [vmem:[%s1 + $0x848] sm:$0xf]
      %v913 = vld [vmem:[%s1 + $0x84c] sm:$0xf]
      %v914 = vld [vmem:[%s1 + $0x850] sm:$0xf]
      %v915 = vld [vmem:[%s1 + $0x854] sm:$0xf]
      %v916 = vld [vmem:[%s1 + $0x858] sm:$0xf]
      %v917 = vld [vmem:[%s1 + $0x85c] sm:$0xf]
      %v918 = vld [vmem:[%s1 + $0x860] sm:$0xf]
      %v919 = vld [vmem:[%s1 + $0x864] sm:$0xf]
      %v920 = vld [vmem:[%s1 + $0x868] sm:$0xf]
      %v921 = vld [vmem:[%s1 + $0x86c] sm:$0xf]
      %v922 = vld [vmem:[%s1 + $0x870] sm:$0xf]
      %v923 = vld [vmem:[%s1 + $0x874] sm:$0xf]
      %v924 = vld [vmem:[%s1 + $0x878] sm:$0xf]
      %v925 = vld [vmem:[%s1 + $0x87c] sm:$0xf]
      %v926 = vld [vmem:[%s1 + $0x880] sm:$0xf]
      %v927 = vld [vmem:[%s1 + $0x884] sm:$0xf]
      %v928 = vld [vmem:[%s1 + $0x888] sm:$0xf]
      %v929 = vld [vmem:[%s1 + $0x88c] sm:$0xf]
      %v930 = vld [vmem:[%s1 + $0x890] sm:$0xf]
      %v931 = vld [vmem:[%s1 + $0x894] sm:$0xf]
      %v932 = vld [vmem:[%s1 + $0x898] sm:$0xf]
      %v933 = vld [vmem:[%s1 + $0x89c] sm:$0xf]
      %v934 = vld [vmem:[%s1 + $0x8a0] sm:$0xf]
      %v935 = vld [vmem:[%s1 + $0x8a4] sm:$0xf]
      %v936 = vld [vmem:[%s1 + $0x8a8] sm:$0xf]
      %v937 = vld [vmem:[%s1 + $0x8ac] sm:$0xf]
      %v938 = vld [vmem:[%s1 + $0x8b0] sm:$0xf]
      %v939 = vld [vmem:[%s1 + $0x8b4] sm:$0xf]
      %v940 = vld [vmem:[%s1 + $0x8b8] sm:$0xf]
      %v941 = vld [vmem:[%s1 + $0x8bc] sm:$0xf]
      %v942 = vld [vmem:[%s1 + $0x8c0] sm:$0xf]
      %v943 = vld [vmem:[%s1 + $0x8c4] sm:$0xf]
      %v944 = vld [vmem:[%s1 + $0x8c8] sm:$0xf]
      %v945 = vld [vmem:[%s1 + $0x8cc] sm:$0xf]
      %v946 = vld [vmem:[%s1 + $0x8d0] sm:$0xf]
      %v947 = vld [vmem:[%s1 + $0x8d4] sm:$0xf]
      %v948 = vld [vmem:[%s1 + $0x8d8] sm:$0xf]
      %v949 = vld [vmem:[%s1 + $0x8dc] sm:$0xf]
      %v950 = vld [vmem:[%s1 + $0x8e0] sm:$0xf]
      %v951 = vld [vmem:[%s1 + $0x8e4] sm:$0xf]
      %v952 = vld [vmem:[%s1 + $0x8e8] sm:$0xf]
      %v953 = vld [vmem:[%s1 + $0x8ec] sm:$0xf]
      %v954 = vld [vmem:[%s1 + $0x8f0] sm:$0xf]
      %v955 = vld [vmem:[%s1 + $0x8f4] sm:$0xf]
      %v956 = vld [vmem:[%s1 + $0x8f8] sm:$0xf]
      %v957 = vld [vmem:[%s1 + $0x8fc] sm:$0xf]
      %v958 = vld [vmem:[%s1 + $0x900] sm:$0xf]
      %v959 = vld [vmem:[%s1 + $0x904] sm:$0xf]
      %v960 = vld [vmem:[%s1 + $0x908] sm:$0xf]
      %v961 = vld [vmem:[%s1 + $0x90c] sm:$0xf]
      %v962 = vld [vmem:[%s1 + $0x910] sm:$0xf]
      %v963 = vld [vmem:[%s1 + $0x914] sm:$0xf]
      %v964 = vld [vmem:[%s1 + $0x918] sm:$0xf]
      %v965 = vld [vmem:[%s1 + $0x91c] sm:$0xf]
      %v966 = vld [vmem:[%s1 + $0x920] sm:$0xf]
      %v967 = vld [vmem:[%s1 + $0x924] sm:$0xf]
      %v968 = vld [vmem:[%s1 + $0x928] sm:$0xf]
      %v969 = vld [vmem:[%s1 + $0x92c] sm:$0xf]
      %v970 = vld [vmem:[%s1 + $0x930] sm:$0xf]
      %v971 = vld [vmem:[%s1 + $0x934] sm:$0xf]
      %v972 = vld [vmem:[%s1 + $0x938] sm:$0xf]
      %v973 = vld [vmem:[%s1 + $0x93c] sm:$0xf]
      %v974 = vld [vmem:[%s1 + $0x940] sm:$0xf]
      %v975 = vld [vmem:[%s1 + $0x944] sm:$0xf]
      %v976 = vld [vmem:[%s1 + $0x948] sm:$0xf]
      %v977 = vld [vmem:[%s1 + $0x94c] sm:$0xf]
      %v978 = vld [vmem:[%s1 + $0x950] sm:$0xf]
      %v979 = vld [vmem:[%s1 + $0x954] sm:$0xf]
      %v980 = vld [vmem:[%s1 + $0x958] sm:$0xf]
      %v981 = vld [vmem:[%s1 + $0x95c] sm:$0xf]
      %v982 = vld [vmem:[%s1 + $0x960] sm:$0xf]
      %v983 = vld [vmem:[%s1 + $0x964] sm:$0xf]
      %v984 = vld [vmem:[%s1 + $0x968] sm:$0xf]
      %v985 = vld [vmem:[%s1 + $0x96c] sm:$0xf]
      %v986 = vld [vmem:[%s1 + $0x970] sm:$0xf]
      %v987 = vld [vmem:[%s1 + $0x974] sm:$0xf]
      %v988 = vld [vmem:[%s1 + $0x978] sm:$0xf]
      %v989 = vld [vmem:[%s1 + $0x97c] sm:$0xf]
      %v990 = vld [vmem:[%s1 + $0x980] sm:$0xf]
      %v991 = vld [vmem:[%s1 + $0x984] sm:$0xf]
      %v992 = vld [vmem:[%s1 + $0x988] sm:$0xf]
      %v993 = vld [vmem:[%s1 + $0x98c] sm:$0xf]
      %v994 = vld [vmem:[%s1 + $0x990] sm:$0xf]
      %v995 = vld [vmem:[%s1 + $0x994] sm:$0xf]
      %v996 = vld [vmem:[%s1 + $0x998] sm:$0xf]
      %v997 = vld [vmem:[%s1 + $0x99c] sm:$0xf]
      %v998 = vld [vmem:[%s1 + $0x9a0] sm:$0xf]
      %v999 = vld [vmem:[%s1 + $0x9a4] sm:$0xf]
      %v1000 = vld [vmem:[%s1 + $0x9a8] sm:$0xf]
      %v1001 = vld [vmem:[%s1 + $0x9ac] sm:$0xf]
      %v1002 = vld [vmem:[%s1 + $0x9b0] sm:$0xf]
      %v1003 = vld [vmem:[%s1 + $0x9b4] sm:$0xf]
      %v1004 = vld [vmem:[%s1 + $0x9b8] sm:$0xf]
      %v1005 = vld [vmem:[%s1 + $0x9bc] sm:$0xf]
      %v1006 = vld [vmem:[%s1 + $0x9c0] sm:$0xf]
      %v1007 = vld [vmem:[%s1 + $0x9c4] sm:$0xf]
      %v1008 = vld [vmem:[%s1 + $0x9c8] sm:$0xf]
      %v1009 = vld [vmem:[%s1 + $0x9cc] sm:$0xf]
      %v1010 = vld [vmem:[%s1 + $0x9d0] sm:$0xf]
      %v1011 = vld [vmem:[%s1 + $0x9d4] sm:$0xf]
      %v1012 = vld [vmem:[%s1 + $0x9d8] sm:$0xf]
      %v1013 = vld [vmem:[%s1 + $0x9dc] sm:$0xf]
      %v1014 = vld [vmem:[%s1 + $0x9e0] sm:$0xf]
      %v1015 = vld [vmem:[%s1 + $0x9e4] sm:$0xf]
      %v1016 = vld [vmem:[%s1 + $0x9e8] sm:$0xf]
      %v1017 = vld [vmem:[%s1 + $0x9ec] sm:$0xf]
      %v1018 = vld [vmem:[%s1 + $0x9f0] sm:$0xf]
      %v1019 = vld [vmem:[%s1 + $0x9f4] sm:$0xf]
      %v1020 = vld [vmem:[%s1 + $0x9f8] sm:$0xf]
      %v1021 = vld [vmem:[%s1 + $0x9fc] sm:$0xf]
      %v1022 = vld [vmem:[%s1 + $0xa00] sm:$0xf]
      %v1023 = vld [vmem:[%s1 + $0xa04] sm:$0xf]
      %v1024 = vld [vmem:[%s1 + $0xa08] sm:$0xf]
      %v1025 = vld [vmem:[%s1 + $0xa0c] sm:$0xf]
      %v1026 = vld [vmem:[%s1 + $0xa10] sm:$0xf]
      %v1027 = vld [vmem:[%s1 + $0xa14] sm:$0xf]
      %v1028 = vld [vmem:[%s1 + $0xa18] sm:$0xf]
      %v1029 = vld [vmem:[%s1 + $0xa1c] sm:$0xf]
      %v1030 = vld [vmem:[%s1 + $0xa20] sm:$0xf]
      %v1031 = vld [vmem:[%s1 + $0xa24] sm:$0xf]
      %v1032 = vld [vmem:[%s1 + $0xa28] sm:$0xf]
      %v1033 = vld [vmem:[%s1 + $0xa2c] sm:$0xf]
      %v1034 = vld [vmem:[%s1 + $0xa30] sm:$0xf]
      %v1035 = vld [vmem:[%s1 + $0xa34] sm:$0xf]
      %v1036 = vld [vmem:[%s1 + $0xa38] sm:$0xf]
      %v1037 = vld [vmem:[%s1 + $0xa3c] sm:$0xf]
      %v1038 = vld [vmem:[%s1 + $0xa40] sm:$0xf]
      %v1039 = vld [vmem:[%s1 + $0xa44] sm:$0xf]
      %v1040 = vld [vmem:[%s1 + $0xa48] sm:$0xf]
      %v1041 = vld [vmem:[%s1 + $0xa4c] sm:$0xf]
      %v1042 = vld [vmem:[%s1 + $0xa50] sm:$0xf]
      %v1043 = vld [vmem:[%s1 + $0xa54] sm:$0xf]
      %v1044 = vld [vmem:[%s1 + $0xa58] sm:$0xf]
      %v1045 = vld [vmem:[%s1 + $0xa5c] sm:$0xf]
      %v1046 = vld [vmem:[%s1 + $0xa60] sm:$0xf]
      %v1047 = vld [vmem:[%s1 + $0xa64] sm:$0xf]
      %v1048 = vld [vmem:[%s1 + $0xa68] sm:$0xf]
      %v1049 = vld [vmem:[%s1 + $0xa6c] sm:$0xf]
      %v1050 = vld [vmem:[%s1 + $0xa70] sm:$0xf]
      %v1051 = vld [vmem:[%s1 + $0xa74] sm:$0xf]
      %v1052 = vld [vmem:[%s1 + $0xa78] sm:$0xf]
      %v1053 = vld [vmem:[%s1 + $0xa7c] sm:$0xf]
      %v1054 = vld [vmem:[%s1 + $0xa80] sm:$0xf]
      %v1055 = vld [vmem:[%s1 + $0xa84] sm:$0xf]
      %v1056 = vld [vmem:[%s1 + $0xa88] sm:$0xf]
      %v1057 = vld [vmem:[%s1 + $0xa8c] sm:$0xf]
      %v1058 = vld [vmem:[%s1 + $0xa90] sm:$0xf]
      %v1059 = vld [vmem:[%s1 + $0xa94] sm:$0xf]
      %v1060 = vld [vmem:[%s1 + $0xa98] sm:$0xf]
      %v1061 = vld [vmem:[%s1 + $0xa9c] sm:$0xf]
      %v1062 = vld [vmem:[%s1 + $0xaa0] sm:$0xf]
      %v1063 = vld [vmem:[%s1 + $0xaa4] sm:$0xf]
      %v1064 = vld [vmem:[%s1 + $0xaa8] sm:$0xf]
      %v1065 = vld [vmem:[%s1 + $0xaac] sm:$0xf]
      %v1066 = vld [vmem:[%s1 + $0xab0] sm:$0xf]
      %v1067 = vld [vmem:[%s1 + $0xab4] sm:$0xf]
      %v1068 = vld [vmem:[%s1 + $0xab8] sm:$0xf]
      %v1069 = vld [vmem:[%s1 + $0xabc] sm:$0xf]
      %v1070 = vld [vmem:[%s1 + $0xac0] sm:$0xf]
      %v1071 = vld [vmem:[%s1 + $0xac4] sm:$0xf]
      %v1072 = vld [vmem:[%s1 + $0xac8] sm:$0xf]
      %v1073 = vld [vmem:[%s1 + $0xacc] sm:$0xf]
      %v1074 = vld [vmem:[%s1 + $0xad0] sm:$0xf]
      %v1075 = vld [vmem:[%s1 + $0xad4] sm:$0xf]
      %v1076 = vld [vmem:[%s1 + $0xad8] sm:$0xf]
      %v1077 = vld [vmem:[%s1 + $0xadc] sm:$0xf]
      %v1078 = vld [vmem:[%s1 + $0xae0] sm:$0xf]
      %v1079 = vld [vmem:[%s1 + $0xae4] sm:$0xf]
      %v1080 = vld [vmem:[%s1 + $0xae8] sm:$0xf]
      %v1081 = vld [vmem:[%s1 + $0xaec] sm:$0xf]
      %v1082 = vld [vmem:[%s1 + $0xaf0] sm:$0xf]
      %v1083 = vld [vmem:[%s1 + $0xaf4] sm:$0xf]
      %v1084 = vld [vmem:[%s1 + $0xaf8] sm:$0xf]
      %v1085 = vld [vmem:[%s1 + $0xafc] sm:$0xf]
      %v1086 = vld [vmem:[%s1 + $0xb00] sm:$0xf]
      %v1087 = vld [vmem:[%s1 + $0xb04] sm:$0xf]
      %v1088 = vld [vmem:[%s1 + $0xb08] sm:$0xf]
      %v1089 = vld [vmem:[%s1 + $0xb0c] sm:$0xf]
      %v1090 = vld [vmem:[%s1 + $0xb10] sm:$0xf]
      %v1091 = vld [vmem:[%s1 + $0xb14] sm:$0xf]
      %v1092 = vld [vmem:[%s1 + $0xb18] sm:$0xf]
      %v1093 = vld [vmem:[%s1 + $0xb1c] sm:$0xf]
      %v1094 = vld [vmem:[%s1 + $0xb20] sm:$0xf]
      %v1095 = vld [vmem:[%s1 + $0xb24] sm:$0xf]
      %v1096 = vld [vmem:[%s1 + $0xb28] sm:$0xf]
      %v1097 = vld [vmem:[%s1 + $0xb2c] sm:$0xf]
      %v1098 = vld [vmem:[%s1 + $0xb30] sm:$0xf]
      %v1099 = vld [vmem:[%s1 + $0xb34] sm:$0xf]
      %v1100 = vld [vmem:[%s1 + $0xb38] sm:$0xf]
      %v1101 = vld [vmem:[%s1 + $0xb3c] sm:$0xf]
      %v1102 = vld [vmem:[%s1 + $0xb40] sm:$0xf]
      %v1103 = vld [vmem:[%s1 + $0xb44] sm:$0xf]
      %v1104 = vld [vmem:[%s1 + $0xb48] sm:$0xf]
      %v1105 = vld [vmem:[%s1 + $0xb4c] sm:$0xf]
      %v1106 = vld [vmem:[%s1 + $0xb50] sm:$0xf]
      %v1107 = vld [vmem:[%s1 + $0xb54] sm:$0xf]
      %v1108 = vld [vmem:[%s1 + $0xb58] sm:$0xf]
      %v1109 = vld [vmem:[%s1 + $0xb5c] sm:$0xf]
      %v1110 = vld [vmem:[%s1 + $0xb60] sm:$0xf]
      %v1111 = vld [vmem:[%s1 + $0xb64] sm:$0xf]
      %v1112 = vld [vmem:[%s1 + $0xb68] sm:$0xf]
      %v1113 = vld [vmem:[%s1 + $0xb6c] sm:$0xf]
      %v1114 = vld [vmem:[%s1 + $0xb70] sm:$0xf]
      %v1115 = vld [vmem:[%s1 + $0xb74] sm:$0xf]
      %v1116 = vld [vmem:[%s1 + $0xb78] sm:$0xf]
      %v1117 = vld [vmem:[%s1 + $0xb7c] sm:$0xf]
      %v1118 = vld [vmem:[%s1 + $0xb80] sm:$0xf]
      %v1119 = vld [vmem:[%s1 + $0xb84] sm:$0xf]
      %v1120 = vld [vmem:[%s1 + $0xb88] sm:$0xf]
      %v1121 = vld [vmem:[%s1 + $0xb8c] sm:$0xf]
      %v1122 = vld [vmem:[%s1 + $0xb90] sm:$0xf]
      %v1123 = vld [vmem:[%s1 + $0xb94] sm:$0xf]
      %v1124 = vld [vmem:[%s1 + $0xb98] sm:$0xf]
      %v1125 = vld [vmem:[%s1 + $0xb9c] sm:$0xf]
      %v1126 = vld [vmem:[%s1 + $0xba0] sm:$0xf]
      %v1127 = vld [vmem:[%s1 + $0xba4] sm:$0xf]
      %v1128 = vld [vmem:[%s1 + $0xba8] sm:$0xf]
      %v1129 = vld [vmem:[%s1 + $0xbac] sm:$0xf]
      %v1130 = vld [vmem:[%s1 + $0xbb0] sm:$0xf]
      %v1131 = vld [vmem:[%s1 + $0xbb4] sm:$0xf]
      %v1132 = vld [vmem:[%s1 + $0xbb8] sm:$0xf]
      %v1133 = vld [vmem:[%s1 + $0xbbc] sm:$0xf]
      %v1134 = vld [vmem:[%s1 + $0xbc0] sm:$0xf]
      %v1135 = vld [vmem:[%s1 + $0xbc4] sm:$0xf]
      %v1136 = vld [vmem:[%s1 + $0xbc8] sm:$0xf]
      %v1137 = vld [vmem:[%s1 + $0xbcc] sm:$0xf]
      %v1138 = vld [vmem:[%s1 + $0xbd0] sm:$0xf]
      %v1139 = vld [vmem:[%s1 + $0xbd4] sm:$0xf]
      %v1140 = vld [vmem:[%s1 + $0xbd8] sm:$0xf]
      %v1141 = vld [vmem:[%s1 + $0xbdc] sm:$0xf]
      %v1142 = vld [vmem:[%s1 + $0xbe0] sm:$0xf]
      %v1143 = vld [vmem:[%s1 + $0xbe4] sm:$0xf]
      %v1144 = vld [vmem:[%s1 + $0xbe8] sm:$0xf]
      %v1145 = vld [vmem:[%s1 + $0xbec] sm:$0xf]
      %v1146 = vld [vmem:[%s1 + $0xbf0] sm:$0xf]
      %v1147 = vld [vmem:[%s1 + $0xbf4] sm:$0xf]
      %v1148 = vld [vmem:[%s1 + $0xbf8] sm:$0xf]
      %v1149 = vld [vmem:[%s1 + $0xbfc] sm:$0xf]
      %v1150 = vld [vmem:[%s1 + $0xc00] sm:$0xf]
      %v1151 = vld [vmem:[%s1 + $0xc04] sm:$0xf]
      %v1152 = vld [vmem:[%s1 + $0xc08] sm:$0xf]
      %v1153 = vld [vmem:[%s1 + $0xc0c] sm:$0xf]
      %v1154 = vld [vmem:[%s1 + $0xc10] sm:$0xf]
      %v1155 = vld [vmem:[%s1 + $0xc14] sm:$0xf]
      %v1156 = vld [vmem:[%s1 + $0xc18] sm:$0xf]
      %v1157 = vld [vmem:[%s1 + $0xc1c] sm:$0xf]
      %v1158 = vld [vmem:[%s1 + $0xc20] sm:$0xf]
      %v1159 = vld [vmem:[%s1 + $0xc24] sm:$0xf]
      %v1160 = vld [vmem:[%s1 + $0xc28] sm:$0xf]
      %v1161 = vld [vmem:[%s1 + $0xc2c] sm:$0xf]
      %v1162 = vld [vmem:[%s1 + $0xc30] sm:$0xf]
      %v1163 = vld [vmem:[%s1 + $0xc34] sm:$0xf]
      %v1164 = vld [vmem:[%s1 + $0xc38] sm:$0xf]
      %v1165 = vld [vmem:[%s1 + $0xc3c] sm:$0xf]
      %v1166 = vld [vmem:[%s1 + $0xc40] sm:$0xf]
      %v1167 = vld [vmem:[%s1 + $0xc44] sm:$0xf]
      %v1168 = vld [vmem:[%s1 + $0xc48] sm:$0xf]
      %v1169 = vld [vmem:[%s1 + $0xc4c] sm:$0xf]
      %v1170 = vld [vmem:[%s1 + $0xc50] sm:$0xf]
      %v1171 = vld [vmem:[%s1 + $0xc54] sm:$0xf]
      %v1172 = vld [vmem:[%s1 + $0xc58] sm:$0xf]
      %v1173 = vld [vmem:[%s1 + $0xc5c] sm:$0xf]
      %v1174 = vld [vmem:[%s1 + $0xc60] sm:$0xf]
      %v1175 = vld [vmem:[%s1 + $0xc64] sm:$0xf]
      %v1176 = vld [vmem:[%s1 + $0xc68] sm:$0xf]
      %v1177 = vld [vmem:[%s1 + $0xc6c] sm:$0xf]
      %v1178 = vld [vmem:[%s1 + $0xc70] sm:$0xf]
      %v1179 = vld [vmem:[%s1 + $0xc74] sm:$0xf]
      %v1180 = vld [vmem:[%s1 + $0xc78] sm:$0xf]
      %v1181 = vld [vmem:[%s1 + $0xc7c] sm:$0xf]
      %v1182 = vld [vmem:[%s1 + $0xc80] sm:$0xf]
      %v1183 = vld [vmem:[%s1 + $0xc84] sm:$0xf]
      %v1184 = vld [vmem:[%s1 + $0xc88] sm:$0xf]
      %v1185 = vld [vmem:[%s1 + $0xc8c] sm:$0xf]
      %v1186 = vld [vmem:[%s1 + $0xc90] sm:$0xf]
      %v1187 = vld [vmem:[%s1 + $0xc94] sm:$0xf]
      %v1188 = vld [vmem:[%s1 + $0xc98] sm:$0xf]
      %v1189 = vld [vmem:[%s1 + $0xc9c] sm:$0xf]
      %v1190 = vld [vmem:[%s1 + $0xca0] sm:$0xf]
      %v1191 = vld [vmem:[%s1 + $0xca4] sm:$0xf]
      %v1192 = vld [vmem:[%s1 + $0xca8] sm:$0xf]
      %v1193 = vld [vmem:[%s1 + $0xcac] sm:$0xf]
      %v1194 = vld [vmem:[%s1 + $0xcb0] sm:$0xf]
      %v1195 = vld [vmem:[%s1 + $0xcb4] sm:$0xf]
      %v1196 = vld [vmem:[%s1 + $0xcb8] sm:$0xf]
      %v1197 = vld [vmem:[%s1 + $0xcbc] sm:$0xf]
      %v1198 = vld [vmem:[%s1 + $0xcc0] sm:$0xf]
      %v1199 = vld [vmem:[%s1 + $0xcc4] sm:$0xf]
      %v1200 = vld [vmem:[%s1 + $0xcc8] sm:$0xf]
      %v1201 = vld [vmem:[%s1 + $0xccc] sm:$0xf]
      %v1202 = vld [vmem:[%s1 + $0xcd0] sm:$0xf]
      %v1203 = vld [vmem:[%s1 + $0xcd4] sm:$0xf]
      %v1204 = vld [vmem:[%s1 + $0xcd8] sm:$0xf]
      %v1205 = vld [vmem:[%s1 + $0xcdc] sm:$0xf]
      %v1206 = vld [vmem:[%s1 + $0xce0] sm:$0xf]
      %v1207 = vld [vmem:[%s1 + $0xce4] sm:$0xf]
      %v1208 = vld [vmem:[%s1 + $0xce8] sm:$0xf]
      %v1209 = vld [vmem:[%s1 + $0xcec] sm:$0xf]
      %v1210 = vld [vmem:[%s1 + $0xcf0] sm:$0xf]
      %v1211 = vld [vmem:[%s1 + $0xcf4] sm:$0xf]
      %v1212 = vld [vmem:[%s1 + $0xcf8] sm:$0xf]
      %v1213 = vld [vmem:[%s1 + $0xcfc] sm:$0xf]
      %v1214 = vld [vmem:[%s1 + $0xd00] sm:$0xf]
      %v1215 = vld [vmem:[%s1 + $0xd04] sm:$0xf]
      %v1216 = vld [vmem:[%s1 + $0xd08] sm:$0xf]
      %v1217 = vld [vmem:[%s1 + $0xd0c] sm:$0xf]
      %v1218 = vld [vmem:[%s1 + $0xd10] sm:$0xf]
      %v1219 = vld [vmem:[%s1 + $0xd14] sm:$0xf]
      %v1220 = vld [vmem:[%s1 + $0xd18] sm:$0xf]
      %v1221 = vld [vmem:[%s1 + $0xd1c] sm:$0xf]
      %v1222 = vld [vmem:[%s1 + $0xd20] sm:$0xf]
      %v1223 = vld [vmem:[%s1 + $0xd24] sm:$0xf]
      %v1224 = vld [vmem:[%s1 + $0xd28] sm:$0xf]
      %v1225 = vld [vmem:[%s1 + $0xd2c] sm:$0xf]
      %v1226 = vld [vmem:[%s1 + $0xd30] sm:$0xf]
      %v1227 = vld [vmem:[%s1 + $0xd34] sm:$0xf]
      %v1228 = vld [vmem:[%s1 + $0xd38] sm:$0xf]
      %v1229 = vld [vmem:[%s1 + $0xd3c] sm:$0xf]
      %v1230 = vld [vmem:[%s1 + $0xd40] sm:$0xf]
      %v1231 = vld [vmem:[%s1 + $0xd44] sm:$0xf]
      %v1232 = vld [vmem:[%s1 + $0xd48] sm:$0xf]
      %v1233 = vld [vmem:[%s1 + $0xd4c] sm:$0xf]
      %v1234 = vld [vmem:[%s1 + $0xd50] sm:$0xf]
      %v1235 = vld [vmem:[%s1 + $0xd54] sm:$0xf]
      %v1236 = vld [vmem:[%s1 + $0xd58] sm:$0xf]
      %v1237 = vld [vmem:[%s1 + $0xd5c] sm:$0xf]
      %v1238 = vld [vmem:[%s1 + $0xd60] sm:$0xf]
      %v1239 = vld [vmem:[%s1 + $0xd64] sm:$0xf]
      %v1240 = vld [vmem:[%s1 + $0xd68] sm:$0xf]
      %v1241 = vld [vmem:[%s1 + $0xd6c] sm:$0xf]
      %v1242 = vld [vmem:[%s1 + $0xd70] sm:$0xf]
      %v1243 = vld [vmem:[%s1 + $0xd74] sm:$0xf]
      %v1244 = vld [vmem:[%s1 + $0xd78] sm:$0xf]
      %v1245 = vld [vmem:[%s1 + $0xd7c] sm:$0xf]
      %v1246 = vld [vmem:[%s1 + $0xd80] sm:$0xf]
      %v1247 = vld [vmem:[%s1 + $0xd84] sm:$0xf]
      %v1248 = vld [vmem:[%s1 + $0xd88] sm:$0xf]
      %v1249 = vld [vmem:[%s1 + $0xd8c] sm:$0xf]
      %v1250 = vld [vmem:[%s1 + $0xd90] sm:$0xf]
      %v1251 = vld [vmem:[%s1 + $0xd94] sm:$0xf]
      %v1252 = vld [vmem:[%s1 + $0xd98] sm:$0xf]
      %v1253 = vld [vmem:[%s1 + $0xd9c] sm:$0xf]
      %v1254 = vld [vmem:[%s1 + $0xda0] sm:$0xf]
      %v1255 = vld [vmem:[%s1 + $0xda4] sm:$0xf]
      %v1256 = vld [vmem:[%s1 + $0xda8] sm:$0xf]
      %v1257 = vld [vmem:[%s1 + $0xdac] sm:$0xf]
      %v1258 = vld [vmem:[%s1 + $0xdb0] sm:$0xf]
      %v1259 = vld [vmem:[%s1 + $0xdb4] sm:$0xf]
      %v1260 = vld [vmem:[%s1 + $0xdb8] sm:$0xf]
      %v1261 = vld [vmem:[%s1 + $0xdbc] sm:$0xf]
      %v1262 = vld [vmem:[%s1 + $0xdc0] sm:$0xf]
      %v1263 = vld [vmem:[%s1 + $0xdc4] sm:$0xf]
      %v1264 = vld [vmem:[%s1 + $0xdc8] sm:$0xf]
      %v1265 = vld [vmem:[%s1 + $0xdcc] sm:$0xf]
      %v1266 = vld [vmem:[%s1 + $0xdd0] sm:$0xf]
      %v1267 = vld [vmem:[%s1 + $0xdd4] sm:$0xf]
      %v1268 = vld [vmem:[%s1 + $0xdd8] sm:$0xf]
      %v1269 = vld [vmem:[%s1 + $0xddc] sm:$0xf]
      %v1270 = vld [vmem:[%s1 + $0xde0] sm:$0xf]
      %v1271 = vld [vmem:[%s1 + $0xde4] sm:$0xf]
      %v1272 = vld [vmem:[%s1 + $0xde8] sm:$0xf]
      %v1273 = vld [vmem:[%s1 + $0xdec] sm:$0xf]
      %v1274 = vld [vmem:[%s1 + $0xdf0] sm:$0xf]
      %v1275 = vld [vmem:[%s1 + $0xdf4] sm:$0xf]
      %v1276 = vld [vmem:[%s1 + $0xdf8] sm:$0xf]
      %v1277 = vld [vmem:[%s1 + $0xdfc] sm:$0xf]
      %v1278 = vld [vmem:[%s1 + $0xe00] sm:$0xf]
      %v1279 = vld [vmem:[%s1 + $0xe04] sm:$0xf]
      %v1280 = vld [vmem:[%s1 + $0xe08] sm:$0xf]
      %v1281 = vld [vmem:[%s1 + $0xe0c] sm:$0xf]
      %v1282 = vld [vmem:[%s1 + $0xe10] sm:$0xf]
      %v1283 = vld [vmem:[%s1 + $0xe14] sm:$0xf]
      %v1284 = vld [vmem:[%s1 + $0xe18] sm:$0xf]
      %v1285 = vld [vmem:[%s1 + $0xe1c] sm:$0xf]
      %v1286 = vld [vmem:[%s1 + $0xe20] sm:$0xf]
      %v1287 = vld [vmem:[%s1 + $0xe24] sm:$0xf]
      %v1288 = vld [vmem:[%s1 + $0xe28] sm:$0xf]
      %v1289 = vld [vmem:[%s1 + $0xe2c] sm:$0xf]
      %v1290 = vld [vmem:[%s1 + $0xe30] sm:$0xf]
      %v1291 = vld [vmem:[%s1 + $0xe34] sm:$0xf]
      %v1292 = vld [vmem:[%s1 + $0xe38] sm:$0xf]
      %v1293 = vld [vmem:[%s1 + $0xe3c] sm:$0xf]
      %v1294 = vld [vmem:[%s1 + $0xe40] sm:$0xf]
      %v1295 = vld [vmem:[%s1 + $0xe44] sm:$0xf]
      %v1296 = vld [vmem:[%s1 + $0xe48] sm:$0xf]
      %v1297 = vld [vmem:[%s1 + $0xe4c] sm:$0xf]
      %v1298 = vld [vmem:[%s1 + $0xe50] sm:$0xf]
      %v1299 = vld [vmem:[%s1 + $0xe54] sm:$0xf]
      %v1300 = vld [vmem:[%s1 + $0xe58] sm:$0xf]
      %v1301 = vld [vmem:[%s1 + $0xe5c] sm:$0xf]
      %v1302 = vld [vmem:[%s1 + $0xe60] sm:$0xf]
      %v1303 = vld [vmem:[%s1 + $0xe64] sm:$0xf]
      %v1304 = vld [vmem:[%s1 + $0xe68] sm:$0xf]
      %v1305 = vld [vmem:[%s1 + $0xe6c] sm:$0xf]
      %v1306 = vld [vmem:[%s1 + $0xe70] sm:$0xf]
      %v1307 = vld [vmem:[%s1 + $0xe74] sm:$0xf]
      %v1308 = vld [vmem:[%s1 + $0xe78] sm:$0xf]
      %v1309 = vld [vmem:[%s1 + $0xe7c] sm:$0xf]
      %v1310 = vld [vmem:[%s1 + $0xe80] sm:$0xf]
      %v1311 = vld [vmem:[%s1 + $0xe84] sm:$0xf]
      %v1312 = vld [vmem:[%s1 + $0xe88] sm:$0xf]
      %v1313 = vld [vmem:[%s1 + $0xe8c] sm:$0xf]
      %v1314 = vld [vmem:[%s1 + $0xe90] sm:$0xf]
      %v1315 = vld [vmem:[%s1 + $0xe94] sm:$0xf]
      %v1316 = vld [vmem:[%s1 + $0xe98] sm:$0xf]
      %v1317 = vld [vmem:[%s1 + $0xe9c] sm:$0xf]
      %v1318 = vld [vmem:[%s1 + $0xea0] sm:$0xf]
      %v1319 = vld [vmem:[%s1 + $0xea4] sm:$0xf]
      %v1320 = vld [vmem:[%s1 + $0xea8] sm:$0xf]
      %v1321 = vld [vmem:[%s1 + $0xeac] sm:$0xf]
      %v1322 = vld [vmem:[%s1 + $0xeb0] sm:$0xf]
      %v1323 = vld [vmem:[%s1 + $0xeb4] sm:$0xf]
      %v1324 = vld [vmem:[%s1 + $0xeb8] sm:$0xf]
      %v1325 = vld [vmem:[%s1 + $0xebc] sm:$0xf]
      %v1326 = vld [vmem:[%s1 + $0xec0] sm:$0xf]
      %v1327 = vld [vmem:[%s1 + $0xec4] sm:$0xf]
      %v1328 = vld [vmem:[%s1 + $0xec8] sm:$0xf]
      %v1329 = vld [vmem:[%s1 + $0xecc] sm:$0xf]
      %v1330 = vld [vmem:[%s1 + $0xed0] sm:$0xf]
      %v1331 = vld [vmem:[%s1 + $0xed4] sm:$0xf]
      %v1332 = vld [vmem:[%s1 + $0xed8] sm:$0xf]
      %v1333 = vld [vmem:[%s1 + $0xedc] sm:$0xf]
      %v1334 = vld [vmem:[%s1 + $0xee0] sm:$0xf]
      %v1335 = vld [vmem:[%s1 + $0xee4] sm:$0xf]
      %v1336 = vld [vmem:[%s1 + $0xee8] sm:$0xf]
      %v1337 = vld [vmem:[%s1 + $0xeec] sm:$0xf]
      %v1338 = vld [vmem:[%s1 + $0xef0] sm:$0xf]
      %v1339 = vld [vmem:[%s1 + $0xef4] sm:$0xf]
      %v1340 = vld [vmem:[%s1 + $0xef8] sm:$0xf]
      %v1341 = vld [vmem:[%s1 + $0xefc] sm:$0xf]
      %v1342 = vld [vmem:[%s1 + $0xf00] sm:$0xf]
      %v1343 = vld [vmem:[%s1 + $0xf04] sm:$0xf]
      %v1344 = vld [vmem:[%s1 + $0xf08] sm:$0xf]
      %v1345 = vld [vmem:[%s1 + $0xf0c] sm:$0xf]
      %v1346 = vld [vmem:[%s1 + $0xf10] sm:$0xf]
      %v1347 = vld [vmem:[%s1 + $0xf14] sm:$0xf]
      %v1348 = vld [vmem:[%s1 + $0xf18] sm:$0xf]
      %v1349 = vld [vmem:[%s1 + $0xf1c] sm:$0xf]
      %v1350 = vld [vmem:[%s1 + $0xf20] sm:$0xf]
      %v1351 = vld [vmem:[%s1 + $0xf24] sm:$0xf]
      %v1352 = vld [vmem:[%s1 + $0xf28] sm:$0xf]
      %v1353 = vld [vmem:[%s1 + $0xf2c] sm:$0xf]
      %v1354 = vld [vmem:[%s1 + $0xf30] sm:$0xf]
      %v1355 = vld [vmem:[%s1 + $0xf34] sm:$0xf]
      %v1356 = vld [vmem:[%s1 + $0xf38] sm:$0xf]
      %v1357 = vld [vmem:[%s1 + $0xf3c] sm:$0xf]
      %v1358 = vld [vmem:[%s1 + $0xf40] sm:$0xf]
      %v1359 = vld [vmem:[%s1 + $0xf44] sm:$0xf]
      %v1360 = vld [vmem:[%s1 + $0xf48] sm:$0xf]
      %v1361 = vld [vmem:[%s1 + $0xf4c] sm:$0xf]
      %v1362 = vld [vmem:[%s1 + $0xf50] sm:$0xf]
      %v1363 = vld [vmem:[%s1 + $0xf54] sm:$0xf]
      %v1364 = vld [vmem:[%s1 + $0xf58] sm:$0xf]
      %v1365 = vld [vmem:[%s1 + $0xf5c] sm:$0xf]
      %v1366 = vld [vmem:[%s1 + $0xf60] sm:$0xf]
      %v1367 = vld [vmem:[%s1 + $0xf64] sm:$0xf]
      %v1368 = vld [vmem:[%s1 + $0xf68] sm:$0xf]
      %v1369 = vld [vmem:[%s1 + $0xf6c] sm:$0xf]
      %v1370 = vld [vmem:[%s1 + $0xf70] sm:$0xf]
      %v1371 = vld [vmem:[%s1 + $0xf74] sm:$0xf]
      %v1372 = vld [vmem:[%s1 + $0xf78] sm:$0xf]
      %v1373 = vld [vmem:[%s1 + $0xf7c] sm:$0xf]
      %v1374 = vld [vmem:[%s1 + $0xf80] sm:$0xf]
      %v1375 = vld [vmem:[%s1 + $0xf84] sm:$0xf]
      %v1376 = vld [vmem:[%s1 + $0xf88] sm:$0xf]
      %v1377 = vld [vmem:[%s1 + $0xf8c] sm:$0xf]
      %v1378 = vld [vmem:[%s1 + $0xf90] sm:$0xf]
      %v1379 = vld [vmem:[%s1 + $0xf94] sm:$0xf]
      %v1380 = vld [vmem:[%s1 + $0xf98] sm:$0xf]
      %v1381 = vld [vmem:[%s1 + $0xf9c] sm:$0xf]
      %v1382 = vld [vmem:[%s1 + $0xfa0] sm:$0xf]
      %v1383 = vld [vmem:[%s1 + $0xfa4] sm:$0xf]
      %v1384 = vld [vmem:[%s1 + $0xfa8] sm:$0xf]
      %v1385 = vld [vmem:[%s1 + $0xfac] sm:$0xf]
      %v1386 = vld [vmem:[%s1 + $0xfb0] sm:$0xf]
      %v1387 = vld [vmem:[%s1 + $0xfb4] sm:$0xf]
      %v1388 = vld [vmem:[%s1 + $0xfb8] sm:$0xf]
      %v1389 = vld [vmem:[%s1 + $0xfbc] sm:$0xf]
      %v1390 = vld [vmem:[%s1 + $0xfc0] sm:$0xf]
      %v1391 = vld [vmem:[%s1 + $0xfc4] sm:$0xf]
      %v1392 = vld [vmem:[%s1 + $0xfc8] sm:$0xf]
      %v1393 = vld [vmem:[%s1 + $0xfcc] sm:$0xf]
      %v1394 = vld [vmem:[%s1 + $0xfd0] sm:$0xf]
      %v1395 = vld [vmem:[%s1 + $0xfd4] sm:$0xf]
      %v1396 = vld [vmem:[%s1 + $0xfd8] sm:$0xf]
      %v1397 = vld [vmem:[%s1 + $0xfdc] sm:$0xf]
      %v1398 = vld [vmem:[%s1 + $0xfe0] sm:$0xf]
      %v1399 = vld [vmem:[%s1 + $0xfe4] sm:$0xf]
      %v1400 = vld [vmem:[%s1 + $0xfe8] sm:$0xf]
      %v1401 = vld [vmem:[%s1 + $0xfec] sm:$0xf]
      %v1402 = vld [vmem:[%s1 + $0xff0] sm:$0xf]
      %v1403 = vld [vmem:[%s1 + $0xff4] sm:$0xf]
      %v1404 = vld [vmem:[%s1 + $0xff8] sm:$0xf]
      %v1405 = vld [vmem:[%s1 + $0xffc] sm:$0xf]
      %v1406 = vld [vmem:[%s1 + $0x1000] sm:$0xf]
      %v1407 = vld [vmem:[%s1 + $0x1004] sm:$0xf]
      %v1408 = vld [vmem:[%s1 + $0x1008] sm:$0xf]
      %v1409 = vld [vmem:[%s1 + $0x100c] sm:$0xf]
      %v1410 = vld [vmem:[%s1 + $0x1010] sm:$0xf]
      %v1411 = vld [vmem:[%s1 + $0x1014] sm:$0xf]
      %v1412 = vld [vmem:[%s1 + $0x1018] sm:$0xf]
      %v1413 = vld [vmem:[%s1 + $0x101c] sm:$0xf]
      %v1414 = vld [vmem:[%s1 + $0x1020] sm:$0xf]
      %v1415 = vld [vmem:[%s1 + $0x1024] sm:$0xf]
      %v1416 = vld [vmem:[%s1 + $0x1028] sm:$0xf]
      %v1417 = vld [vmem:[%s1 + $0x102c] sm:$0xf]
      %v1418 = vld [vmem:[%s1 + $0x1030] sm:$0xf]
      %v1419 = vld [vmem:[%s1 + $0x1034] sm:$0xf]
      %v1420 = vld [vmem:[%s1 + $0x1038] sm:$0xf]
      %v1421 = vld [vmem:[%s1 + $0x103c] sm:$0xf]
      %v1422 = vld [vmem:[%s1 + $0x1040] sm:$0xf]
      %v1423 = vld [vmem:[%s1 + $0x1044] sm:$0xf]
      %v1424 = vld [vmem:[%s1 + $0x1048] sm:$0xf]
      %v1425 = vld [vmem:[%s1 + $0x104c] sm:$0xf]
      %v1426 = vld [vmem:[%s1 + $0x1050] sm:$0xf]
      %v1427 = vld [vmem:[%s1 + $0x1054] sm:$0xf]
      %v1428 = vld [vmem:[%s1 + $0x1058] sm:$0xf]
      %v1429 = vld [vmem:[%s1 + $0x105c] sm:$0xf]
      %v1430 = vld [vmem:[%s1 + $0x1060] sm:$0xf]
      %v1431 = vld [vmem:[%s1 + $0x1064] sm:$0xf]
      %v1432 = vld [vmem:[%s1 + $0x1068] sm:$0xf]
      %v1433 = vld [vmem:[%s1 + $0x106c] sm:$0xf]
      %v1434 = vld [vmem:[%s1 + $0x1070] sm:$0xf]
      %v1435 = vld [vmem:[%s1 + $0x1074] sm:$0xf]
      %v1436 = vld [vmem:[%s1 + $0x1078] sm:$0xf]
      %v1437 = vld [vmem:[%s1 + $0x107c] sm:$0xf]
      %v1438 = vld [vmem:[%s1 + $0x1080] sm:$0xf]
      %v1439 = vld [vmem:[%s1 + $0x1084] sm:$0xf]
      %v1440 = vld [vmem:[%s1 + $0x1088] sm:$0xf]
      %v1441 = vld [vmem:[%s1 + $0x108c] sm:$0xf]
      %v1442 = vld [vmem:[%s1 + $0x1090] sm:$0xf]
      %v1443 = vld [vmem:[%s1 + $0x1094] sm:$0xf]
      %v1444 = vld [vmem:[%s1 + $0x1098] sm:$0xf]
      %v1445 = vld [vmem:[%s1 + $0x109c] sm:$0xf]
      %v1446 = vld [vmem:[%s1 + $0x10a0] sm:$0xf]
      %v1447 = vld [vmem:[%s1 + $0x10a4] sm:$0xf]
      %v1448 = vld [vmem:[%s1 + $0x10a8] sm:$0xf]
      %v1449 = vld [vmem:[%s1 + $0x10ac] sm:$0xf]
      %v1450 = vld [vmem:[%s1 + $0x10b0] sm:$0xf]
      %v1451 = vld [vmem:[%s1 + $0x10b4] sm:$0xf]
      %v1452 = vld [vmem:[%s1 + $0x10b8] sm:$0xf]
      %v1453 = vld [vmem:[%s1 + $0x10bc] sm:$0xf]
      %v1454 = vld [vmem:[%s1 + $0x10c0] sm:$0xf]
      %v1455 = vld [vmem:[%s1 + $0x10c4] sm:$0xf]
      %v1456 = vld [vmem:[%s1 + $0x10c8] sm:$0xf]
      %v1457 = vld [vmem:[%s1 + $0x10cc] sm:$0xf]
      %v1458 = vld [vmem:[%s1 + $0x10d0] sm:$0xf]
      %v1459 = vld [vmem:[%s1 + $0x10d4] sm:$0xf]
      %v1460 = vld [vmem:[%s1 + $0x10d8] sm:$0xf]
      %v1461 = vld [vmem:[%s1 + $0x10dc] sm:$0xf]
      %v1462 = vld [vmem:[%s1 + $0x10e0] sm:$0xf]
      %v1463 = vld [vmem:[%s1 + $0x10e4] sm:$0xf]
      %v1464 = vld [vmem:[%s1 + $0x10e8] sm:$0xf]
      %v1465 = vld [vmem:[%s1 + $0x10ec] sm:$0xf]
      %v1466 = vld [vmem:[%s1 + $0x10f0] sm:$0xf]
      %v1467 = vld [vmem:[%s1 + $0x10f4] sm:$0xf]
      %v1468 = vld [vmem:[%s1 + $0x10f8] sm:$0xf]
      %v1469 = vld [vmem:[%s1 + $0x10fc] sm:$0xf]
      %v1470 = vld [vmem:[%s1 + $0x1100] sm:$0xf]
      %v1471 = vld [vmem:[%s1 + $0x1104] sm:$0xf]
      %v1472 = vld [vmem:[%s1 + $0x1108] sm:$0xf]
      %v1473 = vld [vmem:[%s1 + $0x110c] sm:$0xf]
      %v1474 = vld [vmem:[%s1 + $0x1110] sm:$0xf]
      %v1475 = vld [vmem:[%s1 + $0x1114] sm:$0xf]
      %v1476 = vld [vmem:[%s1 + $0x1118] sm:$0xf]
      %v1477 = vld [vmem:[%s1 + $0x111c] sm:$0xf]
      %v1478 = vld [vmem:[%s1 + $0x1120] sm:$0xf]
      %v1479 = vld [vmem:[%s1 + $0x1124] sm:$0xf]
      %v1480 = vld [vmem:[%s1 + $0x1128] sm:$0xf]
      %v1481 = vld [vmem:[%s1 + $0x112c] sm:$0xf]
      %v1482 = vld [vmem:[%s1 + $0x1130] sm:$0xf]
      %v1483 = vld [vmem:[%s1 + $0x1134] sm:$0xf]
      %v1484 = vld [vmem:[%s1 + $0x1138] sm:$0xf]
      %v1485 = vld [vmem:[%s1 + $0x113c] sm:$0xf]
      %v1486 = vld [vmem:[%s1 + $0x1140] sm:$0xf]
      %v1487 = vld [vmem:[%s1 + $0x1144] sm:$0xf]
      %v1488 = vld [vmem:[%s1 + $0x1148] sm:$0xf]
      %v1489 = vld [vmem:[%s1 + $0x114c] sm:$0xf]
      %v1490 = vld [vmem:[%s1 + $0x1150] sm:$0xf]
      %v1491 = vld [vmem:[%s1 + $0x1154] sm:$0xf]
      %v1492 = vld [vmem:[%s1 + $0x1158] sm:$0xf]
      %v1493 = vld [vmem:[%s1 + $0x115c] sm:$0xf]
      %v1494 = vld [vmem:[%s1 + $0x1160] sm:$0xf]
      %v1495 = vld [vmem:[%s1 + $0x1164] sm:$0xf]
      %v1496 = vld [vmem:[%s1 + $0x1168] sm:$0xf]
      %v1497 = vld [vmem:[%s1 + $0x116c] sm:$0xf]
      %v1498 = vld [vmem:[%s1 + $0x1170] sm:$0xf]
      %v1499 = vld [vmem:[%s1 + $0x1174] sm:$0xf]
      %v1500 = vld [vmem:[%s1 + $0x1178] sm:$0xf]
      %v1501 = vld [vmem:[%s1 + $0x117c] sm:$0xf]
      %v1502 = vld [vmem:[%s1 + $0x1180] sm:$0xf]
      %v1503 = vld [vmem:[%s1 + $0x1184] sm:$0xf]
      %v1504 = vld [vmem:[%s1 + $0x1188] sm:$0xf]
      %v1505 = vld [vmem:[%s1 + $0x118c] sm:$0xf]
      %v1506 = vld [vmem:[%s1 + $0x1190] sm:$0xf]
      %v1507 = vld [vmem:[%s1 + $0x1194] sm:$0xf]
      %v1508 = vld [vmem:[%s1 + $0x1198] sm:$0xf]
      %v1509 = vld [vmem:[%s1 + $0x119c] sm:$0xf]
      %v1510 = vld [vmem:[%s1 + $0x11a0] sm:$0xf]
      %v1511 = vld [vmem:[%s1 + $0x11a4] sm:$0xf]
      %v1512 = vld [vmem:[%s1 + $0x11a8] sm:$0xf]
      %v1513 = vld [vmem:[%s1 + $0x11ac] sm:$0xf]
      %v1514 = vld [vmem:[%s1 + $0x11b0] sm:$0xf]
      %v1515 = vld [vmem:[%s1 + $0x11b4] sm:$0xf]
      %v1516 = vld [vmem:[%s1 + $0x11b8] sm:$0xf]
      %v1517 = vld [vmem:[%s1 + $0x11bc] sm:$0xf]
      %v1518 = vld [vmem:[%s1 + $0x11c0] sm:$0xf]
      %v1519 = vld [vmem:[%s1 + $0x11c4] sm:$0xf]
      %v1520 = vld [vmem:[%s1 + $0x11c8] sm:$0xf]
      %v1521 = vld [vmem:[%s1 + $0x11cc] sm:$0xf]
      %v1522 = vld [vmem:[%s1 + $0x11d0] sm:$0xf]
      %v1523 = vld [vmem:[%s1 + $0x11d4] sm:$0xf]
      %v1524 = vld [vmem:[%s1 + $0x11d8] sm:$0xf]
      %v1525 = vld [vmem:[%s1 + $0x11dc] sm:$0xf]
      %v1526 = vld [vmem:[%s1 + $0x11e0] sm:$0xf]
      %v1527 = vld [vmem:[%s1 + $0x11e4] sm:$0xf]
      %v1528 = vld [vmem:[%s1 + $0x11e8] sm:$0xf]
      %v1529 = vld [vmem:[%s1 + $0x11ec] sm:$0xf]
      %v1530 = vld [vmem:[%s1 + $0x11f0] sm:$0xf]
      %v1531 = vld [vmem:[%s1 + $0x11f4] sm:$0xf]
      %v1532 = vld [vmem:[%s1 + $0x11f8] sm:$0xf]
      %v1533 = vld [vmem:[%s1 + $0x11fc] sm:$0xf]
      %v1534 = vld [vmem:[%s1 + $0x1200] sm:$0xf]
      %v1535 = vld [vmem:[%s1 + $0x1204] sm:$0xf]
      %v1536 = vld [vmem:[%s1 + $0x1208] sm:$0xf]
      %v1537 = vld [vmem:[%s1 + $0x120c] sm:$0xf]
      %v1538 = vld [vmem:[%s1 + $0x1210] sm:$0xf]
      %v1539 = vld [vmem:[%s1 + $0x1214] sm:$0xf]
      %v1540 = vld [vmem:[%s1 + $0x1218] sm:$0xf]
      %v1541 = vld [vmem:[%s1 + $0x121c] sm:$0xf]
      %v1542 = vld [vmem:[%s1 + $0x1220] sm:$0xf]
      %v1543 = vld [vmem:[%s1 + $0x1224] sm:$0xf]
      %v1544 = vld [vmem:[%s1 + $0x1228] sm:$0xf]
      %v1545 = vld [vmem:[%s1 + $0x122c] sm:$0xf]
      %v1546 = vld [vmem:[%s1 + $0x1230] sm:$0xf]
      %v1547 = vld [vmem:[%s1 + $0x1234] sm:$0xf]
      %v1548 = vld [vmem:[%s1 + $0x1238] sm:$0xf]
      %v1549 = vld [vmem:[%s1 + $0x123c] sm:$0xf]
      %v1550 = vld [vmem:[%s1 + $0x1240] sm:$0xf]
      %v1551 = vld [vmem:[%s1 + $0x1244] sm:$0xf]
      %v1552 = vld [vmem:[%s1 + $0x1248] sm:$0xf]
      %v1553 = vld [vmem:[%s1 + $0x124c] sm:$0xf]
      %v1554 = vld [vmem:[%s1 + $0x1250] sm:$0xf]
      %v1555 = vld [vmem:[%s1 + $0x1254] sm:$0xf]
      %v1556 = vld [vmem:[%s1 + $0x1258] sm:$0xf]
      %v1557 = vld [vmem:[%s1 + $0x125c] sm:$0xf]
      %v1558 = vld [vmem:[%s1 + $0x1260] sm:$0xf]
      %v1559 = vld [vmem:[%s1 + $0x1264] sm:$0xf]
      %v1560 = vld [vmem:[%s1 + $0x1268] sm:$0xf]
      %v1561 = vld [vmem:[%s1 + $0x126c] sm:$0xf]
      %v1562 = vld [vmem:[%s1 + $0x1270] sm:$0xf]
      %v1563 = vld [vmem:[%s1 + $0x1274] sm:$0xf]
      %v1564 = vld [vmem:[%s1 + $0x1278] sm:$0xf]
      %v1565 = vld [vmem:[%s1 + $0x127c] sm:$0xf]
      %v1566 = vld [vmem:[%s1 + $0x1280] sm:$0xf]
      %v1567 = vld [vmem:[%s1 + $0x1284] sm:$0xf]
      %v1568 = vld [vmem:[%s1 + $0x1288] sm:$0xf]
      %v1569 = vld [vmem:[%s1 + $0x128c] sm:$0xf]
      %v1570 = vld [vmem:[%s1 + $0x1290] sm:$0xf]
      %v1571 = vld [vmem:[%s1 + $0x1294] sm:$0xf]
      %v1572 = vld [vmem:[%s1 + $0x1298] sm:$0xf]
      %v1573 = vld [vmem:[%s1 + $0x129c] sm:$0xf]
      %v1574 = vld [vmem:[%s1 + $0x12a0] sm:$0xf]
      %v1575 = vld [vmem:[%s1 + $0x12a4] sm:$0xf]
      %v1576 = vld [vmem:[%s1 + $0x12a8] sm:$0xf]
      %v1577 = vld [vmem:[%s1 + $0x12ac] sm:$0xf]
      %v1578 = vld [vmem:[%s1 + $0x12b0] sm:$0xf]
      %v1579 = vld [vmem:[%s1 + $0x12b4] sm:$0xf]
      %v1580 = vld [vmem:[%s1 + $0x12b8] sm:$0xf]
      %v1581 = vld [vmem:[%s1 + $0x12bc] sm:$0xf]
      %v1582 = vld [vmem:[%s1 + $0x12c0] sm:$0xf]
      %v1583 = vld [vmem:[%s1 + $0x12c4] sm:$0xf]
      %v1584 = vld [vmem:[%s1 + $0x12c8] sm:$0xf]
      %v1585 = vld [vmem:[%s1 + $0x12cc] sm:$0xf]
      %v1586 = vld [vmem:[%s1 + $0x12d0] sm:$0xf]
      %v1587 = vld [vmem:[%s1 + $0x12d4] sm:$0xf]
      %v1588 = vld [vmem:[%s1 + $0x12d8] sm:$0xf]
      %v1589 = vld [vmem:[%s1 + $0x12dc] sm:$0xf]
      %v1590 = vld [vmem:[%s1 + $0x12e0] sm:$0xf]
      %v1591 = vld [vmem:[%s1 + $0x12e4] sm:$0xf]
      %v1592 = vld [vmem:[%s1 + $0x12e8] sm:$0xf]
      %v1593 = vld [vmem:[%s1 + $0x12ec] sm:$0xf]
      %v1594 = vld [vmem:[%s1 + $0x12f0] sm:$0xf]
      %v1595 = vld [vmem:[%s1 + $0x12f4] sm:$0xf]
      %v1596 = vld [vmem:[%s1 + $0x12f8] sm:$0xf]
      %v1597 = vld [vmem:[%s1 + $0x12fc] sm:$0xf]
      %v1598 = vld [vmem:[%s1 + $0x1300] sm:$0xf]
      %v1599 = vld [vmem:[%s1 + $0x1304] sm:$0xf]
      %v1600 = vld [vmem:[%s1 + $0x1308] sm:$0xf]
      %v1601 = vld [vmem:[%s1 + $0x130c] sm:$0xf]
      %v1602 = vld [vmem:[%s1 + $0x1310] sm:$0xf]
      %v1603 = vld [vmem:[%s1 + $0x1314] sm:$0xf]
      %v1604 = vld [vmem:[%s1 + $0x1318] sm:$0xf]
      %v1605 = vld [vmem:[%s1 + $0x131c] sm:$0xf]
      %v1606 = vld [vmem:[%s1 + $0x1320] sm:$0xf]
      %v1607 = vld [vmem:[%s1 + $0x1324] sm:$0xf]
      %v1608 = vld [vmem:[%s1 + $0x1328] sm:$0xf]
      %v1609 = vld [vmem:[%s1 + $0x132c] sm:$0xf]
      %v1610 = vld [vmem:[%s1 + $0x1330] sm:$0xf]
      %v1611 = vld [vmem:[%s1 + $0x1334] sm:$0xf]
      %v1612 = vld [vmem:[%s1 + $0x1338] sm:$0xf]
      %v1613 = vld [vmem:[%s1 + $0x133c] sm:$0xf]
      %v1614 = vld [vmem:[%s1 + $0x1340] sm:$0xf]
      %v1615 = vld [vmem:[%s1 + $0x1344] sm:$0xf]
      %v1616 = vld [vmem:[%s1 + $0x1348] sm:$0xf]
      %v1617 = vld [vmem:[%s1 + $0x134c] sm:$0xf]
      %v1618 = vld [vmem:[%s1 + $0x1350] sm:$0xf]
      %v1619 = vld [vmem:[%s1 + $0x1354] sm:$0xf]
      %v1620 = vld [vmem:[%s1 + $0x1358] sm:$0xf]
      %v1621 = vld [vmem:[%s1 + $0x135c] sm:$0xf]
      %v1622 = vld [vmem:[%s1 + $0x1360] sm:$0xf]
      %v1623 = vld [vmem:[%s1 + $0x1364] sm:$0xf]
      %v1624 = vld [vmem:[%s1 + $0x1368] sm:$0xf]
      %v1625 = vld [vmem:[%s1 + $0x136c] sm:$0xf]
      %v1626 = vld [vmem:[%s1 + $0x1370] sm:$0xf]
      %v1627 = vld [vmem:[%s1 + $0x1374] sm:$0xf]
      %v1628 = vld [vmem:[%s1 + $0x1378] sm:$0xf]
      %v1629 = vld [vmem:[%s1 + $0x137c] sm:$0xf]
      %v1630 = vld [vmem:[%s1 + $0x1380] sm:$0xf]
      %v1631 = vld [vmem:[%s1 + $0x1384] sm:$0xf]
      %v1632 = vld [vmem:[%s1 + $0x1388] sm:$0xf]
      %v1633 = vld [vmem:[%s1 + $0x138c] sm:$0xf]
      %v1634 = vld [vmem:[%s1 + $0x1390] sm:$0xf]
      %v1635 = vld [vmem:[%s1 + $0x1394] sm:$0xf]
      %v1636 = vld [vmem:[%s1 + $0x1398] sm:$0xf]
      %v1637 = vld [vmem:[%s1 + $0x139c] sm:$0xf]
      %v1638 = vld [vmem:[%s1 + $0x13a0] sm:$0xf]
      %v1639 = vld [vmem:[%s1 + $0x13a4] sm:$0xf]
      %v1640 = vld [vmem:[%s1 + $0x13a8] sm:$0xf]
      %v1641 = vld [vmem:[%s1 + $0x13ac] sm:$0xf]
      %v1642 = vld [vmem:[%s1 + $0x13b0] sm:$0xf]
      %v1643 = vld [vmem:[%s1 + $0x13b4] sm:$0xf]
      %v1644 = vld [vmem:[%s1 + $0x13b8] sm:$0xf]
      %v1645 = vld [vmem:[%s1 + $0x13bc] sm:$0xf]
      %v1646 = vld [vmem:[%s1 + $0x13c0] sm:$0xf]
      %v1647 = vld [vmem:[%s1 + $0x13c4] sm:$0xf]
      %v1648 = vld [vmem:[%s1 + $0x13c8] sm:$0xf]
      %v1649 = vld [vmem:[%s1 + $0x13cc] sm:$0xf]
      %v1650 = vld [vmem:[%s1 + $0x13d0] sm:$0xf]
      %v1651 = vld [vmem:[%s1 + $0x13d4] sm:$0xf]
      %v1652 = vld [vmem:[%s1 + $0x13d8] sm:$0xf]
      %v1653 = vld [vmem:[%s1 + $0x13dc] sm:$0xf]
      %v1654 = vld [vmem:[%s1 + $0x13e0] sm:$0xf]
      %v1655 = vld [vmem:[%s1 + $0x13e4] sm:$0xf]
      %v1656 = vld [vmem:[%s1 + $0x13e8] sm:$0xf]
      %v1657 = vld [vmem:[%s1 + $0x13ec] sm:$0xf]
      %v1658 = vld [vmem:[%s1 + $0x13f0] sm:$0xf]
      %v1659 = vld [vmem:[%s1 + $0x13f4] sm:$0xf]
      %v1660 = vld [vmem:[%s1 + $0x13f8] sm:$0xf]
      %v1661 = vld [vmem:[%s1 + $0x13fc] sm:$0xf]
      %v1662 = vld [vmem:[%s1 + $0x1400] sm:$0xf]
      %v1663 = vld [vmem:[%s1 + $0x1404] sm:$0xf]
      %v1664 = vld [vmem:[%s1 + $0x1408] sm:$0xf]
      %v1665 = vld [vmem:[%s1 + $0x140c] sm:$0xf]
      %v1666 = vld [vmem:[%s1 + $0x1410] sm:$0xf]
      %v1667 = vld [vmem:[%s1 + $0x1414] sm:$0xf]
      %v1668 = vld [vmem:[%s1 + $0x1418] sm:$0xf]
      %v1669 = vld [vmem:[%s1 + $0x141c] sm:$0xf]
      %v1670 = vld [vmem:[%s1 + $0x1420] sm:$0xf]
      %v1671 = vld [vmem:[%s1 + $0x1424] sm:$0xf]
      %v1672 = vld [vmem:[%s1 + $0x1428] sm:$0xf]
      %v1673 = vld [vmem:[%s1 + $0x142c] sm:$0xf]
      %v1674 = vld [vmem:[%s1 + $0x1430] sm:$0xf]
      %v1675 = vld [vmem:[%s1 + $0x1434] sm:$0xf]
      %v1676 = vld [vmem:[%s1 + $0x1438] sm:$0xf]
      %v1677 = vld [vmem:[%s1 + $0x143c] sm:$0xf]
      %v1678 = vld [vmem:[%s1 + $0x1440] sm:$0xf]
      %v1679 = vld [vmem:[%s1 + $0x1444] sm:$0xf]
      %v1680 = vld [vmem:[%s1 + $0x1448] sm:$0xf]
      %v1681 = vld [vmem:[%s1 + $0x144c] sm:$0xf]
      %v1682 = vld [vmem:[%s1 + $0x1450] sm:$0xf]
      %v1683 = vld [vmem:[%s1 + $0x1454] sm:$0xf]
      %v1684 = vld [vmem:[%s1 + $0x1458] sm:$0xf]
      %v1685 = vld [vmem:[%s1 + $0x145c] sm:$0xf]
      %v1686 = vld [vmem:[%s1 + $0x1460] sm:$0xf]
      %v1687 = vld [vmem:[%s1 + $0x1464] sm:$0xf]
      %v1688 = vld [vmem:[%s1 + $0x1468] sm:$0xf]
      %v1689 = vld [vmem:[%s1 + $0x146c] sm:$0xf]
      %v1690 = vld [vmem:[%s1 + $0x1470] sm:$0xf]
      %v1691 = vld [vmem:[%s1 + $0x1474] sm:$0xf]
      %v1692 = vld [vmem:[%s1 + $0x1478] sm:$0xf]
      %v1693 = vld [vmem:[%s1 + $0x147c] sm:$0xf]
      %v1694 = vld [vmem:[%s1 + $0x1480] sm:$0xf]
      %v1695 = vld [vmem:[%s1 + $0x1484] sm:$0xf]
      %v1696 = vld [vmem:[%s1 + $0x1488] sm:$0xf]
      %v1697 = vld [vmem:[%s1 + $0x148c] sm:$0xf]
      %v1698 = vld [vmem:[%s1 + $0x1490] sm:$0xf]
      %v1699 = vld [vmem:[%s1 + $0x1494] sm:$0xf]
      %v1700 = vld [vmem:[%s1 + $0x1498] sm:$0xf]
      %v1701 = vld [vmem:[%s1 + $0x149c] sm:$0xf]
      %v1702 = vld [vmem:[%s1 + $0x14a0] sm:$0xf]
      %v1703 = vld [vmem:[%s1 + $0x14a4] sm:$0xf]
      %v1704 = vld [vmem:[%s1 + $0x14a8] sm:$0xf]
      %v1705 = vld [vmem:[%s1 + $0x14ac] sm:$0xf]
      %v1706 = vld [vmem:[%s1 + $0x14b0] sm:$0xf]
      %v1707 = vld [vmem:[%s1 + $0x14b4] sm:$0xf]
      %v1708 = vld [vmem:[%s1 + $0x14b8] sm:$0xf]
      %v1709 = vld [vmem:[%s1 + $0x14bc] sm:$0xf]
      %v1710 = vld [vmem:[%s1 + $0x14c0] sm:$0xf]
      %v1711 = vld [vmem:[%s1 + $0x14c4] sm:$0xf]
      %v1712 = vld [vmem:[%s1 + $0x14c8] sm:$0xf]
      %v1713 = vld [vmem:[%s1 + $0x14cc] sm:$0xf]
      %v1714 = vld [vmem:[%s1 + $0x14d0] sm:$0xf]
      %v1715 = vld [vmem:[%s1 + $0x14d4] sm:$0xf]
      %v1716 = vld [vmem:[%s1 + $0x14d8] sm:$0xf]
      %v1717 = vld [vmem:[%s1 + $0x14dc] sm:$0xf]
      %v1718 = vld [vmem:[%s1 + $0x14e0] sm:$0xf]
      %v1719 = vld [vmem:[%s1 + $0x14e4] sm:$0xf]
      %v1720 = vld [vmem:[%s1 + $0x14e8] sm:$0xf]
      %v1721 = vld [vmem:[%s1 + $0x14ec] sm:$0xf]
      %v1722 = vld [vmem:[%s1 + $0x14f0] sm:$0xf]
      %v1723 = vld [vmem:[%s1 + $0x14f4] sm:$0xf]
      %v1724 = vld [vmem:[%s1 + $0x14f8] sm:$0xf]
      %v1725 = vld [vmem:[%s1 + $0x14fc] sm:$0xf]
      %v1726 = vld [vmem:[%s1 + $0x1500] sm:$0xf]
      %v1727 = vld [vmem:[%s1 + $0x1504] sm:$0xf]
      %v1728 = vld [vmem:[%s1 + $0x1508] sm:$0xf]
      %v1729 = vld [vmem:[%s1 + $0x150c] sm:$0xf]
      %v1730 = vld [vmem:[%s1 + $0x1510] sm:$0xf]
      %v1731 = vld [vmem:[%s1 + $0x1514] sm:$0xf]
      %v1732 = vld [vmem:[%s1 + $0x1518] sm:$0xf]
      %v1733 = vld [vmem:[%s1 + $0x151c] sm:$0xf]
      %v1734 = vld [vmem:[%s1 + $0x1520] sm:$0xf]
      %v1735 = vld [vmem:[%s1 + $0x1524] sm:$0xf]
      %v1736 = vld [vmem:[%s1 + $0x1528] sm:$0xf]
      %v1737 = vld [vmem:[%s1 + $0x152c] sm:$0xf]
      %v1738 = vld [vmem:[%s1 + $0x1530] sm:$0xf]
      %v1739 = vld [vmem:[%s1 + $0x1534] sm:$0xf]
      %v1740 = vld [vmem:[%s1 + $0x1538] sm:$0xf]
      %v1741 = vld [vmem:[%s1 + $0x153c] sm:$0xf]
      %v1742 = vld [vmem:[%s1 + $0x1540] sm:$0xf]
      %v1743 = vld [vmem:[%s1 + $0x1544] sm:$0xf]
      %v1744 = vld [vmem:[%s1 + $0x1548] sm:$0xf]
      %v1745 = vld [vmem:[%s1 + $0x154c] sm:$0xf]
      %v1746 = vld [vmem:[%s1 + $0x1550] sm:$0xf]
      %v1747 = vld [vmem:[%s1 + $0x1554] sm:$0xf]
      %v1748 = vld [vmem:[%s1 + $0x1558] sm:$0xf]
      %v1749 = vld [vmem:[%s1 + $0x155c] sm:$0xf]
      %v1750 = vld [vmem:[%s1 + $0x1560] sm:$0xf]
      %v1751 = vld [vmem:[%s1 + $0x1564] sm:$0xf]
      %v1752 = vld [vmem:[%s1 + $0x1568] sm:$0xf]
      %v1753 = vld [vmem:[%s1 + $0x156c] sm:$0xf]
      %v1754 = vld [vmem:[%s1 + $0x1570] sm:$0xf]
      %v1755 = vld [vmem:[%s1 + $0x1574] sm:$0xf]
      %v1756 = vld [vmem:[%s1 + $0x1578] sm:$0xf]
      %v1757 = vld [vmem:[%s1 + $0x157c] sm:$0xf]
      %v1758 = vld [vmem:[%s1 + $0x1580] sm:$0xf]
      %v1759 = vld [vmem:[%s1 + $0x1584] sm:$0xf]
      %v1760 = vld [vmem:[%s1 + $0x1588] sm:$0xf]
      %v1761 = vld [vmem:[%s1 + $0x158c] sm:$0xf]
      %v1762 = vld [vmem:[%s1 + $0x1590] sm:$0xf]
      %v1763 = vld [vmem:[%s1 + $0x1594] sm:$0xf]
      %v1764 = vld [vmem:[%s1 + $0x1598] sm:$0xf]
      %v1765 = vld [vmem:[%s1 + $0x159c] sm:$0xf]
      %v1766 = vld [vmem:[%s1 + $0x15a0] sm:$0xf]
      %v1767 = vld [vmem:[%s1 + $0x15a4] sm:$0xf]
      %v1768 = vld [vmem:[%s1 + $0x15a8] sm:$0xf]
      %v1769 = vld [vmem:[%s1 + $0x15ac] sm:$0xf]
      %v1770 = vld [vmem:[%s1 + $0x15b0] sm:$0xf]
      %v1771 = vld [vmem:[%s1 + $0x15b4] sm:$0xf]
      %v1772 = vld [vmem:[%s1 + $0x15b8] sm:$0xf]
      %v1773 = vld [vmem:[%s1 + $0x15bc] sm:$0xf]
      %v1774 = vld [vmem:[%s1 + $0x15c0] sm:$0xf]
      %v1775 = vld [vmem:[%s1 + $0x15c4] sm:$0xf]
      %v1776 = vld [vmem:[%s1 + $0x15c8] sm:$0xf]
      %v1777 = vld [vmem:[%s1 + $0x15cc] sm:$0xf]
      %v1778 = vld [vmem:[%s1 + $0x15d0] sm:$0xf]
      %v1779 = vld [vmem:[%s1 + $0x15d4] sm:$0xf]
      %v1780 = vld [vmem:[%s1 + $0x15d8] sm:$0xf]
      %v1781 = vld [vmem:[%s1 + $0x15dc] sm:$0xf]
      %v1782 = vld [vmem:[%s1 + $0x15e0] sm:$0xf]
      %v1783 = vld [vmem:[%s1 + $0x15e4] sm:$0xf]
      %v1784 = vld [vmem:[%s1 + $0x15e8] sm:$0xf]
      %v1785 = vld [vmem:[%s1 + $0x15ec] sm:$0xf]
      %v1786 = vld [vmem:[%s1 + $0x15f0] sm:$0xf]
      %v1787 = vld [vmem:[%s1 + $0x15f4] sm:$0xf]
      %v1788 = vld [vmem:[%s1 + $0x15f8] sm:$0xf]
      %v1789 = vld [vmem:[%s1 + $0x15fc] sm:$0xf]
      %v1790 = vld [vmem:[%s1 + $0x1600] sm:$0xf]
      %v1791 = vld [vmem:[%s1 + $0x1604] sm:$0xf]
      %v1792 = vld [vmem:[%s1 + $0x1608] sm:$0xf]
      %v1793 = vld [vmem:[%s1 + $0x160c] sm:$0xf]
      %v1794 = vld [vmem:[%s1 + $0x1610] sm:$0xf]
      %v1795 = vld [vmem:[%s1 + $0x1614] sm:$0xf]
      %v1796 = vld [vmem:[%s1 + $0x1618] sm:$0xf]
      %v1797 = vld [vmem:[%s1 + $0x161c] sm:$0xf]
      %v1798 = vld [vmem:[%s1 + $0x1620] sm:$0xf]
      %v1799 = vld [vmem:[%s1 + $0x1624] sm:$0xf]
      %v1800 = vld [vmem:[%s1 + $0x1628] sm:$0xf]
      %v1801 = vld [vmem:[%s1 + $0x162c] sm:$0xf]
      %v1802 = vld [vmem:[%s1 + $0x1630] sm:$0xf]
      %v1803 = vld [vmem:[%s1 + $0x1634] sm:$0xf]
      %v1804 = vld [vmem:[%s1 + $0x1638] sm:$0xf]
      %v1805 = vld [vmem:[%s1 + $0x163c] sm:$0xf]
      %v1806 = vld [vmem:[%s1 + $0x1640] sm:$0xf]
      %v1807 = vld [vmem:[%s1 + $0x1644] sm:$0xf]
      %v1808 = vld [vmem:[%s1 + $0x1648] sm:$0xf]
      %v1809 = vld [vmem:[%s1 + $0x164c] sm:$0xf]
      %v1810 = vld [vmem:[%s1 + $0x1650] sm:$0xf]
      %v1811 = vld [vmem:[%s1 + $0x1654] sm:$0xf]
      %v1812 = vld [vmem:[%s1 + $0x1658] sm:$0xf]
      %v1813 = vld [vmem:[%s1 + $0x165c] sm:$0xf]
      %v1814 = vld [vmem:[%s1 + $0x1660] sm:$0xf]
      %v1815 = vld [vmem:[%s1 + $0x1664] sm:$0xf]
      %v1816 = vld [vmem:[%s1 + $0x1668] sm:$0xf]
      %v1817 = vld [vmem:[%s1 + $0x166c] sm:$0xf]
      %v1818 = vld [vmem:[%s1 + $0x1670] sm:$0xf]
      %v1819 = vld [vmem:[%s1 + $0x1674] sm:$0xf]
      %v1820 = vld [vmem:[%s1 + $0x1678] sm:$0xf]
      %v1821 = vld [vmem:[%s1 + $0x167c] sm:$0xf]
      %v1822 = vld [vmem:[%s1 + $0x1680] sm:$0xf]
      %v1823 = vld [vmem:[%s1 + $0x1684] sm:$0xf]
      %v1824 = vld [vmem:[%s1 + $0x1688] sm:$0xf]
      %v1825 = vld [vmem:[%s1 + $0x168c] sm:$0xf]
      %v1826 = vld [vmem:[%s1 + $0x1690] sm:$0xf]
      %v1827 = vld [vmem:[%s1 + $0x1694] sm:$0xf]
      %v1828 = vld [vmem:[%s1 + $0x1698] sm:$0xf]
      %v1829 = vld [vmem:[%s1 + $0x169c] sm:$0xf]
      %v1830 = vld [vmem:[%s1 + $0x16a0] sm:$0xf]
      %v1831 = vld [vmem:[%s1 + $0x16a4] sm:$0xf]
      %v1832 = vld [vmem:[%s1 + $0x16a8] sm:$0xf]
      %v1833 = vld [vmem:[%s1 + $0x16ac] sm:$0xf]
      %v1834 = vld [vmem:[%s1 + $0x16b0] sm:$0xf]
      %v1835 = vld [vmem:[%s1 + $0x16b4] sm:$0xf]
      %v1836 = vld [vmem:[%s1 + $0x16b8] sm:$0xf]
      %v1837 = vld [vmem:[%s1 + $0x16bc] sm:$0xf]
      %v1838 = vld [vmem:[%s1 + $0x16c0] sm:$0xf]
      %v1839 = vld [vmem:[%s1 + $0x16c4] sm:$0xf]
      %v1840 = vld [vmem:[%s1 + $0x16c8] sm:$0xf]
      %v1841 = vld [vmem:[%s1 + $0x16cc] sm:$0xf]
      %v1842 = vld [vmem:[%s1 + $0x16d0] sm:$0xf]
      %v1843 = vld [vmem:[%s1 + $0x16d4] sm:$0xf]
      %v1844 = vld [vmem:[%s1 + $0x16d8] sm:$0xf]
      %v1845 = vld [vmem:[%s1 + $0x16dc] sm:$0xf]
      %v1846 = vld [vmem:[%s1 + $0x16e0] sm:$0xf]
      %v1847 = vld [vmem:[%s1 + $0x16e4] sm:$0xf]
      %v1848 = vld [vmem:[%s1 + $0x16e8] sm:$0xf]
      %v1849 = vld [vmem:[%s1 + $0x16ec] sm:$0xf]
      %v1850 = vld [vmem:[%s1 + $0x16f0] sm:$0xf]
      %v1851 = vld [vmem:[%s1 + $0x16f4] sm:$0xf]
      %v1852 = vld [vmem:[%s1 + $0x16f8] sm:$0xf]
      %v1853 = vld [vmem:[%s1 + $0x16fc] sm:$0xf]
      %v1854 = vld [vmem:[%s1 + $0x1700] sm:$0xf]
      %v1855 = vld [vmem:[%s1 + $0x1704] sm:$0xf]
      %v1856 = vld [vmem:[%s1 + $0x1708] sm:$0xf]
      %v1857 = vld [vmem:[%s1 + $0x170c] sm:$0xf]
      %v1858 = vld [vmem:[%s1 + $0x1710] sm:$0xf]
      %v1859 = vld [vmem:[%s1 + $0x1714] sm:$0xf]
      %v1860 = vld [vmem:[%s1 + $0x1718] sm:$0xf]
      %v1861 = vld [vmem:[%s1 + $0x171c] sm:$0xf]
      %v1862 = vld [vmem:[%s1 + $0x1720] sm:$0xf]
      %v1863 = vld [vmem:[%s1 + $0x1724] sm:$0xf]
      %v1864 = vld [vmem:[%s1 + $0x1728] sm:$0xf]
      %v1865 = vld [vmem:[%s1 + $0x172c] sm:$0xf]
      %v1866 = vld [vmem:[%s1 + $0x1730] sm:$0xf]
      %v1867 = vld [vmem:[%s1 + $0x1734] sm:$0xf]
      %v1868 = vld [vmem:[%s1 + $0x1738] sm:$0xf]
      %v1869 = vld [vmem:[%s1 + $0x173c] sm:$0xf]
      %v1870 = vld [vmem:[%s1 + $0x1740] sm:$0xf]
      %v1871 = vld [vmem:[%s1 + $0x1744] sm:$0xf]
      %v1872 = vld [vmem:[%s1 + $0x1748] sm:$0xf]
      %v1873 = vld [vmem:[%s1 + $0x174c] sm:$0xf]
      %v1874 = vld [vmem:[%s1 + $0x1750] sm:$0xf]
      %v1875 = vld [vmem:[%s1 + $0x1754] sm:$0xf]
      %v1876 = vld [vmem:[%s1 + $0x1758] sm:$0xf]
      %v1877 = vld [vmem:[%s1 + $0x175c] sm:$0xf]
      %v1878 = vld [vmem:[%s1 + $0x1760] sm:$0xf]
      %v1879 = vld [vmem:[%s1 + $0x1764] sm:$0xf]
      %v1880 = vld [vmem:[%s1 + $0x1768] sm:$0xf]
      %v1881 = vld [vmem:[%s1 + $0x176c] sm:$0xf]
      %v1882 = vld [vmem:[%s1 + $0x1770] sm:$0xf]
      %v1883 = vld [vmem:[%s1 + $0x1774] sm:$0xf]
      %v1884 = vld [vmem:[%s1 + $0x1778] sm:$0xf]
      %v1885 = vld [vmem:[%s1 + $0x177c] sm:$0xf]
      %v1886 = vld [vmem:[%s1 + $0x1780] sm:$0xf]
      %v1887 = vld [vmem:[%s1 + $0x1784] sm:$0xf]
      %v1888 = vld [vmem:[%s1 + $0x1788] sm:$0xf]
      %v1889 = vld [vmem:[%s1 + $0x178c] sm:$0xf]
      %v1890 = vld [vmem:[%s1 + $0x1790] sm:$0xf]
      %v1891 = vld [vmem:[%s1 + $0x1794] sm:$0xf]
      %v1892 = vld [vmem:[%s1 + $0x1798] sm:$0xf]
      %v1893 = vld [vmem:[%s1 + $0x179c] sm:$0xf]
      %v1894 = vld [vmem:[%s1 + $0x17a0] sm:$0xf]
      %v1895 = vld [vmem:[%s1 + $0x17a4] sm:$0xf]
      %v1896 = vld [vmem:[%s1 + $0x17a8] sm:$0xf]
      %v1897 = vld [vmem:[%s1 + $0x17ac] sm:$0xf]
      %v1898 = vld [vmem:[%s1 + $0x17b0] sm:$0xf]
      %v1899 = vld [vmem:[%s1 + $0x17b4] sm:$0xf]
      %v1900 = vld [vmem:[%s1 + $0x17b8] sm:$0xf]
      %v1901 = vld [vmem:[%s1 + $0x17bc] sm:$0xf]
      %v1902 = vld [vmem:[%s1 + $0x17c0] sm:$0xf]
      %v1903 = vld [vmem:[%s1 + $0x17c4] sm:$0xf]
      %v1904 = vld [vmem:[%s1 + $0x17c8] sm:$0xf]
      %v1905 = vld [vmem:[%s1 + $0x17cc] sm:$0xf]
      %v1906 = vld [vmem:[%s1 + $0x17d0] sm:$0xf]
      %v1907 = vld [vmem:[%s1 + $0x17d4] sm:$0xf]
      %v1908 = vld [vmem:[%s1 + $0x17d8] sm:$0xf]
      %v1909 = vld [vmem:[%s1 + $0x17dc] sm:$0xf]
      %v1910 = vld [vmem:[%s1 + $0x17e0] sm:$0xf]
      %v1911 = vld [vmem:[%s1 + $0x17e4] sm:$0xf]
      %v1912 = vld [vmem:[%s1 + $0x17e8] sm:$0xf]
      %v1913 = vld [vmem:[%s1 + $0x17ec] sm:$0xf]
      %v1914 = vld [vmem:[%s1 + $0x17f0] sm:$0xf]
      %v1915 = vld [vmem:[%s1 + $0x17f4] sm:$0xf]
      %v1916 = vld [vmem:[%s1 + $0x17f8] sm:$0xf]
      %v1917 = vld [vmem:[%s1 + $0x17fc] sm:$0xf]
      %v1918 = vld [vmem:[%s2] sm:$0x1]
      %v1920 = vlaneseq
      %v1921 = vshrl.u32 %v1920, 7
      %v1922 = vsub.s32 0, %v1921
      %v1923 = vrot.slane %v1918, %v1922
      %v2021 = vunpack.c.l.b16 %v286
      %v2022 = vunpack.c.h.b16 %v286
      %v2023 = vunpack.c.l.b16 %v287
      %v2024 = vunpack.c.h.b16 %v287
      %v2025 = vunpack.c.l.b16 %v288
      %v2026 = vunpack.c.h.b16 %v288
      %v2027 = vunpack.c.l.b16 %v289
      %v2028 = vunpack.c.h.b16 %v289
      %v2029 = vunpack.c.l.b16 %v290
      %v2030 = vunpack.c.h.b16 %v290
      %v2031 = vunpack.c.l.b16 %v291
      %v2032 = vunpack.c.h.b16 %v291
      %v2033 = vunpack.c.l.b16 %v292
      %v2034 = vunpack.c.h.b16 %v292
      %v2035 = vunpack.c.l.b16 %v293
      %v2036 = vunpack.c.h.b16 %v293
      %v2037 = vunpack.c.l.b16 %v294
      %v2038 = vunpack.c.h.b16 %v294
      %v2039 = vunpack.c.l.b16 %v295
      %v2040 = vunpack.c.h.b16 %v295
      %v2041 = vunpack.c.l.b16 %v296
      %v2042 = vunpack.c.h.b16 %v296
      %v2043 = vunpack.c.l.b16 %v297
      %v2044 = vunpack.c.h.b16 %v297
      %v2045 = vunpack.c.l.b16 %v298
      %v2046 = vunpack.c.h.b16 %v298
      %v2047 = vunpack.c.l.b16 %v299
      %v2048 = vunpack.c.h.b16 %v299
      %v2049 = vunpack.c.l.b16 %v300
      %v2050 = vunpack.c.h.b16 %v300
      %v2051 = vunpack.c.l.b16 %v301
      %v2052 = vunpack.c.h.b16 %v301
      %v2053 = vunpack.c.l.b16 %v302
      %v2054 = vunpack.c.h.b16 %v302
      %v2055 = vunpack.c.l.b16 %v303
      %v2056 = vunpack.c.h.b16 %v303
      %v2057 = vunpack.c.l.b16 %v304
      %v2058 = vunpack.c.h.b16 %v304
      %v2059 = vunpack.c.l.b16 %v305
      %v2060 = vunpack.c.h.b16 %v305
      %v2061 = vunpack.c.l.b16 %v306
      %v2062 = vunpack.c.h.b16 %v306
      %v2063 = vunpack.c.l.b16 %v307
      %v2064 = vunpack.c.h.b16 %v307
      %v2065 = vunpack.c.l.b16 %v308
      %v2066 = vunpack.c.h.b16 %v308
      %v2067 = vunpack.c.l.b16 %v309
      %v2068 = vunpack.c.h.b16 %v309
      %v2069 = vunpack.c.l.b16 %v310
      %v2070 = vunpack.c.h.b16 %v310
      %v2071 = vunpack.c.l.b16 %v311
      %v2072 = vunpack.c.h.b16 %v311
      %v2073 = vunpack.c.l.b16 %v312
      %v2074 = vunpack.c.h.b16 %v312
      %v2075 = vunpack.c.l.b16 %v313
      %v2076 = vunpack.c.h.b16 %v313
      %v2077 = vunpack.c.l.b16 %v314
      %v2078 = vunpack.c.h.b16 %v314
      %v2079 = vunpack.c.l.b16 %v315
      %v2080 = vunpack.c.h.b16 %v315
      %v2081 = vunpack.c.l.b16 %v316
      %v2082 = vunpack.c.h.b16 %v316
      %v2083 = vunpack.c.l.b16 %v317
      %v2084 = vunpack.c.h.b16 %v317
      %v2085 = vunpack.c.l.b16 %v318
      %v2086 = vunpack.c.h.b16 %v318
      %v2087 = vunpack.c.l.b16 %v319
      %v2088 = vunpack.c.h.b16 %v319
      %v2089 = vunpack.c.l.b16 %v320
      %v2090 = vunpack.c.h.b16 %v320
      %v2091 = vunpack.c.l.b16 %v321
      %v2092 = vunpack.c.h.b16 %v321
      %v2093 = vunpack.c.l.b16 %v322
      %v2094 = vunpack.c.h.b16 %v322
      %v2095 = vunpack.c.l.b16 %v323
      %v2096 = vunpack.c.h.b16 %v323
      %v2097 = vunpack.c.l.b16 %v324
      %v2098 = vunpack.c.h.b16 %v324
      %v2099 = vunpack.c.l.b16 %v325
      %v2100 = vunpack.c.h.b16 %v325
      %v2101 = vunpack.c.l.b16 %v326
      %v2102 = vunpack.c.h.b16 %v326
      %v2103 = vunpack.c.l.b16 %v327
      %v2104 = vunpack.c.h.b16 %v327
      %v2105 = vunpack.c.l.b16 %v328
      %v2106 = vunpack.c.h.b16 %v328
      %v2107 = vunpack.c.l.b16 %v329
      %v2108 = vunpack.c.h.b16 %v329
      %v2109 = vunpack.c.l.b16 %v330
      %v2110 = vunpack.c.h.b16 %v330
      %v2111 = vunpack.c.l.b16 %v331
      %v2112 = vunpack.c.h.b16 %v331
      %v2113 = vunpack.c.l.b16 %v332
      %v2114 = vunpack.c.h.b16 %v332
      %v2115 = vunpack.c.l.b16 %v333
      %v2116 = vunpack.c.h.b16 %v333
      %v2117 = vunpack.c.l.b16 %v334
      %v2118 = vunpack.c.h.b16 %v334
      %v2119 = vunpack.c.l.b16 %v335
      %v2120 = vunpack.c.h.b16 %v335
      %v2121 = vunpack.c.l.b16 %v336
      %v2122 = vunpack.c.h.b16 %v336
      %v2123 = vunpack.c.l.b16 %v337
      %v2124 = vunpack.c.h.b16 %v337
      %v2125 = vunpack.c.l.b16 %v338
      %v2126 = vunpack.c.h.b16 %v338
      %v2127 = vunpack.c.l.b16 %v339
      %v2128 = vunpack.c.h.b16 %v339
      %v2129 = vunpack.c.l.b16 %v340
      %v2130 = vunpack.c.h.b16 %v340
      %v2131 = vunpack.c.l.b16 %v341
      %v2132 = vunpack.c.h.b16 %v341
      %v2133 = vunpack.c.l.b16 %v342
      %v2134 = vunpack.c.h.b16 %v342
      %v2135 = vunpack.c.l.b16 %v343
      %v2136 = vunpack.c.h.b16 %v343
      %v2137 = vunpack.c.l.b16 %v344
      %v2138 = vunpack.c.h.b16 %v344
      %v2139 = vunpack.c.l.b16 %v345
      %v2140 = vunpack.c.h.b16 %v345
      %v2141 = vunpack.c.l.b16 %v346
      %v2142 = vunpack.c.h.b16 %v346
      %v2143 = vunpack.c.l.b16 %v347
      %v2144 = vunpack.c.h.b16 %v347
      %v2145 = vunpack.c.l.b16 %v348
      %v2146 = vunpack.c.h.b16 %v348
      %v2147 = vunpack.c.l.b16 %v349
      %v2148 = vunpack.c.h.b16 %v349
      %v2149 = vunpack.c.l.b16 %v350
      %v2150 = vunpack.c.h.b16 %v350
      %v2151 = vunpack.c.l.b16 %v351
      %v2152 = vunpack.c.h.b16 %v351
      %v2153 = vunpack.c.l.b16 %v352
      %v2154 = vunpack.c.h.b16 %v352
      %v2155 = vunpack.c.l.b16 %v353
      %v2156 = vunpack.c.h.b16 %v353
      %v2157 = vunpack.c.l.b16 %v354
      %v2158 = vunpack.c.h.b16 %v354
      %v2159 = vunpack.c.l.b16 %v355
      %v2160 = vunpack.c.h.b16 %v355
      %v2161 = vunpack.c.l.b16 %v356
      %v2162 = vunpack.c.h.b16 %v356
      %v2163 = vunpack.c.l.b16 %v357
      %v2164 = vunpack.c.h.b16 %v357
      %v2165 = vunpack.c.l.b16 %v358
      %v2166 = vunpack.c.h.b16 %v358
      %v2167 = vunpack.c.l.b16 %v359
      %v2168 = vunpack.c.h.b16 %v359
      %v2169 = vunpack.c.l.b16 %v360
      %v2170 = vunpack.c.h.b16 %v360
      %v2171 = vunpack.c.l.b16 %v361
      %v2172 = vunpack.c.h.b16 %v361
      %v2173 = vunpack.c.l.b16 %v362
      %v2174 = vunpack.c.h.b16 %v362
      %v2175 = vunpack.c.l.b16 %v363
      %v2176 = vunpack.c.h.b16 %v363
      %v2177 = vunpack.c.l.b16 %v364
      %v2178 = vunpack.c.h.b16 %v364
      %v2179 = vunpack.c.l.b16 %v365
      %v2180 = vunpack.c.h.b16 %v365
      %v2181 = vunpack.c.l.b16 %v366
      %v2182 = vunpack.c.h.b16 %v366
      %v2183 = vunpack.c.l.b16 %v367
      %v2184 = vunpack.c.h.b16 %v367
      %v2185 = vunpack.c.l.b16 %v368
      %v2186 = vunpack.c.h.b16 %v368
      %v2187 = vunpack.c.l.b16 %v369
      %v2188 = vunpack.c.h.b16 %v369
      %v2189 = vunpack.c.l.b16 %v370
      %v2190 = vunpack.c.h.b16 %v370
      %v2191 = vunpack.c.l.b16 %v371
      %v2192 = vunpack.c.h.b16 %v371
      %v2193 = vunpack.c.l.b16 %v372
      %v2194 = vunpack.c.h.b16 %v372
      %v2195 = vunpack.c.l.b16 %v373
      %v2196 = vunpack.c.h.b16 %v373
      %v2197 = vunpack.c.l.b16 %v374
      %v2198 = vunpack.c.h.b16 %v374
      %v2199 = vunpack.c.l.b16 %v375
      %v2200 = vunpack.c.h.b16 %v375
      %v2201 = vunpack.c.l.b16 %v376
      %v2202 = vunpack.c.h.b16 %v376
      %v2203 = vunpack.c.l.b16 %v377
      %v2204 = vunpack.c.h.b16 %v377
      %v2205 = vunpack.c.l.b16 %v378
      %v2206 = vunpack.c.h.b16 %v378
      %v2207 = vunpack.c.l.b16 %v379
      %v2208 = vunpack.c.h.b16 %v379
      %v2209 = vunpack.c.l.b16 %v380
      %v2210 = vunpack.c.h.b16 %v380
      %v2211 = vunpack.c.l.b16 %v381
      %v2212 = vunpack.c.h.b16 %v381
      %v2213 = vpack.c.b16 %v2117, %v2021
      %v2214 = vpack.c.b16 %v2118, %v2022
      %v2215 = vpack.c.b16 %v2119, %v2023
      %v2216 = vpack.c.b16 %v2120, %v2024
      %v2217 = vpack.c.b16 %v2121, %v2025
      %v2218 = vpack.c.b16 %v2122, %v2026
      %v2219 = vpack.c.b16 %v2123, %v2027
      %v2220 = vpack.c.b16 %v2124, %v2028
      %v2221 = vpack.c.b16 %v2125, %v2029
      %v2222 = vpack.c.b16 %v2126, %v2030
      %v2223 = vpack.c.b16 %v2127, %v2031
      %v2224 = vpack.c.b16 %v2128, %v2032
      %v2225 = vpack.c.b16 %v2129, %v2033
      %v2226 = vpack.c.b16 %v2130, %v2034
      %v2227 = vpack.c.b16 %v2131, %v2035
      %v2228 = vpack.c.b16 %v2132, %v2036
      %v2229 = vpack.c.b16 %v2133, %v2037
      %v2230 = vpack.c.b16 %v2134, %v2038
      %v2231 = vpack.c.b16 %v2135, %v2039
      %v2232 = vpack.c.b16 %v2136, %v2040
      %v2233 = vpack.c.b16 %v2137, %v2041
      %v2234 = vpack.c.b16 %v2138, %v2042
      %v2235 = vpack.c.b16 %v2139, %v2043
      %v2236 = vpack.c.b16 %v2140, %v2044
      %v2237 = vpack.c.b16 %v2141, %v2045
      %v2238 = vpack.c.b16 %v2142, %v2046
      %v2239 = vpack.c.b16 %v2143, %v2047
      %v2240 = vpack.c.b16 %v2144, %v2048
      %v2241 = vpack.c.b16 %v2145, %v2049
      %v2242 = vpack.c.b16 %v2146, %v2050
      %v2243 = vpack.c.b16 %v2147, %v2051
      %v2244 = vpack.c.b16 %v2148, %v2052
      %v2245 = vpack.c.b16 %v2149, %v2053
      %v2246 = vpack.c.b16 %v2150, %v2054
      %v2247 = vpack.c.b16 %v2151, %v2055
      %v2248 = vpack.c.b16 %v2152, %v2056
      %v2249 = vpack.c.b16 %v2153, %v2057
      %v2250 = vpack.c.b16 %v2154, %v2058
      %v2251 = vpack.c.b16 %v2155, %v2059
      %v2252 = vpack.c.b16 %v2156, %v2060
      %v2253 = vpack.c.b16 %v2157, %v2061
      %v2254 = vpack.c.b16 %v2158, %v2062
      %v2255 = vpack.c.b16 %v2159, %v2063
      %v2256 = vpack.c.b16 %v2160, %v2064
      %v2257 = vpack.c.b16 %v2161, %v2065
      %v2258 = vpack.c.b16 %v2162, %v2066
      %v2259 = vpack.c.b16 %v2163, %v2067
      %v2260 = vpack.c.b16 %v2164, %v2068
      %v2261 = vpack.c.b16 %v2165, %v2069
      %v2262 = vpack.c.b16 %v2166, %v2070
      %v2263 = vpack.c.b16 %v2167, %v2071
      %v2264 = vpack.c.b16 %v2168, %v2072
      %v2265 = vpack.c.b16 %v2169, %v2073
      %v2266 = vpack.c.b16 %v2170, %v2074
      %v2267 = vpack.c.b16 %v2171, %v2075
      %v2268 = vpack.c.b16 %v2172, %v2076
      %v2269 = vpack.c.b16 %v2173, %v2077
      %v2270 = vpack.c.b16 %v2174, %v2078
      %v2271 = vpack.c.b16 %v2175, %v2079
      %v2272 = vpack.c.b16 %v2176, %v2080
      %v2273 = vpack.c.b16 %v2177, %v2081
      %v2274 = vpack.c.b16 %v2178, %v2082
      %v2275 = vpack.c.b16 %v2179, %v2083
      %v2276 = vpack.c.b16 %v2180, %v2084
      %v2277 = vpack.c.b16 %v2181, %v2085
      %v2278 = vpack.c.b16 %v2182, %v2086
      %v2279 = vpack.c.b16 %v2183, %v2087
      %v2280 = vpack.c.b16 %v2184, %v2088
      %v2281 = vpack.c.b16 %v2185, %v2089
      %v2282 = vpack.c.b16 %v2186, %v2090
      %v2283 = vpack.c.b16 %v2187, %v2091
      %v2284 = vpack.c.b16 %v2188, %v2092
      %v2285 = vpack.c.b16 %v2189, %v2093
      %v2286 = vpack.c.b16 %v2190, %v2094
      %v2287 = vpack.c.b16 %v2191, %v2095
      %v2288 = vpack.c.b16 %v2192, %v2096
      %v2289 = vpack.c.b16 %v2193, %v2097
      %v2290 = vpack.c.b16 %v2194, %v2098
      %v2291 = vpack.c.b16 %v2195, %v2099
      %v2292 = vpack.c.b16 %v2196, %v2100
      %v2293 = vpack.c.b16 %v2197, %v2101
      %v2294 = vpack.c.b16 %v2198, %v2102
      %v2295 = vpack.c.b16 %v2199, %v2103
      %v2296 = vpack.c.b16 %v2200, %v2104
      %v2297 = vpack.c.b16 %v2201, %v2105
      %v2298 = vpack.c.b16 %v2202, %v2106
      %v2299 = vpack.c.b16 %v2203, %v2107
      %v2300 = vpack.c.b16 %v2204, %v2108
      %v2301 = vpack.c.b16 %v2205, %v2109
      %v2302 = vpack.c.b16 %v2206, %v2110
      %v2303 = vpack.c.b16 %v2207, %v2111
      %v2304 = vpack.c.b16 %v2208, %v2112
      %v2305 = vpack.c.b16 %v2209, %v2113
      %v2306 = vpack.c.b16 %v2210, %v2114
      %v2307 = vpack.c.b16 %v2211, %v2115
      %v2308 = vpack.c.b16 %v2212, %v2116
      %v3941 = vunpack.c.l.b16 %v382
      %v3942 = vunpack.c.l.b16 %v383
      %v3943 = vunpack.c.l.b16 %v384
      %v3944 = vunpack.c.l.b16 %v385
      %v3945 = vunpack.c.l.b16 %v386
      %v3946 = vunpack.c.l.b16 %v387
      %v3947 = vunpack.c.l.b16 %v388
      %v3948 = vunpack.c.l.b16 %v389
      %v3949 = vunpack.c.l.b16 %v390
      %v3950 = vunpack.c.l.b16 %v391
      %v3951 = vunpack.c.l.b16 %v392
      %v3952 = vunpack.c.l.b16 %v393
      %v3953 = vunpack.c.l.b16 %v394
      %v3954 = vunpack.c.l.b16 %v395
      %v3955 = vunpack.c.l.b16 %v396
      %v3956 = vunpack.c.l.b16 %v397
      %v3957 = vunpack.c.l.b16 %v398
      %v3958 = vunpack.c.l.b16 %v399
      %v3959 = vunpack.c.l.b16 %v400
      %v3960 = vunpack.c.l.b16 %v401
      %v3961 = vunpack.c.l.b16 %v402
      %v3962 = vunpack.c.l.b16 %v403
      %v3963 = vunpack.c.l.b16 %v404
      %v3964 = vunpack.c.l.b16 %v405
      %v3965 = vunpack.c.l.b16 %v406
      %v3966 = vunpack.c.l.b16 %v407
      %v3967 = vunpack.c.l.b16 %v408
      %v3968 = vunpack.c.l.b16 %v409
      %v3969 = vunpack.c.l.b16 %v410
      %v3970 = vunpack.c.l.b16 %v411
      %v3971 = vunpack.c.l.b16 %v412
      %v3972 = vunpack.c.l.b16 %v413
      %v3973 = vunpack.c.l.b16 %v414
      %v3974 = vunpack.c.l.b16 %v415
      %v3975 = vunpack.c.l.b16 %v416
      %v3976 = vunpack.c.l.b16 %v417
      %v3977 = vunpack.c.l.b16 %v418
      %v3978 = vunpack.c.l.b16 %v419
      %v3979 = vunpack.c.l.b16 %v420
      %v3980 = vunpack.c.l.b16 %v421
      %v3981 = vunpack.c.l.b16 %v422
      %v3982 = vunpack.c.l.b16 %v423
      %v3983 = vunpack.c.l.b16 %v424
      %v3984 = vunpack.c.l.b16 %v425
      %v3985 = vunpack.c.l.b16 %v426
      %v3986 = vunpack.c.l.b16 %v427
      %v3987 = vunpack.c.l.b16 %v428
      %v3988 = vunpack.c.l.b16 %v429
      %v3989 = vunpack.c.l.b16 %v430
      %v3990 = vunpack.c.l.b16 %v431
      %v3991 = vunpack.c.l.b16 %v432
      %v3992 = vunpack.c.l.b16 %v433
      %v3993 = vunpack.c.l.b16 %v434
      %v3994 = vunpack.c.l.b16 %v435
      %v3995 = vunpack.c.l.b16 %v436
      %v3996 = vunpack.c.l.b16 %v437
      %v3997 = vunpack.c.l.b16 %v438
      %v3998 = vunpack.c.l.b16 %v439
      %v3999 = vunpack.c.l.b16 %v440
      %v4000 = vunpack.c.l.b16 %v441
      %v4001 = vunpack.c.l.b16 %v442
      %v4002 = vunpack.c.l.b16 %v443
      %v4003 = vunpack.c.l.b16 %v444
      %v4004 = vunpack.c.l.b16 %v445
      %v4005 = vunpack.c.l.b16 %v446
      %v4006 = vunpack.c.l.b16 %v447
      %v4007 = vunpack.c.l.b16 %v448
      %v4008 = vunpack.c.l.b16 %v449
      %v4009 = vunpack.c.l.b16 %v450
      %v4010 = vunpack.c.l.b16 %v451
      %v4011 = vunpack.c.l.b16 %v452
      %v4012 = vunpack.c.l.b16 %v453
      %v4013 = vunpack.c.l.b16 %v454
      %v4014 = vunpack.c.l.b16 %v455
      %v4015 = vunpack.c.l.b16 %v456
      %v4016 = vunpack.c.l.b16 %v457
      %v4017 = vunpack.c.l.b16 %v458
      %v4018 = vunpack.c.l.b16 %v459
      %v4019 = vunpack.c.l.b16 %v460
      %v4020 = vunpack.c.l.b16 %v461
      %v4021 = vunpack.c.l.b16 %v462
      %v4022 = vunpack.c.l.b16 %v463
      %v4023 = vunpack.c.l.b16 %v464
      %v4024 = vunpack.c.l.b16 %v465
      %v4025 = vunpack.c.l.b16 %v466
      %v4026 = vunpack.c.l.b16 %v467
      %v4027 = vunpack.c.l.b16 %v468
      %v4028 = vunpack.c.l.b16 %v469
      %v4029 = vunpack.c.l.b16 %v470
      %v4030 = vunpack.c.l.b16 %v471
      %v4031 = vunpack.c.l.b16 %v472
      %v4032 = vunpack.c.l.b16 %v473
      %v4033 = vunpack.c.l.b16 %v474
      %v4034 = vunpack.c.l.b16 %v475
      %v4035 = vunpack.c.l.b16 %v476
      %v4036 = vunpack.c.l.b16 %v477
      %v4037 = vunpack.c.l.b16 %v478
      %v4038 = vunpack.c.l.b16 %v479
      %v4039 = vunpack.c.l.b16 %v480
      %v4040 = vunpack.c.l.b16 %v481
      %v4041 = vunpack.c.l.b16 %v482
      %v4042 = vunpack.c.l.b16 %v483
      %v4043 = vunpack.c.l.b16 %v484
      %v4044 = vunpack.c.l.b16 %v485
      %v4045 = vunpack.c.l.b16 %v486
      %v4046 = vunpack.c.l.b16 %v487
      %v4047 = vunpack.c.l.b16 %v488
      %v4048 = vunpack.c.l.b16 %v489
      %v4049 = vunpack.c.l.b16 %v490
      %v4050 = vunpack.c.l.b16 %v491
      %v4051 = vunpack.c.l.b16 %v492
      %v4052 = vunpack.c.l.b16 %v493
      %v4053 = vunpack.c.l.b16 %v494
      %v4054 = vunpack.c.l.b16 %v495
      %v4055 = vunpack.c.l.b16 %v496
      %v4056 = vunpack.c.l.b16 %v497
      %v4057 = vunpack.c.l.b16 %v498
      %v4058 = vunpack.c.l.b16 %v499
      %v4059 = vunpack.c.l.b16 %v500
      %v4060 = vunpack.c.l.b16 %v501
      %v4061 = vunpack.c.l.b16 %v502
      %v4062 = vunpack.c.l.b16 %v503
      %v4063 = vunpack.c.l.b16 %v504
      %v4064 = vunpack.c.l.b16 %v505
      %v4065 = vunpack.c.l.b16 %v506
      %v4066 = vunpack.c.l.b16 %v507
      %v4067 = vunpack.c.l.b16 %v508
      %v4068 = vunpack.c.l.b16 %v509
      %v4069 = vunpack.c.l.b16 %v510
      %v4070 = vunpack.c.l.b16 %v511
      %v4071 = vunpack.c.l.b16 %v512
      %v4072 = vunpack.c.l.b16 %v513
      %v4073 = vunpack.c.l.b16 %v514
      %v4074 = vunpack.c.l.b16 %v515
      %v4075 = vunpack.c.l.b16 %v516
      %v4076 = vunpack.c.l.b16 %v517
      %v4077 = vunpack.c.l.b16 %v518
      %v4078 = vunpack.c.l.b16 %v519
      %v4079 = vunpack.c.l.b16 %v520
      %v4080 = vunpack.c.l.b16 %v521
      %v4081 = vunpack.c.l.b16 %v522
      %v4082 = vunpack.c.l.b16 %v523
      %v4083 = vunpack.c.l.b16 %v524
      %v4084 = vunpack.c.l.b16 %v525
      %v4085 = vunpack.c.l.b16 %v526
      %v4086 = vunpack.c.l.b16 %v527
      %v4087 = vunpack.c.l.b16 %v528
      %v4088 = vunpack.c.l.b16 %v529
      %v4089 = vunpack.c.l.b16 %v530
      %v4090 = vunpack.c.l.b16 %v531
      %v4091 = vunpack.c.l.b16 %v532
      %v4092 = vunpack.c.l.b16 %v533
      %v4093 = vunpack.c.l.b16 %v534
      %v4094 = vunpack.c.l.b16 %v535
      %v4095 = vunpack.c.l.b16 %v536
      %v4096 = vunpack.c.l.b16 %v537
      %v4097 = vunpack.c.l.b16 %v538
      %v4098 = vunpack.c.l.b16 %v539
      %v4099 = vunpack.c.l.b16 %v540
      %v4100 = vunpack.c.l.b16 %v541
      %v4101 = vunpack.c.l.b16 %v542
      %v4102 = vunpack.c.l.b16 %v543
      %v4103 = vunpack.c.l.b16 %v544
      %v4104 = vunpack.c.l.b16 %v545
      %v4105 = vunpack.c.l.b16 %v546
      %v4106 = vunpack.c.l.b16 %v547
      %v4107 = vunpack.c.l.b16 %v548
      %v4108 = vunpack.c.l.b16 %v549
      %v4109 = vunpack.c.l.b16 %v550
      %v4110 = vunpack.c.l.b16 %v551
      %v4111 = vunpack.c.l.b16 %v552
      %v4112 = vunpack.c.l.b16 %v553
      %v4113 = vunpack.c.l.b16 %v554
      %v4114 = vunpack.c.l.b16 %v555
      %v4115 = vunpack.c.l.b16 %v556
      %v4116 = vunpack.c.l.b16 %v557
      %v4117 = vunpack.c.l.b16 %v558
      %v4118 = vunpack.c.l.b16 %v559
      %v4119 = vunpack.c.l.b16 %v560
      %v4120 = vunpack.c.l.b16 %v561
      %v4121 = vunpack.c.l.b16 %v562
      %v4122 = vunpack.c.l.b16 %v563
      %v4123 = vunpack.c.l.b16 %v564
      %v4124 = vunpack.c.l.b16 %v565
      %v4125 = vunpack.c.l.b16 %v566
      %v4126 = vunpack.c.l.b16 %v567
      %v4127 = vunpack.c.l.b16 %v568
      %v4128 = vunpack.c.l.b16 %v569
      %v4129 = vunpack.c.l.b16 %v570
      %v4130 = vunpack.c.l.b16 %v571
      %v4131 = vunpack.c.l.b16 %v572
      %v4132 = vunpack.c.l.b16 %v573
      %v4133 = vunpack.c.l.b16 %v574
      %v4134 = vunpack.c.l.b16 %v575
      %v4135 = vunpack.c.l.b16 %v576
      %v4136 = vunpack.c.l.b16 %v577
      %v4137 = vunpack.c.l.b16 %v578
      %v4138 = vunpack.c.l.b16 %v579
      %v4139 = vunpack.c.l.b16 %v580
      %v4140 = vunpack.c.l.b16 %v581
      %v4141 = vunpack.c.l.b16 %v582
      %v4142 = vunpack.c.l.b16 %v583
      %v4143 = vunpack.c.l.b16 %v584
      %v4144 = vunpack.c.l.b16 %v585
      %v4145 = vunpack.c.l.b16 %v586
      %v4146 = vunpack.c.l.b16 %v587
      %v4147 = vunpack.c.l.b16 %v588
      %v4148 = vunpack.c.l.b16 %v589
      %v4149 = vunpack.c.l.b16 %v590
      %v4150 = vunpack.c.l.b16 %v591
      %v4151 = vunpack.c.l.b16 %v592
      %v4152 = vunpack.c.l.b16 %v593
      %v4153 = vunpack.c.l.b16 %v594
      %v4154 = vunpack.c.l.b16 %v595
      %v4155 = vunpack.c.l.b16 %v596
      %v4156 = vunpack.c.l.b16 %v597
      %v4157 = vunpack.c.l.b16 %v598
      %v4158 = vunpack.c.l.b16 %v599
      %v4159 = vunpack.c.l.b16 %v600
      %v4160 = vunpack.c.l.b16 %v601
      %v4161 = vunpack.c.l.b16 %v602
      %v4162 = vunpack.c.l.b16 %v603
      %v4163 = vunpack.c.l.b16 %v604
      %v4164 = vunpack.c.l.b16 %v605
      %v4165 = vunpack.c.l.b16 %v606
      %v4166 = vunpack.c.l.b16 %v607
      %v4167 = vunpack.c.l.b16 %v608
      %v4168 = vunpack.c.l.b16 %v609
      %v4169 = vunpack.c.l.b16 %v610
      %v4170 = vunpack.c.l.b16 %v611
      %v4171 = vunpack.c.l.b16 %v612
      %v4172 = vunpack.c.l.b16 %v613
      %v4173 = vunpack.c.l.b16 %v614
      %v4174 = vunpack.c.l.b16 %v615
      %v4175 = vunpack.c.l.b16 %v616
      %v4176 = vunpack.c.l.b16 %v617
      %v4177 = vunpack.c.l.b16 %v618
      %v4178 = vunpack.c.l.b16 %v619
      %v4179 = vunpack.c.l.b16 %v620
      %v4180 = vunpack.c.l.b16 %v621
      %v4181 = vunpack.c.l.b16 %v622
      %v4182 = vunpack.c.l.b16 %v623
      %v4183 = vunpack.c.l.b16 %v624
      %v4184 = vunpack.c.l.b16 %v625
      %v4185 = vunpack.c.l.b16 %v626
      %v4186 = vunpack.c.l.b16 %v627
      %v4187 = vunpack.c.l.b16 %v628
      %v4188 = vunpack.c.l.b16 %v629
      %v4189 = vunpack.c.l.b16 %v630
      %v4190 = vunpack.c.l.b16 %v631
      %v4191 = vunpack.c.l.b16 %v632
      %v4192 = vunpack.c.l.b16 %v633
      %v4193 = vunpack.c.l.b16 %v634
      %v4194 = vunpack.c.l.b16 %v635
      %v4195 = vunpack.c.l.b16 %v636
      %v4196 = vunpack.c.l.b16 %v637
      %v4197 = vunpack.c.l.b16 %v638
      %v4198 = vunpack.c.l.b16 %v639
      %v4199 = vunpack.c.l.b16 %v640
      %v4200 = vunpack.c.l.b16 %v641
      %v4201 = vunpack.c.l.b16 %v642
      %v4202 = vunpack.c.l.b16 %v643
      %v4203 = vunpack.c.l.b16 %v644
      %v4204 = vunpack.c.l.b16 %v645
      %v4205 = vunpack.c.l.b16 %v646
      %v4206 = vunpack.c.l.b16 %v647
      %v4207 = vunpack.c.l.b16 %v648
      %v4208 = vunpack.c.l.b16 %v649
      %v4209 = vunpack.c.l.b16 %v650
      %v4210 = vunpack.c.l.b16 %v651
      %v4211 = vunpack.c.l.b16 %v652
      %v4212 = vunpack.c.l.b16 %v653
      %v4213 = vunpack.c.l.b16 %v654
      %v4214 = vunpack.c.l.b16 %v655
      %v4215 = vunpack.c.l.b16 %v656
      %v4216 = vunpack.c.l.b16 %v657
      %v4217 = vunpack.c.l.b16 %v658
      %v4218 = vunpack.c.l.b16 %v659
      %v4219 = vunpack.c.l.b16 %v660
      %v4220 = vunpack.c.l.b16 %v661
      %v4221 = vunpack.c.l.b16 %v662
      %v4222 = vunpack.c.l.b16 %v663
      %v4223 = vunpack.c.l.b16 %v664
      %v4224 = vunpack.c.l.b16 %v665
      %v4225 = vunpack.c.l.b16 %v666
      %v4226 = vunpack.c.l.b16 %v667
      %v4227 = vunpack.c.l.b16 %v668
      %v4228 = vunpack.c.l.b16 %v669
      %v4229 = vunpack.c.l.b16 %v670
      %v4230 = vunpack.c.l.b16 %v671
      %v4231 = vunpack.c.l.b16 %v672
      %v4232 = vunpack.c.l.b16 %v673
      %v4233 = vunpack.c.l.b16 %v674
      %v4234 = vunpack.c.l.b16 %v675
      %v4235 = vunpack.c.l.b16 %v676
      %v4236 = vunpack.c.l.b16 %v677
      %v4237 = vunpack.c.l.b16 %v678
      %v4238 = vunpack.c.l.b16 %v679
      %v4239 = vunpack.c.l.b16 %v680
      %v4240 = vunpack.c.l.b16 %v681
      %v4241 = vunpack.c.l.b16 %v682
      %v4242 = vunpack.c.l.b16 %v683
      %v4243 = vunpack.c.l.b16 %v684
      %v4244 = vunpack.c.l.b16 %v685
      %v4245 = vunpack.c.l.b16 %v686
      %v4246 = vunpack.c.l.b16 %v687
      %v4247 = vunpack.c.l.b16 %v688
      %v4248 = vunpack.c.l.b16 %v689
      %v4249 = vunpack.c.l.b16 %v690
      %v4250 = vunpack.c.l.b16 %v691
      %v4251 = vunpack.c.l.b16 %v692
      %v4252 = vunpack.c.l.b16 %v693
      %v4253 = vunpack.c.l.b16 %v694
      %v4254 = vunpack.c.l.b16 %v695
      %v4255 = vunpack.c.l.b16 %v696
      %v4256 = vunpack.c.l.b16 %v697
      %v4257 = vunpack.c.l.b16 %v698
      %v4258 = vunpack.c.l.b16 %v699
      %v4259 = vunpack.c.l.b16 %v700
      %v4260 = vunpack.c.l.b16 %v701
      %v4261 = vunpack.c.l.b16 %v702
      %v4262 = vunpack.c.l.b16 %v703
      %v4263 = vunpack.c.l.b16 %v704
      %v4264 = vunpack.c.l.b16 %v705
      %v4265 = vunpack.c.l.b16 %v706
      %v4266 = vunpack.c.l.b16 %v707
      %v4267 = vunpack.c.l.b16 %v708
      %v4268 = vunpack.c.l.b16 %v709
      %v4269 = vunpack.c.l.b16 %v710
      %v4270 = vunpack.c.l.b16 %v711
      %v4271 = vunpack.c.l.b16 %v712
      %v4272 = vunpack.c.l.b16 %v713
      %v4273 = vunpack.c.l.b16 %v714
      %v4274 = vunpack.c.l.b16 %v715
      %v4275 = vunpack.c.l.b16 %v716
      %v4276 = vunpack.c.l.b16 %v717
      %v4277 = vunpack.c.l.b16 %v718
      %v4278 = vunpack.c.l.b16 %v719
      %v4279 = vunpack.c.l.b16 %v720
      %v4280 = vunpack.c.l.b16 %v721
      %v4281 = vunpack.c.l.b16 %v722
      %v4282 = vunpack.c.l.b16 %v723
      %v4283 = vunpack.c.l.b16 %v724
      %v4284 = vunpack.c.l.b16 %v725
      %v4285 = vunpack.c.l.b16 %v726
      %v4286 = vunpack.c.l.b16 %v727
      %v4287 = vunpack.c.l.b16 %v728
      %v4288 = vunpack.c.l.b16 %v729
      %v4289 = vunpack.c.l.b16 %v730
      %v4290 = vunpack.c.l.b16 %v731
      %v4291 = vunpack.c.l.b16 %v732
      %v4292 = vunpack.c.l.b16 %v733
      %v4293 = vunpack.c.l.b16 %v734
      %v4294 = vunpack.c.l.b16 %v735
      %v4295 = vunpack.c.l.b16 %v736
      %v4296 = vunpack.c.l.b16 %v737
      %v4297 = vunpack.c.l.b16 %v738
      %v4298 = vunpack.c.l.b16 %v739
      %v4299 = vunpack.c.l.b16 %v740
      %v4300 = vunpack.c.l.b16 %v741
      %v4301 = vunpack.c.l.b16 %v742
      %v4302 = vunpack.c.l.b16 %v743
      %v4303 = vunpack.c.l.b16 %v744
      %v4304 = vunpack.c.l.b16 %v745
      %v4305 = vunpack.c.l.b16 %v746
      %v4306 = vunpack.c.l.b16 %v747
      %v4307 = vunpack.c.l.b16 %v748
      %v4308 = vunpack.c.l.b16 %v749
      %v4309 = vunpack.c.l.b16 %v750
      %v4310 = vunpack.c.l.b16 %v751
      %v4311 = vunpack.c.l.b16 %v752
      %v4312 = vunpack.c.l.b16 %v753
      %v4313 = vunpack.c.l.b16 %v754
      %v4314 = vunpack.c.l.b16 %v755
      %v4315 = vunpack.c.l.b16 %v756
      %v4316 = vunpack.c.l.b16 %v757
      %v4317 = vunpack.c.l.b16 %v758
      %v4318 = vunpack.c.l.b16 %v759
      %v4319 = vunpack.c.l.b16 %v760
      %v4320 = vunpack.c.l.b16 %v761
      %v4321 = vunpack.c.l.b16 %v762
      %v4322 = vunpack.c.l.b16 %v763
      %v4323 = vunpack.c.l.b16 %v764
      %v4324 = vunpack.c.l.b16 %v765
      %v4325 = vunpack.c.l.b16 %v766
      %v4326 = vunpack.c.l.b16 %v767
      %v4327 = vunpack.c.l.b16 %v768
      %v4328 = vunpack.c.l.b16 %v769
      %v4329 = vunpack.c.l.b16 %v770
      %v4330 = vunpack.c.l.b16 %v771
      %v4331 = vunpack.c.l.b16 %v772
      %v4332 = vunpack.c.l.b16 %v773
      %v4333 = vunpack.c.l.b16 %v774
      %v4334 = vunpack.c.l.b16 %v775
      %v4335 = vunpack.c.l.b16 %v776
      %v4336 = vunpack.c.l.b16 %v777
      %v4337 = vunpack.c.l.b16 %v778
      %v4338 = vunpack.c.l.b16 %v779
      %v4339 = vunpack.c.l.b16 %v780
      %v4340 = vunpack.c.l.b16 %v781
      %v4341 = vunpack.c.l.b16 %v782
      %v4342 = vunpack.c.l.b16 %v783
      %v4343 = vunpack.c.l.b16 %v784
      %v4344 = vunpack.c.l.b16 %v785
      %v4345 = vunpack.c.l.b16 %v786
      %v4346 = vunpack.c.l.b16 %v787
      %v4347 = vunpack.c.l.b16 %v788
      %v4348 = vunpack.c.l.b16 %v789
      %v4349 = vunpack.c.l.b16 %v790
      %v4350 = vunpack.c.l.b16 %v791
      %v4351 = vunpack.c.l.b16 %v792
      %v4352 = vunpack.c.l.b16 %v793
      %v4353 = vunpack.c.l.b16 %v794
      %v4354 = vunpack.c.l.b16 %v795
      %v4355 = vunpack.c.l.b16 %v796
      %v4356 = vunpack.c.l.b16 %v797
      %v4357 = vunpack.c.l.b16 %v798
      %v4358 = vunpack.c.l.b16 %v799
      %v4359 = vunpack.c.l.b16 %v800
      %v4360 = vunpack.c.l.b16 %v801
      %v4361 = vunpack.c.l.b16 %v802
      %v4362 = vunpack.c.l.b16 %v803
      %v4363 = vunpack.c.l.b16 %v804
      %v4364 = vunpack.c.l.b16 %v805
      %v4365 = vunpack.c.l.b16 %v806
      %v4366 = vunpack.c.l.b16 %v807
      %v4367 = vunpack.c.l.b16 %v808
      %v4368 = vunpack.c.l.b16 %v809
      %v4369 = vunpack.c.l.b16 %v810
      %v4370 = vunpack.c.l.b16 %v811
      %v4371 = vunpack.c.l.b16 %v812
      %v4372 = vunpack.c.l.b16 %v813
      %v4373 = vunpack.c.l.b16 %v814
      %v4374 = vunpack.c.l.b16 %v815
      %v4375 = vunpack.c.l.b16 %v816
      %v4376 = vunpack.c.l.b16 %v817
      %v4377 = vunpack.c.l.b16 %v818
      %v4378 = vunpack.c.l.b16 %v819
      %v4379 = vunpack.c.l.b16 %v820
      %v4380 = vunpack.c.l.b16 %v821
      %v4381 = vunpack.c.l.b16 %v822
      %v4382 = vunpack.c.l.b16 %v823
      %v4383 = vunpack.c.l.b16 %v824
      %v4384 = vunpack.c.l.b16 %v825
      %v4385 = vunpack.c.l.b16 %v826
      %v4386 = vunpack.c.l.b16 %v827
      %v4387 = vunpack.c.l.b16 %v828
      %v4388 = vunpack.c.l.b16 %v829
      %v4389 = vunpack.c.l.b16 %v830
      %v4390 = vunpack.c.l.b16 %v831
      %v4391 = vunpack.c.l.b16 %v832
      %v4392 = vunpack.c.l.b16 %v833
      %v4393 = vunpack.c.l.b16 %v834
      %v4394 = vunpack.c.l.b16 %v835
      %v4395 = vunpack.c.l.b16 %v836
      %v4396 = vunpack.c.l.b16 %v837
      %v4397 = vunpack.c.l.b16 %v838
      %v4398 = vunpack.c.l.b16 %v839
      %v4399 = vunpack.c.l.b16 %v840
      %v4400 = vunpack.c.l.b16 %v841
      %v4401 = vunpack.c.l.b16 %v842
      %v4402 = vunpack.c.l.b16 %v843
      %v4403 = vunpack.c.l.b16 %v844
      %v4404 = vunpack.c.l.b16 %v845
      %v4405 = vunpack.c.l.b16 %v846
      %v4406 = vunpack.c.l.b16 %v847
      %v4407 = vunpack.c.l.b16 %v848
      %v4408 = vunpack.c.l.b16 %v849
      %v4409 = vunpack.c.l.b16 %v850
      %v4410 = vunpack.c.l.b16 %v851
      %v4411 = vunpack.c.l.b16 %v852
      %v4412 = vunpack.c.l.b16 %v853
      %v4413 = vunpack.c.l.b16 %v854
      %v4414 = vunpack.c.l.b16 %v855
      %v4415 = vunpack.c.l.b16 %v856
      %v4416 = vunpack.c.l.b16 %v857
      %v4417 = vunpack.c.l.b16 %v858
      %v4418 = vunpack.c.l.b16 %v859
      %v4419 = vunpack.c.l.b16 %v860
      %v4420 = vunpack.c.l.b16 %v861
      %v4421 = vunpack.c.l.b16 %v862
      %v4422 = vunpack.c.l.b16 %v863
      %v4423 = vunpack.c.l.b16 %v864
      %v4424 = vunpack.c.l.b16 %v865
      %v4425 = vunpack.c.l.b16 %v866
      %v4426 = vunpack.c.l.b16 %v867
      %v4427 = vunpack.c.l.b16 %v868
      %v4428 = vunpack.c.l.b16 %v869
      %v4429 = vunpack.c.l.b16 %v870
      %v4430 = vunpack.c.l.b16 %v871
      %v4431 = vunpack.c.l.b16 %v872
      %v4432 = vunpack.c.l.b16 %v873
      %v4433 = vunpack.c.l.b16 %v874
      %v4434 = vunpack.c.l.b16 %v875
      %v4435 = vunpack.c.l.b16 %v876
      %v4436 = vunpack.c.l.b16 %v877
      %v4437 = vunpack.c.l.b16 %v878
      %v4438 = vunpack.c.l.b16 %v879
      %v4439 = vunpack.c.l.b16 %v880
      %v4440 = vunpack.c.l.b16 %v881
      %v4441 = vunpack.c.l.b16 %v882
      %v4442 = vunpack.c.l.b16 %v883
      %v4443 = vunpack.c.l.b16 %v884
      %v4444 = vunpack.c.l.b16 %v885
      %v4445 = vunpack.c.l.b16 %v886
      %v4446 = vunpack.c.l.b16 %v887
      %v4447 = vunpack.c.l.b16 %v888
      %v4448 = vunpack.c.l.b16 %v889
      %v4449 = vunpack.c.l.b16 %v890
      %v4450 = vunpack.c.l.b16 %v891
      %v4451 = vunpack.c.l.b16 %v892
      %v4452 = vunpack.c.l.b16 %v893
      %v4453 = vunpack.c.l.b16 %v894
      %v4454 = vunpack.c.l.b16 %v895
      %v4455 = vunpack.c.l.b16 %v896
      %v4456 = vunpack.c.l.b16 %v897
      %v4457 = vunpack.c.l.b16 %v898
      %v4458 = vunpack.c.l.b16 %v899
      %v4459 = vunpack.c.l.b16 %v900
      %v4460 = vunpack.c.l.b16 %v901
      %v4461 = vunpack.c.l.b16 %v902
      %v4462 = vunpack.c.l.b16 %v903
      %v4463 = vunpack.c.l.b16 %v904
      %v4464 = vunpack.c.l.b16 %v905
      %v4465 = vunpack.c.l.b16 %v906
      %v4466 = vunpack.c.l.b16 %v907
      %v4467 = vunpack.c.l.b16 %v908
      %v4468 = vunpack.c.l.b16 %v909
      %v4469 = vunpack.c.l.b16 %v910
      %v4470 = vunpack.c.l.b16 %v911
      %v4471 = vunpack.c.l.b16 %v912
      %v4472 = vunpack.c.l.b16 %v913
      %v4473 = vunpack.c.l.b16 %v914
      %v4474 = vunpack.c.l.b16 %v915
      %v4475 = vunpack.c.l.b16 %v916
      %v4476 = vunpack.c.l.b16 %v917
      %v4477 = vunpack.c.l.b16 %v918
      %v4478 = vunpack.c.l.b16 %v919
      %v4479 = vunpack.c.l.b16 %v920
      %v4480 = vunpack.c.l.b16 %v921
      %v4481 = vunpack.c.l.b16 %v922
      %v4482 = vunpack.c.l.b16 %v923
      %v4483 = vunpack.c.l.b16 %v924
      %v4484 = vunpack.c.l.b16 %v925
      %v4485 = vunpack.c.l.b16 %v926
      %v4486 = vunpack.c.l.b16 %v927
      %v4487 = vunpack.c.l.b16 %v928
      %v4488 = vunpack.c.l.b16 %v929
      %v4489 = vunpack.c.l.b16 %v930
      %v4490 = vunpack.c.l.b16 %v931
      %v4491 = vunpack.c.l.b16 %v932
      %v4492 = vunpack.c.l.b16 %v933
      %v4493 = vunpack.c.l.b16 %v934
      %v4494 = vunpack.c.l.b16 %v935
      %v4495 = vunpack.c.l.b16 %v936
      %v4496 = vunpack.c.l.b16 %v937
      %v4497 = vunpack.c.l.b16 %v938
      %v4498 = vunpack.c.l.b16 %v939
      %v4499 = vunpack.c.l.b16 %v940
      %v4500 = vunpack.c.l.b16 %v941
      %v4501 = vunpack.c.l.b16 %v942
      %v4502 = vunpack.c.l.b16 %v943
      %v4503 = vunpack.c.l.b16 %v944
      %v4504 = vunpack.c.l.b16 %v945
      %v4505 = vunpack.c.l.b16 %v946
      %v4506 = vunpack.c.l.b16 %v947
      %v4507 = vunpack.c.l.b16 %v948
      %v4508 = vunpack.c.l.b16 %v949
      %v4509 = vunpack.c.l.b16 %v950
      %v4510 = vunpack.c.l.b16 %v951
      %v4511 = vunpack.c.l.b16 %v952
      %v4512 = vunpack.c.l.b16 %v953
      %v4513 = vunpack.c.l.b16 %v954
      %v4514 = vunpack.c.l.b16 %v955
      %v4515 = vunpack.c.l.b16 %v956
      %v4516 = vunpack.c.l.b16 %v957
      %v4517 = vunpack.c.l.b16 %v958
      %v4518 = vunpack.c.l.b16 %v959
      %v4519 = vunpack.c.l.b16 %v960
      %v4520 = vunpack.c.l.b16 %v961
      %v4521 = vunpack.c.l.b16 %v962
      %v4522 = vunpack.c.l.b16 %v963
      %v4523 = vunpack.c.l.b16 %v964
      %v4524 = vunpack.c.l.b16 %v965
      %v4525 = vunpack.c.l.b16 %v966
      %v4526 = vunpack.c.l.b16 %v967
      %v4527 = vunpack.c.l.b16 %v968
      %v4528 = vunpack.c.l.b16 %v969
      %v4529 = vunpack.c.l.b16 %v970
      %v4530 = vunpack.c.l.b16 %v971
      %v4531 = vunpack.c.l.b16 %v972
      %v4532 = vunpack.c.l.b16 %v973
      %v4533 = vunpack.c.l.b16 %v974
      %v4534 = vunpack.c.l.b16 %v975
      %v4535 = vunpack.c.l.b16 %v976
      %v4536 = vunpack.c.l.b16 %v977
      %v4537 = vunpack.c.l.b16 %v978
      %v4538 = vunpack.c.l.b16 %v979
      %v4539 = vunpack.c.l.b16 %v980
      %v4540 = vunpack.c.l.b16 %v981
      %v4541 = vunpack.c.l.b16 %v982
      %v4542 = vunpack.c.l.b16 %v983
      %v4543 = vunpack.c.l.b16 %v984
      %v4544 = vunpack.c.l.b16 %v985
      %v4545 = vunpack.c.l.b16 %v986
      %v4546 = vunpack.c.l.b16 %v987
      %v4547 = vunpack.c.l.b16 %v988
      %v4548 = vunpack.c.l.b16 %v989
      %v4549 = vunpack.c.l.b16 %v990
      %v4550 = vunpack.c.l.b16 %v991
      %v4551 = vunpack.c.l.b16 %v992
      %v4552 = vunpack.c.l.b16 %v993
      %v4553 = vunpack.c.l.b16 %v994
      %v4554 = vunpack.c.l.b16 %v995
      %v4555 = vunpack.c.l.b16 %v996
      %v4556 = vunpack.c.l.b16 %v997
      %v4557 = vunpack.c.l.b16 %v998
      %v4558 = vunpack.c.l.b16 %v999
      %v4559 = vunpack.c.l.b16 %v1000
      %v4560 = vunpack.c.l.b16 %v1001
      %v4561 = vunpack.c.l.b16 %v1002
      %v4562 = vunpack.c.l.b16 %v1003
      %v4563 = vunpack.c.l.b16 %v1004
      %v4564 = vunpack.c.l.b16 %v1005
      %v4565 = vunpack.c.l.b16 %v1006
      %v4566 = vunpack.c.l.b16 %v1007
      %v4567 = vunpack.c.l.b16 %v1008
      %v4568 = vunpack.c.l.b16 %v1009
      %v4569 = vunpack.c.l.b16 %v1010
      %v4570 = vunpack.c.l.b16 %v1011
      %v4571 = vunpack.c.l.b16 %v1012
      %v4572 = vunpack.c.l.b16 %v1013
      %v4573 = vunpack.c.l.b16 %v1014
      %v4574 = vunpack.c.l.b16 %v1015
      %v4575 = vunpack.c.l.b16 %v1016
      %v4576 = vunpack.c.l.b16 %v1017
      %v4577 = vunpack.c.l.b16 %v1018
      %v4578 = vunpack.c.l.b16 %v1019
      %v4579 = vunpack.c.l.b16 %v1020
      %v4580 = vunpack.c.l.b16 %v1021
      %v4581 = vunpack.c.l.b16 %v1022
      %v4582 = vunpack.c.l.b16 %v1023
      %v4583 = vunpack.c.l.b16 %v1024
      %v4584 = vunpack.c.l.b16 %v1025
      %v4585 = vunpack.c.l.b16 %v1026
      %v4586 = vunpack.c.l.b16 %v1027
      %v4587 = vunpack.c.l.b16 %v1028
      %v4588 = vunpack.c.l.b16 %v1029
      %v4589 = vunpack.c.l.b16 %v1030
      %v4590 = vunpack.c.l.b16 %v1031
      %v4591 = vunpack.c.l.b16 %v1032
      %v4592 = vunpack.c.l.b16 %v1033
      %v4593 = vunpack.c.l.b16 %v1034
      %v4594 = vunpack.c.l.b16 %v1035
      %v4595 = vunpack.c.l.b16 %v1036
      %v4596 = vunpack.c.l.b16 %v1037
      %v4597 = vunpack.c.l.b16 %v1038
      %v4598 = vunpack.c.l.b16 %v1039
      %v4599 = vunpack.c.l.b16 %v1040
      %v4600 = vunpack.c.l.b16 %v1041
      %v4601 = vunpack.c.l.b16 %v1042
      %v4602 = vunpack.c.l.b16 %v1043
      %v4603 = vunpack.c.l.b16 %v1044
      %v4604 = vunpack.c.l.b16 %v1045
      %v4605 = vunpack.c.l.b16 %v1046
      %v4606 = vunpack.c.l.b16 %v1047
      %v4607 = vunpack.c.l.b16 %v1048
      %v4608 = vunpack.c.l.b16 %v1049
      %v4609 = vunpack.c.l.b16 %v1050
      %v4610 = vunpack.c.l.b16 %v1051
      %v4611 = vunpack.c.l.b16 %v1052
      %v4612 = vunpack.c.l.b16 %v1053
      %v4613 = vunpack.c.l.b16 %v1054
      %v4614 = vunpack.c.l.b16 %v1055
      %v4615 = vunpack.c.l.b16 %v1056
      %v4616 = vunpack.c.l.b16 %v1057
      %v4617 = vunpack.c.l.b16 %v1058
      %v4618 = vunpack.c.l.b16 %v1059
      %v4619 = vunpack.c.l.b16 %v1060
      %v4620 = vunpack.c.l.b16 %v1061
      %v4621 = vunpack.c.l.b16 %v1062
      %v4622 = vunpack.c.l.b16 %v1063
      %v4623 = vunpack.c.l.b16 %v1064
      %v4624 = vunpack.c.l.b16 %v1065
      %v4625 = vunpack.c.l.b16 %v1066
      %v4626 = vunpack.c.l.b16 %v1067
      %v4627 = vunpack.c.l.b16 %v1068
      %v4628 = vunpack.c.l.b16 %v1069
      %v4629 = vunpack.c.l.b16 %v1070
      %v4630 = vunpack.c.l.b16 %v1071
      %v4631 = vunpack.c.l.b16 %v1072
      %v4632 = vunpack.c.l.b16 %v1073
      %v4633 = vunpack.c.l.b16 %v1074
      %v4634 = vunpack.c.l.b16 %v1075
      %v4635 = vunpack.c.l.b16 %v1076
      %v4636 = vunpack.c.l.b16 %v1077
      %v4637 = vunpack.c.l.b16 %v1078
      %v4638 = vunpack.c.l.b16 %v1079
      %v4639 = vunpack.c.l.b16 %v1080
      %v4640 = vunpack.c.l.b16 %v1081
      %v4641 = vunpack.c.l.b16 %v1082
      %v4642 = vunpack.c.l.b16 %v1083
      %v4643 = vunpack.c.l.b16 %v1084
      %v4644 = vunpack.c.l.b16 %v1085
      %v4645 = vunpack.c.l.b16 %v1086
      %v4646 = vunpack.c.l.b16 %v1087
      %v4647 = vunpack.c.l.b16 %v1088
      %v4648 = vunpack.c.l.b16 %v1089
      %v4649 = vunpack.c.l.b16 %v1090
      %v4650 = vunpack.c.l.b16 %v1091
      %v4651 = vunpack.c.l.b16 %v1092
      %v4652 = vunpack.c.l.b16 %v1093
      %v4653 = vunpack.c.l.b16 %v1094
      %v4654 = vunpack.c.l.b16 %v1095
      %v4655 = vunpack.c.l.b16 %v1096
      %v4656 = vunpack.c.l.b16 %v1097
      %v4657 = vunpack.c.l.b16 %v1098
      %v4658 = vunpack.c.l.b16 %v1099
      %v4659 = vunpack.c.l.b16 %v1100
      %v4660 = vunpack.c.l.b16 %v1101
      %v4661 = vunpack.c.l.b16 %v1102
      %v4662 = vunpack.c.l.b16 %v1103
      %v4663 = vunpack.c.l.b16 %v1104
      %v4664 = vunpack.c.l.b16 %v1105
      %v4665 = vunpack.c.l.b16 %v1106
      %v4666 = vunpack.c.l.b16 %v1107
      %v4667 = vunpack.c.l.b16 %v1108
      %v4668 = vunpack.c.l.b16 %v1109
      %v4669 = vunpack.c.l.b16 %v1110
      %v4670 = vunpack.c.l.b16 %v1111
      %v4671 = vunpack.c.l.b16 %v1112
      %v4672 = vunpack.c.l.b16 %v1113
      %v4673 = vunpack.c.l.b16 %v1114
      %v4674 = vunpack.c.l.b16 %v1115
      %v4675 = vunpack.c.l.b16 %v1116
      %v4676 = vunpack.c.l.b16 %v1117
      %v4677 = vunpack.c.l.b16 %v1118
      %v4678 = vunpack.c.l.b16 %v1119
      %v4679 = vunpack.c.l.b16 %v1120
      %v4680 = vunpack.c.l.b16 %v1121
      %v4681 = vunpack.c.l.b16 %v1122
      %v4682 = vunpack.c.l.b16 %v1123
      %v4683 = vunpack.c.l.b16 %v1124
      %v4684 = vunpack.c.l.b16 %v1125
      %v4685 = vunpack.c.l.b16 %v1126
      %v4686 = vunpack.c.l.b16 %v1127
      %v4687 = vunpack.c.l.b16 %v1128
      %v4688 = vunpack.c.l.b16 %v1129
      %v4689 = vunpack.c.l.b16 %v1130
      %v4690 = vunpack.c.l.b16 %v1131
      %v4691 = vunpack.c.l.b16 %v1132
      %v4692 = vunpack.c.l.b16 %v1133
      %v4693 = vunpack.c.l.b16 %v1134
      %v4694 = vunpack.c.l.b16 %v1135
      %v4695 = vunpack.c.l.b16 %v1136
      %v4696 = vunpack.c.l.b16 %v1137
      %v4697 = vunpack.c.l.b16 %v1138
      %v4698 = vunpack.c.l.b16 %v1139
      %v4699 = vunpack.c.l.b16 %v1140
      %v4700 = vunpack.c.l.b16 %v1141
      %v4701 = vunpack.c.l.b16 %v1142
      %v4702 = vunpack.c.l.b16 %v1143
      %v4703 = vunpack.c.l.b16 %v1144
      %v4704 = vunpack.c.l.b16 %v1145
      %v4705 = vunpack.c.l.b16 %v1146
      %v4706 = vunpack.c.l.b16 %v1147
      %v4707 = vunpack.c.l.b16 %v1148
      %v4708 = vunpack.c.l.b16 %v1149
      %v4709 = vunpack.c.l.b16 %v1150
      %v4710 = vunpack.c.l.b16 %v1151
      %v4711 = vunpack.c.l.b16 %v1152
      %v4712 = vunpack.c.l.b16 %v1153
      %v4713 = vunpack.c.l.b16 %v1154
      %v4714 = vunpack.c.l.b16 %v1155
      %v4715 = vunpack.c.l.b16 %v1156
      %v4716 = vunpack.c.l.b16 %v1157
      %v4717 = vunpack.c.l.b16 %v1158
      %v4718 = vunpack.c.l.b16 %v1159
      %v4719 = vunpack.c.l.b16 %v1160
      %v4720 = vunpack.c.l.b16 %v1161
      %v4721 = vunpack.c.l.b16 %v1162
      %v4722 = vunpack.c.l.b16 %v1163
      %v4723 = vunpack.c.l.b16 %v1164
      %v4724 = vunpack.c.l.b16 %v1165
      %v4725 = vunpack.c.l.b16 %v1166
      %v4726 = vunpack.c.l.b16 %v1167
      %v4727 = vunpack.c.l.b16 %v1168
      %v4728 = vunpack.c.l.b16 %v1169
      %v4729 = vunpack.c.l.b16 %v1170
      %v4730 = vunpack.c.l.b16 %v1171
      %v4731 = vunpack.c.l.b16 %v1172
      %v4732 = vunpack.c.l.b16 %v1173
      %v4733 = vunpack.c.l.b16 %v1174
      %v4734 = vunpack.c.l.b16 %v1175
      %v4735 = vunpack.c.l.b16 %v1176
      %v4736 = vunpack.c.l.b16 %v1177
      %v4737 = vunpack.c.l.b16 %v1178
      %v4738 = vunpack.c.l.b16 %v1179
      %v4739 = vunpack.c.l.b16 %v1180
      %v4740 = vunpack.c.l.b16 %v1181
      %v4741 = vunpack.c.l.b16 %v1182
      %v4742 = vunpack.c.l.b16 %v1183
      %v4743 = vunpack.c.l.b16 %v1184
      %v4744 = vunpack.c.l.b16 %v1185
      %v4745 = vunpack.c.l.b16 %v1186
      %v4746 = vunpack.c.l.b16 %v1187
      %v4747 = vunpack.c.l.b16 %v1188
      %v4748 = vunpack.c.l.b16 %v1189
      %v4749 = vunpack.c.l.b16 %v1190
      %v4750 = vunpack.c.l.b16 %v1191
      %v4751 = vunpack.c.l.b16 %v1192
      %v4752 = vunpack.c.l.b16 %v1193
      %v4753 = vunpack.c.l.b16 %v1194
      %v4754 = vunpack.c.l.b16 %v1195
      %v4755 = vunpack.c.l.b16 %v1196
      %v4756 = vunpack.c.l.b16 %v1197
      %v4757 = vunpack.c.l.b16 %v1198
      %v4758 = vunpack.c.l.b16 %v1199
      %v4759 = vunpack.c.l.b16 %v1200
      %v4760 = vunpack.c.l.b16 %v1201
      %v4761 = vunpack.c.l.b16 %v1202
      %v4762 = vunpack.c.l.b16 %v1203
      %v4763 = vunpack.c.l.b16 %v1204
      %v4764 = vunpack.c.l.b16 %v1205
      %v4765 = vunpack.c.l.b16 %v1206
      %v4766 = vunpack.c.l.b16 %v1207
      %v4767 = vunpack.c.l.b16 %v1208
      %v4768 = vunpack.c.l.b16 %v1209
      %v4769 = vunpack.c.l.b16 %v1210
      %v4770 = vunpack.c.l.b16 %v1211
      %v4771 = vunpack.c.l.b16 %v1212
      %v4772 = vunpack.c.l.b16 %v1213
      %v4773 = vunpack.c.l.b16 %v1214
      %v4774 = vunpack.c.l.b16 %v1215
      %v4775 = vunpack.c.l.b16 %v1216
      %v4776 = vunpack.c.l.b16 %v1217
      %v4777 = vunpack.c.l.b16 %v1218
      %v4778 = vunpack.c.l.b16 %v1219
      %v4779 = vunpack.c.l.b16 %v1220
      %v4780 = vunpack.c.l.b16 %v1221
      %v4781 = vunpack.c.l.b16 %v1222
      %v4782 = vunpack.c.l.b16 %v1223
      %v4783 = vunpack.c.l.b16 %v1224
      %v4784 = vunpack.c.l.b16 %v1225
      %v4785 = vunpack.c.l.b16 %v1226
      %v4786 = vunpack.c.l.b16 %v1227
      %v4787 = vunpack.c.l.b16 %v1228
      %v4788 = vunpack.c.l.b16 %v1229
      %v4789 = vunpack.c.l.b16 %v1230
      %v4790 = vunpack.c.l.b16 %v1231
      %v4791 = vunpack.c.l.b16 %v1232
      %v4792 = vunpack.c.l.b16 %v1233
      %v4793 = vunpack.c.l.b16 %v1234
      %v4794 = vunpack.c.l.b16 %v1235
      %v4795 = vunpack.c.l.b16 %v1236
      %v4796 = vunpack.c.l.b16 %v1237
      %v4797 = vunpack.c.l.b16 %v1238
      %v4798 = vunpack.c.l.b16 %v1239
      %v4799 = vunpack.c.l.b16 %v1240
      %v4800 = vunpack.c.l.b16 %v1241
      %v4801 = vunpack.c.l.b16 %v1242
      %v4802 = vunpack.c.l.b16 %v1243
      %v4803 = vunpack.c.l.b16 %v1244
      %v4804 = vunpack.c.l.b16 %v1245
      %v4805 = vunpack.c.l.b16 %v1246
      %v4806 = vunpack.c.l.b16 %v1247
      %v4807 = vunpack.c.l.b16 %v1248
      %v4808 = vunpack.c.l.b16 %v1249
      %v4809 = vunpack.c.l.b16 %v1250
      %v4810 = vunpack.c.l.b16 %v1251
      %v4811 = vunpack.c.l.b16 %v1252
      %v4812 = vunpack.c.l.b16 %v1253
      %v4813 = vunpack.c.l.b16 %v1254
      %v4814 = vunpack.c.l.b16 %v1255
      %v4815 = vunpack.c.l.b16 %v1256
      %v4816 = vunpack.c.l.b16 %v1257
      %v4817 = vunpack.c.l.b16 %v1258
      %v4818 = vunpack.c.l.b16 %v1259
      %v4819 = vunpack.c.l.b16 %v1260
      %v4820 = vunpack.c.l.b16 %v1261
      %v4821 = vunpack.c.l.b16 %v1262
      %v4822 = vunpack.c.l.b16 %v1263
      %v4823 = vunpack.c.l.b16 %v1264
      %v4824 = vunpack.c.l.b16 %v1265
      %v4825 = vunpack.c.l.b16 %v1266
      %v4826 = vunpack.c.l.b16 %v1267
      %v4827 = vunpack.c.l.b16 %v1268
      %v4828 = vunpack.c.l.b16 %v1269
      %v4829 = vunpack.c.l.b16 %v1270
      %v4830 = vunpack.c.l.b16 %v1271
      %v4831 = vunpack.c.l.b16 %v1272
      %v4832 = vunpack.c.l.b16 %v1273
      %v4833 = vunpack.c.l.b16 %v1274
      %v4834 = vunpack.c.l.b16 %v1275
      %v4835 = vunpack.c.l.b16 %v1276
      %v4836 = vunpack.c.l.b16 %v1277
      %v4837 = vunpack.c.l.b16 %v1278
      %v4838 = vunpack.c.l.b16 %v1279
      %v4839 = vunpack.c.l.b16 %v1280
      %v4840 = vunpack.c.l.b16 %v1281
      %v4841 = vunpack.c.l.b16 %v1282
      %v4842 = vunpack.c.l.b16 %v1283
      %v4843 = vunpack.c.l.b16 %v1284
      %v4844 = vunpack.c.l.b16 %v1285
      %v4845 = vunpack.c.l.b16 %v1286
      %v4846 = vunpack.c.l.b16 %v1287
      %v4847 = vunpack.c.l.b16 %v1288
      %v4848 = vunpack.c.l.b16 %v1289
      %v4849 = vunpack.c.l.b16 %v1290
      %v4850 = vunpack.c.l.b16 %v1291
      %v4851 = vunpack.c.l.b16 %v1292
      %v4852 = vunpack.c.l.b16 %v1293
      %v4853 = vunpack.c.l.b16 %v1294
      %v4854 = vunpack.c.l.b16 %v1295
      %v4855 = vunpack.c.l.b16 %v1296
      %v4856 = vunpack.c.l.b16 %v1297
      %v4857 = vunpack.c.l.b16 %v1298
      %v4858 = vunpack.c.l.b16 %v1299
      %v4859 = vunpack.c.l.b16 %v1300
      %v4860 = vunpack.c.l.b16 %v1301
      %v4861 = vunpack.c.l.b16 %v1302
      %v4862 = vunpack.c.l.b16 %v1303
      %v4863 = vunpack.c.l.b16 %v1304
      %v4864 = vunpack.c.l.b16 %v1305
      %v4865 = vunpack.c.l.b16 %v1306
      %v4866 = vunpack.c.l.b16 %v1307
      %v4867 = vunpack.c.l.b16 %v1308
      %v4868 = vunpack.c.l.b16 %v1309
      %v4869 = vunpack.c.l.b16 %v1310
      %v4870 = vunpack.c.l.b16 %v1311
      %v4871 = vunpack.c.l.b16 %v1312
      %v4872 = vunpack.c.l.b16 %v1313
      %v4873 = vunpack.c.l.b16 %v1314
      %v4874 = vunpack.c.l.b16 %v1315
      %v4875 = vunpack.c.l.b16 %v1316
      %v4876 = vunpack.c.l.b16 %v1317
      %v4877 = vunpack.c.l.b16 %v1318
      %v4878 = vunpack.c.l.b16 %v1319
      %v4879 = vunpack.c.l.b16 %v1320
      %v4880 = vunpack.c.l.b16 %v1321
      %v4881 = vunpack.c.l.b16 %v1322
      %v4882 = vunpack.c.l.b16 %v1323
      %v4883 = vunpack.c.l.b16 %v1324
      %v4884 = vunpack.c.l.b16 %v1325
      %v4885 = vunpack.c.l.b16 %v1326
      %v4886 = vunpack.c.l.b16 %v1327
      %v4887 = vunpack.c.l.b16 %v1328
      %v4888 = vunpack.c.l.b16 %v1329
      %v4889 = vunpack.c.l.b16 %v1330
      %v4890 = vunpack.c.l.b16 %v1331
      %v4891 = vunpack.c.l.b16 %v1332
      %v4892 = vunpack.c.l.b16 %v1333
      %v4893 = vunpack.c.l.b16 %v1334
      %v4894 = vunpack.c.l.b16 %v1335
      %v4895 = vunpack.c.l.b16 %v1336
      %v4896 = vunpack.c.l.b16 %v1337
      %v4897 = vunpack.c.l.b16 %v1338
      %v4898 = vunpack.c.l.b16 %v1339
      %v4899 = vunpack.c.l.b16 %v1340
      %v4900 = vunpack.c.l.b16 %v1341
      %v4901 = vunpack.c.l.b16 %v1342
      %v4902 = vunpack.c.l.b16 %v1343
      %v4903 = vunpack.c.l.b16 %v1344
      %v4904 = vunpack.c.l.b16 %v1345
      %v4905 = vunpack.c.l.b16 %v1346
      %v4906 = vunpack.c.l.b16 %v1347
      %v4907 = vunpack.c.l.b16 %v1348
      %v4908 = vunpack.c.l.b16 %v1349
      %v4909 = vunpack.c.l.b16 %v1350
      %v4910 = vunpack.c.l.b16 %v1351
      %v4911 = vunpack.c.l.b16 %v1352
      %v4912 = vunpack.c.l.b16 %v1353
      %v4913 = vunpack.c.l.b16 %v1354
      %v4914 = vunpack.c.l.b16 %v1355
      %v4915 = vunpack.c.l.b16 %v1356
      %v4916 = vunpack.c.l.b16 %v1357
      %v4917 = vunpack.c.l.b16 %v1358
      %v4918 = vunpack.c.l.b16 %v1359
      %v4919 = vunpack.c.l.b16 %v1360
      %v4920 = vunpack.c.l.b16 %v1361
      %v4921 = vunpack.c.l.b16 %v1362
      %v4922 = vunpack.c.l.b16 %v1363
      %v4923 = vunpack.c.l.b16 %v1364
      %v4924 = vunpack.c.l.b16 %v1365
      %v4925 = vunpack.c.l.b16 %v1366
      %v4926 = vunpack.c.l.b16 %v1367
      %v4927 = vunpack.c.l.b16 %v1368
      %v4928 = vunpack.c.l.b16 %v1369
      %v4929 = vunpack.c.l.b16 %v1370
      %v4930 = vunpack.c.l.b16 %v1371
      %v4931 = vunpack.c.l.b16 %v1372
      %v4932 = vunpack.c.l.b16 %v1373
      %v4933 = vunpack.c.l.b16 %v1374
      %v4934 = vunpack.c.l.b16 %v1375
      %v4935 = vunpack.c.l.b16 %v1376
      %v4936 = vunpack.c.l.b16 %v1377
      %v4937 = vunpack.c.l.b16 %v1378
      %v4938 = vunpack.c.l.b16 %v1379
      %v4939 = vunpack.c.l.b16 %v1380
      %v4940 = vunpack.c.l.b16 %v1381
      %v4941 = vunpack.c.l.b16 %v1382
      %v4942 = vunpack.c.l.b16 %v1383
      %v4943 = vunpack.c.l.b16 %v1384
      %v4944 = vunpack.c.l.b16 %v1385
      %v4945 = vunpack.c.l.b16 %v1386
      %v4946 = vunpack.c.l.b16 %v1387
      %v4947 = vunpack.c.l.b16 %v1388
      %v4948 = vunpack.c.l.b16 %v1389
      %v4949 = vunpack.c.l.b16 %v1390
      %v4950 = vunpack.c.l.b16 %v1391
      %v4951 = vunpack.c.l.b16 %v1392
      %v4952 = vunpack.c.l.b16 %v1393
      %v4953 = vunpack.c.l.b16 %v1394
      %v4954 = vunpack.c.l.b16 %v1395
      %v4955 = vunpack.c.l.b16 %v1396
      %v4956 = vunpack.c.l.b16 %v1397
      %v4957 = vunpack.c.l.b16 %v1398
      %v4958 = vunpack.c.l.b16 %v1399
      %v4959 = vunpack.c.l.b16 %v1400
      %v4960 = vunpack.c.l.b16 %v1401
      %v4961 = vunpack.c.l.b16 %v1402
      %v4962 = vunpack.c.l.b16 %v1403
      %v4963 = vunpack.c.l.b16 %v1404
      %v4964 = vunpack.c.l.b16 %v1405
      %v4965 = vunpack.c.l.b16 %v1406
      %v4966 = vunpack.c.l.b16 %v1407
      %v4967 = vunpack.c.l.b16 %v1408
      %v4968 = vunpack.c.l.b16 %v1409
      %v4969 = vunpack.c.l.b16 %v1410
      %v4970 = vunpack.c.l.b16 %v1411
      %v4971 = vunpack.c.l.b16 %v1412
      %v4972 = vunpack.c.l.b16 %v1413
      %v4973 = vunpack.c.l.b16 %v1414
      %v4974 = vunpack.c.l.b16 %v1415
      %v4975 = vunpack.c.l.b16 %v1416
      %v4976 = vunpack.c.l.b16 %v1417
      %v4977 = vunpack.c.l.b16 %v1418
      %v4978 = vunpack.c.l.b16 %v1419
      %v4979 = vunpack.c.l.b16 %v1420
      %v4980 = vunpack.c.l.b16 %v1421
      %v4981 = vunpack.c.l.b16 %v1422
      %v4982 = vunpack.c.l.b16 %v1423
      %v4983 = vunpack.c.l.b16 %v1424
      %v4984 = vunpack.c.l.b16 %v1425
      %v4985 = vunpack.c.l.b16 %v1426
      %v4986 = vunpack.c.l.b16 %v1427
      %v4987 = vunpack.c.l.b16 %v1428
      %v4988 = vunpack.c.l.b16 %v1429
      %v4989 = vunpack.c.l.b16 %v1430
      %v4990 = vunpack.c.l.b16 %v1431
      %v4991 = vunpack.c.l.b16 %v1432
      %v4992 = vunpack.c.l.b16 %v1433
      %v4993 = vunpack.c.l.b16 %v1434
      %v4994 = vunpack.c.l.b16 %v1435
      %v4995 = vunpack.c.l.b16 %v1436
      %v4996 = vunpack.c.l.b16 %v1437
      %v4997 = vunpack.c.l.b16 %v1438
      %v4998 = vunpack.c.l.b16 %v1439
      %v4999 = vunpack.c.l.b16 %v1440
      %v5000 = vunpack.c.l.b16 %v1441
      %v5001 = vunpack.c.l.b16 %v1442
      %v5002 = vunpack.c.l.b16 %v1443
      %v5003 = vunpack.c.l.b16 %v1444
      %v5004 = vunpack.c.l.b16 %v1445
      %v5005 = vunpack.c.l.b16 %v1446
      %v5006 = vunpack.c.l.b16 %v1447
      %v5007 = vunpack.c.l.b16 %v1448
      %v5008 = vunpack.c.l.b16 %v1449
      %v5009 = vunpack.c.l.b16 %v1450
      %v5010 = vunpack.c.l.b16 %v1451
      %v5011 = vunpack.c.l.b16 %v1452
      %v5012 = vunpack.c.l.b16 %v1453
      %v5013 = vunpack.c.l.b16 %v1454
      %v5014 = vunpack.c.l.b16 %v1455
      %v5015 = vunpack.c.l.b16 %v1456
      %v5016 = vunpack.c.l.b16 %v1457
      %v5017 = vunpack.c.l.b16 %v1458
      %v5018 = vunpack.c.l.b16 %v1459
      %v5019 = vunpack.c.l.b16 %v1460
      %v5020 = vunpack.c.l.b16 %v1461
      %v5021 = vunpack.c.l.b16 %v1462
      %v5022 = vunpack.c.l.b16 %v1463
      %v5023 = vunpack.c.l.b16 %v1464
      %v5024 = vunpack.c.l.b16 %v1465
      %v5025 = vunpack.c.l.b16 %v1466
      %v5026 = vunpack.c.l.b16 %v1467
      %v5027 = vunpack.c.l.b16 %v1468
      %v5028 = vunpack.c.l.b16 %v1469
      %v5029 = vunpack.c.l.b16 %v1470
      %v5030 = vunpack.c.l.b16 %v1471
      %v5031 = vunpack.c.l.b16 %v1472
      %v5032 = vunpack.c.l.b16 %v1473
      %v5033 = vunpack.c.l.b16 %v1474
      %v5034 = vunpack.c.l.b16 %v1475
      %v5035 = vunpack.c.l.b16 %v1476
      %v5036 = vunpack.c.l.b16 %v1477
      %v5037 = vunpack.c.l.b16 %v1478
      %v5038 = vunpack.c.l.b16 %v1479
      %v5039 = vunpack.c.l.b16 %v1480
      %v5040 = vunpack.c.l.b16 %v1481
      %v5041 = vunpack.c.l.b16 %v1482
      %v5042 = vunpack.c.l.b16 %v1483
      %v5043 = vunpack.c.l.b16 %v1484
      %v5044 = vunpack.c.l.b16 %v1485
      %v5045 = vunpack.c.l.b16 %v1486
      %v5046 = vunpack.c.l.b16 %v1487
      %v5047 = vunpack.c.l.b16 %v1488
      %v5048 = vunpack.c.l.b16 %v1489
      %v5049 = vunpack.c.l.b16 %v1490
      %v5050 = vunpack.c.l.b16 %v1491
      %v5051 = vunpack.c.l.b16 %v1492
      %v5052 = vunpack.c.l.b16 %v1493
      %v5053 = vunpack.c.l.b16 %v1494
      %v5054 = vunpack.c.l.b16 %v1495
      %v5055 = vunpack.c.l.b16 %v1496
      %v5056 = vunpack.c.l.b16 %v1497
      %v5057 = vunpack.c.l.b16 %v1498
      %v5058 = vunpack.c.l.b16 %v1499
      %v5059 = vunpack.c.l.b16 %v1500
      %v5060 = vunpack.c.l.b16 %v1501
      %v5061 = vunpack.c.l.b16 %v1502
      %v5062 = vunpack.c.l.b16 %v1503
      %v5063 = vunpack.c.l.b16 %v1504
      %v5064 = vunpack.c.l.b16 %v1505
      %v5065 = vunpack.c.l.b16 %v1506
      %v5066 = vunpack.c.l.b16 %v1507
      %v5067 = vunpack.c.l.b16 %v1508
      %v5068 = vunpack.c.l.b16 %v1509
      %v5069 = vunpack.c.l.b16 %v1510
      %v5070 = vunpack.c.l.b16 %v1511
      %v5071 = vunpack.c.l.b16 %v1512
      %v5072 = vunpack.c.l.b16 %v1513
      %v5073 = vunpack.c.l.b16 %v1514
      %v5074 = vunpack.c.l.b16 %v1515
      %v5075 = vunpack.c.l.b16 %v1516
      %v5076 = vunpack.c.l.b16 %v1517
      %v5077 = vunpack.c.l.b16 %v1518
      %v5078 = vunpack.c.l.b16 %v1519
      %v5079 = vunpack.c.l.b16 %v1520
      %v5080 = vunpack.c.l.b16 %v1521
      %v5081 = vunpack.c.l.b16 %v1522
      %v5082 = vunpack.c.l.b16 %v1523
      %v5083 = vunpack.c.l.b16 %v1524
      %v5084 = vunpack.c.l.b16 %v1525
      %v5085 = vunpack.c.l.b16 %v1526
      %v5086 = vunpack.c.l.b16 %v1527
      %v5087 = vunpack.c.l.b16 %v1528
      %v5088 = vunpack.c.l.b16 %v1529
      %v5089 = vunpack.c.l.b16 %v1530
      %v5090 = vunpack.c.l.b16 %v1531
      %v5091 = vunpack.c.l.b16 %v1532
      %v5092 = vunpack.c.l.b16 %v1533
      %v5093 = vunpack.c.l.b16 %v1534
      %v5094 = vunpack.c.l.b16 %v1535
      %v5095 = vunpack.c.l.b16 %v1536
      %v5096 = vunpack.c.l.b16 %v1537
      %v5097 = vunpack.c.l.b16 %v1538
      %v5098 = vunpack.c.l.b16 %v1539
      %v5099 = vunpack.c.l.b16 %v1540
      %v5100 = vunpack.c.l.b16 %v1541
      %v5101 = vunpack.c.l.b16 %v1542
      %v5102 = vunpack.c.l.b16 %v1543
      %v5103 = vunpack.c.l.b16 %v1544
      %v5104 = vunpack.c.l.b16 %v1545
      %v5105 = vunpack.c.l.b16 %v1546
      %v5106 = vunpack.c.l.b16 %v1547
      %v5107 = vunpack.c.l.b16 %v1548
      %v5108 = vunpack.c.l.b16 %v1549
      %v5109 = vunpack.c.l.b16 %v1550
      %v5110 = vunpack.c.l.b16 %v1551
      %v5111 = vunpack.c.l.b16 %v1552
      %v5112 = vunpack.c.l.b16 %v1553
      %v5113 = vunpack.c.l.b16 %v1554
      %v5114 = vunpack.c.l.b16 %v1555
      %v5115 = vunpack.c.l.b16 %v1556
      %v5116 = vunpack.c.l.b16 %v1557
      %v5117 = vunpack.c.l.b16 %v1558
      %v5118 = vunpack.c.l.b16 %v1559
      %v5119 = vunpack.c.l.b16 %v1560
      %v5120 = vunpack.c.l.b16 %v1561
      %v5121 = vunpack.c.l.b16 %v1562
      %v5122 = vunpack.c.l.b16 %v1563
      %v5123 = vunpack.c.l.b16 %v1564
      %v5124 = vunpack.c.l.b16 %v1565
      %v5125 = vunpack.c.l.b16 %v1566
      %v5126 = vunpack.c.l.b16 %v1567
      %v5127 = vunpack.c.l.b16 %v1568
      %v5128 = vunpack.c.l.b16 %v1569
      %v5129 = vunpack.c.l.b16 %v1570
      %v5130 = vunpack.c.l.b16 %v1571
      %v5131 = vunpack.c.l.b16 %v1572
      %v5132 = vunpack.c.l.b16 %v1573
      %v5133 = vunpack.c.l.b16 %v1574
      %v5134 = vunpack.c.l.b16 %v1575
      %v5135 = vunpack.c.l.b16 %v1576
      %v5136 = vunpack.c.l.b16 %v1577
      %v5137 = vunpack.c.l.b16 %v1578
      %v5138 = vunpack.c.l.b16 %v1579
      %v5139 = vunpack.c.l.b16 %v1580
      %v5140 = vunpack.c.l.b16 %v1581
      %v5141 = vunpack.c.l.b16 %v1582
      %v5142 = vunpack.c.l.b16 %v1583
      %v5143 = vunpack.c.l.b16 %v1584
      %v5144 = vunpack.c.l.b16 %v1585
      %v5145 = vunpack.c.l.b16 %v1586
      %v5146 = vunpack.c.l.b16 %v1587
      %v5147 = vunpack.c.l.b16 %v1588
      %v5148 = vunpack.c.l.b16 %v1589
      %v5149 = vunpack.c.l.b16 %v1590
      %v5150 = vunpack.c.l.b16 %v1591
      %v5151 = vunpack.c.l.b16 %v1592
      %v5152 = vunpack.c.l.b16 %v1593
      %v5153 = vunpack.c.l.b16 %v1594
      %v5154 = vunpack.c.l.b16 %v1595
      %v5155 = vunpack.c.l.b16 %v1596
      %v5156 = vunpack.c.l.b16 %v1597
      %v5157 = vunpack.c.l.b16 %v1598
      %v5158 = vunpack.c.l.b16 %v1599
      %v5159 = vunpack.c.l.b16 %v1600
      %v5160 = vunpack.c.l.b16 %v1601
      %v5161 = vunpack.c.l.b16 %v1602
      %v5162 = vunpack.c.l.b16 %v1603
      %v5163 = vunpack.c.l.b16 %v1604
      %v5164 = vunpack.c.l.b16 %v1605
      %v5165 = vunpack.c.l.b16 %v1606
      %v5166 = vunpack.c.l.b16 %v1607
      %v5167 = vunpack.c.l.b16 %v1608
      %v5168 = vunpack.c.l.b16 %v1609
      %v5169 = vunpack.c.l.b16 %v1610
      %v5170 = vunpack.c.l.b16 %v1611
      %v5171 = vunpack.c.l.b16 %v1612
      %v5172 = vunpack.c.l.b16 %v1613
      %v5173 = vunpack.c.l.b16 %v1614
      %v5174 = vunpack.c.l.b16 %v1615
      %v5175 = vunpack.c.l.b16 %v1616
      %v5176 = vunpack.c.l.b16 %v1617
      %v5177 = vunpack.c.l.b16 %v1618
      %v5178 = vunpack.c.l.b16 %v1619
      %v5179 = vunpack.c.l.b16 %v1620
      %v5180 = vunpack.c.l.b16 %v1621
      %v5181 = vunpack.c.l.b16 %v1622
      %v5182 = vunpack.c.l.b16 %v1623
      %v5183 = vunpack.c.l.b16 %v1624
      %v5184 = vunpack.c.l.b16 %v1625
      %v5185 = vunpack.c.l.b16 %v1626
      %v5186 = vunpack.c.l.b16 %v1627
      %v5187 = vunpack.c.l.b16 %v1628
      %v5188 = vunpack.c.l.b16 %v1629
      %v5189 = vunpack.c.l.b16 %v1630
      %v5190 = vunpack.c.l.b16 %v1631
      %v5191 = vunpack.c.l.b16 %v1632
      %v5192 = vunpack.c.l.b16 %v1633
      %v5193 = vunpack.c.l.b16 %v1634
      %v5194 = vunpack.c.l.b16 %v1635
      %v5195 = vunpack.c.l.b16 %v1636
      %v5196 = vunpack.c.l.b16 %v1637
      %v5197 = vunpack.c.l.b16 %v1638
      %v5198 = vunpack.c.l.b16 %v1639
      %v5199 = vunpack.c.l.b16 %v1640
      %v5200 = vunpack.c.l.b16 %v1641
      %v5201 = vunpack.c.l.b16 %v1642
      %v5202 = vunpack.c.l.b16 %v1643
      %v5203 = vunpack.c.l.b16 %v1644
      %v5204 = vunpack.c.l.b16 %v1645
      %v5205 = vunpack.c.l.b16 %v1646
      %v5206 = vunpack.c.l.b16 %v1647
      %v5207 = vunpack.c.l.b16 %v1648
      %v5208 = vunpack.c.l.b16 %v1649
      %v5209 = vunpack.c.l.b16 %v1650
      %v5210 = vunpack.c.l.b16 %v1651
      %v5211 = vunpack.c.l.b16 %v1652
      %v5212 = vunpack.c.l.b16 %v1653
      %v5213 = vunpack.c.l.b16 %v1654
      %v5214 = vunpack.c.l.b16 %v1655
      %v5215 = vunpack.c.l.b16 %v1656
      %v5216 = vunpack.c.l.b16 %v1657
      %v5217 = vunpack.c.l.b16 %v1658
      %v5218 = vunpack.c.l.b16 %v1659
      %v5219 = vunpack.c.l.b16 %v1660
      %v5220 = vunpack.c.l.b16 %v1661
      %v5221 = vunpack.c.l.b16 %v1662
      %v5222 = vunpack.c.l.b16 %v1663
      %v5223 = vunpack.c.l.b16 %v1664
      %v5224 = vunpack.c.l.b16 %v1665
      %v5225 = vunpack.c.l.b16 %v1666
      %v5226 = vunpack.c.l.b16 %v1667
      %v5227 = vunpack.c.l.b16 %v1668
      %v5228 = vunpack.c.l.b16 %v1669
      %v5229 = vunpack.c.l.b16 %v1670
      %v5230 = vunpack.c.l.b16 %v1671
      %v5231 = vunpack.c.l.b16 %v1672
      %v5232 = vunpack.c.l.b16 %v1673
      %v5233 = vunpack.c.l.b16 %v1674
      %v5234 = vunpack.c.l.b16 %v1675
      %v5235 = vunpack.c.l.b16 %v1676
      %v5236 = vunpack.c.l.b16 %v1677
      %v5237 = vunpack.c.l.b16 %v1678
      %v5238 = vunpack.c.l.b16 %v1679
      %v5239 = vunpack.c.l.b16 %v1680
      %v5240 = vunpack.c.l.b16 %v1681
      %v5241 = vunpack.c.l.b16 %v1682
      %v5242 = vunpack.c.l.b16 %v1683
      %v5243 = vunpack.c.l.b16 %v1684
      %v5244 = vunpack.c.l.b16 %v1685
      %v5245 = vunpack.c.l.b16 %v1686
      %v5246 = vunpack.c.l.b16 %v1687
      %v5247 = vunpack.c.l.b16 %v1688
      %v5248 = vunpack.c.l.b16 %v1689
      %v5249 = vunpack.c.l.b16 %v1690
      %v5250 = vunpack.c.l.b16 %v1691
      %v5251 = vunpack.c.l.b16 %v1692
      %v5252 = vunpack.c.l.b16 %v1693
      %v5253 = vunpack.c.l.b16 %v1694
      %v5254 = vunpack.c.l.b16 %v1695
      %v5255 = vunpack.c.l.b16 %v1696
      %v5256 = vunpack.c.l.b16 %v1697
      %v5257 = vunpack.c.l.b16 %v1698
      %v5258 = vunpack.c.l.b16 %v1699
      %v5259 = vunpack.c.l.b16 %v1700
      %v5260 = vunpack.c.l.b16 %v1701
      %v5261 = vunpack.c.l.b16 %v1702
      %v5262 = vunpack.c.l.b16 %v1703
      %v5263 = vunpack.c.l.b16 %v1704
      %v5264 = vunpack.c.l.b16 %v1705
      %v5265 = vunpack.c.l.b16 %v1706
      %v5266 = vunpack.c.l.b16 %v1707
      %v5267 = vunpack.c.l.b16 %v1708
      %v5268 = vunpack.c.l.b16 %v1709
      %v5269 = vunpack.c.l.b16 %v1710
      %v5270 = vunpack.c.l.b16 %v1711
      %v5271 = vunpack.c.l.b16 %v1712
      %v5272 = vunpack.c.l.b16 %v1713
      %v5273 = vunpack.c.l.b16 %v1714
      %v5274 = vunpack.c.l.b16 %v1715
      %v5275 = vunpack.c.l.b16 %v1716
      %v5276 = vunpack.c.l.b16 %v1717
      %v5277 = vunpack.c.l.b16 %v1718
      %v5278 = vunpack.c.l.b16 %v1719
      %v5279 = vunpack.c.l.b16 %v1720
      %v5280 = vunpack.c.l.b16 %v1721
      %v5281 = vunpack.c.l.b16 %v1722
      %v5282 = vunpack.c.l.b16 %v1723
      %v5283 = vunpack.c.l.b16 %v1724
      %v5284 = vunpack.c.l.b16 %v1725
      %v5285 = vunpack.c.l.b16 %v1726
      %v5286 = vunpack.c.l.b16 %v1727
      %v5287 = vunpack.c.l.b16 %v1728
      %v5288 = vunpack.c.l.b16 %v1729
      %v5289 = vunpack.c.l.b16 %v1730
      %v5290 = vunpack.c.l.b16 %v1731
      %v5291 = vunpack.c.l.b16 %v1732
      %v5292 = vunpack.c.l.b16 %v1733
      %v5293 = vunpack.c.l.b16 %v1734
      %v5294 = vunpack.c.l.b16 %v1735
      %v5295 = vunpack.c.l.b16 %v1736
      %v5296 = vunpack.c.l.b16 %v1737
      %v5297 = vunpack.c.l.b16 %v1738
      %v5298 = vunpack.c.l.b16 %v1739
      %v5299 = vunpack.c.l.b16 %v1740
      %v5300 = vunpack.c.l.b16 %v1741
      %v5301 = vunpack.c.l.b16 %v1742
      %v5302 = vunpack.c.l.b16 %v1743
      %v5303 = vunpack.c.l.b16 %v1744
      %v5304 = vunpack.c.l.b16 %v1745
      %v5305 = vunpack.c.l.b16 %v1746
      %v5306 = vunpack.c.l.b16 %v1747
      %v5307 = vunpack.c.l.b16 %v1748
      %v5308 = vunpack.c.l.b16 %v1749
      %v5309 = vunpack.c.l.b16 %v1750
      %v5310 = vunpack.c.l.b16 %v1751
      %v5311 = vunpack.c.l.b16 %v1752
      %v5312 = vunpack.c.l.b16 %v1753
      %v5313 = vunpack.c.l.b16 %v1754
      %v5314 = vunpack.c.l.b16 %v1755
      %v5315 = vunpack.c.l.b16 %v1756
      %v5316 = vunpack.c.l.b16 %v1757
      %v5317 = vunpack.c.l.b16 %v1758
      %v5318 = vunpack.c.l.b16 %v1759
      %v5319 = vunpack.c.l.b16 %v1760
      %v5320 = vunpack.c.l.b16 %v1761
      %v5321 = vunpack.c.l.b16 %v1762
      %v5322 = vunpack.c.l.b16 %v1763
      %v5323 = vunpack.c.l.b16 %v1764
      %v5324 = vunpack.c.l.b16 %v1765
      %v5325 = vunpack.c.l.b16 %v1766
      %v5326 = vunpack.c.l.b16 %v1767
      %v5327 = vunpack.c.l.b16 %v1768
      %v5328 = vunpack.c.l.b16 %v1769
      %v5329 = vunpack.c.l.b16 %v1770
      %v5330 = vunpack.c.l.b16 %v1771
      %v5331 = vunpack.c.l.b16 %v1772
      %v5332 = vunpack.c.l.b16 %v1773
      %v5333 = vunpack.c.l.b16 %v1774
      %v5334 = vunpack.c.l.b16 %v1775
      %v5335 = vunpack.c.l.b16 %v1776
      %v5336 = vunpack.c.l.b16 %v1777
      %v5337 = vunpack.c.l.b16 %v1778
      %v5338 = vunpack.c.l.b16 %v1779
      %v5339 = vunpack.c.l.b16 %v1780
      %v5340 = vunpack.c.l.b16 %v1781
      %v5341 = vunpack.c.l.b16 %v1782
      %v5342 = vunpack.c.l.b16 %v1783
      %v5343 = vunpack.c.l.b16 %v1784
      %v5344 = vunpack.c.l.b16 %v1785
      %v5345 = vunpack.c.l.b16 %v1786
      %v5346 = vunpack.c.l.b16 %v1787
      %v5347 = vunpack.c.l.b16 %v1788
      %v5348 = vunpack.c.l.b16 %v1789
      %v5349 = vunpack.c.l.b16 %v1790
      %v5350 = vunpack.c.l.b16 %v1791
      %v5351 = vunpack.c.l.b16 %v1792
      %v5352 = vunpack.c.l.b16 %v1793
      %v5353 = vunpack.c.l.b16 %v1794
      %v5354 = vunpack.c.l.b16 %v1795
      %v5355 = vunpack.c.l.b16 %v1796
      %v5356 = vunpack.c.l.b16 %v1797
      %v5357 = vunpack.c.l.b16 %v1798
      %v5358 = vunpack.c.l.b16 %v1799
      %v5359 = vunpack.c.l.b16 %v1800
      %v5360 = vunpack.c.l.b16 %v1801
      %v5361 = vunpack.c.l.b16 %v1802
      %v5362 = vunpack.c.l.b16 %v1803
      %v5363 = vunpack.c.l.b16 %v1804
      %v5364 = vunpack.c.l.b16 %v1805
      %v5365 = vunpack.c.l.b16 %v1806
      %v5366 = vunpack.c.l.b16 %v1807
      %v5367 = vunpack.c.l.b16 %v1808
      %v5368 = vunpack.c.l.b16 %v1809
      %v5369 = vunpack.c.l.b16 %v1810
      %v5370 = vunpack.c.l.b16 %v1811
      %v5371 = vunpack.c.l.b16 %v1812
      %v5372 = vunpack.c.l.b16 %v1813
      %v5373 = vunpack.c.l.b16 %v1814
      %v5374 = vunpack.c.l.b16 %v1815
      %v5375 = vunpack.c.l.b16 %v1816
      %v5376 = vunpack.c.l.b16 %v1817
      %v5377 = vunpack.c.l.b16 %v1818
      %v5378 = vunpack.c.l.b16 %v1819
      %v5379 = vunpack.c.l.b16 %v1820
      %v5380 = vunpack.c.l.b16 %v1821
      %v5381 = vunpack.c.l.b16 %v1822
      %v5382 = vunpack.c.l.b16 %v1823
      %v5383 = vunpack.c.l.b16 %v1824
      %v5384 = vunpack.c.l.b16 %v1825
      %v5385 = vunpack.c.l.b16 %v1826
      %v5386 = vunpack.c.l.b16 %v1827
      %v5387 = vunpack.c.l.b16 %v1828
      %v5388 = vunpack.c.l.b16 %v1829
      %v5389 = vunpack.c.l.b16 %v1830
      %v5390 = vunpack.c.l.b16 %v1831
      %v5391 = vunpack.c.l.b16 %v1832
      %v5392 = vunpack.c.l.b16 %v1833
      %v5393 = vunpack.c.l.b16 %v1834
      %v5394 = vunpack.c.l.b16 %v1835
      %v5395 = vunpack.c.l.b16 %v1836
      %v5396 = vunpack.c.l.b16 %v1837
      %v5397 = vunpack.c.l.b16 %v1838
      %v5398 = vunpack.c.l.b16 %v1839
      %v5399 = vunpack.c.l.b16 %v1840
      %v5400 = vunpack.c.l.b16 %v1841
      %v5401 = vunpack.c.l.b16 %v1842
      %v5402 = vunpack.c.l.b16 %v1843
      %v5403 = vunpack.c.l.b16 %v1844
      %v5404 = vunpack.c.l.b16 %v1845
      %v5405 = vunpack.c.l.b16 %v1846
      %v5406 = vunpack.c.l.b16 %v1847
      %v5407 = vunpack.c.l.b16 %v1848
      %v5408 = vunpack.c.l.b16 %v1849
      %v5409 = vunpack.c.l.b16 %v1850
      %v5410 = vunpack.c.l.b16 %v1851
      %v5411 = vunpack.c.l.b16 %v1852
      %v5412 = vunpack.c.l.b16 %v1853
      %v5413 = vunpack.c.l.b16 %v1854
      %v5414 = vunpack.c.l.b16 %v1855
      %v5415 = vunpack.c.l.b16 %v1856
      %v5416 = vunpack.c.l.b16 %v1857
      %v5417 = vunpack.c.l.b16 %v1858
      %v5418 = vunpack.c.l.b16 %v1859
      %v5419 = vunpack.c.l.b16 %v1860
      %v5420 = vunpack.c.l.b16 %v1861
      %v5421 = vunpack.c.l.b16 %v1862
      %v5422 = vunpack.c.l.b16 %v1863
      %v5423 = vunpack.c.l.b16 %v1864
      %v5424 = vunpack.c.l.b16 %v1865
      %v5425 = vunpack.c.l.b16 %v1866
      %v5426 = vunpack.c.l.b16 %v1867
      %v5427 = vunpack.c.l.b16 %v1868
      %v5428 = vunpack.c.l.b16 %v1869
      %v5429 = vunpack.c.l.b16 %v1870
      %v5430 = vunpack.c.l.b16 %v1871
      %v5431 = vunpack.c.l.b16 %v1872
      %v5432 = vunpack.c.l.b16 %v1873
      %v5433 = vunpack.c.l.b16 %v1874
      %v5434 = vunpack.c.l.b16 %v1875
      %v5435 = vunpack.c.l.b16 %v1876
      %v5436 = vunpack.c.l.b16 %v1877
      %v5437 = vunpack.c.l.b16 %v1878
      %v5438 = vunpack.c.l.b16 %v1879
      %v5439 = vunpack.c.l.b16 %v1880
      %v5440 = vunpack.c.l.b16 %v1881
      %v5441 = vunpack.c.l.b16 %v1882
      %v5442 = vunpack.c.l.b16 %v1883
      %v5443 = vunpack.c.l.b16 %v1884
      %v5444 = vunpack.c.l.b16 %v1885
      %v5445 = vunpack.c.l.b16 %v1886
      %v5446 = vunpack.c.l.b16 %v1887
      %v5447 = vunpack.c.l.b16 %v1888
      %v5448 = vunpack.c.l.b16 %v1889
      %v5449 = vunpack.c.l.b16 %v1890
      %v5450 = vunpack.c.l.b16 %v1891
      %v5451 = vunpack.c.l.b16 %v1892
      %v5452 = vunpack.c.l.b16 %v1893
      %v5453 = vunpack.c.l.b16 %v1894
      %v5454 = vunpack.c.l.b16 %v1895
      %v5455 = vunpack.c.l.b16 %v1896
      %v5456 = vunpack.c.l.b16 %v1897
      %v5457 = vunpack.c.l.b16 %v1898
      %v5458 = vunpack.c.l.b16 %v1899
      %v5459 = vunpack.c.l.b16 %v1900
      %v5460 = vunpack.c.l.b16 %v1901
      %v5461 = vunpack.c.l.b16 %v1902
      %v5462 = vunpack.c.l.b16 %v1903
      %v5463 = vunpack.c.l.b16 %v1904
      %v5464 = vunpack.c.l.b16 %v1905
      %v5465 = vunpack.c.l.b16 %v1906
      %v5466 = vunpack.c.l.b16 %v1907
      %v5467 = vunpack.c.l.b16 %v1908
      %v5468 = vunpack.c.l.b16 %v1909
      %v5469 = vunpack.c.l.b16 %v1910
      %v5470 = vunpack.c.l.b16 %v1911
      %v5471 = vunpack.c.l.b16 %v1912
      %v5472 = vunpack.c.l.b16 %v1913
      %v5473 = vunpack.c.l.b16 %v1914
      %v5474 = vunpack.c.l.b16 %v1915
      %v5475 = vunpack.c.l.b16 %v1916
      %v5476 = vunpack.c.l.b16 %v1917
      %v5477 = vpack.c.b16 %v3942, %v3941
      %v5478 = vpack.c.b16 %v3944, %v3943
      %v5479 = vpack.c.b16 %v3946, %v3945
      %v5480 = vpack.c.b16 %v3948, %v3947
      %v5481 = vpack.c.b16 %v3950, %v3949
      %v5482 = vpack.c.b16 %v3952, %v3951
      %v5483 = vpack.c.b16 %v3954, %v3953
      %v5484 = vpack.c.b16 %v3956, %v3955
      %v5485 = vpack.c.b16 %v3958, %v3957
      %v5486 = vpack.c.b16 %v3960, %v3959
      %v5487 = vpack.c.b16 %v3962, %v3961
      %v5488 = vpack.c.b16 %v3964, %v3963
      %v5489 = vpack.c.b16 %v3966, %v3965
      %v5490 = vpack.c.b16 %v3968, %v3967
      %v5491 = vpack.c.b16 %v3970, %v3969
      %v5492 = vpack.c.b16 %v3972, %v3971
      %v5493 = vpack.c.b16 %v3974, %v3973
      %v5494 = vpack.c.b16 %v3976, %v3975
      %v5495 = vpack.c.b16 %v3978, %v3977
      %v5496 = vpack.c.b16 %v3980, %v3979
      %v5497 = vpack.c.b16 %v3982, %v3981
      %v5498 = vpack.c.b16 %v3984, %v3983
      %v5499 = vpack.c.b16 %v3986, %v3985
      %v5500 = vpack.c.b16 %v3988, %v3987
      %v5501 = vpack.c.b16 %v3990, %v3989
      %v5502 = vpack.c.b16 %v3992, %v3991
      %v5503 = vpack.c.b16 %v3994, %v3993
      %v5504 = vpack.c.b16 %v3996, %v3995
      %v5505 = vpack.c.b16 %v3998, %v3997
      %v5506 = vpack.c.b16 %v4000, %v3999
      %v5507 = vpack.c.b16 %v4002, %v4001
      %v5508 = vpack.c.b16 %v4004, %v4003
      %v5509 = vpack.c.b16 %v4006, %v4005
      %v5510 = vpack.c.b16 %v4008, %v4007
      %v5511 = vpack.c.b16 %v4010, %v4009
      %v5512 = vpack.c.b16 %v4012, %v4011
      %v5513 = vpack.c.b16 %v4014, %v4013
      %v5514 = vpack.c.b16 %v4016, %v4015
      %v5515 = vpack.c.b16 %v4018, %v4017
      %v5516 = vpack.c.b16 %v4020, %v4019
      %v5517 = vpack.c.b16 %v4022, %v4021
      %v5518 = vpack.c.b16 %v4024, %v4023
      %v5519 = vpack.c.b16 %v4026, %v4025
      %v5520 = vpack.c.b16 %v4028, %v4027
      %v5521 = vpack.c.b16 %v4030, %v4029
      %v5522 = vpack.c.b16 %v4032, %v4031
      %v5523 = vpack.c.b16 %v4034, %v4033
      %v5524 = vpack.c.b16 %v4036, %v4035
      %v5525 = vpack.c.b16 %v4038, %v4037
      %v5526 = vpack.c.b16 %v4040, %v4039
      %v5527 = vpack.c.b16 %v4042, %v4041
      %v5528 = vpack.c.b16 %v4044, %v4043
      %v5529 = vpack.c.b16 %v4046, %v4045
      %v5530 = vpack.c.b16 %v4048, %v4047
      %v5531 = vpack.c.b16 %v4050, %v4049
      %v5532 = vpack.c.b16 %v4052, %v4051
      %v5533 = vpack.c.b16 %v4054, %v4053
      %v5534 = vpack.c.b16 %v4056, %v4055
      %v5535 = vpack.c.b16 %v4058, %v4057
      %v5536 = vpack.c.b16 %v4060, %v4059
      %v5537 = vpack.c.b16 %v4062, %v4061
      %v5538 = vpack.c.b16 %v4064, %v4063
      %v5539 = vpack.c.b16 %v4066, %v4065
      %v5540 = vpack.c.b16 %v4068, %v4067
      %v5541 = vpack.c.b16 %v4070, %v4069
      %v5542 = vpack.c.b16 %v4072, %v4071
      %v5543 = vpack.c.b16 %v4074, %v4073
      %v5544 = vpack.c.b16 %v4076, %v4075
      %v5545 = vpack.c.b16 %v4078, %v4077
      %v5546 = vpack.c.b16 %v4080, %v4079
      %v5547 = vpack.c.b16 %v4082, %v4081
      %v5548 = vpack.c.b16 %v4084, %v4083
      %v5549 = vpack.c.b16 %v4086, %v4085
      %v5550 = vpack.c.b16 %v4088, %v4087
      %v5551 = vpack.c.b16 %v4090, %v4089
      %v5552 = vpack.c.b16 %v4092, %v4091
      %v5553 = vpack.c.b16 %v4094, %v4093
      %v5554 = vpack.c.b16 %v4096, %v4095
      %v5555 = vpack.c.b16 %v4098, %v4097
      %v5556 = vpack.c.b16 %v4100, %v4099
      %v5557 = vpack.c.b16 %v4102, %v4101
      %v5558 = vpack.c.b16 %v4104, %v4103
      %v5559 = vpack.c.b16 %v4106, %v4105
      %v5560 = vpack.c.b16 %v4108, %v4107
      %v5561 = vpack.c.b16 %v4110, %v4109
      %v5562 = vpack.c.b16 %v4112, %v4111
      %v5563 = vpack.c.b16 %v4114, %v4113
      %v5564 = vpack.c.b16 %v4116, %v4115
      %v5565 = vpack.c.b16 %v4118, %v4117
      %v5566 = vpack.c.b16 %v4120, %v4119
      %v5567 = vpack.c.b16 %v4122, %v4121
      %v5568 = vpack.c.b16 %v4124, %v4123
      %v5569 = vpack.c.b16 %v4126, %v4125
      %v5570 = vpack.c.b16 %v4128, %v4127
      %v5571 = vpack.c.b16 %v4130, %v4129
      %v5572 = vpack.c.b16 %v4132, %v4131
      %v5573 = vpack.c.b16 %v4134, %v4133
      %v5574 = vpack.c.b16 %v4136, %v4135
      %v5575 = vpack.c.b16 %v4138, %v4137
      %v5576 = vpack.c.b16 %v4140, %v4139
      %v5577 = vpack.c.b16 %v4142, %v4141
      %v5578 = vpack.c.b16 %v4144, %v4143
      %v5579 = vpack.c.b16 %v4146, %v4145
      %v5580 = vpack.c.b16 %v4148, %v4147
      %v5581 = vpack.c.b16 %v4150, %v4149
      %v5582 = vpack.c.b16 %v4152, %v4151
      %v5583 = vpack.c.b16 %v4154, %v4153
      %v5584 = vpack.c.b16 %v4156, %v4155
      %v5585 = vpack.c.b16 %v4158, %v4157
      %v5586 = vpack.c.b16 %v4160, %v4159
      %v5587 = vpack.c.b16 %v4162, %v4161
      %v5588 = vpack.c.b16 %v4164, %v4163
      %v5589 = vpack.c.b16 %v4166, %v4165
      %v5590 = vpack.c.b16 %v4168, %v4167
      %v5591 = vpack.c.b16 %v4170, %v4169
      %v5592 = vpack.c.b16 %v4172, %v4171
      %v5593 = vpack.c.b16 %v4174, %v4173
      %v5594 = vpack.c.b16 %v4176, %v4175
      %v5595 = vpack.c.b16 %v4178, %v4177
      %v5596 = vpack.c.b16 %v4180, %v4179
      %v5597 = vpack.c.b16 %v4182, %v4181
      %v5598 = vpack.c.b16 %v4184, %v4183
      %v5599 = vpack.c.b16 %v4186, %v4185
      %v5600 = vpack.c.b16 %v4188, %v4187
      %v5601 = vpack.c.b16 %v4190, %v4189
      %v5602 = vpack.c.b16 %v4192, %v4191
      %v5603 = vpack.c.b16 %v4194, %v4193
      %v5604 = vpack.c.b16 %v4196, %v4195
      %v5605 = vpack.c.b16 %v4198, %v4197
      %v5606 = vpack.c.b16 %v4200, %v4199
      %v5607 = vpack.c.b16 %v4202, %v4201
      %v5608 = vpack.c.b16 %v4204, %v4203
      %v5609 = vpack.c.b16 %v4206, %v4205
      %v5610 = vpack.c.b16 %v4208, %v4207
      %v5611 = vpack.c.b16 %v4210, %v4209
      %v5612 = vpack.c.b16 %v4212, %v4211
      %v5613 = vpack.c.b16 %v4214, %v4213
      %v5614 = vpack.c.b16 %v4216, %v4215
      %v5615 = vpack.c.b16 %v4218, %v4217
      %v5616 = vpack.c.b16 %v4220, %v4219
      %v5617 = vpack.c.b16 %v4222, %v4221
      %v5618 = vpack.c.b16 %v4224, %v4223
      %v5619 = vpack.c.b16 %v4226, %v4225
      %v5620 = vpack.c.b16 %v4228, %v4227
      %v5621 = vpack.c.b16 %v4230, %v4229
      %v5622 = vpack.c.b16 %v4232, %v4231
      %v5623 = vpack.c.b16 %v4234, %v4233
      %v5624 = vpack.c.b16 %v4236, %v4235
      %v5625 = vpack.c.b16 %v4238, %v4237
      %v5626 = vpack.c.b16 %v4240, %v4239
      %v5627 = vpack.c.b16 %v4242, %v4241
      %v5628 = vpack.c.b16 %v4244, %v4243
      %v5629 = vpack.c.b16 %v4246, %v4245
      %v5630 = vpack.c.b16 %v4248, %v4247
      %v5631 = vpack.c.b16 %v4250, %v4249
      %v5632 = vpack.c.b16 %v4252, %v4251
      %v5633 = vpack.c.b16 %v4254, %v4253
      %v5634 = vpack.c.b16 %v4256, %v4255
      %v5635 = vpack.c.b16 %v4258, %v4257
      %v5636 = vpack.c.b16 %v4260, %v4259
      %v5637 = vpack.c.b16 %v4262, %v4261
      %v5638 = vpack.c.b16 %v4264, %v4263
      %v5639 = vpack.c.b16 %v4266, %v4265
      %v5640 = vpack.c.b16 %v4268, %v4267
      %v5641 = vpack.c.b16 %v4270, %v4269
      %v5642 = vpack.c.b16 %v4272, %v4271
      %v5643 = vpack.c.b16 %v4274, %v4273
      %v5644 = vpack.c.b16 %v4276, %v4275
      %v5645 = vpack.c.b16 %v4278, %v4277
      %v5646 = vpack.c.b16 %v4280, %v4279
      %v5647 = vpack.c.b16 %v4282, %v4281
      %v5648 = vpack.c.b16 %v4284, %v4283
      %v5649 = vpack.c.b16 %v4286, %v4285
      %v5650 = vpack.c.b16 %v4288, %v4287
      %v5651 = vpack.c.b16 %v4290, %v4289
      %v5652 = vpack.c.b16 %v4292, %v4291
      %v5653 = vpack.c.b16 %v4294, %v4293
      %v5654 = vpack.c.b16 %v4296, %v4295
      %v5655 = vpack.c.b16 %v4298, %v4297
      %v5656 = vpack.c.b16 %v4300, %v4299
      %v5657 = vpack.c.b16 %v4302, %v4301
      %v5658 = vpack.c.b16 %v4304, %v4303
      %v5659 = vpack.c.b16 %v4306, %v4305
      %v5660 = vpack.c.b16 %v4308, %v4307
      %v5661 = vpack.c.b16 %v4310, %v4309
      %v5662 = vpack.c.b16 %v4312, %v4311
      %v5663 = vpack.c.b16 %v4314, %v4313
      %v5664 = vpack.c.b16 %v4316, %v4315
      %v5665 = vpack.c.b16 %v4318, %v4317
      %v5666 = vpack.c.b16 %v4320, %v4319
      %v5667 = vpack.c.b16 %v4322, %v4321
      %v5668 = vpack.c.b16 %v4324, %v4323
      %v5669 = vpack.c.b16 %v4326, %v4325
      %v5670 = vpack.c.b16 %v4328, %v4327
      %v5671 = vpack.c.b16 %v4330, %v4329
      %v5672 = vpack.c.b16 %v4332, %v4331
      %v5673 = vpack.c.b16 %v4334, %v4333
      %v5674 = vpack.c.b16 %v4336, %v4335
      %v5675 = vpack.c.b16 %v4338, %v4337
      %v5676 = vpack.c.b16 %v4340, %v4339
      %v5677 = vpack.c.b16 %v4342, %v4341
      %v5678 = vpack.c.b16 %v4344, %v4343
      %v5679 = vpack.c.b16 %v4346, %v4345
      %v5680 = vpack.c.b16 %v4348, %v4347
      %v5681 = vpack.c.b16 %v4350, %v4349
      %v5682 = vpack.c.b16 %v4352, %v4351
      %v5683 = vpack.c.b16 %v4354, %v4353
      %v5684 = vpack.c.b16 %v4356, %v4355
      %v5685 = vpack.c.b16 %v4358, %v4357
      %v5686 = vpack.c.b16 %v4360, %v4359
      %v5687 = vpack.c.b16 %v4362, %v4361
      %v5688 = vpack.c.b16 %v4364, %v4363
      %v5689 = vpack.c.b16 %v4366, %v4365
      %v5690 = vpack.c.b16 %v4368, %v4367
      %v5691 = vpack.c.b16 %v4370, %v4369
      %v5692 = vpack.c.b16 %v4372, %v4371
      %v5693 = vpack.c.b16 %v4374, %v4373
      %v5694 = vpack.c.b16 %v4376, %v4375
      %v5695 = vpack.c.b16 %v4378, %v4377
      %v5696 = vpack.c.b16 %v4380, %v4379
      %v5697 = vpack.c.b16 %v4382, %v4381
      %v5698 = vpack.c.b16 %v4384, %v4383
      %v5699 = vpack.c.b16 %v4386, %v4385
      %v5700 = vpack.c.b16 %v4388, %v4387
      %v5701 = vpack.c.b16 %v4390, %v4389
      %v5702 = vpack.c.b16 %v4392, %v4391
      %v5703 = vpack.c.b16 %v4394, %v4393
      %v5704 = vpack.c.b16 %v4396, %v4395
      %v5705 = vpack.c.b16 %v4398, %v4397
      %v5706 = vpack.c.b16 %v4400, %v4399
      %v5707 = vpack.c.b16 %v4402, %v4401
      %v5708 = vpack.c.b16 %v4404, %v4403
      %v5709 = vpack.c.b16 %v4406, %v4405
      %v5710 = vpack.c.b16 %v4408, %v4407
      %v5711 = vpack.c.b16 %v4410, %v4409
      %v5712 = vpack.c.b16 %v4412, %v4411
      %v5713 = vpack.c.b16 %v4414, %v4413
      %v5714 = vpack.c.b16 %v4416, %v4415
      %v5715 = vpack.c.b16 %v4418, %v4417
      %v5716 = vpack.c.b16 %v4420, %v4419
      %v5717 = vpack.c.b16 %v4422, %v4421
      %v5718 = vpack.c.b16 %v4424, %v4423
      %v5719 = vpack.c.b16 %v4426, %v4425
      %v5720 = vpack.c.b16 %v4428, %v4427
      %v5721 = vpack.c.b16 %v4430, %v4429
      %v5722 = vpack.c.b16 %v4432, %v4431
      %v5723 = vpack.c.b16 %v4434, %v4433
      %v5724 = vpack.c.b16 %v4436, %v4435
      %v5725 = vpack.c.b16 %v4438, %v4437
      %v5726 = vpack.c.b16 %v4440, %v4439
      %v5727 = vpack.c.b16 %v4442, %v4441
      %v5728 = vpack.c.b16 %v4444, %v4443
      %v5729 = vpack.c.b16 %v4446, %v4445
      %v5730 = vpack.c.b16 %v4448, %v4447
      %v5731 = vpack.c.b16 %v4450, %v4449
      %v5732 = vpack.c.b16 %v4452, %v4451
      %v5733 = vpack.c.b16 %v4454, %v4453
      %v5734 = vpack.c.b16 %v4456, %v4455
      %v5735 = vpack.c.b16 %v4458, %v4457
      %v5736 = vpack.c.b16 %v4460, %v4459
      %v5737 = vpack.c.b16 %v4462, %v4461
      %v5738 = vpack.c.b16 %v4464, %v4463
      %v5739 = vpack.c.b16 %v4466, %v4465
      %v5740 = vpack.c.b16 %v4468, %v4467
      %v5741 = vpack.c.b16 %v4470, %v4469
      %v5742 = vpack.c.b16 %v4472, %v4471
      %v5743 = vpack.c.b16 %v4474, %v4473
      %v5744 = vpack.c.b16 %v4476, %v4475
      %v5745 = vpack.c.b16 %v4478, %v4477
      %v5746 = vpack.c.b16 %v4480, %v4479
      %v5747 = vpack.c.b16 %v4482, %v4481
      %v5748 = vpack.c.b16 %v4484, %v4483
      %v5749 = vpack.c.b16 %v4486, %v4485
      %v5750 = vpack.c.b16 %v4488, %v4487
      %v5751 = vpack.c.b16 %v4490, %v4489
      %v5752 = vpack.c.b16 %v4492, %v4491
      %v5753 = vpack.c.b16 %v4494, %v4493
      %v5754 = vpack.c.b16 %v4496, %v4495
      %v5755 = vpack.c.b16 %v4498, %v4497
      %v5756 = vpack.c.b16 %v4500, %v4499
      %v5757 = vpack.c.b16 %v4502, %v4501
      %v5758 = vpack.c.b16 %v4504, %v4503
      %v5759 = vpack.c.b16 %v4506, %v4505
      %v5760 = vpack.c.b16 %v4508, %v4507
      %v5761 = vpack.c.b16 %v4510, %v4509
      %v5762 = vpack.c.b16 %v4512, %v4511
      %v5763 = vpack.c.b16 %v4514, %v4513
      %v5764 = vpack.c.b16 %v4516, %v4515
      %v5765 = vpack.c.b16 %v4518, %v4517
      %v5766 = vpack.c.b16 %v4520, %v4519
      %v5767 = vpack.c.b16 %v4522, %v4521
      %v5768 = vpack.c.b16 %v4524, %v4523
      %v5769 = vpack.c.b16 %v4526, %v4525
      %v5770 = vpack.c.b16 %v4528, %v4527
      %v5771 = vpack.c.b16 %v4530, %v4529
      %v5772 = vpack.c.b16 %v4532, %v4531
      %v5773 = vpack.c.b16 %v4534, %v4533
      %v5774 = vpack.c.b16 %v4536, %v4535
      %v5775 = vpack.c.b16 %v4538, %v4537
      %v5776 = vpack.c.b16 %v4540, %v4539
      %v5777 = vpack.c.b16 %v4542, %v4541
      %v5778 = vpack.c.b16 %v4544, %v4543
      %v5779 = vpack.c.b16 %v4546, %v4545
      %v5780 = vpack.c.b16 %v4548, %v4547
      %v5781 = vpack.c.b16 %v4550, %v4549
      %v5782 = vpack.c.b16 %v4552, %v4551
      %v5783 = vpack.c.b16 %v4554, %v4553
      %v5784 = vpack.c.b16 %v4556, %v4555
      %v5785 = vpack.c.b16 %v4558, %v4557
      %v5786 = vpack.c.b16 %v4560, %v4559
      %v5787 = vpack.c.b16 %v4562, %v4561
      %v5788 = vpack.c.b16 %v4564, %v4563
      %v5789 = vpack.c.b16 %v4566, %v4565
      %v5790 = vpack.c.b16 %v4568, %v4567
      %v5791 = vpack.c.b16 %v4570, %v4569
      %v5792 = vpack.c.b16 %v4572, %v4571
      %v5793 = vpack.c.b16 %v4574, %v4573
      %v5794 = vpack.c.b16 %v4576, %v4575
      %v5795 = vpack.c.b16 %v4578, %v4577
      %v5796 = vpack.c.b16 %v4580, %v4579
      %v5797 = vpack.c.b16 %v4582, %v4581
      %v5798 = vpack.c.b16 %v4584, %v4583
      %v5799 = vpack.c.b16 %v4586, %v4585
      %v5800 = vpack.c.b16 %v4588, %v4587
      %v5801 = vpack.c.b16 %v4590, %v4589
      %v5802 = vpack.c.b16 %v4592, %v4591
      %v5803 = vpack.c.b16 %v4594, %v4593
      %v5804 = vpack.c.b16 %v4596, %v4595
      %v5805 = vpack.c.b16 %v4598, %v4597
      %v5806 = vpack.c.b16 %v4600, %v4599
      %v5807 = vpack.c.b16 %v4602, %v4601
      %v5808 = vpack.c.b16 %v4604, %v4603
      %v5809 = vpack.c.b16 %v4606, %v4605
      %v5810 = vpack.c.b16 %v4608, %v4607
      %v5811 = vpack.c.b16 %v4610, %v4609
      %v5812 = vpack.c.b16 %v4612, %v4611
      %v5813 = vpack.c.b16 %v4614, %v4613
      %v5814 = vpack.c.b16 %v4616, %v4615
      %v5815 = vpack.c.b16 %v4618, %v4617
      %v5816 = vpack.c.b16 %v4620, %v4619
      %v5817 = vpack.c.b16 %v4622, %v4621
      %v5818 = vpack.c.b16 %v4624, %v4623
      %v5819 = vpack.c.b16 %v4626, %v4625
      %v5820 = vpack.c.b16 %v4628, %v4627
      %v5821 = vpack.c.b16 %v4630, %v4629
      %v5822 = vpack.c.b16 %v4632, %v4631
      %v5823 = vpack.c.b16 %v4634, %v4633
      %v5824 = vpack.c.b16 %v4636, %v4635
      %v5825 = vpack.c.b16 %v4638, %v4637
      %v5826 = vpack.c.b16 %v4640, %v4639
      %v5827 = vpack.c.b16 %v4642, %v4641
      %v5828 = vpack.c.b16 %v4644, %v4643
      %v5829 = vpack.c.b16 %v4646, %v4645
      %v5830 = vpack.c.b16 %v4648, %v4647
      %v5831 = vpack.c.b16 %v4650, %v4649
      %v5832 = vpack.c.b16 %v4652, %v4651
      %v5833 = vpack.c.b16 %v4654, %v4653
      %v5834 = vpack.c.b16 %v4656, %v4655
      %v5835 = vpack.c.b16 %v4658, %v4657
      %v5836 = vpack.c.b16 %v4660, %v4659
      %v5837 = vpack.c.b16 %v4662, %v4661
      %v5838 = vpack.c.b16 %v4664, %v4663
      %v5839 = vpack.c.b16 %v4666, %v4665
      %v5840 = vpack.c.b16 %v4668, %v4667
      %v5841 = vpack.c.b16 %v4670, %v4669
      %v5842 = vpack.c.b16 %v4672, %v4671
      %v5843 = vpack.c.b16 %v4674, %v4673
      %v5844 = vpack.c.b16 %v4676, %v4675
      %v5845 = vpack.c.b16 %v4678, %v4677
      %v5846 = vpack.c.b16 %v4680, %v4679
      %v5847 = vpack.c.b16 %v4682, %v4681
      %v5848 = vpack.c.b16 %v4684, %v4683
      %v5849 = vpack.c.b16 %v4686, %v4685
      %v5850 = vpack.c.b16 %v4688, %v4687
      %v5851 = vpack.c.b16 %v4690, %v4689
      %v5852 = vpack.c.b16 %v4692, %v4691
      %v5853 = vpack.c.b16 %v4694, %v4693
      %v5854 = vpack.c.b16 %v4696, %v4695
      %v5855 = vpack.c.b16 %v4698, %v4697
      %v5856 = vpack.c.b16 %v4700, %v4699
      %v5857 = vpack.c.b16 %v4702, %v4701
      %v5858 = vpack.c.b16 %v4704, %v4703
      %v5859 = vpack.c.b16 %v4706, %v4705
      %v5860 = vpack.c.b16 %v4708, %v4707
      %v5861 = vpack.c.b16 %v4710, %v4709
      %v5862 = vpack.c.b16 %v4712, %v4711
      %v5863 = vpack.c.b16 %v4714, %v4713
      %v5864 = vpack.c.b16 %v4716, %v4715
      %v5865 = vpack.c.b16 %v4718, %v4717
      %v5866 = vpack.c.b16 %v4720, %v4719
      %v5867 = vpack.c.b16 %v4722, %v4721
      %v5868 = vpack.c.b16 %v4724, %v4723
      %v5869 = vpack.c.b16 %v4726, %v4725
      %v5870 = vpack.c.b16 %v4728, %v4727
      %v5871 = vpack.c.b16 %v4730, %v4729
      %v5872 = vpack.c.b16 %v4732, %v4731
      %v5873 = vpack.c.b16 %v4734, %v4733
      %v5874 = vpack.c.b16 %v4736, %v4735
      %v5875 = vpack.c.b16 %v4738, %v4737
      %v5876 = vpack.c.b16 %v4740, %v4739
      %v5877 = vpack.c.b16 %v4742, %v4741
      %v5878 = vpack.c.b16 %v4744, %v4743
      %v5879 = vpack.c.b16 %v4746, %v4745
      %v5880 = vpack.c.b16 %v4748, %v4747
      %v5881 = vpack.c.b16 %v4750, %v4749
      %v5882 = vpack.c.b16 %v4752, %v4751
      %v5883 = vpack.c.b16 %v4754, %v4753
      %v5884 = vpack.c.b16 %v4756, %v4755
      %v5885 = vpack.c.b16 %v4758, %v4757
      %v5886 = vpack.c.b16 %v4760, %v4759
      %v5887 = vpack.c.b16 %v4762, %v4761
      %v5888 = vpack.c.b16 %v4764, %v4763
      %v5889 = vpack.c.b16 %v4766, %v4765
      %v5890 = vpack.c.b16 %v4768, %v4767
      %v5891 = vpack.c.b16 %v4770, %v4769
      %v5892 = vpack.c.b16 %v4772, %v4771
      %v5893 = vpack.c.b16 %v4774, %v4773
      %v5894 = vpack.c.b16 %v4776, %v4775
      %v5895 = vpack.c.b16 %v4778, %v4777
      %v5896 = vpack.c.b16 %v4780, %v4779
      %v5897 = vpack.c.b16 %v4782, %v4781
      %v5898 = vpack.c.b16 %v4784, %v4783
      %v5899 = vpack.c.b16 %v4786, %v4785
      %v5900 = vpack.c.b16 %v4788, %v4787
      %v5901 = vpack.c.b16 %v4790, %v4789
      %v5902 = vpack.c.b16 %v4792, %v4791
      %v5903 = vpack.c.b16 %v4794, %v4793
      %v5904 = vpack.c.b16 %v4796, %v4795
      %v5905 = vpack.c.b16 %v4798, %v4797
      %v5906 = vpack.c.b16 %v4800, %v4799
      %v5907 = vpack.c.b16 %v4802, %v4801
      %v5908 = vpack.c.b16 %v4804, %v4803
      %v5909 = vpack.c.b16 %v4806, %v4805
      %v5910 = vpack.c.b16 %v4808, %v4807
      %v5911 = vpack.c.b16 %v4810, %v4809
      %v5912 = vpack.c.b16 %v4812, %v4811
      %v5913 = vpack.c.b16 %v4814, %v4813
      %v5914 = vpack.c.b16 %v4816, %v4815
      %v5915 = vpack.c.b16 %v4818, %v4817
      %v5916 = vpack.c.b16 %v4820, %v4819
      %v5917 = vpack.c.b16 %v4822, %v4821
      %v5918 = vpack.c.b16 %v4824, %v4823
      %v5919 = vpack.c.b16 %v4826, %v4825
      %v5920 = vpack.c.b16 %v4828, %v4827
      %v5921 = vpack.c.b16 %v4830, %v4829
      %v5922 = vpack.c.b16 %v4832, %v4831
      %v5923 = vpack.c.b16 %v4834, %v4833
      %v5924 = vpack.c.b16 %v4836, %v4835
      %v5925 = vpack.c.b16 %v4838, %v4837
      %v5926 = vpack.c.b16 %v4840, %v4839
      %v5927 = vpack.c.b16 %v4842, %v4841
      %v5928 = vpack.c.b16 %v4844, %v4843
      %v5929 = vpack.c.b16 %v4846, %v4845
      %v5930 = vpack.c.b16 %v4848, %v4847
      %v5931 = vpack.c.b16 %v4850, %v4849
      %v5932 = vpack.c.b16 %v4852, %v4851
      %v5933 = vpack.c.b16 %v4854, %v4853
      %v5934 = vpack.c.b16 %v4856, %v4855
      %v5935 = vpack.c.b16 %v4858, %v4857
      %v5936 = vpack.c.b16 %v4860, %v4859
      %v5937 = vpack.c.b16 %v4862, %v4861
      %v5938 = vpack.c.b16 %v4864, %v4863
      %v5939 = vpack.c.b16 %v4866, %v4865
      %v5940 = vpack.c.b16 %v4868, %v4867
      %v5941 = vpack.c.b16 %v4870, %v4869
      %v5942 = vpack.c.b16 %v4872, %v4871
      %v5943 = vpack.c.b16 %v4874, %v4873
      %v5944 = vpack.c.b16 %v4876, %v4875
      %v5945 = vpack.c.b16 %v4878, %v4877
      %v5946 = vpack.c.b16 %v4880, %v4879
      %v5947 = vpack.c.b16 %v4882, %v4881
      %v5948 = vpack.c.b16 %v4884, %v4883
      %v5949 = vpack.c.b16 %v4886, %v4885
      %v5950 = vpack.c.b16 %v4888, %v4887
      %v5951 = vpack.c.b16 %v4890, %v4889
      %v5952 = vpack.c.b16 %v4892, %v4891
      %v5953 = vpack.c.b16 %v4894, %v4893
      %v5954 = vpack.c.b16 %v4896, %v4895
      %v5955 = vpack.c.b16 %v4898, %v4897
      %v5956 = vpack.c.b16 %v4900, %v4899
      %v5957 = vpack.c.b16 %v4902, %v4901
      %v5958 = vpack.c.b16 %v4904, %v4903
      %v5959 = vpack.c.b16 %v4906, %v4905
      %v5960 = vpack.c.b16 %v4908, %v4907
      %v5961 = vpack.c.b16 %v4910, %v4909
      %v5962 = vpack.c.b16 %v4912, %v4911
      %v5963 = vpack.c.b16 %v4914, %v4913
      %v5964 = vpack.c.b16 %v4916, %v4915
      %v5965 = vpack.c.b16 %v4918, %v4917
      %v5966 = vpack.c.b16 %v4920, %v4919
      %v5967 = vpack.c.b16 %v4922, %v4921
      %v5968 = vpack.c.b16 %v4924, %v4923
      %v5969 = vpack.c.b16 %v4926, %v4925
      %v5970 = vpack.c.b16 %v4928, %v4927
      %v5971 = vpack.c.b16 %v4930, %v4929
      %v5972 = vpack.c.b16 %v4932, %v4931
      %v5973 = vpack.c.b16 %v4934, %v4933
      %v5974 = vpack.c.b16 %v4936, %v4935
      %v5975 = vpack.c.b16 %v4938, %v4937
      %v5976 = vpack.c.b16 %v4940, %v4939
      %v5977 = vpack.c.b16 %v4942, %v4941
      %v5978 = vpack.c.b16 %v4944, %v4943
      %v5979 = vpack.c.b16 %v4946, %v4945
      %v5980 = vpack.c.b16 %v4948, %v4947
      %v5981 = vpack.c.b16 %v4950, %v4949
      %v5982 = vpack.c.b16 %v4952, %v4951
      %v5983 = vpack.c.b16 %v4954, %v4953
      %v5984 = vpack.c.b16 %v4956, %v4955
      %v5985 = vpack.c.b16 %v4958, %v4957
      %v5986 = vpack.c.b16 %v4960, %v4959
      %v5987 = vpack.c.b16 %v4962, %v4961
      %v5988 = vpack.c.b16 %v4964, %v4963
      %v5989 = vpack.c.b16 %v4966, %v4965
      %v5990 = vpack.c.b16 %v4968, %v4967
      %v5991 = vpack.c.b16 %v4970, %v4969
      %v5992 = vpack.c.b16 %v4972, %v4971
      %v5993 = vpack.c.b16 %v4974, %v4973
      %v5994 = vpack.c.b16 %v4976, %v4975
      %v5995 = vpack.c.b16 %v4978, %v4977
      %v5996 = vpack.c.b16 %v4980, %v4979
      %v5997 = vpack.c.b16 %v4982, %v4981
      %v5998 = vpack.c.b16 %v4984, %v4983
      %v5999 = vpack.c.b16 %v4986, %v4985
      %v6000 = vpack.c.b16 %v4988, %v4987
      %v6001 = vpack.c.b16 %v4990, %v4989
      %v6002 = vpack.c.b16 %v4992, %v4991
      %v6003 = vpack.c.b16 %v4994, %v4993
      %v6004 = vpack.c.b16 %v4996, %v4995
      %v6005 = vpack.c.b16 %v4998, %v4997
      %v6006 = vpack.c.b16 %v5000, %v4999
      %v6007 = vpack.c.b16 %v5002, %v5001
      %v6008 = vpack.c.b16 %v5004, %v5003
      %v6009 = vpack.c.b16 %v5006, %v5005
      %v6010 = vpack.c.b16 %v5008, %v5007
      %v6011 = vpack.c.b16 %v5010, %v5009
      %v6012 = vpack.c.b16 %v5012, %v5011
      %v6013 = vpack.c.b16 %v5014, %v5013
      %v6014 = vpack.c.b16 %v5016, %v5015
      %v6015 = vpack.c.b16 %v5018, %v5017
      %v6016 = vpack.c.b16 %v5020, %v5019
      %v6017 = vpack.c.b16 %v5022, %v5021
      %v6018 = vpack.c.b16 %v5024, %v5023
      %v6019 = vpack.c.b16 %v5026, %v5025
      %v6020 = vpack.c.b16 %v5028, %v5027
      %v6021 = vpack.c.b16 %v5030, %v5029
      %v6022 = vpack.c.b16 %v5032, %v5031
      %v6023 = vpack.c.b16 %v5034, %v5033
      %v6024 = vpack.c.b16 %v5036, %v5035
      %v6025 = vpack.c.b16 %v5038, %v5037
      %v6026 = vpack.c.b16 %v5040, %v5039
      %v6027 = vpack.c.b16 %v5042, %v5041
      %v6028 = vpack.c.b16 %v5044, %v5043
      %v6029 = vpack.c.b16 %v5046, %v5045
      %v6030 = vpack.c.b16 %v5048, %v5047
      %v6031 = vpack.c.b16 %v5050, %v5049
      %v6032 = vpack.c.b16 %v5052, %v5051
      %v6033 = vpack.c.b16 %v5054, %v5053
      %v6034 = vpack.c.b16 %v5056, %v5055
      %v6035 = vpack.c.b16 %v5058, %v5057
      %v6036 = vpack.c.b16 %v5060, %v5059
      %v6037 = vpack.c.b16 %v5062, %v5061
      %v6038 = vpack.c.b16 %v5064, %v5063
      %v6039 = vpack.c.b16 %v5066, %v5065
      %v6040 = vpack.c.b16 %v5068, %v5067
      %v6041 = vpack.c.b16 %v5070, %v5069
      %v6042 = vpack.c.b16 %v5072, %v5071
      %v6043 = vpack.c.b16 %v5074, %v5073
      %v6044 = vpack.c.b16 %v5076, %v5075
      %v6045 = vpack.c.b16 %v5078, %v5077
      %v6046 = vpack.c.b16 %v5080, %v5079
      %v6047 = vpack.c.b16 %v5082, %v5081
      %v6048 = vpack.c.b16 %v5084, %v5083
      %v6049 = vpack.c.b16 %v5086, %v5085
      %v6050 = vpack.c.b16 %v5088, %v5087
      %v6051 = vpack.c.b16 %v5090, %v5089
      %v6052 = vpack.c.b16 %v5092, %v5091
      %v6053 = vpack.c.b16 %v5094, %v5093
      %v6054 = vpack.c.b16 %v5096, %v5095
      %v6055 = vpack.c.b16 %v5098, %v5097
      %v6056 = vpack.c.b16 %v5100, %v5099
      %v6057 = vpack.c.b16 %v5102, %v5101
      %v6058 = vpack.c.b16 %v5104, %v5103
      %v6059 = vpack.c.b16 %v5106, %v5105
      %v6060 = vpack.c.b16 %v5108, %v5107
      %v6061 = vpack.c.b16 %v5110, %v5109
      %v6062 = vpack.c.b16 %v5112, %v5111
      %v6063 = vpack.c.b16 %v5114, %v5113
      %v6064 = vpack.c.b16 %v5116, %v5115
      %v6065 = vpack.c.b16 %v5118, %v5117
      %v6066 = vpack.c.b16 %v5120, %v5119
      %v6067 = vpack.c.b16 %v5122, %v5121
      %v6068 = vpack.c.b16 %v5124, %v5123
      %v6069 = vpack.c.b16 %v5126, %v5125
      %v6070 = vpack.c.b16 %v5128, %v5127
      %v6071 = vpack.c.b16 %v5130, %v5129
      %v6072 = vpack.c.b16 %v5132, %v5131
      %v6073 = vpack.c.b16 %v5134, %v5133
      %v6074 = vpack.c.b16 %v5136, %v5135
      %v6075 = vpack.c.b16 %v5138, %v5137
      %v6076 = vpack.c.b16 %v5140, %v5139
      %v6077 = vpack.c.b16 %v5142, %v5141
      %v6078 = vpack.c.b16 %v5144, %v5143
      %v6079 = vpack.c.b16 %v5146, %v5145
      %v6080 = vpack.c.b16 %v5148, %v5147
      %v6081 = vpack.c.b16 %v5150, %v5149
      %v6082 = vpack.c.b16 %v5152, %v5151
      %v6083 = vpack.c.b16 %v5154, %v5153
      %v6084 = vpack.c.b16 %v5156, %v5155
      %v6085 = vpack.c.b16 %v5158, %v5157
      %v6086 = vpack.c.b16 %v5160, %v5159
      %v6087 = vpack.c.b16 %v5162, %v5161
      %v6088 = vpack.c.b16 %v5164, %v5163
      %v6089 = vpack.c.b16 %v5166, %v5165
      %v6090 = vpack.c.b16 %v5168, %v5167
      %v6091 = vpack.c.b16 %v5170, %v5169
      %v6092 = vpack.c.b16 %v5172, %v5171
      %v6093 = vpack.c.b16 %v5174, %v5173
      %v6094 = vpack.c.b16 %v5176, %v5175
      %v6095 = vpack.c.b16 %v5178, %v5177
      %v6096 = vpack.c.b16 %v5180, %v5179
      %v6097 = vpack.c.b16 %v5182, %v5181
      %v6098 = vpack.c.b16 %v5184, %v5183
      %v6099 = vpack.c.b16 %v5186, %v5185
      %v6100 = vpack.c.b16 %v5188, %v5187
      %v6101 = vpack.c.b16 %v5190, %v5189
      %v6102 = vpack.c.b16 %v5192, %v5191
      %v6103 = vpack.c.b16 %v5194, %v5193
      %v6104 = vpack.c.b16 %v5196, %v5195
      %v6105 = vpack.c.b16 %v5198, %v5197
      %v6106 = vpack.c.b16 %v5200, %v5199
      %v6107 = vpack.c.b16 %v5202, %v5201
      %v6108 = vpack.c.b16 %v5204, %v5203
      %v6109 = vpack.c.b16 %v5206, %v5205
      %v6110 = vpack.c.b16 %v5208, %v5207
      %v6111 = vpack.c.b16 %v5210, %v5209
      %v6112 = vpack.c.b16 %v5212, %v5211
      %v6113 = vpack.c.b16 %v5214, %v5213
      %v6114 = vpack.c.b16 %v5216, %v5215
      %v6115 = vpack.c.b16 %v5218, %v5217
      %v6116 = vpack.c.b16 %v5220, %v5219
      %v6117 = vpack.c.b16 %v5222, %v5221
      %v6118 = vpack.c.b16 %v5224, %v5223
      %v6119 = vpack.c.b16 %v5226, %v5225
      %v6120 = vpack.c.b16 %v5228, %v5227
      %v6121 = vpack.c.b16 %v5230, %v5229
      %v6122 = vpack.c.b16 %v5232, %v5231
      %v6123 = vpack.c.b16 %v5234, %v5233
      %v6124 = vpack.c.b16 %v5236, %v5235
      %v6125 = vpack.c.b16 %v5238, %v5237
      %v6126 = vpack.c.b16 %v5240, %v5239
      %v6127 = vpack.c.b16 %v5242, %v5241
      %v6128 = vpack.c.b16 %v5244, %v5243
      %v6129 = vpack.c.b16 %v5246, %v5245
      %v6130 = vpack.c.b16 %v5248, %v5247
      %v6131 = vpack.c.b16 %v5250, %v5249
      %v6132 = vpack.c.b16 %v5252, %v5251
      %v6133 = vpack.c.b16 %v5254, %v5253
      %v6134 = vpack.c.b16 %v5256, %v5255
      %v6135 = vpack.c.b16 %v5258, %v5257
      %v6136 = vpack.c.b16 %v5260, %v5259
      %v6137 = vpack.c.b16 %v5262, %v5261
      %v6138 = vpack.c.b16 %v5264, %v5263
      %v6139 = vpack.c.b16 %v5266, %v5265
      %v6140 = vpack.c.b16 %v5268, %v5267
      %v6141 = vpack.c.b16 %v5270, %v5269
      %v6142 = vpack.c.b16 %v5272, %v5271
      %v6143 = vpack.c.b16 %v5274, %v5273
      %v6144 = vpack.c.b16 %v5276, %v5275
      %v6145 = vpack.c.b16 %v5278, %v5277
      %v6146 = vpack.c.b16 %v5280, %v5279
      %v6147 = vpack.c.b16 %v5282, %v5281
      %v6148 = vpack.c.b16 %v5284, %v5283
      %v6149 = vpack.c.b16 %v5286, %v5285
      %v6150 = vpack.c.b16 %v5288, %v5287
      %v6151 = vpack.c.b16 %v5290, %v5289
      %v6152 = vpack.c.b16 %v5292, %v5291
      %v6153 = vpack.c.b16 %v5294, %v5293
      %v6154 = vpack.c.b16 %v5296, %v5295
      %v6155 = vpack.c.b16 %v5298, %v5297
      %v6156 = vpack.c.b16 %v5300, %v5299
      %v6157 = vpack.c.b16 %v5302, %v5301
      %v6158 = vpack.c.b16 %v5304, %v5303
      %v6159 = vpack.c.b16 %v5306, %v5305
      %v6160 = vpack.c.b16 %v5308, %v5307
      %v6161 = vpack.c.b16 %v5310, %v5309
      %v6162 = vpack.c.b16 %v5312, %v5311
      %v6163 = vpack.c.b16 %v5314, %v5313
      %v6164 = vpack.c.b16 %v5316, %v5315
      %v6165 = vpack.c.b16 %v5318, %v5317
      %v6166 = vpack.c.b16 %v5320, %v5319
      %v6167 = vpack.c.b16 %v5322, %v5321
      %v6168 = vpack.c.b16 %v5324, %v5323
      %v6169 = vpack.c.b16 %v5326, %v5325
      %v6170 = vpack.c.b16 %v5328, %v5327
      %v6171 = vpack.c.b16 %v5330, %v5329
      %v6172 = vpack.c.b16 %v5332, %v5331
      %v6173 = vpack.c.b16 %v5334, %v5333
      %v6174 = vpack.c.b16 %v5336, %v5335
      %v6175 = vpack.c.b16 %v5338, %v5337
      %v6176 = vpack.c.b16 %v5340, %v5339
      %v6177 = vpack.c.b16 %v5342, %v5341
      %v6178 = vpack.c.b16 %v5344, %v5343
      %v6179 = vpack.c.b16 %v5346, %v5345
      %v6180 = vpack.c.b16 %v5348, %v5347
      %v6181 = vpack.c.b16 %v5350, %v5349
      %v6182 = vpack.c.b16 %v5352, %v5351
      %v6183 = vpack.c.b16 %v5354, %v5353
      %v6184 = vpack.c.b16 %v5356, %v5355
      %v6185 = vpack.c.b16 %v5358, %v5357
      %v6186 = vpack.c.b16 %v5360, %v5359
      %v6187 = vpack.c.b16 %v5362, %v5361
      %v6188 = vpack.c.b16 %v5364, %v5363
      %v6189 = vpack.c.b16 %v5366, %v5365
      %v6190 = vpack.c.b16 %v5368, %v5367
      %v6191 = vpack.c.b16 %v5370, %v5369
      %v6192 = vpack.c.b16 %v5372, %v5371
      %v6193 = vpack.c.b16 %v5374, %v5373
      %v6194 = vpack.c.b16 %v5376, %v5375
      %v6195 = vpack.c.b16 %v5378, %v5377
      %v6196 = vpack.c.b16 %v5380, %v5379
      %v6197 = vpack.c.b16 %v5382, %v5381
      %v6198 = vpack.c.b16 %v5384, %v5383
      %v6199 = vpack.c.b16 %v5386, %v5385
      %v6200 = vpack.c.b16 %v5388, %v5387
      %v6201 = vpack.c.b16 %v5390, %v5389
      %v6202 = vpack.c.b16 %v5392, %v5391
      %v6203 = vpack.c.b16 %v5394, %v5393
      %v6204 = vpack.c.b16 %v5396, %v5395
      %v6205 = vpack.c.b16 %v5398, %v5397
      %v6206 = vpack.c.b16 %v5400, %v5399
      %v6207 = vpack.c.b16 %v5402, %v5401
      %v6208 = vpack.c.b16 %v5404, %v5403
      %v6209 = vpack.c.b16 %v5406, %v5405
      %v6210 = vpack.c.b16 %v5408, %v5407
      %v6211 = vpack.c.b16 %v5410, %v5409
      %v6212 = vpack.c.b16 %v5412, %v5411
      %v6213 = vpack.c.b16 %v5414, %v5413
      %v6214 = vpack.c.b16 %v5416, %v5415
      %v6215 = vpack.c.b16 %v5418, %v5417
      %v6216 = vpack.c.b16 %v5420, %v5419
      %v6217 = vpack.c.b16 %v5422, %v5421
      %v6218 = vpack.c.b16 %v5424, %v5423
      %v6219 = vpack.c.b16 %v5426, %v5425
      %v6220 = vpack.c.b16 %v5428, %v5427
      %v6221 = vpack.c.b16 %v5430, %v5429
      %v6222 = vpack.c.b16 %v5432, %v5431
      %v6223 = vpack.c.b16 %v5434, %v5433
      %v6224 = vpack.c.b16 %v5436, %v5435
      %v6225 = vpack.c.b16 %v5438, %v5437
      %v6226 = vpack.c.b16 %v5440, %v5439
      %v6227 = vpack.c.b16 %v5442, %v5441
      %v6228 = vpack.c.b16 %v5444, %v5443
      %v6229 = vpack.c.b16 %v5446, %v5445
      %v6230 = vpack.c.b16 %v5448, %v5447
      %v6231 = vpack.c.b16 %v5450, %v5449
      %v6232 = vpack.c.b16 %v5452, %v5451
      %v6233 = vpack.c.b16 %v5454, %v5453
      %v6234 = vpack.c.b16 %v5456, %v5455
      %v6235 = vpack.c.b16 %v5458, %v5457
      %v6236 = vpack.c.b16 %v5460, %v5459
      %v6237 = vpack.c.b16 %v5462, %v5461
      %v6238 = vpack.c.b16 %v5464, %v5463
      %v6239 = vpack.c.b16 %v5466, %v5465
      %v6240 = vpack.c.b16 %v5468, %v5467
      %v6241 = vpack.c.b16 %v5470, %v5469
      %v6242 = vpack.c.b16 %v5472, %v5471
      %v6243 = vpack.c.b16 %v5474, %v5473
      %v6244 = vpack.c.b16 %v5476, %v5475
      %7013 = vmatprep.subr.bf16.mxu0 0
      %7014 = vmatpush1.bf16.msra.mxu0 %v5484
      %7015 = vmatprep.subr.bf16.mxu0 0
      %7016 = vmatpush1.bf16.msra.mxu0 %v5483
      %7017 = vmatprep.subr.bf16.mxu0 0
      %7018 = vmatpush1.bf16.msra.mxu0 %v5482
      %7019 = vmatprep.subr.bf16.mxu0 0
      %7020 = vmatpush1.bf16.msra.mxu0 %v5481
      %7021 = vmatprep.subr.bf16.mxu0 0
      %7022 = vmatpush1.bf16.msra.mxu0 %v5480
      %7023 = vmatprep.subr.bf16.mxu0 0
      %7024 = vmatpush1.bf16.msra.mxu0 %v5479
      %7025 = vmatprep.subr.bf16.mxu0 0
      %7026 = vmatpush1.bf16.msra.mxu0 %v5478
      %7027 = vmatprep.subr.bf16.mxu0 0
      %7028 = vmatpush1.bf16.msra.mxu0 %v5477
      %7029 = vmatprep.subr.bf16.mxu0 0
      %7030 = vmatpush2.bf16.msra.mxu0 %v5492
      %7031 = vmatprep.subr.bf16.mxu0 0
      %7032 = vmatpush2.bf16.msra.mxu0 %v5491
      %7033 = vmatprep.subr.bf16.mxu0 0
      %7034 = vmatpush2.bf16.msra.mxu0 %v5490
      %7035 = vmatprep.subr.bf16.mxu0 0
      %7036 = vmatpush2.bf16.msra.mxu0 %v5489
      %7037 = vmatprep.subr.bf16.mxu0 0
      %7038 = vmatpush2.bf16.msra.mxu0 %v5488
      %7039 = vmatprep.subr.bf16.mxu0 0
      %7040 = vmatpush2.bf16.msra.mxu0 %v5487
      %7041 = vmatprep.subr.bf16.mxu0 0
      %7042 = vmatpush2.bf16.msra.mxu0 %v5486
      %7043 = vmatprep.subr.bf16.mxu0 0
      %7044 = vmatpush2.bf16.msra.mxu0 %v5485
      %7045 = vmatprep.mubr.bf16.mxu0 %v2214
      %7046 = vmatmul.mubr.bf16.gmra.mxu0 %v2213
      %v7047 = vpop.f32.mrf.mxu0
      %v7048 = vadd.f32 %v1923, %v7047
      %v7049 = vpop.f32.mrf.mxu0
      %v7050 = vpop.f32.mrf.mxu0
      %v7051 = vadd.f32 %v1923, %v7050
      %v7052 = vpop.f32.mrf.mxu0
      %7053 = vdwg.mxu0
      %7054 = vmatprep.subr.bf16.mxu0 0
      %7055 = vmatpush1.bf16.msra.mxu0 %v5500
      %7056 = vmatprep.subr.bf16.mxu0 0
      %7057 = vmatpush1.bf16.msra.mxu0 %v5499
      %7058 = vmatprep.subr.bf16.mxu0 0
      %7059 = vmatpush1.bf16.msra.mxu0 %v5498
      %7060 = vmatprep.subr.bf16.mxu0 0
      %7061 = vmatpush1.bf16.msra.mxu0 %v5497
      %7062 = vmatprep.subr.bf16.mxu0 0
      %7063 = vmatpush1.bf16.msra.mxu0 %v5496
      %7064 = vmatprep.subr.bf16.mxu0 0
      %7065 = vmatpush1.bf16.msra.mxu0 %v5495
      %7066 = vmatprep.subr.bf16.mxu0 0
      %7067 = vmatpush1.bf16.msra.mxu0 %v5494
      %7068 = vmatprep.subr.bf16.mxu0 0
      %7069 = vmatpush1.bf16.msra.mxu0 %v5493
      %7070 = vmatprep.subr.bf16.mxu0 0
      %7071 = vmatpush2.bf16.msra.mxu0 %v5508
      %7072 = vmatprep.subr.bf16.mxu0 0
      %7073 = vmatpush2.bf16.msra.mxu0 %v5507
      %7074 = vmatprep.subr.bf16.mxu0 0
      %7075 = vmatpush2.bf16.msra.mxu0 %v5506
      %7076 = vmatprep.subr.bf16.mxu0 0
      %7077 = vmatpush2.bf16.msra.mxu0 %v5505
      %7078 = vmatprep.subr.bf16.mxu0 0
      %7079 = vmatpush2.bf16.msra.mxu0 %v5504
      %7080 = vmatprep.subr.bf16.mxu0 0
      %7081 = vmatpush2.bf16.msra.mxu0 %v5503
      %7082 = vmatprep.subr.bf16.mxu0 0
      %7083 = vmatpush2.bf16.msra.mxu0 %v5502
      %7084 = vmatprep.subr.bf16.mxu0 0
      %7085 = vmatpush2.bf16.msra.mxu0 %v5501
      %7086 = vmatprep.mubr.bf16.mxu0 %v2216
      %7087 = vmatmul.mubr.bf16.gmra.mxu0 %v2215
      %v7088 = vpop.f32.mrf.mxu0
      %v7089 = vadd.f32 %v7048, %v7088
      %v7090 = vpop.f32.mrf.mxu0
      %v7091 = vpop.f32.mrf.mxu0
      %v7092 = vadd.f32 %v7051, %v7091
      %v7093 = vpop.f32.mrf.mxu0
      %7094 = vdwg.mxu0
      %7095 = vmatprep.subr.bf16.mxu0 0
      %7096 = vmatpush1.bf16.msra.mxu0 %v5516
      %7097 = vmatprep.subr.bf16.mxu0 0
      %7098 = vmatpush1.bf16.msra.mxu0 %v5515
      %7099 = vmatprep.subr.bf16.mxu0 0
      %7100 = vmatpush1.bf16.msra.mxu0 %v5514
      %7101 = vmatprep.subr.bf16.mxu0 0
      %7102 = vmatpush1.bf16.msra.mxu0 %v5513
      %7103 = vmatprep.subr.bf16.mxu0 0
      %7104 = vmatpush1.bf16.msra.mxu0 %v5512
      %7105 = vmatprep.subr.bf16.mxu0 0
      %7106 = vmatpush1.bf16.msra.mxu0 %v5511
      %7107 = vmatprep.subr.bf16.mxu0 0
      %7108 = vmatpush1.bf16.msra.mxu0 %v5510
      %7109 = vmatprep.subr.bf16.mxu0 0
      %7110 = vmatpush1.bf16.msra.mxu0 %v5509
      %7111 = vmatprep.subr.bf16.mxu0 0
      %7112 = vmatpush2.bf16.msra.mxu0 %v5524
      %7113 = vmatprep.subr.bf16.mxu0 0
      %7114 = vmatpush2.bf16.msra.mxu0 %v5523
      %7115 = vmatprep.subr.bf16.mxu0 0
      %7116 = vmatpush2.bf16.msra.mxu0 %v5522
      %7117 = vmatprep.subr.bf16.mxu0 0
      %7118 = vmatpush2.bf16.msra.mxu0 %v5521
      %7119 = vmatprep.subr.bf16.mxu0 0
      %7120 = vmatpush2.bf16.msra.mxu0 %v5520
      %7121 = vmatprep.subr.bf16.mxu0 0
      %7122 = vmatpush2.bf16.msra.mxu0 %v5519
      %7123 = vmatprep.subr.bf16.mxu0 0
      %7124 = vmatpush2.bf16.msra.mxu0 %v5518
      %7125 = vmatprep.subr.bf16.mxu0 0
      %7126 = vmatpush2.bf16.msra.mxu0 %v5517
      %7127 = vmatprep.mubr.bf16.mxu0 %v2218
      %7128 = vmatmul.mubr.bf16.gmra.mxu0 %v2217
      %v7129 = vpop.f32.mrf.mxu0
      %v7130 = vadd.f32 %v7089, %v7129
      %v7131 = vpop.f32.mrf.mxu0
      %v7132 = vpop.f32.mrf.mxu0
      %v7133 = vadd.f32 %v7092, %v7132
      %v7134 = vpop.f32.mrf.mxu0
      %7135 = vdwg.mxu0
      %7136 = vmatprep.subr.bf16.mxu0 0
      %7137 = vmatpush1.bf16.msra.mxu0 %v5532
      %7138 = vmatprep.subr.bf16.mxu0 0
      %7139 = vmatpush1.bf16.msra.mxu0 %v5531
      %7140 = vmatprep.subr.bf16.mxu0 0
      %7141 = vmatpush1.bf16.msra.mxu0 %v5530
      %7142 = vmatprep.subr.bf16.mxu0 0
      %7143 = vmatpush1.bf16.msra.mxu0 %v5529
      %7144 = vmatprep.subr.bf16.mxu0 0
      %7145 = vmatpush1.bf16.msra.mxu0 %v5528
      %7146 = vmatprep.subr.bf16.mxu0 0
      %7147 = vmatpush1.bf16.msra.mxu0 %v5527
      %7148 = vmatprep.subr.bf16.mxu0 0
      %7149 = vmatpush1.bf16.msra.mxu0 %v5526
      %7150 = vmatprep.subr.bf16.mxu0 0
      %7151 = vmatpush1.bf16.msra.mxu0 %v5525
      %7152 = vmatprep.subr.bf16.mxu0 0
      %7153 = vmatpush2.bf16.msra.mxu0 %v5540
      %7154 = vmatprep.subr.bf16.mxu0 0
      %7155 = vmatpush2.bf16.msra.mxu0 %v5539
      %7156 = vmatprep.subr.bf16.mxu0 0
      %7157 = vmatpush2.bf16.msra.mxu0 %v5538
      %7158 = vmatprep.subr.bf16.mxu0 0
      %7159 = vmatpush2.bf16.msra.mxu0 %v5537
      %7160 = vmatprep.subr.bf16.mxu0 0
      %7161 = vmatpush2.bf16.msra.mxu0 %v5536
      %7162 = vmatprep.subr.bf16.mxu0 0
      %7163 = vmatpush2.bf16.msra.mxu0 %v5535
      %7164 = vmatprep.subr.bf16.mxu0 0
      %7165 = vmatpush2.bf16.msra.mxu0 %v5534
      %7166 = vmatprep.subr.bf16.mxu0 0
      %7167 = vmatpush2.bf16.msra.mxu0 %v5533
      %7168 = vmatprep.mubr.bf16.mxu0 %v2220
      %7169 = vmatmul.mubr.bf16.gmra.mxu0 %v2219
      %v7170 = vpop.f32.mrf.mxu0
      %v7171 = vadd.f32 %v7130, %v7170
      %v7172 = vpop.f32.mrf.mxu0
      %v7173 = vpop.f32.mrf.mxu0
      %v7174 = vadd.f32 %v7133, %v7173
      %v7175 = vpop.f32.mrf.mxu0
      %7176 = vdwg.mxu0
      %7177 = vmatprep.subr.bf16.mxu0 0
      %7178 = vmatpush1.bf16.msra.mxu0 %v5548
      %7179 = vmatprep.subr.bf16.mxu0 0
      %7180 = vmatpush1.bf16.msra.mxu0 %v5547
      %7181 = vmatprep.subr.bf16.mxu0 0
      %7182 = vmatpush1.bf16.msra.mxu0 %v5546
      %7183 = vmatprep.subr.bf16.mxu0 0
      %7184 = vmatpush1.bf16.msra.mxu0 %v5545
      %7185 = vmatprep.subr.bf16.mxu0 0
      %7186 = vmatpush1.bf16.msra.mxu0 %v5544
      %7187 = vmatprep.subr.bf16.mxu0 0
      %7188 = vmatpush1.bf16.msra.mxu0 %v5543
      %7189 = vmatprep.subr.bf16.mxu0 0
      %7190 = vmatpush1.bf16.msra.mxu0 %v5542
      %7191 = vmatprep.subr.bf16.mxu0 0
      %7192 = vmatpush1.bf16.msra.mxu0 %v5541
      %7193 = vmatprep.subr.bf16.mxu0 0
      %7194 = vmatpush2.bf16.msra.mxu0 %v5556
      %7195 = vmatprep.subr.bf16.mxu0 0
      %7196 = vmatpush2.bf16.msra.mxu0 %v5555
      %7197 = vmatprep.subr.bf16.mxu0 0
      %7198 = vmatpush2.bf16.msra.mxu0 %v5554
      %7199 = vmatprep.subr.bf16.mxu0 0
      %7200 = vmatpush2.bf16.msra.mxu0 %v5553
      %7201 = vmatprep.subr.bf16.mxu0 0
      %7202 = vmatpush2.bf16.msra.mxu0 %v5552
      %7203 = vmatprep.subr.bf16.mxu0 0
      %7204 = vmatpush2.bf16.msra.mxu0 %v5551
      %7205 = vmatprep.subr.bf16.mxu0 0
      %7206 = vmatpush2.bf16.msra.mxu0 %v5550
      %7207 = vmatprep.subr.bf16.mxu0 0
      %7208 = vmatpush2.bf16.msra.mxu0 %v5549
      %7209 = vmatprep.mubr.bf16.mxu0 %v2222
      %7210 = vmatmul.mubr.bf16.gmra.mxu0 %v2221
      %v7211 = vpop.f32.mrf.mxu0
      %v7212 = vadd.f32 %v7171, %v7211
      %v7213 = vpop.f32.mrf.mxu0
      %v7214 = vpop.f32.mrf.mxu0
      %v7215 = vadd.f32 %v7174, %v7214
      %v7216 = vpop.f32.mrf.mxu0
      %7217 = vdwg.mxu0
      %7218 = vmatprep.subr.bf16.mxu0 0
      %7219 = vmatpush1.bf16.msra.mxu0 %v5564
      %7220 = vmatprep.subr.bf16.mxu0 0
      %7221 = vmatpush1.bf16.msra.mxu0 %v5563
      %7222 = vmatprep.subr.bf16.mxu0 0
      %7223 = vmatpush1.bf16.msra.mxu0 %v5562
      %7224 = vmatprep.subr.bf16.mxu0 0
      %7225 = vmatpush1.bf16.msra.mxu0 %v5561
      %7226 = vmatprep.subr.bf16.mxu0 0
      %7227 = vmatpush1.bf16.msra.mxu0 %v5560
      %7228 = vmatprep.subr.bf16.mxu0 0
      %7229 = vmatpush1.bf16.msra.mxu0 %v5559
      %7230 = vmatprep.subr.bf16.mxu0 0
      %7231 = vmatpush1.bf16.msra.mxu0 %v5558
      %7232 = vmatprep.subr.bf16.mxu0 0
      %7233 = vmatpush1.bf16.msra.mxu0 %v5557
      %7234 = vmatprep.subr.bf16.mxu0 0
      %7235 = vmatpush2.bf16.msra.mxu0 %v5572
      %7236 = vmatprep.subr.bf16.mxu0 0
      %7237 = vmatpush2.bf16.msra.mxu0 %v5571
      %7238 = vmatprep.subr.bf16.mxu0 0
      %7239 = vmatpush2.bf16.msra.mxu0 %v5570
      %7240 = vmatprep.subr.bf16.mxu0 0
      %7241 = vmatpush2.bf16.msra.mxu0 %v5569
      %7242 = vmatprep.subr.bf16.mxu0 0
      %7243 = vmatpush2.bf16.msra.mxu0 %v5568
      %7244 = vmatprep.subr.bf16.mxu0 0
      %7245 = vmatpush2.bf16.msra.mxu0 %v5567
      %7246 = vmatprep.subr.bf16.mxu0 0
      %7247 = vmatpush2.bf16.msra.mxu0 %v5566
      %7248 = vmatprep.subr.bf16.mxu0 0
      %7249 = vmatpush2.bf16.msra.mxu0 %v5565
      %7250 = vmatprep.mubr.bf16.mxu0 %v2224
      %7251 = vmatmul.mubr.bf16.gmra.mxu0 %v2223
      %v7252 = vpop.f32.mrf.mxu0
      %v7253 = vadd.f32 %v7212, %v7252
      %v7254 = vpop.f32.mrf.mxu0
      %v7255 = vpop.f32.mrf.mxu0
      %v7256 = vadd.f32 %v7215, %v7255
      %v7257 = vpop.f32.mrf.mxu0
      %7258 = vdwg.mxu0
      %7259 = vmatprep.subr.bf16.mxu0 0
      %7260 = vmatpush1.bf16.msra.mxu0 %v5580
      %7261 = vmatprep.subr.bf16.mxu0 0
      %7262 = vmatpush1.bf16.msra.mxu0 %v5579
      %7263 = vmatprep.subr.bf16.mxu0 0
      %7264 = vmatpush1.bf16.msra.mxu0 %v5578
      %7265 = vmatprep.subr.bf16.mxu0 0
      %7266 = vmatpush1.bf16.msra.mxu0 %v5577
      %7267 = vmatprep.subr.bf16.mxu0 0
      %7268 = vmatpush1.bf16.msra.mxu0 %v5576
      %7269 = vmatprep.subr.bf16.mxu0 0
      %7270 = vmatpush1.bf16.msra.mxu0 %v5575
      %7271 = vmatprep.subr.bf16.mxu0 0
      %7272 = vmatpush1.bf16.msra.mxu0 %v5574
      %7273 = vmatprep.subr.bf16.mxu0 0
      %7274 = vmatpush1.bf16.msra.mxu0 %v5573
      %7275 = vmatprep.subr.bf16.mxu0 0
      %7276 = vmatpush2.bf16.msra.mxu0 %v5588
      %7277 = vmatprep.subr.bf16.mxu0 0
      %7278 = vmatpush2.bf16.msra.mxu0 %v5587
      %7279 = vmatprep.subr.bf16.mxu0 0
      %7280 = vmatpush2.bf16.msra.mxu0 %v5586
      %7281 = vmatprep.subr.bf16.mxu0 0
      %7282 = vmatpush2.bf16.msra.mxu0 %v5585
      %7283 = vmatprep.subr.bf16.mxu0 0
      %7284 = vmatpush2.bf16.msra.mxu0 %v5584
      %7285 = vmatprep.subr.bf16.mxu0 0
      %7286 = vmatpush2.bf16.msra.mxu0 %v5583
      %7287 = vmatprep.subr.bf16.mxu0 0
      %7288 = vmatpush2.bf16.msra.mxu0 %v5582
      %7289 = vmatprep.subr.bf16.mxu0 0
      %7290 = vmatpush2.bf16.msra.mxu0 %v5581
      %7291 = vmatprep.mubr.bf16.mxu0 %v2226
      %7292 = vmatmul.mubr.bf16.gmra.mxu0 %v2225
      %v7293 = vpop.f32.mrf.mxu0
      %v7294 = vadd.f32 %v7253, %v7293
      %v7295 = vpop.f32.mrf.mxu0
      %v7296 = vpop.f32.mrf.mxu0
      %v7297 = vadd.f32 %v7256, %v7296
      %v7298 = vpop.f32.mrf.mxu0
      %7299 = vdwg.mxu0
      %7300 = vmatprep.subr.bf16.mxu0 0
      %7301 = vmatpush1.bf16.msra.mxu0 %v5596
      %7302 = vmatprep.subr.bf16.mxu0 0
      %7303 = vmatpush1.bf16.msra.mxu0 %v5595
      %7304 = vmatprep.subr.bf16.mxu0 0
      %7305 = vmatpush1.bf16.msra.mxu0 %v5594
      %7306 = vmatprep.subr.bf16.mxu0 0
      %7307 = vmatpush1.bf16.msra.mxu0 %v5593
      %7308 = vmatprep.subr.bf16.mxu0 0
      %7309 = vmatpush1.bf16.msra.mxu0 %v5592
      %7310 = vmatprep.subr.bf16.mxu0 0
      %7311 = vmatpush1.bf16.msra.mxu0 %v5591
      %7312 = vmatprep.subr.bf16.mxu0 0
      %7313 = vmatpush1.bf16.msra.mxu0 %v5590
      %7314 = vmatprep.subr.bf16.mxu0 0
      %7315 = vmatpush1.bf16.msra.mxu0 %v5589
      %7316 = vmatprep.subr.bf16.mxu0 0
      %7317 = vmatpush2.bf16.msra.mxu0 %v5604
      %7318 = vmatprep.subr.bf16.mxu0 0
      %7319 = vmatpush2.bf16.msra.mxu0 %v5603
      %7320 = vmatprep.subr.bf16.mxu0 0
      %7321 = vmatpush2.bf16.msra.mxu0 %v5602
      %7322 = vmatprep.subr.bf16.mxu0 0
      %7323 = vmatpush2.bf16.msra.mxu0 %v5601
      %7324 = vmatprep.subr.bf16.mxu0 0
      %7325 = vmatpush2.bf16.msra.mxu0 %v5600
      %7326 = vmatprep.subr.bf16.mxu0 0
      %7327 = vmatpush2.bf16.msra.mxu0 %v5599
      %7328 = vmatprep.subr.bf16.mxu0 0
      %7329 = vmatpush2.bf16.msra.mxu0 %v5598
      %7330 = vmatprep.subr.bf16.mxu0 0
      %7331 = vmatpush2.bf16.msra.mxu0 %v5597
      %7332 = vmatprep.mubr.bf16.mxu0 %v2228
      %7333 = vmatmul.mubr.bf16.gmra.mxu0 %v2227
      %v7334 = vpop.f32.mrf.mxu0
      %v7335 = vadd.f32 %v7294, %v7334
      %v7336 = vpop.f32.mrf.mxu0
      %v7337 = vpop.f32.mrf.mxu0
      %v7338 = vadd.f32 %v7297, %v7337
      %v7339 = vpop.f32.mrf.mxu0
      %7340 = vdwg.mxu0
      %7341 = vmatprep.subr.bf16.mxu0 0
      %7342 = vmatpush1.bf16.msra.mxu0 %v5612
      %7343 = vmatprep.subr.bf16.mxu0 0
      %7344 = vmatpush1.bf16.msra.mxu0 %v5611
      %7345 = vmatprep.subr.bf16.mxu0 0
      %7346 = vmatpush1.bf16.msra.mxu0 %v5610
      %7347 = vmatprep.subr.bf16.mxu0 0
      %7348 = vmatpush1.bf16.msra.mxu0 %v5609
      %7349 = vmatprep.subr.bf16.mxu0 0
      %7350 = vmatpush1.bf16.msra.mxu0 %v5608
      %7351 = vmatprep.subr.bf16.mxu0 0
      %7352 = vmatpush1.bf16.msra.mxu0 %v5607
      %7353 = vmatprep.subr.bf16.mxu0 0
      %7354 = vmatpush1.bf16.msra.mxu0 %v5606
      %7355 = vmatprep.subr.bf16.mxu0 0
      %7356 = vmatpush1.bf16.msra.mxu0 %v5605
      %7357 = vmatprep.subr.bf16.mxu0 0
      %7358 = vmatpush2.bf16.msra.mxu0 %v5620
      %7359 = vmatprep.subr.bf16.mxu0 0
      %7360 = vmatpush2.bf16.msra.mxu0 %v5619
      %7361 = vmatprep.subr.bf16.mxu0 0
      %7362 = vmatpush2.bf16.msra.mxu0 %v5618
      %7363 = vmatprep.subr.bf16.mxu0 0
      %7364 = vmatpush2.bf16.msra.mxu0 %v5617
      %7365 = vmatprep.subr.bf16.mxu0 0
      %7366 = vmatpush2.bf16.msra.mxu0 %v5616
      %7367 = vmatprep.subr.bf16.mxu0 0
      %7368 = vmatpush2.bf16.msra.mxu0 %v5615
      %7369 = vmatprep.subr.bf16.mxu0 0
      %7370 = vmatpush2.bf16.msra.mxu0 %v5614
      %7371 = vmatprep.subr.bf16.mxu0 0
      %7372 = vmatpush2.bf16.msra.mxu0 %v5613
      %7373 = vmatprep.mubr.bf16.mxu0 %v2230
      %7374 = vmatmul.mubr.bf16.gmra.mxu0 %v2229
      %v7375 = vpop.f32.mrf.mxu0
      %v7376 = vadd.f32 %v7335, %v7375
      %v7377 = vpop.f32.mrf.mxu0
      %v7378 = vpop.f32.mrf.mxu0
      %v7379 = vadd.f32 %v7338, %v7378
      %v7380 = vpop.f32.mrf.mxu0
      %7381 = vdwg.mxu0
      %7382 = vmatprep.subr.bf16.mxu0 0
      %7383 = vmatpush1.bf16.msra.mxu0 %v5628
      %7384 = vmatprep.subr.bf16.mxu0 0
      %7385 = vmatpush1.bf16.msra.mxu0 %v5627
      %7386 = vmatprep.subr.bf16.mxu0 0
      %7387 = vmatpush1.bf16.msra.mxu0 %v5626
      %7388 = vmatprep.subr.bf16.mxu0 0
      %7389 = vmatpush1.bf16.msra.mxu0 %v5625
      %7390 = vmatprep.subr.bf16.mxu0 0
      %7391 = vmatpush1.bf16.msra.mxu0 %v5624
      %7392 = vmatprep.subr.bf16.mxu0 0
      %7393 = vmatpush1.bf16.msra.mxu0 %v5623
      %7394 = vmatprep.subr.bf16.mxu0 0
      %7395 = vmatpush1.bf16.msra.mxu0 %v5622
      %7396 = vmatprep.subr.bf16.mxu0 0
      %7397 = vmatpush1.bf16.msra.mxu0 %v5621
      %7398 = vmatprep.subr.bf16.mxu0 0
      %7399 = vmatpush2.bf16.msra.mxu0 %v5636
      %7400 = vmatprep.subr.bf16.mxu0 0
      %7401 = vmatpush2.bf16.msra.mxu0 %v5635
      %7402 = vmatprep.subr.bf16.mxu0 0
      %7403 = vmatpush2.bf16.msra.mxu0 %v5634
      %7404 = vmatprep.subr.bf16.mxu0 0
      %7405 = vmatpush2.bf16.msra.mxu0 %v5633
      %7406 = vmatprep.subr.bf16.mxu0 0
      %7407 = vmatpush2.bf16.msra.mxu0 %v5632
      %7408 = vmatprep.subr.bf16.mxu0 0
      %7409 = vmatpush2.bf16.msra.mxu0 %v5631
      %7410 = vmatprep.subr.bf16.mxu0 0
      %7411 = vmatpush2.bf16.msra.mxu0 %v5630
      %7412 = vmatprep.subr.bf16.mxu0 0
      %7413 = vmatpush2.bf16.msra.mxu0 %v5629
      %7414 = vmatprep.mubr.bf16.mxu0 %v2232
      %7415 = vmatmul.mubr.bf16.gmra.mxu0 %v2231
      %v7416 = vpop.f32.mrf.mxu0
      %v7417 = vadd.f32 %v7376, %v7416
      %v7418 = vpop.f32.mrf.mxu0
      %v7419 = vpop.f32.mrf.mxu0
      %v7420 = vadd.f32 %v7379, %v7419
      %v7421 = vpop.f32.mrf.mxu0
      %7422 = vdwg.mxu0
      %7423 = vmatprep.subr.bf16.mxu0 0
      %7424 = vmatpush1.bf16.msra.mxu0 %v5644
      %7425 = vmatprep.subr.bf16.mxu0 0
      %7426 = vmatpush1.bf16.msra.mxu0 %v5643
      %7427 = vmatprep.subr.bf16.mxu0 0
      %7428 = vmatpush1.bf16.msra.mxu0 %v5642
      %7429 = vmatprep.subr.bf16.mxu0 0
      %7430 = vmatpush1.bf16.msra.mxu0 %v5641
      %7431 = vmatprep.subr.bf16.mxu0 0
      %7432 = vmatpush1.bf16.msra.mxu0 %v5640
      %7433 = vmatprep.subr.bf16.mxu0 0
      %7434 = vmatpush1.bf16.msra.mxu0 %v5639
      %7435 = vmatprep.subr.bf16.mxu0 0
      %7436 = vmatpush1.bf16.msra.mxu0 %v5638
      %7437 = vmatprep.subr.bf16.mxu0 0
      %7438 = vmatpush1.bf16.msra.mxu0 %v5637
      %7439 = vmatprep.subr.bf16.mxu0 0
      %7440 = vmatpush2.bf16.msra.mxu0 %v5652
      %7441 = vmatprep.subr.bf16.mxu0 0
      %7442 = vmatpush2.bf16.msra.mxu0 %v5651
      %7443 = vmatprep.subr.bf16.mxu0 0
      %7444 = vmatpush2.bf16.msra.mxu0 %v5650
      %7445 = vmatprep.subr.bf16.mxu0 0
      %7446 = vmatpush2.bf16.msra.mxu0 %v5649
      %7447 = vmatprep.subr.bf16.mxu0 0
      %7448 = vmatpush2.bf16.msra.mxu0 %v5648
      %7449 = vmatprep.subr.bf16.mxu0 0
      %7450 = vmatpush2.bf16.msra.mxu0 %v5647
      %7451 = vmatprep.subr.bf16.mxu0 0
      %7452 = vmatpush2.bf16.msra.mxu0 %v5646
      %7453 = vmatprep.subr.bf16.mxu0 0
      %7454 = vmatpush2.bf16.msra.mxu0 %v5645
      %7455 = vmatprep.mubr.bf16.mxu0 %v2234
      %7456 = vmatmul.mubr.bf16.gmra.mxu0 %v2233
      %v7457 = vpop.f32.mrf.mxu0
      %v7458 = vadd.f32 %v7417, %v7457
      %v7459 = vpop.f32.mrf.mxu0
      %v7460 = vpop.f32.mrf.mxu0
      %v7461 = vadd.f32 %v7420, %v7460
      %v7462 = vpop.f32.mrf.mxu0
      %7463 = vdwg.mxu0
      %7464 = vmatprep.subr.bf16.mxu0 0
      %7465 = vmatpush1.bf16.msra.mxu0 %v5660
      %7466 = vmatprep.subr.bf16.mxu0 0
      %7467 = vmatpush1.bf16.msra.mxu0 %v5659
      %7468 = vmatprep.subr.bf16.mxu0 0
      %7469 = vmatpush1.bf16.msra.mxu0 %v5658
      %7470 = vmatprep.subr.bf16.mxu0 0
      %7471 = vmatpush1.bf16.msra.mxu0 %v5657
      %7472 = vmatprep.subr.bf16.mxu0 0
      %7473 = vmatpush1.bf16.msra.mxu0 %v5656
      %7474 = vmatprep.subr.bf16.mxu0 0
      %7475 = vmatpush1.bf16.msra.mxu0 %v5655
      %7476 = vmatprep.subr.bf16.mxu0 0
      %7477 = vmatpush1.bf16.msra.mxu0 %v5654
      %7478 = vmatprep.subr.bf16.mxu0 0
      %7479 = vmatpush1.bf16.msra.mxu0 %v5653
      %7480 = vmatprep.subr.bf16.mxu0 0
      %7481 = vmatpush2.bf16.msra.mxu0 %v5668
      %7482 = vmatprep.subr.bf16.mxu0 0
      %7483 = vmatpush2.bf16.msra.mxu0 %v5667
      %7484 = vmatprep.subr.bf16.mxu0 0
      %7485 = vmatpush2.bf16.msra.mxu0 %v5666
      %7486 = vmatprep.subr.bf16.mxu0 0
      %7487 = vmatpush2.bf16.msra.mxu0 %v5665
      %7488 = vmatprep.subr.bf16.mxu0 0
      %7489 = vmatpush2.bf16.msra.mxu0 %v5664
      %7490 = vmatprep.subr.bf16.mxu0 0
      %7491 = vmatpush2.bf16.msra.mxu0 %v5663
      %7492 = vmatprep.subr.bf16.mxu0 0
      %7493 = vmatpush2.bf16.msra.mxu0 %v5662
      %7494 = vmatprep.subr.bf16.mxu0 0
      %7495 = vmatpush2.bf16.msra.mxu0 %v5661
      %7496 = vmatprep.mubr.bf16.mxu0 %v2236
      %7497 = vmatmul.mubr.bf16.gmra.mxu0 %v2235
      %v7498 = vpop.f32.mrf.mxu0
      %v7499 = vadd.f32 %v7458, %v7498
      %v7500 = vpop.f32.mrf.mxu0
      %v7501 = vpop.f32.mrf.mxu0
      %v7502 = vadd.f32 %v7461, %v7501
      %v7503 = vpop.f32.mrf.mxu0
      %7504 = vdwg.mxu0
      %7505 = vmatprep.subr.bf16.mxu0 0
      %7506 = vmatpush1.bf16.msra.mxu0 %v5676
      %7507 = vmatprep.subr.bf16.mxu0 0
      %7508 = vmatpush1.bf16.msra.mxu0 %v5675
      %7509 = vmatprep.subr.bf16.mxu0 0
      %7510 = vmatpush1.bf16.msra.mxu0 %v5674
      %7511 = vmatprep.subr.bf16.mxu0 0
      %7512 = vmatpush1.bf16.msra.mxu0 %v5673
      %7513 = vmatprep.subr.bf16.mxu0 0
      %7514 = vmatpush1.bf16.msra.mxu0 %v5672
      %7515 = vmatprep.subr.bf16.mxu0 0
      %7516 = vmatpush1.bf16.msra.mxu0 %v5671
      %7517 = vmatprep.subr.bf16.mxu0 0
      %7518 = vmatpush1.bf16.msra.mxu0 %v5670
      %7519 = vmatprep.subr.bf16.mxu0 0
      %7520 = vmatpush1.bf16.msra.mxu0 %v5669
      %7521 = vmatprep.subr.bf16.mxu0 0
      %7522 = vmatpush2.bf16.msra.mxu0 %v5684
      %7523 = vmatprep.subr.bf16.mxu0 0
      %7524 = vmatpush2.bf16.msra.mxu0 %v5683
      %7525 = vmatprep.subr.bf16.mxu0 0
      %7526 = vmatpush2.bf16.msra.mxu0 %v5682
      %7527 = vmatprep.subr.bf16.mxu0 0
      %7528 = vmatpush2.bf16.msra.mxu0 %v5681
      %7529 = vmatprep.subr.bf16.mxu0 0
      %7530 = vmatpush2.bf16.msra.mxu0 %v5680
      %7531 = vmatprep.subr.bf16.mxu0 0
      %7532 = vmatpush2.bf16.msra.mxu0 %v5679
      %7533 = vmatprep.subr.bf16.mxu0 0
      %7534 = vmatpush2.bf16.msra.mxu0 %v5678
      %7535 = vmatprep.subr.bf16.mxu0 0
      %7536 = vmatpush2.bf16.msra.mxu0 %v5677
      %7537 = vmatprep.mubr.bf16.mxu0 %v2238
      %7538 = vmatmul.mubr.bf16.gmra.mxu0 %v2237
      %v7539 = vpop.f32.mrf.mxu0
      %v7540 = vadd.f32 %v7499, %v7539
      %v7541 = vpop.f32.mrf.mxu0
      %v7542 = vpop.f32.mrf.mxu0
      %v7543 = vadd.f32 %v7502, %v7542
      %v7544 = vpop.f32.mrf.mxu0
      %7545 = vdwg.mxu0
      %7546 = vmatprep.subr.bf16.mxu0 0
      %7547 = vmatpush1.bf16.msra.mxu0 %v5692
      %7548 = vmatprep.subr.bf16.mxu0 0
      %7549 = vmatpush1.bf16.msra.mxu0 %v5691
      %7550 = vmatprep.subr.bf16.mxu0 0
      %7551 = vmatpush1.bf16.msra.mxu0 %v5690
      %7552 = vmatprep.subr.bf16.mxu0 0
      %7553 = vmatpush1.bf16.msra.mxu0 %v5689
      %7554 = vmatprep.subr.bf16.mxu0 0
      %7555 = vmatpush1.bf16.msra.mxu0 %v5688
      %7556 = vmatprep.subr.bf16.mxu0 0
      %7557 = vmatpush1.bf16.msra.mxu0 %v5687
      %7558 = vmatprep.subr.bf16.mxu0 0
      %7559 = vmatpush1.bf16.msra.mxu0 %v5686
      %7560 = vmatprep.subr.bf16.mxu0 0
      %7561 = vmatpush1.bf16.msra.mxu0 %v5685
      %7562 = vmatprep.subr.bf16.mxu0 0
      %7563 = vmatpush2.bf16.msra.mxu0 %v5700
      %7564 = vmatprep.subr.bf16.mxu0 0
      %7565 = vmatpush2.bf16.msra.mxu0 %v5699
      %7566 = vmatprep.subr.bf16.mxu0 0
      %7567 = vmatpush2.bf16.msra.mxu0 %v5698
      %7568 = vmatprep.subr.bf16.mxu0 0
      %7569 = vmatpush2.bf16.msra.mxu0 %v5697
      %7570 = vmatprep.subr.bf16.mxu0 0
      %7571 = vmatpush2.bf16.msra.mxu0 %v5696
      %7572 = vmatprep.subr.bf16.mxu0 0
      %7573 = vmatpush2.bf16.msra.mxu0 %v5695
      %7574 = vmatprep.subr.bf16.mxu0 0
      %7575 = vmatpush2.bf16.msra.mxu0 %v5694
      %7576 = vmatprep.subr.bf16.mxu0 0
      %7577 = vmatpush2.bf16.msra.mxu0 %v5693
      %7578 = vmatprep.mubr.bf16.mxu0 %v2240
      %7579 = vmatmul.mubr.bf16.gmra.mxu0 %v2239
      %v7580 = vpop.f32.mrf.mxu0
      %v7581 = vadd.f32 %v7540, %v7580
      %v7582 = vpop.f32.mrf.mxu0
      %v7583 = vpop.f32.mrf.mxu0
      %v7584 = vadd.f32 %v7543, %v7583
      %v7585 = vpop.f32.mrf.mxu0
      %7586 = vdwg.mxu0
      %7587 = vmatprep.subr.bf16.mxu0 0
      %7588 = vmatpush1.bf16.msra.mxu0 %v5708
      %7589 = vmatprep.subr.bf16.mxu0 0
      %7590 = vmatpush1.bf16.msra.mxu0 %v5707
      %7591 = vmatprep.subr.bf16.mxu0 0
      %7592 = vmatpush1.bf16.msra.mxu0 %v5706
      %7593 = vmatprep.subr.bf16.mxu0 0
      %7594 = vmatpush1.bf16.msra.mxu0 %v5705
      %7595 = vmatprep.subr.bf16.mxu0 0
      %7596 = vmatpush1.bf16.msra.mxu0 %v5704
      %7597 = vmatprep.subr.bf16.mxu0 0
      %7598 = vmatpush1.bf16.msra.mxu0 %v5703
      %7599 = vmatprep.subr.bf16.mxu0 0
      %7600 = vmatpush1.bf16.msra.mxu0 %v5702
      %7601 = vmatprep.subr.bf16.mxu0 0
      %7602 = vmatpush1.bf16.msra.mxu0 %v5701
      %7603 = vmatprep.subr.bf16.mxu0 0
      %7604 = vmatpush2.bf16.msra.mxu0 %v5716
      %7605 = vmatprep.subr.bf16.mxu0 0
      %7606 = vmatpush2.bf16.msra.mxu0 %v5715
      %7607 = vmatprep.subr.bf16.mxu0 0
      %7608 = vmatpush2.bf16.msra.mxu0 %v5714
      %7609 = vmatprep.subr.bf16.mxu0 0
      %7610 = vmatpush2.bf16.msra.mxu0 %v5713
      %7611 = vmatprep.subr.bf16.mxu0 0
      %7612 = vmatpush2.bf16.msra.mxu0 %v5712
      %7613 = vmatprep.subr.bf16.mxu0 0
      %7614 = vmatpush2.bf16.msra.mxu0 %v5711
      %7615 = vmatprep.subr.bf16.mxu0 0
      %7616 = vmatpush2.bf16.msra.mxu0 %v5710
      %7617 = vmatprep.subr.bf16.mxu0 0
      %7618 = vmatpush2.bf16.msra.mxu0 %v5709
      %7619 = vmatprep.mubr.bf16.mxu0 %v2242
      %7620 = vmatmul.mubr.bf16.gmra.mxu0 %v2241
      %v7621 = vpop.f32.mrf.mxu0
      %v7622 = vadd.f32 %v7581, %v7621
      %v7623 = vpop.f32.mrf.mxu0
      %v7624 = vpop.f32.mrf.mxu0
      %v7625 = vadd.f32 %v7584, %v7624
      %v7626 = vpop.f32.mrf.mxu0
      %7627 = vdwg.mxu0
      %7628 = vmatprep.subr.bf16.mxu0 0
      %7629 = vmatpush1.bf16.msra.mxu0 %v5724
      %7630 = vmatprep.subr.bf16.mxu0 0
      %7631 = vmatpush1.bf16.msra.mxu0 %v5723
      %7632 = vmatprep.subr.bf16.mxu0 0
      %7633 = vmatpush1.bf16.msra.mxu0 %v5722
      %7634 = vmatprep.subr.bf16.mxu0 0
      %7635 = vmatpush1.bf16.msra.mxu0 %v5721
      %7636 = vmatprep.subr.bf16.mxu0 0
      %7637 = vmatpush1.bf16.msra.mxu0 %v5720
      %7638 = vmatprep.subr.bf16.mxu0 0
      %7639 = vmatpush1.bf16.msra.mxu0 %v5719
      %7640 = vmatprep.subr.bf16.mxu0 0
      %7641 = vmatpush1.bf16.msra.mxu0 %v5718
      %7642 = vmatprep.subr.bf16.mxu0 0
      %7643 = vmatpush1.bf16.msra.mxu0 %v5717
      %7644 = vmatprep.subr.bf16.mxu0 0
      %7645 = vmatpush2.bf16.msra.mxu0 %v5732
      %7646 = vmatprep.subr.bf16.mxu0 0
      %7647 = vmatpush2.bf16.msra.mxu0 %v5731
      %7648 = vmatprep.subr.bf16.mxu0 0
      %7649 = vmatpush2.bf16.msra.mxu0 %v5730
      %7650 = vmatprep.subr.bf16.mxu0 0
      %7651 = vmatpush2.bf16.msra.mxu0 %v5729
      %7652 = vmatprep.subr.bf16.mxu0 0
      %7653 = vmatpush2.bf16.msra.mxu0 %v5728
      %7654 = vmatprep.subr.bf16.mxu0 0
      %7655 = vmatpush2.bf16.msra.mxu0 %v5727
      %7656 = vmatprep.subr.bf16.mxu0 0
      %7657 = vmatpush2.bf16.msra.mxu0 %v5726
      %7658 = vmatprep.subr.bf16.mxu0 0
      %7659 = vmatpush2.bf16.msra.mxu0 %v5725
      %7660 = vmatprep.mubr.bf16.mxu0 %v2244
      %7661 = vmatmul.mubr.bf16.gmra.mxu0 %v2243
      %v7662 = vpop.f32.mrf.mxu0
      %v7663 = vadd.f32 %v7622, %v7662
      %v7664 = vpop.f32.mrf.mxu0
      %v7665 = vpop.f32.mrf.mxu0
      %v7666 = vadd.f32 %v7625, %v7665
      %v7667 = vpop.f32.mrf.mxu0
      %7668 = vdwg.mxu0
      %7669 = vmatprep.subr.bf16.mxu0 0
      %7670 = vmatpush1.bf16.msra.mxu0 %v5740
      %7671 = vmatprep.subr.bf16.mxu0 0
      %7672 = vmatpush1.bf16.msra.mxu0 %v5739
      %7673 = vmatprep.subr.bf16.mxu0 0
      %7674 = vmatpush1.bf16.msra.mxu0 %v5738
      %7675 = vmatprep.subr.bf16.mxu0 0
      %7676 = vmatpush1.bf16.msra.mxu0 %v5737
      %7677 = vmatprep.subr.bf16.mxu0 0
      %7678 = vmatpush1.bf16.msra.mxu0 %v5736
      %7679 = vmatprep.subr.bf16.mxu0 0
      %7680 = vmatpush1.bf16.msra.mxu0 %v5735
      %7681 = vmatprep.subr.bf16.mxu0 0
      %7682 = vmatpush1.bf16.msra.mxu0 %v5734
      %7683 = vmatprep.subr.bf16.mxu0 0
      %7684 = vmatpush1.bf16.msra.mxu0 %v5733
      %7685 = vmatprep.subr.bf16.mxu0 0
      %7686 = vmatpush2.bf16.msra.mxu0 %v5748
      %7687 = vmatprep.subr.bf16.mxu0 0
      %7688 = vmatpush2.bf16.msra.mxu0 %v5747
      %7689 = vmatprep.subr.bf16.mxu0 0
      %7690 = vmatpush2.bf16.msra.mxu0 %v5746
      %7691 = vmatprep.subr.bf16.mxu0 0
      %7692 = vmatpush2.bf16.msra.mxu0 %v5745
      %7693 = vmatprep.subr.bf16.mxu0 0
      %7694 = vmatpush2.bf16.msra.mxu0 %v5744
      %7695 = vmatprep.subr.bf16.mxu0 0
      %7696 = vmatpush2.bf16.msra.mxu0 %v5743
      %7697 = vmatprep.subr.bf16.mxu0 0
      %7698 = vmatpush2.bf16.msra.mxu0 %v5742
      %7699 = vmatprep.subr.bf16.mxu0 0
      %7700 = vmatpush2.bf16.msra.mxu0 %v5741
      %7701 = vmatprep.mubr.bf16.mxu0 %v2246
      %7702 = vmatmul.mubr.bf16.gmra.mxu0 %v2245
      %v7703 = vpop.f32.mrf.mxu0
      %v7704 = vadd.f32 %v7663, %v7703
      %v7705 = vpop.f32.mrf.mxu0
      %v7706 = vpop.f32.mrf.mxu0
      %v7707 = vadd.f32 %v7666, %v7706
      %v7708 = vpop.f32.mrf.mxu0
      %7709 = vdwg.mxu0
      %7710 = vmatprep.subr.bf16.mxu0 0
      %7711 = vmatpush1.bf16.msra.mxu0 %v5756
      %7712 = vmatprep.subr.bf16.mxu0 0
      %7713 = vmatpush1.bf16.msra.mxu0 %v5755
      %7714 = vmatprep.subr.bf16.mxu0 0
      %7715 = vmatpush1.bf16.msra.mxu0 %v5754
      %7716 = vmatprep.subr.bf16.mxu0 0
      %7717 = vmatpush1.bf16.msra.mxu0 %v5753
      %7718 = vmatprep.subr.bf16.mxu0 0
      %7719 = vmatpush1.bf16.msra.mxu0 %v5752
      %7720 = vmatprep.subr.bf16.mxu0 0
      %7721 = vmatpush1.bf16.msra.mxu0 %v5751
      %7722 = vmatprep.subr.bf16.mxu0 0
      %7723 = vmatpush1.bf16.msra.mxu0 %v5750
      %7724 = vmatprep.subr.bf16.mxu0 0
      %7725 = vmatpush1.bf16.msra.mxu0 %v5749
      %7726 = vmatprep.subr.bf16.mxu0 0
      %7727 = vmatpush2.bf16.msra.mxu0 %v5764
      %7728 = vmatprep.subr.bf16.mxu0 0
      %7729 = vmatpush2.bf16.msra.mxu0 %v5763
      %7730 = vmatprep.subr.bf16.mxu0 0
      %7731 = vmatpush2.bf16.msra.mxu0 %v5762
      %7732 = vmatprep.subr.bf16.mxu0 0
      %7733 = vmatpush2.bf16.msra.mxu0 %v5761
      %7734 = vmatprep.subr.bf16.mxu0 0
      %7735 = vmatpush2.bf16.msra.mxu0 %v5760
      %7736 = vmatprep.subr.bf16.mxu0 0
      %7737 = vmatpush2.bf16.msra.mxu0 %v5759
      %7738 = vmatprep.subr.bf16.mxu0 0
      %7739 = vmatpush2.bf16.msra.mxu0 %v5758
      %7740 = vmatprep.subr.bf16.mxu0 0
      %7741 = vmatpush2.bf16.msra.mxu0 %v5757
      %7742 = vmatprep.mubr.bf16.mxu0 %v2248
      %7743 = vmatmul.mubr.bf16.gmra.mxu0 %v2247
      %v7744 = vpop.f32.mrf.mxu0
      %v7745 = vadd.f32 %v7704, %v7744
      %v7746 = vpop.f32.mrf.mxu0
      %v7747 = vpop.f32.mrf.mxu0
      %v7748 = vadd.f32 %v7707, %v7747
      %v7749 = vpop.f32.mrf.mxu0
      %7750 = vdwg.mxu0
      %7751 = vmatprep.subr.bf16.mxu0 0
      %7752 = vmatpush1.bf16.msra.mxu0 %v5772
      %7753 = vmatprep.subr.bf16.mxu0 0
      %7754 = vmatpush1.bf16.msra.mxu0 %v5771
      %7755 = vmatprep.subr.bf16.mxu0 0
      %7756 = vmatpush1.bf16.msra.mxu0 %v5770
      %7757 = vmatprep.subr.bf16.mxu0 0
      %7758 = vmatpush1.bf16.msra.mxu0 %v5769
      %7759 = vmatprep.subr.bf16.mxu0 0
      %7760 = vmatpush1.bf16.msra.mxu0 %v5768
      %7761 = vmatprep.subr.bf16.mxu0 0
      %7762 = vmatpush1.bf16.msra.mxu0 %v5767
      %7763 = vmatprep.subr.bf16.mxu0 0
      %7764 = vmatpush1.bf16.msra.mxu0 %v5766
      %7765 = vmatprep.subr.bf16.mxu0 0
      %7766 = vmatpush1.bf16.msra.mxu0 %v5765
      %7767 = vmatprep.subr.bf16.mxu0 0
      %7768 = vmatpush2.bf16.msra.mxu0 %v5780
      %7769 = vmatprep.subr.bf16.mxu0 0
      %7770 = vmatpush2.bf16.msra.mxu0 %v5779
      %7771 = vmatprep.subr.bf16.mxu0 0
      %7772 = vmatpush2.bf16.msra.mxu0 %v5778
      %7773 = vmatprep.subr.bf16.mxu0 0
      %7774 = vmatpush2.bf16.msra.mxu0 %v5777
      %7775 = vmatprep.subr.bf16.mxu0 0
      %7776 = vmatpush2.bf16.msra.mxu0 %v5776
      %7777 = vmatprep.subr.bf16.mxu0 0
      %7778 = vmatpush2.bf16.msra.mxu0 %v5775
      %7779 = vmatprep.subr.bf16.mxu0 0
      %7780 = vmatpush2.bf16.msra.mxu0 %v5774
      %7781 = vmatprep.subr.bf16.mxu0 0
      %7782 = vmatpush2.bf16.msra.mxu0 %v5773
      %7783 = vmatprep.mubr.bf16.mxu0 %v2250
      %7784 = vmatmul.mubr.bf16.gmra.mxu0 %v2249
      %v7785 = vpop.f32.mrf.mxu0
      %v7786 = vadd.f32 %v7745, %v7785
      %v7787 = vpop.f32.mrf.mxu0
      %v7788 = vpop.f32.mrf.mxu0
      %v7789 = vadd.f32 %v7748, %v7788
      %v7790 = vpop.f32.mrf.mxu0
      %7791 = vdwg.mxu0
      %7792 = vmatprep.subr.bf16.mxu0 0
      %7793 = vmatpush1.bf16.msra.mxu0 %v5788
      %7794 = vmatprep.subr.bf16.mxu0 0
      %7795 = vmatpush1.bf16.msra.mxu0 %v5787
      %7796 = vmatprep.subr.bf16.mxu0 0
      %7797 = vmatpush1.bf16.msra.mxu0 %v5786
      %7798 = vmatprep.subr.bf16.mxu0 0
      %7799 = vmatpush1.bf16.msra.mxu0 %v5785
      %7800 = vmatprep.subr.bf16.mxu0 0
      %7801 = vmatpush1.bf16.msra.mxu0 %v5784
      %7802 = vmatprep.subr.bf16.mxu0 0
      %7803 = vmatpush1.bf16.msra.mxu0 %v5783
      %7804 = vmatprep.subr.bf16.mxu0 0
      %7805 = vmatpush1.bf16.msra.mxu0 %v5782
      %7806 = vmatprep.subr.bf16.mxu0 0
      %7807 = vmatpush1.bf16.msra.mxu0 %v5781
      %7808 = vmatprep.subr.bf16.mxu0 0
      %7809 = vmatpush2.bf16.msra.mxu0 %v5796
      %7810 = vmatprep.subr.bf16.mxu0 0
      %7811 = vmatpush2.bf16.msra.mxu0 %v5795
      %7812 = vmatprep.subr.bf16.mxu0 0
      %7813 = vmatpush2.bf16.msra.mxu0 %v5794
      %7814 = vmatprep.subr.bf16.mxu0 0
      %7815 = vmatpush2.bf16.msra.mxu0 %v5793
      %7816 = vmatprep.subr.bf16.mxu0 0
      %7817 = vmatpush2.bf16.msra.mxu0 %v5792
      %7818 = vmatprep.subr.bf16.mxu0 0
      %7819 = vmatpush2.bf16.msra.mxu0 %v5791
      %7820 = vmatprep.subr.bf16.mxu0 0
      %7821 = vmatpush2.bf16.msra.mxu0 %v5790
      %7822 = vmatprep.subr.bf16.mxu0 0
      %7823 = vmatpush2.bf16.msra.mxu0 %v5789
      %7824 = vmatprep.mubr.bf16.mxu0 %v2252
      %7825 = vmatmul.mubr.bf16.gmra.mxu0 %v2251
      %v7826 = vpop.f32.mrf.mxu0
      %v7827 = vadd.f32 %v7786, %v7826
      %v7828 = vpop.f32.mrf.mxu0
      %v7829 = vpop.f32.mrf.mxu0
      %v7830 = vadd.f32 %v7789, %v7829
      %v7831 = vpop.f32.mrf.mxu0
      %7832 = vdwg.mxu0
      %7833 = vmatprep.subr.bf16.mxu0 0
      %7834 = vmatpush1.bf16.msra.mxu0 %v5804
      %7835 = vmatprep.subr.bf16.mxu0 0
      %7836 = vmatpush1.bf16.msra.mxu0 %v5803
      %7837 = vmatprep.subr.bf16.mxu0 0
      %7838 = vmatpush1.bf16.msra.mxu0 %v5802
      %7839 = vmatprep.subr.bf16.mxu0 0
      %7840 = vmatpush1.bf16.msra.mxu0 %v5801
      %7841 = vmatprep.subr.bf16.mxu0 0
      %7842 = vmatpush1.bf16.msra.mxu0 %v5800
      %7843 = vmatprep.subr.bf16.mxu0 0
      %7844 = vmatpush1.bf16.msra.mxu0 %v5799
      %7845 = vmatprep.subr.bf16.mxu0 0
      %7846 = vmatpush1.bf16.msra.mxu0 %v5798
      %7847 = vmatprep.subr.bf16.mxu0 0
      %7848 = vmatpush1.bf16.msra.mxu0 %v5797
      %7849 = vmatprep.subr.bf16.mxu0 0
      %7850 = vmatpush2.bf16.msra.mxu0 %v5812
      %7851 = vmatprep.subr.bf16.mxu0 0
      %7852 = vmatpush2.bf16.msra.mxu0 %v5811
      %7853 = vmatprep.subr.bf16.mxu0 0
      %7854 = vmatpush2.bf16.msra.mxu0 %v5810
      %7855 = vmatprep.subr.bf16.mxu0 0
      %7856 = vmatpush2.bf16.msra.mxu0 %v5809
      %7857 = vmatprep.subr.bf16.mxu0 0
      %7858 = vmatpush2.bf16.msra.mxu0 %v5808
      %7859 = vmatprep.subr.bf16.mxu0 0
      %7860 = vmatpush2.bf16.msra.mxu0 %v5807
      %7861 = vmatprep.subr.bf16.mxu0 0
      %7862 = vmatpush2.bf16.msra.mxu0 %v5806
      %7863 = vmatprep.subr.bf16.mxu0 0
      %7864 = vmatpush2.bf16.msra.mxu0 %v5805
      %7865 = vmatprep.mubr.bf16.mxu0 %v2254
      %7866 = vmatmul.mubr.bf16.gmra.mxu0 %v2253
      %v7867 = vpop.f32.mrf.mxu0
      %v7868 = vadd.f32 %v7827, %v7867
      %v7869 = vpop.f32.mrf.mxu0
      %v7870 = vpop.f32.mrf.mxu0
      %v7871 = vadd.f32 %v7830, %v7870
      %v7872 = vpop.f32.mrf.mxu0
      %7873 = vdwg.mxu0
      %7874 = vmatprep.subr.bf16.mxu0 0
      %7875 = vmatpush1.bf16.msra.mxu0 %v5820
      %7876 = vmatprep.subr.bf16.mxu0 0
      %7877 = vmatpush1.bf16.msra.mxu0 %v5819
      %7878 = vmatprep.subr.bf16.mxu0 0
      %7879 = vmatpush1.bf16.msra.mxu0 %v5818
      %7880 = vmatprep.subr.bf16.mxu0 0
      %7881 = vmatpush1.bf16.msra.mxu0 %v5817
      %7882 = vmatprep.subr.bf16.mxu0 0
      %7883 = vmatpush1.bf16.msra.mxu0 %v5816
      %7884 = vmatprep.subr.bf16.mxu0 0
      %7885 = vmatpush1.bf16.msra.mxu0 %v5815
      %7886 = vmatprep.subr.bf16.mxu0 0
      %7887 = vmatpush1.bf16.msra.mxu0 %v5814
      %7888 = vmatprep.subr.bf16.mxu0 0
      %7889 = vmatpush1.bf16.msra.mxu0 %v5813
      %7890 = vmatprep.subr.bf16.mxu0 0
      %7891 = vmatpush2.bf16.msra.mxu0 %v5828
      %7892 = vmatprep.subr.bf16.mxu0 0
      %7893 = vmatpush2.bf16.msra.mxu0 %v5827
      %7894 = vmatprep.subr.bf16.mxu0 0
      %7895 = vmatpush2.bf16.msra.mxu0 %v5826
      %7896 = vmatprep.subr.bf16.mxu0 0
      %7897 = vmatpush2.bf16.msra.mxu0 %v5825
      %7898 = vmatprep.subr.bf16.mxu0 0
      %7899 = vmatpush2.bf16.msra.mxu0 %v5824
      %7900 = vmatprep.subr.bf16.mxu0 0
      %7901 = vmatpush2.bf16.msra.mxu0 %v5823
      %7902 = vmatprep.subr.bf16.mxu0 0
      %7903 = vmatpush2.bf16.msra.mxu0 %v5822
      %7904 = vmatprep.subr.bf16.mxu0 0
      %7905 = vmatpush2.bf16.msra.mxu0 %v5821
      %7906 = vmatprep.mubr.bf16.mxu0 %v2256
      %7907 = vmatmul.mubr.bf16.gmra.mxu0 %v2255
      %v7908 = vpop.f32.mrf.mxu0
      %v7909 = vadd.f32 %v7868, %v7908
      %v7910 = vpop.f32.mrf.mxu0
      %v7911 = vpop.f32.mrf.mxu0
      %v7912 = vadd.f32 %v7871, %v7911
      %v7913 = vpop.f32.mrf.mxu0
      %7914 = vdwg.mxu0
      %7915 = vmatprep.subr.bf16.mxu0 0
      %7916 = vmatpush1.bf16.msra.mxu0 %v5836
      %7917 = vmatprep.subr.bf16.mxu0 0
      %7918 = vmatpush1.bf16.msra.mxu0 %v5835
      %7919 = vmatprep.subr.bf16.mxu0 0
      %7920 = vmatpush1.bf16.msra.mxu0 %v5834
      %7921 = vmatprep.subr.bf16.mxu0 0
      %7922 = vmatpush1.bf16.msra.mxu0 %v5833
      %7923 = vmatprep.subr.bf16.mxu0 0
      %7924 = vmatpush1.bf16.msra.mxu0 %v5832
      %7925 = vmatprep.subr.bf16.mxu0 0
      %7926 = vmatpush1.bf16.msra.mxu0 %v5831
      %7927 = vmatprep.subr.bf16.mxu0 0
      %7928 = vmatpush1.bf16.msra.mxu0 %v5830
      %7929 = vmatprep.subr.bf16.mxu0 0
      %7930 = vmatpush1.bf16.msra.mxu0 %v5829
      %7931 = vmatprep.subr.bf16.mxu0 0
      %7932 = vmatpush2.bf16.msra.mxu0 %v5844
      %7933 = vmatprep.subr.bf16.mxu0 0
      %7934 = vmatpush2.bf16.msra.mxu0 %v5843
      %7935 = vmatprep.subr.bf16.mxu0 0
      %7936 = vmatpush2.bf16.msra.mxu0 %v5842
      %7937 = vmatprep.subr.bf16.mxu0 0
      %7938 = vmatpush2.bf16.msra.mxu0 %v5841
      %7939 = vmatprep.subr.bf16.mxu0 0
      %7940 = vmatpush2.bf16.msra.mxu0 %v5840
      %7941 = vmatprep.subr.bf16.mxu0 0
      %7942 = vmatpush2.bf16.msra.mxu0 %v5839
      %7943 = vmatprep.subr.bf16.mxu0 0
      %7944 = vmatpush2.bf16.msra.mxu0 %v5838
      %7945 = vmatprep.subr.bf16.mxu0 0
      %7946 = vmatpush2.bf16.msra.mxu0 %v5837
      %7947 = vmatprep.mubr.bf16.mxu0 %v2258
      %7948 = vmatmul.mubr.bf16.gmra.mxu0 %v2257
      %v7949 = vpop.f32.mrf.mxu0
      %v7950 = vadd.f32 %v7909, %v7949
      %v7951 = vpop.f32.mrf.mxu0
      %v7952 = vpop.f32.mrf.mxu0
      %v7953 = vadd.f32 %v7912, %v7952
      %v7954 = vpop.f32.mrf.mxu0
      %7955 = vdwg.mxu0
      %7956 = vmatprep.subr.bf16.mxu0 0
      %7957 = vmatpush1.bf16.msra.mxu0 %v5852
      %7958 = vmatprep.subr.bf16.mxu0 0
      %7959 = vmatpush1.bf16.msra.mxu0 %v5851
      %7960 = vmatprep.subr.bf16.mxu0 0
      %7961 = vmatpush1.bf16.msra.mxu0 %v5850
      %7962 = vmatprep.subr.bf16.mxu0 0
      %7963 = vmatpush1.bf16.msra.mxu0 %v5849
      %7964 = vmatprep.subr.bf16.mxu0 0
      %7965 = vmatpush1.bf16.msra.mxu0 %v5848
      %7966 = vmatprep.subr.bf16.mxu0 0
      %7967 = vmatpush1.bf16.msra.mxu0 %v5847
      %7968 = vmatprep.subr.bf16.mxu0 0
      %7969 = vmatpush1.bf16.msra.mxu0 %v5846
      %7970 = vmatprep.subr.bf16.mxu0 0
      %7971 = vmatpush1.bf16.msra.mxu0 %v5845
      %7972 = vmatprep.subr.bf16.mxu0 0
      %7973 = vmatpush2.bf16.msra.mxu0 %v5860
      %7974 = vmatprep.subr.bf16.mxu0 0
      %7975 = vmatpush2.bf16.msra.mxu0 %v5859
      %7976 = vmatprep.subr.bf16.mxu0 0
      %7977 = vmatpush2.bf16.msra.mxu0 %v5858
      %7978 = vmatprep.subr.bf16.mxu0 0
      %7979 = vmatpush2.bf16.msra.mxu0 %v5857
      %7980 = vmatprep.subr.bf16.mxu0 0
      %7981 = vmatpush2.bf16.msra.mxu0 %v5856
      %7982 = vmatprep.subr.bf16.mxu0 0
      %7983 = vmatpush2.bf16.msra.mxu0 %v5855
      %7984 = vmatprep.subr.bf16.mxu0 0
      %7985 = vmatpush2.bf16.msra.mxu0 %v5854
      %7986 = vmatprep.subr.bf16.mxu0 0
      %7987 = vmatpush2.bf16.msra.mxu0 %v5853
      %7988 = vmatprep.mubr.bf16.mxu0 %v2260
      %7989 = vmatmul.mubr.bf16.gmra.mxu0 %v2259
      %v7990 = vpop.f32.mrf.mxu0
      %v7991 = vadd.f32 %v7950, %v7990
      %v7992 = vpop.f32.mrf.mxu0
      %v7993 = vpop.f32.mrf.mxu0
      %v7994 = vadd.f32 %v7953, %v7993
      %v7995 = vpop.f32.mrf.mxu0
      %7996 = vdwg.mxu0
      %7997 = vmatprep.subr.bf16.mxu0 0
      %7998 = vmatpush1.bf16.msra.mxu0 %v5868
      %7999 = vmatprep.subr.bf16.mxu0 0
      %8000 = vmatpush1.bf16.msra.mxu0 %v5867
      %8001 = vmatprep.subr.bf16.mxu0 0
      %8002 = vmatpush1.bf16.msra.mxu0 %v5866
      %8003 = vmatprep.subr.bf16.mxu0 0
      %8004 = vmatpush1.bf16.msra.mxu0 %v5865
      %8005 = vmatprep.subr.bf16.mxu0 0
      %8006 = vmatpush1.bf16.msra.mxu0 %v5864
      %8007 = vmatprep.subr.bf16.mxu0 0
      %8008 = vmatpush1.bf16.msra.mxu0 %v5863
      %8009 = vmatprep.subr.bf16.mxu0 0
      %8010 = vmatpush1.bf16.msra.mxu0 %v5862
      %8011 = vmatprep.subr.bf16.mxu0 0
      %8012 = vmatpush1.bf16.msra.mxu0 %v5861
      %8013 = vmatprep.subr.bf16.mxu0 0
      %8014 = vmatpush2.bf16.msra.mxu0 %v5876
      %8015 = vmatprep.subr.bf16.mxu0 0
      %8016 = vmatpush2.bf16.msra.mxu0 %v5875
      %8017 = vmatprep.subr.bf16.mxu0 0
      %8018 = vmatpush2.bf16.msra.mxu0 %v5874
      %8019 = vmatprep.subr.bf16.mxu0 0
      %8020 = vmatpush2.bf16.msra.mxu0 %v5873
      %8021 = vmatprep.subr.bf16.mxu0 0
      %8022 = vmatpush2.bf16.msra.mxu0 %v5872
      %8023 = vmatprep.subr.bf16.mxu0 0
      %8024 = vmatpush2.bf16.msra.mxu0 %v5871
      %8025 = vmatprep.subr.bf16.mxu0 0
      %8026 = vmatpush2.bf16.msra.mxu0 %v5870
      %8027 = vmatprep.subr.bf16.mxu0 0
      %8028 = vmatpush2.bf16.msra.mxu0 %v5869
      %8029 = vmatprep.mubr.bf16.mxu0 %v2262
      %8030 = vmatmul.mubr.bf16.gmra.mxu0 %v2261
      %v8031 = vpop.f32.mrf.mxu0
      %v8032 = vadd.f32 %v7991, %v8031
      %v8033 = vpop.f32.mrf.mxu0
      %v8034 = vpop.f32.mrf.mxu0
      %v8035 = vadd.f32 %v7994, %v8034
      %v8036 = vpop.f32.mrf.mxu0
      %8037 = vdwg.mxu0
      %8038 = vmatprep.subr.bf16.mxu0 0
      %8039 = vmatpush1.bf16.msra.mxu0 %v5884
      %8040 = vmatprep.subr.bf16.mxu0 0
      %8041 = vmatpush1.bf16.msra.mxu0 %v5883
      %8042 = vmatprep.subr.bf16.mxu0 0
      %8043 = vmatpush1.bf16.msra.mxu0 %v5882
      %8044 = vmatprep.subr.bf16.mxu0 0
      %8045 = vmatpush1.bf16.msra.mxu0 %v5881
      %8046 = vmatprep.subr.bf16.mxu0 0
      %8047 = vmatpush1.bf16.msra.mxu0 %v5880
      %8048 = vmatprep.subr.bf16.mxu0 0
      %8049 = vmatpush1.bf16.msra.mxu0 %v5879
      %8050 = vmatprep.subr.bf16.mxu0 0
      %8051 = vmatpush1.bf16.msra.mxu0 %v5878
      %8052 = vmatprep.subr.bf16.mxu0 0
      %8053 = vmatpush1.bf16.msra.mxu0 %v5877
      %8054 = vmatprep.subr.bf16.mxu0 0
      %8055 = vmatpush2.bf16.msra.mxu0 %v5892
      %8056 = vmatprep.subr.bf16.mxu0 0
      %8057 = vmatpush2.bf16.msra.mxu0 %v5891
      %8058 = vmatprep.subr.bf16.mxu0 0
      %8059 = vmatpush2.bf16.msra.mxu0 %v5890
      %8060 = vmatprep.subr.bf16.mxu0 0
      %8061 = vmatpush2.bf16.msra.mxu0 %v5889
      %8062 = vmatprep.subr.bf16.mxu0 0
      %8063 = vmatpush2.bf16.msra.mxu0 %v5888
      %8064 = vmatprep.subr.bf16.mxu0 0
      %8065 = vmatpush2.bf16.msra.mxu0 %v5887
      %8066 = vmatprep.subr.bf16.mxu0 0
      %8067 = vmatpush2.bf16.msra.mxu0 %v5886
      %8068 = vmatprep.subr.bf16.mxu0 0
      %8069 = vmatpush2.bf16.msra.mxu0 %v5885
      %8070 = vmatprep.mubr.bf16.mxu0 %v2264
      %8071 = vmatmul.mubr.bf16.gmra.mxu0 %v2263
      %v8072 = vpop.f32.mrf.mxu0
      %v8073 = vadd.f32 %v8032, %v8072
      %v8074 = vpop.f32.mrf.mxu0
      %v8075 = vpop.f32.mrf.mxu0
      %v8076 = vadd.f32 %v8035, %v8075
      %v8077 = vpop.f32.mrf.mxu0
      %8078 = vdwg.mxu0
      %8079 = vmatprep.subr.bf16.mxu0 0
      %8080 = vmatpush1.bf16.msra.mxu0 %v5900
      %8081 = vmatprep.subr.bf16.mxu0 0
      %8082 = vmatpush1.bf16.msra.mxu0 %v5899
      %8083 = vmatprep.subr.bf16.mxu0 0
      %8084 = vmatpush1.bf16.msra.mxu0 %v5898
      %8085 = vmatprep.subr.bf16.mxu0 0
      %8086 = vmatpush1.bf16.msra.mxu0 %v5897
      %8087 = vmatprep.subr.bf16.mxu0 0
      %8088 = vmatpush1.bf16.msra.mxu0 %v5896
      %8089 = vmatprep.subr.bf16.mxu0 0
      %8090 = vmatpush1.bf16.msra.mxu0 %v5895
      %8091 = vmatprep.subr.bf16.mxu0 0
      %8092 = vmatpush1.bf16.msra.mxu0 %v5894
      %8093 = vmatprep.subr.bf16.mxu0 0
      %8094 = vmatpush1.bf16.msra.mxu0 %v5893
      %8095 = vmatprep.subr.bf16.mxu0 0
      %8096 = vmatpush2.bf16.msra.mxu0 %v5908
      %8097 = vmatprep.subr.bf16.mxu0 0
      %8098 = vmatpush2.bf16.msra.mxu0 %v5907
      %8099 = vmatprep.subr.bf16.mxu0 0
      %8100 = vmatpush2.bf16.msra.mxu0 %v5906
      %8101 = vmatprep.subr.bf16.mxu0 0
      %8102 = vmatpush2.bf16.msra.mxu0 %v5905
      %8103 = vmatprep.subr.bf16.mxu0 0
      %8104 = vmatpush2.bf16.msra.mxu0 %v5904
      %8105 = vmatprep.subr.bf16.mxu0 0
      %8106 = vmatpush2.bf16.msra.mxu0 %v5903
      %8107 = vmatprep.subr.bf16.mxu0 0
      %8108 = vmatpush2.bf16.msra.mxu0 %v5902
      %8109 = vmatprep.subr.bf16.mxu0 0
      %8110 = vmatpush2.bf16.msra.mxu0 %v5901
      %8111 = vmatprep.mubr.bf16.mxu0 %v2266
      %8112 = vmatmul.mubr.bf16.gmra.mxu0 %v2265
      %v8113 = vpop.f32.mrf.mxu0
      %v8114 = vadd.f32 %v8073, %v8113
      %v8115 = vpop.f32.mrf.mxu0
      %v8116 = vpop.f32.mrf.mxu0
      %v8117 = vadd.f32 %v8076, %v8116
      %v8118 = vpop.f32.mrf.mxu0
      %8119 = vdwg.mxu0
      %8120 = vmatprep.subr.bf16.mxu0 0
      %8121 = vmatpush1.bf16.msra.mxu0 %v5916
      %8122 = vmatprep.subr.bf16.mxu0 0
      %8123 = vmatpush1.bf16.msra.mxu0 %v5915
      %8124 = vmatprep.subr.bf16.mxu0 0
      %8125 = vmatpush1.bf16.msra.mxu0 %v5914
      %8126 = vmatprep.subr.bf16.mxu0 0
      %8127 = vmatpush1.bf16.msra.mxu0 %v5913
      %8128 = vmatprep.subr.bf16.mxu0 0
      %8129 = vmatpush1.bf16.msra.mxu0 %v5912
      %8130 = vmatprep.subr.bf16.mxu0 0
      %8131 = vmatpush1.bf16.msra.mxu0 %v5911
      %8132 = vmatprep.subr.bf16.mxu0 0
      %8133 = vmatpush1.bf16.msra.mxu0 %v5910
      %8134 = vmatprep.subr.bf16.mxu0 0
      %8135 = vmatpush1.bf16.msra.mxu0 %v5909
      %8136 = vmatprep.subr.bf16.mxu0 0
      %8137 = vmatpush2.bf16.msra.mxu0 %v5924
      %8138 = vmatprep.subr.bf16.mxu0 0
      %8139 = vmatpush2.bf16.msra.mxu0 %v5923
      %8140 = vmatprep.subr.bf16.mxu0 0
      %8141 = vmatpush2.bf16.msra.mxu0 %v5922
      %8142 = vmatprep.subr.bf16.mxu0 0
      %8143 = vmatpush2.bf16.msra.mxu0 %v5921
      %8144 = vmatprep.subr.bf16.mxu0 0
      %8145 = vmatpush2.bf16.msra.mxu0 %v5920
      %8146 = vmatprep.subr.bf16.mxu0 0
      %8147 = vmatpush2.bf16.msra.mxu0 %v5919
      %8148 = vmatprep.subr.bf16.mxu0 0
      %8149 = vmatpush2.bf16.msra.mxu0 %v5918
      %8150 = vmatprep.subr.bf16.mxu0 0
      %8151 = vmatpush2.bf16.msra.mxu0 %v5917
      %8152 = vmatprep.mubr.bf16.mxu0 %v2268
      %8153 = vmatmul.mubr.bf16.gmra.mxu0 %v2267
      %v8154 = vpop.f32.mrf.mxu0
      %v8155 = vadd.f32 %v8114, %v8154
      %v8156 = vpop.f32.mrf.mxu0
      %v8157 = vpop.f32.mrf.mxu0
      %v8158 = vadd.f32 %v8117, %v8157
      %v8159 = vpop.f32.mrf.mxu0
      %8160 = vdwg.mxu0
      %8161 = vmatprep.subr.bf16.mxu0 0
      %8162 = vmatpush1.bf16.msra.mxu0 %v5932
      %8163 = vmatprep.subr.bf16.mxu0 0
      %8164 = vmatpush1.bf16.msra.mxu0 %v5931
      %8165 = vmatprep.subr.bf16.mxu0 0
      %8166 = vmatpush1.bf16.msra.mxu0 %v5930
      %8167 = vmatprep.subr.bf16.mxu0 0
      %8168 = vmatpush1.bf16.msra.mxu0 %v5929
      %8169 = vmatprep.subr.bf16.mxu0 0
      %8170 = vmatpush1.bf16.msra.mxu0 %v5928
      %8171 = vmatprep.subr.bf16.mxu0 0
      %8172 = vmatpush1.bf16.msra.mxu0 %v5927
      %8173 = vmatprep.subr.bf16.mxu0 0
      %8174 = vmatpush1.bf16.msra.mxu0 %v5926
      %8175 = vmatprep.subr.bf16.mxu0 0
      %8176 = vmatpush1.bf16.msra.mxu0 %v5925
      %8177 = vmatprep.subr.bf16.mxu0 0
      %8178 = vmatpush2.bf16.msra.mxu0 %v5940
      %8179 = vmatprep.subr.bf16.mxu0 0
      %8180 = vmatpush2.bf16.msra.mxu0 %v5939
      %8181 = vmatprep.subr.bf16.mxu0 0
      %8182 = vmatpush2.bf16.msra.mxu0 %v5938
      %8183 = vmatprep.subr.bf16.mxu0 0
      %8184 = vmatpush2.bf16.msra.mxu0 %v5937
      %8185 = vmatprep.subr.bf16.mxu0 0
      %8186 = vmatpush2.bf16.msra.mxu0 %v5936
      %8187 = vmatprep.subr.bf16.mxu0 0
      %8188 = vmatpush2.bf16.msra.mxu0 %v5935
      %8189 = vmatprep.subr.bf16.mxu0 0
      %8190 = vmatpush2.bf16.msra.mxu0 %v5934
      %8191 = vmatprep.subr.bf16.mxu0 0
      %8192 = vmatpush2.bf16.msra.mxu0 %v5933
      %8193 = vmatprep.mubr.bf16.mxu0 %v2270
      %8194 = vmatmul.mubr.bf16.gmra.mxu0 %v2269
      %v8195 = vpop.f32.mrf.mxu0
      %v8196 = vadd.f32 %v8155, %v8195
      %v8197 = vpop.f32.mrf.mxu0
      %v8198 = vpop.f32.mrf.mxu0
      %v8199 = vadd.f32 %v8158, %v8198
      %v8200 = vpop.f32.mrf.mxu0
      %8201 = vdwg.mxu0
      %8202 = vmatprep.subr.bf16.mxu0 0
      %8203 = vmatpush1.bf16.msra.mxu0 %v5948
      %8204 = vmatprep.subr.bf16.mxu0 0
      %8205 = vmatpush1.bf16.msra.mxu0 %v5947
      %8206 = vmatprep.subr.bf16.mxu0 0
      %8207 = vmatpush1.bf16.msra.mxu0 %v5946
      %8208 = vmatprep.subr.bf16.mxu0 0
      %8209 = vmatpush1.bf16.msra.mxu0 %v5945
      %8210 = vmatprep.subr.bf16.mxu0 0
      %8211 = vmatpush1.bf16.msra.mxu0 %v5944
      %8212 = vmatprep.subr.bf16.mxu0 0
      %8213 = vmatpush1.bf16.msra.mxu0 %v5943
      %8214 = vmatprep.subr.bf16.mxu0 0
      %8215 = vmatpush1.bf16.msra.mxu0 %v5942
      %8216 = vmatprep.subr.bf16.mxu0 0
      %8217 = vmatpush1.bf16.msra.mxu0 %v5941
      %8218 = vmatprep.subr.bf16.mxu0 0
      %8219 = vmatpush2.bf16.msra.mxu0 %v5956
      %8220 = vmatprep.subr.bf16.mxu0 0
      %8221 = vmatpush2.bf16.msra.mxu0 %v5955
      %8222 = vmatprep.subr.bf16.mxu0 0
      %8223 = vmatpush2.bf16.msra.mxu0 %v5954
      %8224 = vmatprep.subr.bf16.mxu0 0
      %8225 = vmatpush2.bf16.msra.mxu0 %v5953
      %8226 = vmatprep.subr.bf16.mxu0 0
      %8227 = vmatpush2.bf16.msra.mxu0 %v5952
      %8228 = vmatprep.subr.bf16.mxu0 0
      %8229 = vmatpush2.bf16.msra.mxu0 %v5951
      %8230 = vmatprep.subr.bf16.mxu0 0
      %8231 = vmatpush2.bf16.msra.mxu0 %v5950
      %8232 = vmatprep.subr.bf16.mxu0 0
      %8233 = vmatpush2.bf16.msra.mxu0 %v5949
      %8234 = vmatprep.mubr.bf16.mxu0 %v2272
      %8235 = vmatmul.mubr.bf16.gmra.mxu0 %v2271
      %v8236 = vpop.f32.mrf.mxu0
      %v8237 = vadd.f32 %v8196, %v8236
      %v8238 = vpop.f32.mrf.mxu0
      %v8239 = vpop.f32.mrf.mxu0
      %v8240 = vadd.f32 %v8199, %v8239
      %v8241 = vpop.f32.mrf.mxu0
      %8242 = vdwg.mxu0
      %8243 = vmatprep.subr.bf16.mxu0 0
      %8244 = vmatpush1.bf16.msra.mxu0 %v5964
      %8245 = vmatprep.subr.bf16.mxu0 0
      %8246 = vmatpush1.bf16.msra.mxu0 %v5963
      %8247 = vmatprep.subr.bf16.mxu0 0
      %8248 = vmatpush1.bf16.msra.mxu0 %v5962
      %8249 = vmatprep.subr.bf16.mxu0 0
      %8250 = vmatpush1.bf16.msra.mxu0 %v5961
      %8251 = vmatprep.subr.bf16.mxu0 0
      %8252 = vmatpush1.bf16.msra.mxu0 %v5960
      %8253 = vmatprep.subr.bf16.mxu0 0
      %8254 = vmatpush1.bf16.msra.mxu0 %v5959
      %8255 = vmatprep.subr.bf16.mxu0 0
      %8256 = vmatpush1.bf16.msra.mxu0 %v5958
      %8257 = vmatprep.subr.bf16.mxu0 0
      %8258 = vmatpush1.bf16.msra.mxu0 %v5957
      %8259 = vmatprep.subr.bf16.mxu0 0
      %8260 = vmatpush2.bf16.msra.mxu0 %v5972
      %8261 = vmatprep.subr.bf16.mxu0 0
      %8262 = vmatpush2.bf16.msra.mxu0 %v5971
      %8263 = vmatprep.subr.bf16.mxu0 0
      %8264 = vmatpush2.bf16.msra.mxu0 %v5970
      %8265 = vmatprep.subr.bf16.mxu0 0
      %8266 = vmatpush2.bf16.msra.mxu0 %v5969
      %8267 = vmatprep.subr.bf16.mxu0 0
      %8268 = vmatpush2.bf16.msra.mxu0 %v5968
      %8269 = vmatprep.subr.bf16.mxu0 0
      %8270 = vmatpush2.bf16.msra.mxu0 %v5967
      %8271 = vmatprep.subr.bf16.mxu0 0
      %8272 = vmatpush2.bf16.msra.mxu0 %v5966
      %8273 = vmatprep.subr.bf16.mxu0 0
      %8274 = vmatpush2.bf16.msra.mxu0 %v5965
      %8275 = vmatprep.mubr.bf16.mxu0 %v2274
      %8276 = vmatmul.mubr.bf16.gmra.mxu0 %v2273
      %v8277 = vpop.f32.mrf.mxu0
      %v8278 = vadd.f32 %v8237, %v8277
      %v8279 = vpop.f32.mrf.mxu0
      %v8280 = vpop.f32.mrf.mxu0
      %v8281 = vadd.f32 %v8240, %v8280
      %v8282 = vpop.f32.mrf.mxu0
      %8283 = vdwg.mxu0
      %8284 = vmatprep.subr.bf16.mxu0 0
      %8285 = vmatpush1.bf16.msra.mxu0 %v5980
      %8286 = vmatprep.subr.bf16.mxu0 0
      %8287 = vmatpush1.bf16.msra.mxu0 %v5979
      %8288 = vmatprep.subr.bf16.mxu0 0
      %8289 = vmatpush1.bf16.msra.mxu0 %v5978
      %8290 = vmatprep.subr.bf16.mxu0 0
      %8291 = vmatpush1.bf16.msra.mxu0 %v5977
      %8292 = vmatprep.subr.bf16.mxu0 0
      %8293 = vmatpush1.bf16.msra.mxu0 %v5976
      %8294 = vmatprep.subr.bf16.mxu0 0
      %8295 = vmatpush1.bf16.msra.mxu0 %v5975
      %8296 = vmatprep.subr.bf16.mxu0 0
      %8297 = vmatpush1.bf16.msra.mxu0 %v5974
      %8298 = vmatprep.subr.bf16.mxu0 0
      %8299 = vmatpush1.bf16.msra.mxu0 %v5973
      %8300 = vmatprep.subr.bf16.mxu0 0
      %8301 = vmatpush2.bf16.msra.mxu0 %v5988
      %8302 = vmatprep.subr.bf16.mxu0 0
      %8303 = vmatpush2.bf16.msra.mxu0 %v5987
      %8304 = vmatprep.subr.bf16.mxu0 0
      %8305 = vmatpush2.bf16.msra.mxu0 %v5986
      %8306 = vmatprep.subr.bf16.mxu0 0
      %8307 = vmatpush2.bf16.msra.mxu0 %v5985
      %8308 = vmatprep.subr.bf16.mxu0 0
      %8309 = vmatpush2.bf16.msra.mxu0 %v5984
      %8310 = vmatprep.subr.bf16.mxu0 0
      %8311 = vmatpush2.bf16.msra.mxu0 %v5983
      %8312 = vmatprep.subr.bf16.mxu0 0
      %8313 = vmatpush2.bf16.msra.mxu0 %v5982
      %8314 = vmatprep.subr.bf16.mxu0 0
      %8315 = vmatpush2.bf16.msra.mxu0 %v5981
      %8316 = vmatprep.mubr.bf16.mxu0 %v2276
      %8317 = vmatmul.mubr.bf16.gmra.mxu0 %v2275
      %v8318 = vpop.f32.mrf.mxu0
      %v8319 = vadd.f32 %v8278, %v8318
      %v8320 = vpop.f32.mrf.mxu0
      %v8321 = vpop.f32.mrf.mxu0
      %v8322 = vadd.f32 %v8281, %v8321
      %v8323 = vpop.f32.mrf.mxu0
      %8324 = vdwg.mxu0
      %8325 = vmatprep.subr.bf16.mxu0 0
      %8326 = vmatpush1.bf16.msra.mxu0 %v5996
      %8327 = vmatprep.subr.bf16.mxu0 0
      %8328 = vmatpush1.bf16.msra.mxu0 %v5995
      %8329 = vmatprep.subr.bf16.mxu0 0
      %8330 = vmatpush1.bf16.msra.mxu0 %v5994
      %8331 = vmatprep.subr.bf16.mxu0 0
      %8332 = vmatpush1.bf16.msra.mxu0 %v5993
      %8333 = vmatprep.subr.bf16.mxu0 0
      %8334 = vmatpush1.bf16.msra.mxu0 %v5992
      %8335 = vmatprep.subr.bf16.mxu0 0
      %8336 = vmatpush1.bf16.msra.mxu0 %v5991
      %8337 = vmatprep.subr.bf16.mxu0 0
      %8338 = vmatpush1.bf16.msra.mxu0 %v5990
      %8339 = vmatprep.subr.bf16.mxu0 0
      %8340 = vmatpush1.bf16.msra.mxu0 %v5989
      %8341 = vmatprep.subr.bf16.mxu0 0
      %8342 = vmatpush2.bf16.msra.mxu0 %v6004
      %8343 = vmatprep.subr.bf16.mxu0 0
      %8344 = vmatpush2.bf16.msra.mxu0 %v6003
      %8345 = vmatprep.subr.bf16.mxu0 0
      %8346 = vmatpush2.bf16.msra.mxu0 %v6002
      %8347 = vmatprep.subr.bf16.mxu0 0
      %8348 = vmatpush2.bf16.msra.mxu0 %v6001
      %8349 = vmatprep.subr.bf16.mxu0 0
      %8350 = vmatpush2.bf16.msra.mxu0 %v6000
      %8351 = vmatprep.subr.bf16.mxu0 0
      %8352 = vmatpush2.bf16.msra.mxu0 %v5999
      %8353 = vmatprep.subr.bf16.mxu0 0
      %8354 = vmatpush2.bf16.msra.mxu0 %v5998
      %8355 = vmatprep.subr.bf16.mxu0 0
      %8356 = vmatpush2.bf16.msra.mxu0 %v5997
      %8357 = vmatprep.mubr.bf16.mxu0 %v2278
      %8358 = vmatmul.mubr.bf16.gmra.mxu0 %v2277
      %v8359 = vpop.f32.mrf.mxu0
      %v8360 = vadd.f32 %v8319, %v8359
      %v8361 = vpop.f32.mrf.mxu0
      %v8362 = vpop.f32.mrf.mxu0
      %v8363 = vadd.f32 %v8322, %v8362
      %v8364 = vpop.f32.mrf.mxu0
      %8365 = vdwg.mxu0
      %8366 = vmatprep.subr.bf16.mxu0 0
      %8367 = vmatpush1.bf16.msra.mxu0 %v6012
      %8368 = vmatprep.subr.bf16.mxu0 0
      %8369 = vmatpush1.bf16.msra.mxu0 %v6011
      %8370 = vmatprep.subr.bf16.mxu0 0
      %8371 = vmatpush1.bf16.msra.mxu0 %v6010
      %8372 = vmatprep.subr.bf16.mxu0 0
      %8373 = vmatpush1.bf16.msra.mxu0 %v6009
      %8374 = vmatprep.subr.bf16.mxu0 0
      %8375 = vmatpush1.bf16.msra.mxu0 %v6008
      %8376 = vmatprep.subr.bf16.mxu0 0
      %8377 = vmatpush1.bf16.msra.mxu0 %v6007
      %8378 = vmatprep.subr.bf16.mxu0 0
      %8379 = vmatpush1.bf16.msra.mxu0 %v6006
      %8380 = vmatprep.subr.bf16.mxu0 0
      %8381 = vmatpush1.bf16.msra.mxu0 %v6005
      %8382 = vmatprep.subr.bf16.mxu0 0
      %8383 = vmatpush2.bf16.msra.mxu0 %v6020
      %8384 = vmatprep.subr.bf16.mxu0 0
      %8385 = vmatpush2.bf16.msra.mxu0 %v6019
      %8386 = vmatprep.subr.bf16.mxu0 0
      %8387 = vmatpush2.bf16.msra.mxu0 %v6018
      %8388 = vmatprep.subr.bf16.mxu0 0
      %8389 = vmatpush2.bf16.msra.mxu0 %v6017
      %8390 = vmatprep.subr.bf16.mxu0 0
      %8391 = vmatpush2.bf16.msra.mxu0 %v6016
      %8392 = vmatprep.subr.bf16.mxu0 0
      %8393 = vmatpush2.bf16.msra.mxu0 %v6015
      %8394 = vmatprep.subr.bf16.mxu0 0
      %8395 = vmatpush2.bf16.msra.mxu0 %v6014
      %8396 = vmatprep.subr.bf16.mxu0 0
      %8397 = vmatpush2.bf16.msra.mxu0 %v6013
      %8398 = vmatprep.mubr.bf16.mxu0 %v2280
      %8399 = vmatmul.mubr.bf16.gmra.mxu0 %v2279
      %v8400 = vpop.f32.mrf.mxu0
      %v8401 = vadd.f32 %v8360, %v8400
      %v8402 = vpop.f32.mrf.mxu0
      %v8403 = vpop.f32.mrf.mxu0
      %v8404 = vadd.f32 %v8363, %v8403
      %v8405 = vpop.f32.mrf.mxu0
      %8406 = vdwg.mxu0
      %8407 = vmatprep.subr.bf16.mxu0 0
      %8408 = vmatpush1.bf16.msra.mxu0 %v6028
      %8409 = vmatprep.subr.bf16.mxu0 0
      %8410 = vmatpush1.bf16.msra.mxu0 %v6027
      %8411 = vmatprep.subr.bf16.mxu0 0
      %8412 = vmatpush1.bf16.msra.mxu0 %v6026
      %8413 = vmatprep.subr.bf16.mxu0 0
      %8414 = vmatpush1.bf16.msra.mxu0 %v6025
      %8415 = vmatprep.subr.bf16.mxu0 0
      %8416 = vmatpush1.bf16.msra.mxu0 %v6024
      %8417 = vmatprep.subr.bf16.mxu0 0
      %8418 = vmatpush1.bf16.msra.mxu0 %v6023
      %8419 = vmatprep.subr.bf16.mxu0 0
      %8420 = vmatpush1.bf16.msra.mxu0 %v6022
      %8421 = vmatprep.subr.bf16.mxu0 0
      %8422 = vmatpush1.bf16.msra.mxu0 %v6021
      %8423 = vmatprep.subr.bf16.mxu0 0
      %8424 = vmatpush2.bf16.msra.mxu0 %v6036
      %8425 = vmatprep.subr.bf16.mxu0 0
      %8426 = vmatpush2.bf16.msra.mxu0 %v6035
      %8427 = vmatprep.subr.bf16.mxu0 0
      %8428 = vmatpush2.bf16.msra.mxu0 %v6034
      %8429 = vmatprep.subr.bf16.mxu0 0
      %8430 = vmatpush2.bf16.msra.mxu0 %v6033
      %8431 = vmatprep.subr.bf16.mxu0 0
      %8432 = vmatpush2.bf16.msra.mxu0 %v6032
      %8433 = vmatprep.subr.bf16.mxu0 0
      %8434 = vmatpush2.bf16.msra.mxu0 %v6031
      %8435 = vmatprep.subr.bf16.mxu0 0
      %8436 = vmatpush2.bf16.msra.mxu0 %v6030
      %8437 = vmatprep.subr.bf16.mxu0 0
      %8438 = vmatpush2.bf16.msra.mxu0 %v6029
      %8439 = vmatprep.mubr.bf16.mxu0 %v2282
      %8440 = vmatmul.mubr.bf16.gmra.mxu0 %v2281
      %v8441 = vpop.f32.mrf.mxu0
      %v8442 = vadd.f32 %v8401, %v8441
      %v8443 = vpop.f32.mrf.mxu0
      %v8444 = vpop.f32.mrf.mxu0
      %v8445 = vadd.f32 %v8404, %v8444
      %v8446 = vpop.f32.mrf.mxu0
      %8447 = vdwg.mxu0
      %8448 = vmatprep.subr.bf16.mxu0 0
      %8449 = vmatpush1.bf16.msra.mxu0 %v6044
      %8450 = vmatprep.subr.bf16.mxu0 0
      %8451 = vmatpush1.bf16.msra.mxu0 %v6043
      %8452 = vmatprep.subr.bf16.mxu0 0
      %8453 = vmatpush1.bf16.msra.mxu0 %v6042
      %8454 = vmatprep.subr.bf16.mxu0 0
      %8455 = vmatpush1.bf16.msra.mxu0 %v6041
      %8456 = vmatprep.subr.bf16.mxu0 0
      %8457 = vmatpush1.bf16.msra.mxu0 %v6040
      %8458 = vmatprep.subr.bf16.mxu0 0
      %8459 = vmatpush1.bf16.msra.mxu0 %v6039
      %8460 = vmatprep.subr.bf16.mxu0 0
      %8461 = vmatpush1.bf16.msra.mxu0 %v6038
      %8462 = vmatprep.subr.bf16.mxu0 0
      %8463 = vmatpush1.bf16.msra.mxu0 %v6037
      %8464 = vmatprep.subr.bf16.mxu0 0
      %8465 = vmatpush2.bf16.msra.mxu0 %v6052
      %8466 = vmatprep.subr.bf16.mxu0 0
      %8467 = vmatpush2.bf16.msra.mxu0 %v6051
      %8468 = vmatprep.subr.bf16.mxu0 0
      %8469 = vmatpush2.bf16.msra.mxu0 %v6050
      %8470 = vmatprep.subr.bf16.mxu0 0
      %8471 = vmatpush2.bf16.msra.mxu0 %v6049
      %8472 = vmatprep.subr.bf16.mxu0 0
      %8473 = vmatpush2.bf16.msra.mxu0 %v6048
      %8474 = vmatprep.subr.bf16.mxu0 0
      %8475 = vmatpush2.bf16.msra.mxu0 %v6047
      %8476 = vmatprep.subr.bf16.mxu0 0
      %8477 = vmatpush2.bf16.msra.mxu0 %v6046
      %8478 = vmatprep.subr.bf16.mxu0 0
      %8479 = vmatpush2.bf16.msra.mxu0 %v6045
      %8480 = vmatprep.mubr.bf16.mxu0 %v2284
      %8481 = vmatmul.mubr.bf16.gmra.mxu0 %v2283
      %v8482 = vpop.f32.mrf.mxu0
      %v8483 = vadd.f32 %v8442, %v8482
      %v8484 = vpop.f32.mrf.mxu0
      %v8485 = vpop.f32.mrf.mxu0
      %v8486 = vadd.f32 %v8445, %v8485
      %v8487 = vpop.f32.mrf.mxu0
      %8488 = vdwg.mxu0
      %8489 = vmatprep.subr.bf16.mxu0 0
      %8490 = vmatpush1.bf16.msra.mxu0 %v6060
      %8491 = vmatprep.subr.bf16.mxu0 0
      %8492 = vmatpush1.bf16.msra.mxu0 %v6059
      %8493 = vmatprep.subr.bf16.mxu0 0
      %8494 = vmatpush1.bf16.msra.mxu0 %v6058
      %8495 = vmatprep.subr.bf16.mxu0 0
      %8496 = vmatpush1.bf16.msra.mxu0 %v6057
      %8497 = vmatprep.subr.bf16.mxu0 0
      %8498 = vmatpush1.bf16.msra.mxu0 %v6056
      %8499 = vmatprep.subr.bf16.mxu0 0
      %8500 = vmatpush1.bf16.msra.mxu0 %v6055
      %8501 = vmatprep.subr.bf16.mxu0 0
      %8502 = vmatpush1.bf16.msra.mxu0 %v6054
      %8503 = vmatprep.subr.bf16.mxu0 0
      %8504 = vmatpush1.bf16.msra.mxu0 %v6053
      %8505 = vmatprep.subr.bf16.mxu0 0
      %8506 = vmatpush2.bf16.msra.mxu0 %v6068
      %8507 = vmatprep.subr.bf16.mxu0 0
      %8508 = vmatpush2.bf16.msra.mxu0 %v6067
      %8509 = vmatprep.subr.bf16.mxu0 0
      %8510 = vmatpush2.bf16.msra.mxu0 %v6066
      %8511 = vmatprep.subr.bf16.mxu0 0
      %8512 = vmatpush2.bf16.msra.mxu0 %v6065
      %8513 = vmatprep.subr.bf16.mxu0 0
      %8514 = vmatpush2.bf16.msra.mxu0 %v6064
      %8515 = vmatprep.subr.bf16.mxu0 0
      %8516 = vmatpush2.bf16.msra.mxu0 %v6063
      %8517 = vmatprep.subr.bf16.mxu0 0
      %8518 = vmatpush2.bf16.msra.mxu0 %v6062
      %8519 = vmatprep.subr.bf16.mxu0 0
      %8520 = vmatpush2.bf16.msra.mxu0 %v6061
      %8521 = vmatprep.mubr.bf16.mxu0 %v2286
      %8522 = vmatmul.mubr.bf16.gmra.mxu0 %v2285
      %v8523 = vpop.f32.mrf.mxu0
      %v8524 = vadd.f32 %v8483, %v8523
      %v8525 = vpop.f32.mrf.mxu0
      %v8526 = vpop.f32.mrf.mxu0
      %v8527 = vadd.f32 %v8486, %v8526
      %v8528 = vpop.f32.mrf.mxu0
      %8529 = vdwg.mxu0
      %8530 = vmatprep.subr.bf16.mxu0 0
      %8531 = vmatpush1.bf16.msra.mxu0 %v6076
      %8532 = vmatprep.subr.bf16.mxu0 0
      %8533 = vmatpush1.bf16.msra.mxu0 %v6075
      %8534 = vmatprep.subr.bf16.mxu0 0
      %8535 = vmatpush1.bf16.msra.mxu0 %v6074
      %8536 = vmatprep.subr.bf16.mxu0 0
      %8537 = vmatpush1.bf16.msra.mxu0 %v6073
      %8538 = vmatprep.subr.bf16.mxu0 0
      %8539 = vmatpush1.bf16.msra.mxu0 %v6072
      %8540 = vmatprep.subr.bf16.mxu0 0
      %8541 = vmatpush1.bf16.msra.mxu0 %v6071
      %8542 = vmatprep.subr.bf16.mxu0 0
      %8543 = vmatpush1.bf16.msra.mxu0 %v6070
      %8544 = vmatprep.subr.bf16.mxu0 0
      %8545 = vmatpush1.bf16.msra.mxu0 %v6069
      %8546 = vmatprep.subr.bf16.mxu0 0
      %8547 = vmatpush2.bf16.msra.mxu0 %v6084
      %8548 = vmatprep.subr.bf16.mxu0 0
      %8549 = vmatpush2.bf16.msra.mxu0 %v6083
      %8550 = vmatprep.subr.bf16.mxu0 0
      %8551 = vmatpush2.bf16.msra.mxu0 %v6082
      %8552 = vmatprep.subr.bf16.mxu0 0
      %8553 = vmatpush2.bf16.msra.mxu0 %v6081
      %8554 = vmatprep.subr.bf16.mxu0 0
      %8555 = vmatpush2.bf16.msra.mxu0 %v6080
      %8556 = vmatprep.subr.bf16.mxu0 0
      %8557 = vmatpush2.bf16.msra.mxu0 %v6079
      %8558 = vmatprep.subr.bf16.mxu0 0
      %8559 = vmatpush2.bf16.msra.mxu0 %v6078
      %8560 = vmatprep.subr.bf16.mxu0 0
      %8561 = vmatpush2.bf16.msra.mxu0 %v6077
      %8562 = vmatprep.mubr.bf16.mxu0 %v2288
      %8563 = vmatmul.mubr.bf16.gmra.mxu0 %v2287
      %v8564 = vpop.f32.mrf.mxu0
      %v8565 = vadd.f32 %v8524, %v8564
      %v8566 = vpop.f32.mrf.mxu0
      %v8567 = vpop.f32.mrf.mxu0
      %v8568 = vadd.f32 %v8527, %v8567
      %v8569 = vpop.f32.mrf.mxu0
      %8570 = vdwg.mxu0
      %8571 = vmatprep.subr.bf16.mxu0 0
      %8572 = vmatpush1.bf16.msra.mxu0 %v6092
      %8573 = vmatprep.subr.bf16.mxu0 0
      %8574 = vmatpush1.bf16.msra.mxu0 %v6091
      %8575 = vmatprep.subr.bf16.mxu0 0
      %8576 = vmatpush1.bf16.msra.mxu0 %v6090
      %8577 = vmatprep.subr.bf16.mxu0 0
      %8578 = vmatpush1.bf16.msra.mxu0 %v6089
      %8579 = vmatprep.subr.bf16.mxu0 0
      %8580 = vmatpush1.bf16.msra.mxu0 %v6088
      %8581 = vmatprep.subr.bf16.mxu0 0
      %8582 = vmatpush1.bf16.msra.mxu0 %v6087
      %8583 = vmatprep.subr.bf16.mxu0 0
      %8584 = vmatpush1.bf16.msra.mxu0 %v6086
      %8585 = vmatprep.subr.bf16.mxu0 0
      %8586 = vmatpush1.bf16.msra.mxu0 %v6085
      %8587 = vmatprep.subr.bf16.mxu0 0
      %8588 = vmatpush2.bf16.msra.mxu0 %v6100
      %8589 = vmatprep.subr.bf16.mxu0 0
      %8590 = vmatpush2.bf16.msra.mxu0 %v6099
      %8591 = vmatprep.subr.bf16.mxu0 0
      %8592 = vmatpush2.bf16.msra.mxu0 %v6098
      %8593 = vmatprep.subr.bf16.mxu0 0
      %8594 = vmatpush2.bf16.msra.mxu0 %v6097
      %8595 = vmatprep.subr.bf16.mxu0 0
      %8596 = vmatpush2.bf16.msra.mxu0 %v6096
      %8597 = vmatprep.subr.bf16.mxu0 0
      %8598 = vmatpush2.bf16.msra.mxu0 %v6095
      %8599 = vmatprep.subr.bf16.mxu0 0
      %8600 = vmatpush2.bf16.msra.mxu0 %v6094
      %8601 = vmatprep.subr.bf16.mxu0 0
      %8602 = vmatpush2.bf16.msra.mxu0 %v6093
      %8603 = vmatprep.mubr.bf16.mxu0 %v2290
      %8604 = vmatmul.mubr.bf16.gmra.mxu0 %v2289
      %v8605 = vpop.f32.mrf.mxu0
      %v8606 = vadd.f32 %v8565, %v8605
      %v8607 = vpop.f32.mrf.mxu0
      %v8608 = vpop.f32.mrf.mxu0
      %v8609 = vadd.f32 %v8568, %v8608
      %v8610 = vpop.f32.mrf.mxu0
      %8611 = vdwg.mxu0
      %8612 = vmatprep.subr.bf16.mxu0 0
      %8613 = vmatpush1.bf16.msra.mxu0 %v6108
      %8614 = vmatprep.subr.bf16.mxu0 0
      %8615 = vmatpush1.bf16.msra.mxu0 %v6107
      %8616 = vmatprep.subr.bf16.mxu0 0
      %8617 = vmatpush1.bf16.msra.mxu0 %v6106
      %8618 = vmatprep.subr.bf16.mxu0 0
      %8619 = vmatpush1.bf16.msra.mxu0 %v6105
      %8620 = vmatprep.subr.bf16.mxu0 0
      %8621 = vmatpush1.bf16.msra.mxu0 %v6104
      %8622 = vmatprep.subr.bf16.mxu0 0
      %8623 = vmatpush1.bf16.msra.mxu0 %v6103
      %8624 = vmatprep.subr.bf16.mxu0 0
      %8625 = vmatpush1.bf16.msra.mxu0 %v6102
      %8626 = vmatprep.subr.bf16.mxu0 0
      %8627 = vmatpush1.bf16.msra.mxu0 %v6101
      %8628 = vmatprep.subr.bf16.mxu0 0
      %8629 = vmatpush2.bf16.msra.mxu0 %v6116
      %8630 = vmatprep.subr.bf16.mxu0 0
      %8631 = vmatpush2.bf16.msra.mxu0 %v6115
      %8632 = vmatprep.subr.bf16.mxu0 0
      %8633 = vmatpush2.bf16.msra.mxu0 %v6114
      %8634 = vmatprep.subr.bf16.mxu0 0
      %8635 = vmatpush2.bf16.msra.mxu0 %v6113
      %8636 = vmatprep.subr.bf16.mxu0 0
      %8637 = vmatpush2.bf16.msra.mxu0 %v6112
      %8638 = vmatprep.subr.bf16.mxu0 0
      %8639 = vmatpush2.bf16.msra.mxu0 %v6111
      %8640 = vmatprep.subr.bf16.mxu0 0
      %8641 = vmatpush2.bf16.msra.mxu0 %v6110
      %8642 = vmatprep.subr.bf16.mxu0 0
      %8643 = vmatpush2.bf16.msra.mxu0 %v6109
      %8644 = vmatprep.mubr.bf16.mxu0 %v2292
      %8645 = vmatmul.mubr.bf16.gmra.mxu0 %v2291
      %v8646 = vpop.f32.mrf.mxu0
      %v8647 = vadd.f32 %v8606, %v8646
      %v8648 = vpop.f32.mrf.mxu0
      %v8649 = vpop.f32.mrf.mxu0
      %v8650 = vadd.f32 %v8609, %v8649
      %v8651 = vpop.f32.mrf.mxu0
      %8652 = vdwg.mxu0
      %8653 = vmatprep.subr.bf16.mxu0 0
      %8654 = vmatpush1.bf16.msra.mxu0 %v6124
      %8655 = vmatprep.subr.bf16.mxu0 0
      %8656 = vmatpush1.bf16.msra.mxu0 %v6123
      %8657 = vmatprep.subr.bf16.mxu0 0
      %8658 = vmatpush1.bf16.msra.mxu0 %v6122
      %8659 = vmatprep.subr.bf16.mxu0 0
      %8660 = vmatpush1.bf16.msra.mxu0 %v6121
      %8661 = vmatprep.subr.bf16.mxu0 0
      %8662 = vmatpush1.bf16.msra.mxu0 %v6120
      %8663 = vmatprep.subr.bf16.mxu0 0
      %8664 = vmatpush1.bf16.msra.mxu0 %v6119
      %8665 = vmatprep.subr.bf16.mxu0 0
      %8666 = vmatpush1.bf16.msra.mxu0 %v6118
      %8667 = vmatprep.subr.bf16.mxu0 0
      %8668 = vmatpush1.bf16.msra.mxu0 %v6117
      %8669 = vmatprep.subr.bf16.mxu0 0
      %8670 = vmatpush2.bf16.msra.mxu0 %v6132
      %8671 = vmatprep.subr.bf16.mxu0 0
      %8672 = vmatpush2.bf16.msra.mxu0 %v6131
      %8673 = vmatprep.subr.bf16.mxu0 0
      %8674 = vmatpush2.bf16.msra.mxu0 %v6130
      %8675 = vmatprep.subr.bf16.mxu0 0
      %8676 = vmatpush2.bf16.msra.mxu0 %v6129
      %8677 = vmatprep.subr.bf16.mxu0 0
      %8678 = vmatpush2.bf16.msra.mxu0 %v6128
      %8679 = vmatprep.subr.bf16.mxu0 0
      %8680 = vmatpush2.bf16.msra.mxu0 %v6127
      %8681 = vmatprep.subr.bf16.mxu0 0
      %8682 = vmatpush2.bf16.msra.mxu0 %v6126
      %8683 = vmatprep.subr.bf16.mxu0 0
      %8684 = vmatpush2.bf16.msra.mxu0 %v6125
      %8685 = vmatprep.mubr.bf16.mxu0 %v2294
      %8686 = vmatmul.mubr.bf16.gmra.mxu0 %v2293
      %v8687 = vpop.f32.mrf.mxu0
      %v8688 = vadd.f32 %v8647, %v8687
      %v8689 = vpop.f32.mrf.mxu0
      %v8690 = vpop.f32.mrf.mxu0
      %v8691 = vadd.f32 %v8650, %v8690
      %v8692 = vpop.f32.mrf.mxu0
      %8693 = vdwg.mxu0
      %8694 = vmatprep.subr.bf16.mxu0 0
      %8695 = vmatpush1.bf16.msra.mxu0 %v6140
      %8696 = vmatprep.subr.bf16.mxu0 0
      %8697 = vmatpush1.bf16.msra.mxu0 %v6139
      %8698 = vmatprep.subr.bf16.mxu0 0
      %8699 = vmatpush1.bf16.msra.mxu0 %v6138
      %8700 = vmatprep.subr.bf16.mxu0 0
      %8701 = vmatpush1.bf16.msra.mxu0 %v6137
      %8702 = vmatprep.subr.bf16.mxu0 0
      %8703 = vmatpush1.bf16.msra.mxu0 %v6136
      %8704 = vmatprep.subr.bf16.mxu0 0
      %8705 = vmatpush1.bf16.msra.mxu0 %v6135
      %8706 = vmatprep.subr.bf16.mxu0 0
      %8707 = vmatpush1.bf16.msra.mxu0 %v6134
      %8708 = vmatprep.subr.bf16.mxu0 0
      %8709 = vmatpush1.bf16.msra.mxu0 %v6133
      %8710 = vmatprep.subr.bf16.mxu0 0
      %8711 = vmatpush2.bf16.msra.mxu0 %v6148
      %8712 = vmatprep.subr.bf16.mxu0 0
      %8713 = vmatpush2.bf16.msra.mxu0 %v6147
      %8714 = vmatprep.subr.bf16.mxu0 0
      %8715 = vmatpush2.bf16.msra.mxu0 %v6146
      %8716 = vmatprep.subr.bf16.mxu0 0
      %8717 = vmatpush2.bf16.msra.mxu0 %v6145
      %8718 = vmatprep.subr.bf16.mxu0 0
      %8719 = vmatpush2.bf16.msra.mxu0 %v6144
      %8720 = vmatprep.subr.bf16.mxu0 0
      %8721 = vmatpush2.bf16.msra.mxu0 %v6143
      %8722 = vmatprep.subr.bf16.mxu0 0
      %8723 = vmatpush2.bf16.msra.mxu0 %v6142
      %8724 = vmatprep.subr.bf16.mxu0 0
      %8725 = vmatpush2.bf16.msra.mxu0 %v6141
      %8726 = vmatprep.mubr.bf16.mxu0 %v2296
      %8727 = vmatmul.mubr.bf16.gmra.mxu0 %v2295
      %v8728 = vpop.f32.mrf.mxu0
      %v8729 = vadd.f32 %v8688, %v8728
      %v8730 = vpop.f32.mrf.mxu0
      %v8731 = vpop.f32.mrf.mxu0
      %v8732 = vadd.f32 %v8691, %v8731
      %v8733 = vpop.f32.mrf.mxu0
      %8734 = vdwg.mxu0
      %8735 = vmatprep.subr.bf16.mxu0 0
      %8736 = vmatpush1.bf16.msra.mxu0 %v6156
      %8737 = vmatprep.subr.bf16.mxu0 0
      %8738 = vmatpush1.bf16.msra.mxu0 %v6155
      %8739 = vmatprep.subr.bf16.mxu0 0
      %8740 = vmatpush1.bf16.msra.mxu0 %v6154
      %8741 = vmatprep.subr.bf16.mxu0 0
      %8742 = vmatpush1.bf16.msra.mxu0 %v6153
      %8743 = vmatprep.subr.bf16.mxu0 0
      %8744 = vmatpush1.bf16.msra.mxu0 %v6152
      %8745 = vmatprep.subr.bf16.mxu0 0
      %8746 = vmatpush1.bf16.msra.mxu0 %v6151
      %8747 = vmatprep.subr.bf16.mxu0 0
      %8748 = vmatpush1.bf16.msra.mxu0 %v6150
      %8749 = vmatprep.subr.bf16.mxu0 0
      %8750 = vmatpush1.bf16.msra.mxu0 %v6149
      %8751 = vmatprep.subr.bf16.mxu0 0
      %8752 = vmatpush2.bf16.msra.mxu0 %v6164
      %8753 = vmatprep.subr.bf16.mxu0 0
      %8754 = vmatpush2.bf16.msra.mxu0 %v6163
      %8755 = vmatprep.subr.bf16.mxu0 0
      %8756 = vmatpush2.bf16.msra.mxu0 %v6162
      %8757 = vmatprep.subr.bf16.mxu0 0
      %8758 = vmatpush2.bf16.msra.mxu0 %v6161
      %8759 = vmatprep.subr.bf16.mxu0 0
      %8760 = vmatpush2.bf16.msra.mxu0 %v6160
      %8761 = vmatprep.subr.bf16.mxu0 0
      %8762 = vmatpush2.bf16.msra.mxu0 %v6159
      %8763 = vmatprep.subr.bf16.mxu0 0
      %8764 = vmatpush2.bf16.msra.mxu0 %v6158
      %8765 = vmatprep.subr.bf16.mxu0 0
      %8766 = vmatpush2.bf16.msra.mxu0 %v6157
      %8767 = vmatprep.mubr.bf16.mxu0 %v2298
      %8768 = vmatmul.mubr.bf16.gmra.mxu0 %v2297
      %v8769 = vpop.f32.mrf.mxu0
      %v8770 = vadd.f32 %v8729, %v8769
      %v8771 = vpop.f32.mrf.mxu0
      %v8772 = vpop.f32.mrf.mxu0
      %v8773 = vadd.f32 %v8732, %v8772
      %v8774 = vpop.f32.mrf.mxu0
      %8775 = vdwg.mxu0
      %8776 = vmatprep.subr.bf16.mxu0 0
      %8777 = vmatpush1.bf16.msra.mxu0 %v6172
      %8778 = vmatprep.subr.bf16.mxu0 0
      %8779 = vmatpush1.bf16.msra.mxu0 %v6171
      %8780 = vmatprep.subr.bf16.mxu0 0
      %8781 = vmatpush1.bf16.msra.mxu0 %v6170
      %8782 = vmatprep.subr.bf16.mxu0 0
      %8783 = vmatpush1.bf16.msra.mxu0 %v6169
      %8784 = vmatprep.subr.bf16.mxu0 0
      %8785 = vmatpush1.bf16.msra.mxu0 %v6168
      %8786 = vmatprep.subr.bf16.mxu0 0
      %8787 = vmatpush1.bf16.msra.mxu0 %v6167
      %8788 = vmatprep.subr.bf16.mxu0 0
      %8789 = vmatpush1.bf16.msra.mxu0 %v6166
      %8790 = vmatprep.subr.bf16.mxu0 0
      %8791 = vmatpush1.bf16.msra.mxu0 %v6165
      %8792 = vmatprep.subr.bf16.mxu0 0
      %8793 = vmatpush2.bf16.msra.mxu0 %v6180
      %8794 = vmatprep.subr.bf16.mxu0 0
      %8795 = vmatpush2.bf16.msra.mxu0 %v6179
      %8796 = vmatprep.subr.bf16.mxu0 0
      %8797 = vmatpush2.bf16.msra.mxu0 %v6178
      %8798 = vmatprep.subr.bf16.mxu0 0
      %8799 = vmatpush2.bf16.msra.mxu0 %v6177
      %8800 = vmatprep.subr.bf16.mxu0 0
      %8801 = vmatpush2.bf16.msra.mxu0 %v6176
      %8802 = vmatprep.subr.bf16.mxu0 0
      %8803 = vmatpush2.bf16.msra.mxu0 %v6175
      %8804 = vmatprep.subr.bf16.mxu0 0
      %8805 = vmatpush2.bf16.msra.mxu0 %v6174
      %8806 = vmatprep.subr.bf16.mxu0 0
      %8807 = vmatpush2.bf16.msra.mxu0 %v6173
      %8808 = vmatprep.mubr.bf16.mxu0 %v2300
      %8809 = vmatmul.mubr.bf16.gmra.mxu0 %v2299
      %v8810 = vpop.f32.mrf.mxu0
      %v8811 = vadd.f32 %v8770, %v8810
      %v8812 = vpop.f32.mrf.mxu0
      %v8813 = vpop.f32.mrf.mxu0
      %v8814 = vadd.f32 %v8773, %v8813
      %v8815 = vpop.f32.mrf.mxu0
      %8816 = vdwg.mxu0
      %8817 = vmatprep.subr.bf16.mxu0 0
      %8818 = vmatpush1.bf16.msra.mxu0 %v6188
      %8819 = vmatprep.subr.bf16.mxu0 0
      %8820 = vmatpush1.bf16.msra.mxu0 %v6187
      %8821 = vmatprep.subr.bf16.mxu0 0
      %8822 = vmatpush1.bf16.msra.mxu0 %v6186
      %8823 = vmatprep.subr.bf16.mxu0 0
      %8824 = vmatpush1.bf16.msra.mxu0 %v6185
      %8825 = vmatprep.subr.bf16.mxu0 0
      %8826 = vmatpush1.bf16.msra.mxu0 %v6184
      %8827 = vmatprep.subr.bf16.mxu0 0
      %8828 = vmatpush1.bf16.msra.mxu0 %v6183
      %8829 = vmatprep.subr.bf16.mxu0 0
      %8830 = vmatpush1.bf16.msra.mxu0 %v6182
      %8831 = vmatprep.subr.bf16.mxu0 0
      %8832 = vmatpush1.bf16.msra.mxu0 %v6181
      %8833 = vmatprep.subr.bf16.mxu0 0
      %8834 = vmatpush2.bf16.msra.mxu0 %v6196
      %8835 = vmatprep.subr.bf16.mxu0 0
      %8836 = vmatpush2.bf16.msra.mxu0 %v6195
      %8837 = vmatprep.subr.bf16.mxu0 0
      %8838 = vmatpush2.bf16.msra.mxu0 %v6194
      %8839 = vmatprep.subr.bf16.mxu0 0
      %8840 = vmatpush2.bf16.msra.mxu0 %v6193
      %8841 = vmatprep.subr.bf16.mxu0 0
      %8842 = vmatpush2.bf16.msra.mxu0 %v6192
      %8843 = vmatprep.subr.bf16.mxu0 0
      %8844 = vmatpush2.bf16.msra.mxu0 %v6191
      %8845 = vmatprep.subr.bf16.mxu0 0
      %8846 = vmatpush2.bf16.msra.mxu0 %v6190
      %8847 = vmatprep.subr.bf16.mxu0 0
      %8848 = vmatpush2.bf16.msra.mxu0 %v6189
      %8849 = vmatprep.mubr.bf16.mxu0 %v2302
      %8850 = vmatmul.mubr.bf16.gmra.mxu0 %v2301
      %v8851 = vpop.f32.mrf.mxu0
      %v8852 = vadd.f32 %v8811, %v8851
      %v8853 = vpop.f32.mrf.mxu0
      %v8854 = vpop.f32.mrf.mxu0
      %v8855 = vadd.f32 %v8814, %v8854
      %v8856 = vpop.f32.mrf.mxu0
      %8857 = vdwg.mxu0
      %8858 = vmatprep.subr.bf16.mxu0 0
      %8859 = vmatpush1.bf16.msra.mxu0 %v6204
      %8860 = vmatprep.subr.bf16.mxu0 0
      %8861 = vmatpush1.bf16.msra.mxu0 %v6203
      %8862 = vmatprep.subr.bf16.mxu0 0
      %8863 = vmatpush1.bf16.msra.mxu0 %v6202
      %8864 = vmatprep.subr.bf16.mxu0 0
      %8865 = vmatpush1.bf16.msra.mxu0 %v6201
      %8866 = vmatprep.subr.bf16.mxu0 0
      %8867 = vmatpush1.bf16.msra.mxu0 %v6200
      %8868 = vmatprep.subr.bf16.mxu0 0
      %8869 = vmatpush1.bf16.msra.mxu0 %v6199
      %8870 = vmatprep.subr.bf16.mxu0 0
      %8871 = vmatpush1.bf16.msra.mxu0 %v6198
      %8872 = vmatprep.subr.bf16.mxu0 0
      %8873 = vmatpush1.bf16.msra.mxu0 %v6197
      %8874 = vmatprep.subr.bf16.mxu0 0
      %8875 = vmatpush2.bf16.msra.mxu0 %v6212
      %8876 = vmatprep.subr.bf16.mxu0 0
      %8877 = vmatpush2.bf16.msra.mxu0 %v6211
      %8878 = vmatprep.subr.bf16.mxu0 0
      %8879 = vmatpush2.bf16.msra.mxu0 %v6210
      %8880 = vmatprep.subr.bf16.mxu0 0
      %8881 = vmatpush2.bf16.msra.mxu0 %v6209
      %8882 = vmatprep.subr.bf16.mxu0 0
      %8883 = vmatpush2.bf16.msra.mxu0 %v6208
      %8884 = vmatprep.subr.bf16.mxu0 0
      %8885 = vmatpush2.bf16.msra.mxu0 %v6207
      %8886 = vmatprep.subr.bf16.mxu0 0
      %8887 = vmatpush2.bf16.msra.mxu0 %v6206
      %8888 = vmatprep.subr.bf16.mxu0 0
      %8889 = vmatpush2.bf16.msra.mxu0 %v6205
      %8890 = vmatprep.mubr.bf16.mxu0 %v2304
      %8891 = vmatmul.mubr.bf16.gmra.mxu0 %v2303
      %v8892 = vpop.f32.mrf.mxu0
      %v8893 = vadd.f32 %v8852, %v8892
      %v8894 = vpop.f32.mrf.mxu0
      %v8895 = vpop.f32.mrf.mxu0
      %v8896 = vadd.f32 %v8855, %v8895
      %v8897 = vpop.f32.mrf.mxu0
      %8898 = vdwg.mxu0
      %8899 = vmatprep.subr.bf16.mxu0 0
      %8900 = vmatpush1.bf16.msra.mxu0 %v6220
      %8901 = vmatprep.subr.bf16.mxu0 0
      %8902 = vmatpush1.bf16.msra.mxu0 %v6219
      %8903 = vmatprep.subr.bf16.mxu0 0
      %8904 = vmatpush1.bf16.msra.mxu0 %v6218
      %8905 = vmatprep.subr.bf16.mxu0 0
      %8906 = vmatpush1.bf16.msra.mxu0 %v6217
      %8907 = vmatprep.subr.bf16.mxu0 0
      %8908 = vmatpush1.bf16.msra.mxu0 %v6216
      %8909 = vmatprep.subr.bf16.mxu0 0
      %8910 = vmatpush1.bf16.msra.mxu0 %v6215
      %8911 = vmatprep.subr.bf16.mxu0 0
      %8912 = vmatpush1.bf16.msra.mxu0 %v6214
      %8913 = vmatprep.subr.bf16.mxu0 0
      %8914 = vmatpush1.bf16.msra.mxu0 %v6213
      %8915 = vmatprep.subr.bf16.mxu0 0
      %8916 = vmatpush2.bf16.msra.mxu0 %v6228
      %8917 = vmatprep.subr.bf16.mxu0 0
      %8918 = vmatpush2.bf16.msra.mxu0 %v6227
      %8919 = vmatprep.subr.bf16.mxu0 0
      %8920 = vmatpush2.bf16.msra.mxu0 %v6226
      %8921 = vmatprep.subr.bf16.mxu0 0
      %8922 = vmatpush2.bf16.msra.mxu0 %v6225
      %8923 = vmatprep.subr.bf16.mxu0 0
      %8924 = vmatpush2.bf16.msra.mxu0 %v6224
      %8925 = vmatprep.subr.bf16.mxu0 0
      %8926 = vmatpush2.bf16.msra.mxu0 %v6223
      %8927 = vmatprep.subr.bf16.mxu0 0
      %8928 = vmatpush2.bf16.msra.mxu0 %v6222
      %8929 = vmatprep.subr.bf16.mxu0 0
      %8930 = vmatpush2.bf16.msra.mxu0 %v6221
      %8931 = vmatprep.mubr.bf16.mxu0 %v2306
      %8932 = vmatmul.mubr.bf16.gmra.mxu0 %v2305
      %v8933 = vpop.f32.mrf.mxu0
      %v8934 = vadd.f32 %v8893, %v8933
      %v8935 = vpop.f32.mrf.mxu0
      %v8936 = vpop.f32.mrf.mxu0
      %v8937 = vadd.f32 %v8896, %v8936
      %v8938 = vpop.f32.mrf.mxu0
      %8939 = vdwg.mxu0
      %8940 = vmatprep.subr.bf16.mxu0 0
      %8941 = vmatpush1.bf16.msra.mxu0 %v6236
      %8942 = vmatprep.subr.bf16.mxu0 0
      %8943 = vmatpush1.bf16.msra.mxu0 %v6235
      %8944 = vmatprep.subr.bf16.mxu0 0
      %8945 = vmatpush1.bf16.msra.mxu0 %v6234
      %8946 = vmatprep.subr.bf16.mxu0 0
      %8947 = vmatpush1.bf16.msra.mxu0 %v6233
      %8948 = vmatprep.subr.bf16.mxu0 0
      %8949 = vmatpush1.bf16.msra.mxu0 %v6232
      %8950 = vmatprep.subr.bf16.mxu0 0
      %8951 = vmatpush1.bf16.msra.mxu0 %v6231
      %8952 = vmatprep.subr.bf16.mxu0 0
      %8953 = vmatpush1.bf16.msra.mxu0 %v6230
      %8954 = vmatprep.subr.bf16.mxu0 0
      %8955 = vmatpush1.bf16.msra.mxu0 %v6229
      %8956 = vmatprep.subr.bf16.mxu0 0
      %8957 = vmatpush2.bf16.msra.mxu0 %v6244
      %8958 = vmatprep.subr.bf16.mxu0 0
      %8959 = vmatpush2.bf16.msra.mxu0 %v6243
      %8960 = vmatprep.subr.bf16.mxu0 0
      %8961 = vmatpush2.bf16.msra.mxu0 %v6242
      %8962 = vmatprep.subr.bf16.mxu0 0
      %8963 = vmatpush2.bf16.msra.mxu0 %v6241
      %8964 = vmatprep.subr.bf16.mxu0 0
      %8965 = vmatpush2.bf16.msra.mxu0 %v6240
      %8966 = vmatprep.subr.bf16.mxu0 0
      %8967 = vmatpush2.bf16.msra.mxu0 %v6239
      %8968 = vmatprep.subr.bf16.mxu0 0
      %8969 = vmatpush2.bf16.msra.mxu0 %v6238
      %8970 = vmatprep.subr.bf16.mxu0 0
      %8971 = vmatpush2.bf16.msra.mxu0 %v6237
      %8972 = vmatprep.mubr.bf16.mxu0 %v2308
      %8973 = vmatmul.mubr.bf16.gmra.mxu0 %v2307
      %v8974 = vpop.f32.mrf.mxu0
      %v8975 = vadd.f32 %v8934, %v8974
      %v8976 = vpop.f32.mrf.mxu0
      %v8977 = vpop.f32.mrf.mxu0
      %v8978 = vadd.f32 %v8937, %v8977
      %v8979 = vpop.f32.mrf.mxu0
      %8980 = vdwg.mxu0
      %v8981 = vmax.f32 %v8975, 0.0
      %v8982 = vmax.f32 %v8978, 0.0
      %v8983 = vld [vmem:[%s3] sm:$0xff]
      %v8984 = vld [vmem:[%s3 + $0x8] sm:$0xff]
      %v8985 = vld [vmem:[%s3 + $0x10] sm:$0xff]
      %v8986 = vld [vmem:[%s3 + $0x18] sm:$0xff]
      %v8987 = vld [vmem:[%s3 + $0x20] sm:$0xff]
      %v8988 = vld [vmem:[%s3 + $0x28] sm:$0xff]
      %v8989 = vld [vmem:[%s3 + $0x30] sm:$0x3]
      %v8990 = vld [vmem:[%s4] sm:$0x1]
      %v8992 = vlaneseq
      %v8993 = vshrl.u32 %v8992, 7
      %v8994 = vsub.s32 0, %v8993
      %v8995 = vrot.slane %v8990, %v8994
      %vm8997 = vcmask 408576
      %v8999 = vsel %vm8997, %v8981, 0
      %v9002 = vsel %vm8997, %v8982, 0
      %vm9004 = vcmask 1041408
      %v9006 = vsel %vm9004, %v8989, 0
      %9008 = vmatprep.subr.mxu0 0.0
      %9009 = vmatpush1.msra.mxu0 0.0
      %9010 = vmatprep.subr.mxu0 0.0
      %9011 = vmatpush1.msra.mxu0 0.0
      %9012 = vmatprep.subr.mxu0 0.0
      %9013 = vmatpush1.msra.mxu0 0.0
      %9014 = vmatprep.subr.mxu0 0.0
      %9015 = vmatpush1.msra.mxu0 0.0
      %9016 = vmatprep.subr.mxu0 0.0
      %9017 = vmatpush1.msra.mxu0 0.0
      %9018 = vmatprep.subr.mxu0 0.0
      %9019 = vmatpush1.msra.mxu0 0.0
      %9020 = vmatprep.subr.mxu0 0.0
      %9021 = vmatpush1.msra.mxu0 0.0
      %9022 = vmatprep.subr.mxu0 0.0
      %9023 = vmatpush1.msra.mxu0 0.0
      %9024 = vmatprep.subr.mxu0 0.0
      %9025 = vmatpush1.msra.mxu0 0.0
      %9026 = vmatprep.subr.mxu0 0.0
      %9027 = vmatpush1.msra.mxu0 %v9006
      %9028 = vmatprep.subr.mxu0 0.0
      %9029 = vmatpush1.msra.mxu0 %v8988
      %9030 = vmatprep.subr.mxu0 0.0
      %9031 = vmatpush1.msra.mxu0 %v8987
      %9032 = vmatprep.subr.mxu0 0.0
      %9033 = vmatpush1.msra.mxu0 %v8986
      %9034 = vmatprep.subr.mxu0 0.0
      %9035 = vmatpush1.msra.mxu0 %v8985
      %9036 = vmatprep.subr.mxu0 0.0
      %9037 = vmatpush1.msra.mxu0 %v8984
      %9038 = vmatprep.subr.mxu0 0.0
      %9039 = vmatpush1.msra.mxu0 %v8983
      %9040 = vmatprep.subr.mxu0 0.0
      %9041 = vmatpush2.msra.mxu0 0.0
      %9042 = vmatprep.subr.mxu0 0.0
      %9043 = vmatpush2.msra.mxu0 0.0
      %9044 = vmatprep.subr.mxu0 0.0
      %9045 = vmatpush2.msra.mxu0 0.0
      %9046 = vmatprep.subr.mxu0 0.0
      %9047 = vmatpush2.msra.mxu0 0.0
      %9048 = vmatprep.subr.mxu0 0.0
      %9049 = vmatpush2.msra.mxu0 0.0
      %9050 = vmatprep.subr.mxu0 0.0
      %9051 = vmatpush2.msra.mxu0 0.0
      %9052 = vmatprep.subr.mxu0 0.0
      %9053 = vmatpush2.msra.mxu0 0.0
      %9054 = vmatprep.subr.mxu0 0.0
      %9055 = vmatpush2.msra.mxu0 0.0
      %9056 = vmatprep.subr.mxu0 0.0
      %9057 = vmatpush2.msra.mxu0 0.0
      %9058 = vmatprep.subr.mxu0 0.0
      %9059 = vmatpush2.msra.mxu0 0.0
      %9060 = vmatprep.subr.mxu0 0.0
      %9061 = vmatpush2.msra.mxu0 0.0
      %9062 = vmatprep.subr.mxu0 0.0
      %9063 = vmatpush2.msra.mxu0 0.0
      %9064 = vmatprep.subr.mxu0 0.0
      %9065 = vmatpush2.msra.mxu0 0.0
      %9066 = vmatprep.subr.mxu0 0.0
      %9067 = vmatpush2.msra.mxu0 0.0
      %9068 = vmatprep.subr.mxu0 0.0
      %9069 = vmatpush2.msra.mxu0 0.0
      %9070 = vmatprep.subr.mxu0 0.0
      %9071 = vmatpush2.msra.mxu0 0.0
      %9072 = vmatprep.mubr.f32.mxu0 0.0
      %9073 = vmatmul.mubr.f32.gmra.mxu0 %v8999
      %v9074 = vpop.f32.mrf.mxu0
      %v9075 = vadd.f32 %v8995, %v9074
      %v9076 = vpop.f32.mrf.mxu0
      %9077 = vmatprep.mubr.f32.mxu0 0.0
      %9078 = vmatmul.mubr.f32.gmra.mxu0 %v9002
      %v9079 = vpop.f32.mrf.mxu0
      %v9080 = vadd.f32 %v8995, %v9079
      %v9081 = vpop.f32.mrf.mxu0
      %9082 = vdwg.mxu0
      %v9083 = vmax.f32 %v9075, 0.0
      %v9084 = vmax.f32 %v9080, 0.0
      %v9085 = vld [vmem:[%s5] sm:$0xff]
      %v9086 = vld [vmem:[%s5 + $0x8] sm:$0xff]
      %v9087 = vld [vmem:[%s5 + $0x10] sm:$0xff]
      %v9088 = vld [vmem:[%s5 + $0x18] sm:$0x3f]
      %v9089 = vld [vmem:[%s6] sm:$0x1]
      %v9091 = vlaneseq
      %v9092 = vshrl.u32 %v9091, 7
      %v9093 = vsub.s32 0, %v9092
      %v9094 = vrot.slane %v9089, %v9093
      %vm9096 = vcmask 244736
      %v9098 = vsel %vm9096, %v9083, 0
      %v9101 = vsel %vm9096, %v9084, 0
      %vm9103 = vcmask 1045504
      %v9105 = vsel %vm9103, %v9088, 0
      %9107 = vmatprep.subr.mxu0 0.0
      %9108 = vmatpush1.msra.mxu0 0.0
      %9109 = vmatprep.subr.mxu0 0.0
      %9110 = vmatpush1.msra.mxu0 0.0
      %9111 = vmatprep.subr.mxu0 0.0
      %9112 = vmatpush1.msra.mxu0 0.0
      %9113 = vmatprep.subr.mxu0 0.0
      %9114 = vmatpush1.msra.mxu0 0.0
      %9115 = vmatprep.subr.mxu0 0.0
      %9116 = vmatpush1.msra.mxu0 0.0
      %9117 = vmatprep.subr.mxu0 0.0
      %9118 = vmatpush1.msra.mxu0 0.0
      %9119 = vmatprep.subr.mxu0 0.0
      %9120 = vmatpush1.msra.mxu0 0.0
      %9121 = vmatprep.subr.mxu0 0.0
      %9122 = vmatpush1.msra.mxu0 0.0
      %9123 = vmatprep.subr.mxu0 0.0
      %9124 = vmatpush1.msra.mxu0 0.0
      %9125 = vmatprep.subr.mxu0 0.0
      %9126 = vmatpush1.msra.mxu0 0.0
      %9127 = vmatprep.subr.mxu0 0.0
      %9128 = vmatpush1.msra.mxu0 0.0
      %9129 = vmatprep.subr.mxu0 0.0
      %9130 = vmatpush1.msra.mxu0 0.0
      %9131 = vmatprep.subr.mxu0 0.0
      %9132 = vmatpush1.msra.mxu0 %v9105
      %9133 = vmatprep.subr.mxu0 0.0
      %9134 = vmatpush1.msra.mxu0 %v9087
      %9135 = vmatprep.subr.mxu0 0.0
      %9136 = vmatpush1.msra.mxu0 %v9086
      %9137 = vmatprep.subr.mxu0 0.0
      %9138 = vmatpush1.msra.mxu0 %v9085
      %9139 = vmatprep.subr.mxu0 0.0
      %9140 = vmatpush2.msra.mxu0 0.0
      %9141 = vmatprep.subr.mxu0 0.0
      %9142 = vmatpush2.msra.mxu0 0.0
      %9143 = vmatprep.subr.mxu0 0.0
      %9144 = vmatpush2.msra.mxu0 0.0
      %9145 = vmatprep.subr.mxu0 0.0
      %9146 = vmatpush2.msra.mxu0 0.0
      %9147 = vmatprep.subr.mxu0 0.0
      %9148 = vmatpush2.msra.mxu0 0.0
      %9149 = vmatprep.subr.mxu0 0.0
      %9150 = vmatpush2.msra.mxu0 0.0
      %9151 = vmatprep.subr.mxu0 0.0
      %9152 = vmatpush2.msra.mxu0 0.0
      %9153 = vmatprep.subr.mxu0 0.0
      %9154 = vmatpush2.msra.mxu0 0.0
      %9155 = vmatprep.subr.mxu0 0.0
      %9156 = vmatpush2.msra.mxu0 0.0
      %9157 = vmatprep.subr.mxu0 0.0
      %9158 = vmatpush2.msra.mxu0 0.0
      %9159 = vmatprep.subr.mxu0 0.0
      %9160 = vmatpush2.msra.mxu0 0.0
      %9161 = vmatprep.subr.mxu0 0.0
      %9162 = vmatpush2.msra.mxu0 0.0
      %9163 = vmatprep.subr.mxu0 0.0
      %9164 = vmatpush2.msra.mxu0 0.0
      %9165 = vmatprep.subr.mxu0 0.0
      %9166 = vmatpush2.msra.mxu0 0.0
      %9167 = vmatprep.subr.mxu0 0.0
      %9168 = vmatpush2.msra.mxu0 0.0
      %9169 = vmatprep.subr.mxu0 0.0
      %9170 = vmatpush2.msra.mxu0 0.0
      %9171 = vmatprep.mubr.f32.mxu0 0.0
      %9172 = vmatmul.mubr.f32.gmra.mxu0 %v9098
      %v9173 = vpop.f32.mrf.mxu0
      %v9174 = vadd.f32 %v9094, %v9173
      %v9175 = vpop.f32.mrf.mxu0
      %9176 = vmatprep.mubr.f32.mxu0 0.0
      %9177 = vmatmul.mubr.f32.gmra.mxu0 %v9101
      %v9178 = vpop.f32.mrf.mxu0
      %v9179 = vadd.f32 %v9094, %v9178
      %v9180 = vpop.f32.mrf.mxu0
      %9181 = vdwg.mxu0
      %vm9182 = vcmask 39936
      %9183 = vst.msk [vmem:[%s283] sm:$0xff] %vm9182, %v9174
      %9184 = vst.msk [vmem:[%s283 + $0x8] sm:$0xff] %vm9182, %v9179
      %s9185 = smul.u32 2, %s18
      %p9186 = scmp.lt.s32.totalorder %s9185, 5
      %s9187 = scalar_select %p9186, %s9185, 5
      %s9188 = smul.addr %s9187, 8
      %s9189 = scalar_lea.vmem %s7, %s9188
      // Predicated region
      $region49: #{tpu_custom_call.1} parent=47 // pred_check
        %p9190 = pneg %p188
      $region50: #{tpu_custom_call.1} parent=47 // pred_check_branch
        %9192 = sbr.rel (%p9190) target = $region52
      $region51: #{tpu_custom_call.1} parent=47 // pred_region
        %s9193 = smul.u32 2, %s18
      $region52: #{tpu_custom_call.1} parent=47 // pred_fallthru
        _
    $region48: #{tpu_custom_call.1} parent=5 // pred_fallthru
      _
    %p9194 = scmp.le.s32.totalorder 2, %s13
    // Predicated region
    $region53: #{tpu_custom_call.1} parent=5 // pred_check
      %p9195 = pneg %p9194
    $region54: #{tpu_custom_call.1} parent=5 // pred_check_branch
      %9197 = sbr.rel (%p9195) target = $region56
    $region55: #{tpu_custom_call.1} parent=5 // pred_region
      %s9198 = ssub.s32 %s13, 2
      // Predicated region
      $region57: #{tpu_custom_call.1} parent=55 // pred_check
        %p9199 = pneg %p194
      $region58: #{tpu_custom_call.1} parent=55 // pred_check_branch
        %9201 = sbr.rel (%p9199) target = $region60
      $region59: #{tpu_custom_call.1} parent=55 // pred_region
        %s9202 = smul.u32 2, %s19
        %p9203 = scmp.lt.s32.totalorder %s9202, 5
        %s9204 = scalar_select %p9203, %s9202, 5
        %s9205 = smul.addr %s9204, 8
        %s9206 = scalar_lea.vmem %s7, %s9205
      $region60: #{tpu_custom_call.1} parent=55 // pred_fallthru
        _
    $region56: #{tpu_custom_call.1} parent=5 // pred_fallthru
      _
  $region6: #{tpu_custom_call.1} parent=0 // loop_footer
    %s17 = sadd.s32 1, %s13
  $region7: #{tpu_custom_call.1} parent=0 // loop_footer_branch
    %12 = sbr.rel target = $region3
  $region8: #{tpu_custom_call.1} parent=0 // loop_exit
    _

</llo_original>
